<compile_context>
chip_gen: v5e
topology: v5e:2x2
jax: 0.10.0
libtpu: 0.0.40
codegen_flags: <defaults>
</compile_context>

<pallas_src>
import functools

import jax
import jax.numpy as jnp
from jax.experimental import pallas as pl
from jax.experimental.pallas import tpu as pltpu


# ----------------------------------------------------------------------------
# Pallas kernel: fused (Wt @ patchesT) + bias + optional SiLU, lane-dense output
# ----------------------------------------------------------------------------
def _conv_mm_t_kernel(wt_ref, pt_ref, b_ref, o_ref, *, act):
    # wt: (N, K) bf16, pt: (K, tm) bf16, b: (N, 1) f32, o: (N, tm) f32
    acc = jnp.dot(wt_ref[...], pt_ref[...], preferred_element_type=jnp.float32)
    acc = acc + b_ref[...]
    if act:
        # SiLU: exp on EUP, approx reciprocal on EUP -> no VPU divide in epilogue
        acc = acc * pl.reciprocal(1.0 + jnp.exp(-acc), approx=True)
    o_ref[...] = acc.astype(o_ref.dtype)


def _matmul_t_bias_act(wt, pt, bvec, act):
    """wt: [N, K], pt: [K, M], bvec: [N] -> [N, M] f32 (transposed conv matmul)."""
    N, K = wt.shape
    M = pt.shape[1]
    # Large M tiles; >= 2 tiles for the bigger convs so both v7x TensorCores work.
    if M >= 256:
        tm = min(1024, M // 2)
    else:
        tm = M
    if M % tm != 0:  # defensive; never triggers for the power-of-two shapes here
        tm = M

    wt = wt.astype(jnp.bfloat16)
    pt = pt.astype(jnp.bfloat16)
    b2 = bvec.reshape(N, 1).astype(jnp.float32)

    return pl.pallas_call(
        functools.partial(_conv_mm_t_kernel, act=act),
        out_shape=jax.ShapeDtypeStruct((N, M), jnp.float32),
        grid=(M // tm,),
        in_specs=[
            pl.BlockSpec((N, K), lambda i: (0, 0)),   # weights, resident
            pl.BlockSpec((K, tm), lambda i: (0, i)),  # patch columns, lane-major M
            pl.BlockSpec((N, 1), lambda i: (0, 0)),   # bias
        ],
        out_specs=pl.BlockSpec((N, tm), lambda i: (0, i)),
        compiler_params=pltpu.CompilerParams(dimension_semantics=("parallel",)),
    )(wt, pt, b2)


# ----------------------------------------------------------------------------
# Conv wrapper (glue: im2col / reshapes in plain JAX, matmul in Pallas)
# Feature maps are carried channel-major: (C, B, H, W).
# ----------------------------------------------------------------------------
def _as_wt(w):
    """(kh, kw, cin, cout) -> (cout, kh*kw*cin) matching tap-major patch order."""
    kh, kw, cin, cout = w.shape
    return jnp.transpose(w, (3, 0, 1, 2)).reshape(cout, kh * kw * cin)


def conv2d_cm(x, params, *, stride=1, act=True):
    """x: (Cin, B, H, W). params: {'w': (kh, kw, cin, cout), 'b': (cout,)}. 'same' pad."""
    w, b = params["w"], params["b"]
    kh, kw, cin, cout = w.shape
    pad = kh // 2
    C, B, H, W = x.shape
    Ho = (H + 2 * pad - kh) // stride + 1
    Wo = (W + 2 * pad - kw) // stride + 1

    if kh == 1 and kw == 1 and stride == 1:
        pt = x.reshape(C, B * H * W)  # 1x1 conv: no im2col, plain reshape
    else:
        xp = jnp.pad(x, ((0, 0), (0, 0), (pad, pad), (pad, pad)))
        taps = []
        for i in range(kh):
            for j in range(kw):
                taps.append(
                    xp[:, :, i:i + stride * Ho:stride, j:j + stride * Wo:stride]
                    .reshape(C, B * Ho * Wo))
        # TODO(synk): the transposed patch matrix is still materialized in HBM
        # (kh*kw-fold read amplification); fusing the tap reduction in-kernel needs
        # strided shifted-window DMA (pl.ANY + make_async_copy), left out for robustness.
        pt = jnp.concatenate(taps, axis=0)  # (kh*kw*Cin, M), tap-major rows

    out = _matmul_t_bias_act(_as_wt(w), pt, b, act)  # (cout, M) f32
    return out.reshape(cout, B, Ho, Wo)


def upsample2x_cm(x):  # nearest-neighbour, channel-major (C, B, H, W)
    return jnp.repeat(jnp.repeat(x, 2, axis=2), 2, axis=3)


# ----------------------------------------------------------------------------
# Deterministic parameter construction (synthetic — no checkpoint load)
# ----------------------------------------------------------------------------
NC = 4          # num classes (kept small)
REG_MAX = 4     # DFL bins (kept small);  no = NC + 4*REG_MAX
NM = 8          # number of mask prototypes

# backbone config: (k, cin, cout, stride)  — stand-ins for Conv / C3k2 / A2C2f
BACKBONE_CFG = [
    (3, 3, 8, 2),    # 0  Conv   P1/2
    (3, 8, 16, 2),   # 1  Conv   P2/4
    (3, 16, 16, 1),  # 2  C3k2
    (3, 16, 32, 2),  # 3  Conv   P3/8
    (3, 32, 32, 1),  # 4  C3k2          -> intermediates[4]
    (3, 32, 32, 2),  # 5  Conv   P4/16
    (3, 32, 32, 1),  # 6  A2C2f         -> intermediates[6]
    (3, 32, 64, 2),  # 7  Conv   P5/32
    (3, 64, 64, 1),  # 8  A2C2f         -> intermediates[8]
]


def _make_conv(key, kh, kw, cin, cout):
    kw_key, kb_key = jax.random.split(key)
    scale = 1.0 / float(kh * kw * cin) ** 0.5
    return {
        "w": jax.random.normal(kw_key, (kh, kw, cin, cout), jnp.float32) * scale,
        "b": jax.random.normal(kb_key, (cout,), jnp.float32) * 0.01,
    }


def init_params(key):
    keys = iter(jax.random.split(key, 64))
    p = {}
    p["backbone"] = [_make_conv(next(keys), k, k, ci, co) for (k, ci, co, _s) in BACKBONE_CFG]
    # seg head "neck" layers (indices follow self.seg_head_layers[...])
    p["seg2"] = _make_conv(next(keys), 3, 3, 64 + 32, 32)   # after Upsample+Concat(int[6])
    p["seg5"] = _make_conv(next(keys), 3, 3, 32 + 32, 16)   # after Upsample+Concat(int[4])
    p["seg6"] = _make_conv(next(keys), 3, 3, 16, 16)        # downsample Conv s2
    p["seg8"] = _make_conv(next(keys), 3, 3, 16 + 32, 32)   # after Concat(head_outs[0])
    p["seg9"] = _make_conv(next(keys), 3, 3, 32, 32)        # downsample Conv s2
    p["seg11"] = _make_conv(next(keys), 3, 3, 32 + 64, 64)  # after Concat(int[8])
    # Detect head (det_head_layers): per-scale box / cls branches (1x1, no act)
    scale_ch = [16, 32, 64]  # channels of head_outs[1], [2], [3]
    p["det_cv2"] = [_make_conv(next(keys), 1, 1, c, 4 * REG_MAX) for c in scale_ch]
    p["det_cv3"] = [_make_conv(next(keys), 1, 1, c, NC) for c in scale_ch]
    # Segment head (seg_head_layers[12]): mask-coefficient branches + Proto
    p["seg_cv4"] = [_make_conv(next(keys), 1, 1, c, NM) for c in scale_ch]
    p["proto1"] = _make_conv(next(keys), 3, 3, 16, 16)
    p["proto2"] = _make_conv(next(keys), 3, 3, 16, 16)
    p["proto3"] = _make_conv(next(keys), 1, 1, 16, NM)
    return p


# ----------------------------------------------------------------------------
# Forward pass (mirrors MultiTaskYOLO.forward wiring exactly)
# ----------------------------------------------------------------------------
def multitask_yolo_forward(params, x_nchw):
    # NCHW -> channel-major (C, B, H, W); channels of the matmul output land here for free.
    x = jnp.transpose(x_nchw, (1, 0, 2, 3)).astype(jnp.float32)

    intermediates = []
    out = x
    for cfg, layer_p in zip(BACKBONE_CFG, params["backbone"]):
        out = conv2d_cm(out, layer_p, stride=cfg[3], act=True)
        intermediates.append(out)

    head_outs = []
    x = upsample2x_cm(intermediates[8])                       # seg_head_layers[0] Upsample
    x = jnp.concatenate([x, intermediates[6]], axis=0)        # seg_head_layers[1] Concat
    x = conv2d_cm(x, params["seg2"], act=True)                # seg_head_layers[2]
    head_outs.append(x)                                       # P4-fused
    x = upsample2x_cm(x)                                      # seg_head_layers[3]
    x = jnp.concatenate([x, intermediates[4]], axis=0)        # seg_head_layers[4]
    x = conv2d_cm(x, params["seg5"], act=True)                # seg_head_layers[5]
    head_outs.append(x)                                       # P3
    x = conv2d_cm(x, params["seg6"], stride=2, act=True)      # seg_head_layers[6]
    x = jnp.concatenate([x, head_outs[0]], axis=0)            # seg_head_layers[7]
    x = conv2d_cm(x, params["seg8"], act=True)                # seg_head_layers[8]
    head_outs.append(x)                                       # P4
    x = conv2d_cm(x, params["seg9"], stride=2, act=True)      # seg_head_layers[9]
    x = jnp.concatenate([x, intermediates[8]], axis=0)        # seg_head_layers[10]
    x = conv2d_cm(x, params["seg11"], act=True)               # seg_head_layers[11]
    head_outs.append(x)                                       # P5

    feats = [head_outs[1], head_outs[2], head_outs[3]]        # P3, P4, P5

    # Detect + mask-coefficient heads: the three per-scale 1x1 convs are FUSED
    # into one matmul per scale (weights concatenated along Cout = 16+4+8 = 28),
    # reading each feature map once.
    # TODO(synk): DFL + anchor decode of ultralytics Detect inference path omitted.
    n_det = 4 * REG_MAX + NC
    det, mc = [], []
    for i, f in enumerate(feats):
        w_cat = jnp.concatenate([
            _as_wt(params["det_cv2"][i]["w"]),
            _as_wt(params["det_cv3"][i]["w"]),
            _as_wt(params["seg_cv4"][i]["w"]),
        ], axis=0)                                            # (28, C)
        b_cat = jnp.concatenate([
            params["det_cv2"][i]["b"],
            params["det_cv3"][i]["b"],
            params["seg_cv4"][i]["b"],
        ])
        C, B, H, W = f.shape
        head = _matmul_t_bias_act(w_cat, f.reshape(C, B * H * W), b_cat, act=False)
        head = head.reshape(-1, B, H, W)                      # channel-major (28, B, H, W)
        det.append(jnp.transpose(head[:n_det], (1, 0, 2, 3)))  # NCHW [B, 4*reg_max+nc, H, W]
        mc.append(jnp.transpose(head[n_det:], (1, 0, 2, 3)))   # NCHW [B, nm, H, W]

    # Prototype masks from P3
    pr = conv2d_cm(feats[0], params["proto1"], act=True)
    pr = upsample2x_cm(pr)
    pr = conv2d_cm(pr, params["proto2"], act=True)
    pr = conv2d_cm(pr, params["proto3"], act=False)
    proto = jnp.transpose(pr, (1, 0, 2, 3))                   # NCHW
    seg = {"coeffs": mc, "proto": proto}

    return {"seg": seg, "det": det}


# ----------------------------------------------------------------------------
# Main
# ----------------------------------------------------------------------------
if __name__ == "__main__":
    key = jax.random.PRNGKey(0)
    pkey, xkey = jax.random.split(key)
    params = init_params(pkey)

    # input small enough to stay cheap but large enough for the /32 P5 scale
    x = jax.random.normal(xkey, (2, 3, 64, 64), jnp.float32)  # NCHW, like PyTorch

    fwd = jax.jit(multitask_yolo_forward)
    out = fwd(params, x)
    out = jax.block_until_ready(out)

    # sanity: three det scales, three coeff scales, one proto map
    assert len(out["det"]) == 3 and len(out["seg"]["coeffs"]) == 3
    assert out["det"][0].shape == (2, 4 * REG_MAX + NC, 8, 8)
    assert out["det"][2].shape == (2, 4 * REG_MAX + NC, 2, 2)
    assert out["seg"]["proto"].shape == (2, NM, 16, 16)
    assert bool(jnp.all(jnp.isfinite(out["det"][0])))
    assert bool(jnp.all(jnp.isfinite(out["seg"]["proto"])))

    print("KERNEL_OK")
</pallas_src>

<mosaic_0001>
module attributes {stable_mosaic.version = 11 : i64} {
  func.func @_conv_mm_t_kernel(%arg0: i32, %arg1: memref<8x27xbf16, #tpu.memory_space<vmem>>, %arg2: memref<27x1024xbf16, #tpu.memory_space<vmem>>, %arg3: memref<8x1xf32, #tpu.memory_space<vmem>>, %arg4: memref<8x1024xf32, #tpu.memory_space<vmem>>) attributes {dimension_semantics = [#tpu.dimension_semantics<parallel>], iteration_bounds = array<i64: 2>, scalar_prefetch = 0 : i64, scratch_operands = 0 : i64, tpu.core_type = #tpu.core_type<tc>, window_params = [{pipeline_mode = #tpu.pipeline_mode<synchronous>, transform_indices = @transform_0, window_bounds = array<i64: 8, 27>}, {transform_indices = @transform_1, window_bounds = array<i64: 27, 1024>}, {pipeline_mode = #tpu.pipeline_mode<synchronous>, transform_indices = @transform_2, window_bounds = array<i64: 8, 1>}, {transform_indices = @transform_3, window_bounds = array<i64: 8, 1024>}]} {
    %c0 = arith.constant 0 : index
    %c0_0 = arith.constant 0 : index
    %0 = vector.load %arg1[%c0, %c0_0] : memref<8x27xbf16, #tpu.memory_space<vmem>>, vector<8x27xbf16>
    %c0_1 = arith.constant 0 : index
    %c0_2 = arith.constant 0 : index
    %1 = vector.load %arg2[%c0_1, %c0_2] : memref<27x1024xbf16, #tpu.memory_space<vmem>>, vector<27x1024xbf16>
    %cst = arith.constant dense<0.000000e+00> : vector<8x1024xf32>
    %2 = tpu.matmul %0, %1, %cst {dimension_numbers = #tpu.dot_dimension_numbers<[1], [0], [0], [1], [0, 0, 1, 1], [], []>} : vector<8x27xbf16>, vector<27x1024xbf16>, vector<8x1024xf32> -> vector<8x1024xf32>
    %c0_3 = arith.constant 0 : index
    %c0_4 = arith.constant 0 : index
    %3 = vector.load %arg3[%c0_3, %c0_4] : memref<8x1xf32, #tpu.memory_space<vmem>>, vector<8x1xf32>
    %4 = vector.broadcast %3 : vector<8x1xf32> to vector<8x1024xf32>
    %5 = arith.addf %2, %4 : vector<8x1024xf32>
    %cst_5 = arith.constant 0.000000e+00 : f32
    %6 = vector.broadcast %cst_5 : f32 to vector<8x1024xf32>
    %7 = arith.subf %6, %5 : vector<8x1024xf32>
    %8 = math.exp %7 : vector<8x1024xf32>
    %cst_6 = arith.constant 1.000000e+00 : f32
    %9 = vector.broadcast %cst_6 : f32 to vector<8x1024xf32>
    %10 = arith.addf %9, %8 : vector<8x1024xf32>
    %11 = tpu.reciprocal %10 {approx = true} : vector<8x1024xf32> -> vector<8x1024xf32>
    %12 = arith.mulf %5, %11 : vector<8x1024xf32>
    %c0_7 = arith.constant 0 : index
    %c0_8 = arith.constant 0 : index
    %13 = vector.load %arg4[%c0_7, %c0_8] : memref<8x1024xf32, #tpu.memory_space<vmem>>, vector<8x1024xf32>
    tpu.vector_store %arg4[%c0_7, %c0_8], %12 {strides = array<i32>} : memref<8x1024xf32, #tpu.memory_space<vmem>>, vector<8x1024xf32>,
    return
  }
  func.func @transform_0(%arg0: i32) -> (i32, i32) {
    %c0_i32 = arith.constant 0 : i32
    %c0_i32_0 = arith.constant 0 : i32
    %c0_i32_1 = arith.constant 0 : i32
    return %c0_i32, %c0_i32_0 : i32, i32
  }
  func.func @transform_1(%arg0: i32) -> (i32, i32) {
    %c0_i32 = arith.constant 0 : i32
    %c0_i32_0 = arith.constant 0 : i32
    return %c0_i32, %arg0 : i32, i32
  }
  func.func @transform_2(%arg0: i32) -> (i32, i32) {
    %c0_i32 = arith.constant 0 : i32
    %c0_i32_0 = arith.constant 0 : i32
    %c0_i32_1 = arith.constant 0 : i32
    return %c0_i32, %c0_i32_0 : i32, i32
  }
  func.func @transform_3(%arg0: i32) -> (i32, i32) {
    %c0_i32 = arith.constant 0 : i32
    %c0_i32_0 = arith.constant 0 : i32
    return %c0_i32, %arg0 : i32, i32
  }
}

module attributes {stable_mosaic.version = 11 : i64} {
  func.func @_conv_mm_t_kernel(%arg0: i32, %arg1: memref<16x72xbf16, #tpu.memory_space<vmem>>, %arg2: memref<72x256xbf16, #tpu.memory_space<vmem>>, %arg3: memref<16x1xf32, #tpu.memory_space<vmem>>, %arg4: memref<16x256xf32, #tpu.memory_space<vmem>>) attributes {dimension_semantics = [#tpu.dimension_semantics<parallel>], iteration_bounds = array<i64: 2>, scalar_prefetch = 0 : i64, scratch_operands = 0 : i64, tpu.core_type = #tpu.core_type<tc>, window_params = [{pipeline_mode = #tpu.pipeline_mode<synchronous>, transform_indices = @transform_0, window_bounds = array<i64: 16, 72>}, {transform_indices = @transform_1, window_bounds = array<i64: 72, 256>}, {pipeline_mode = #tpu.pipeline_mode<synchronous>, transform_indices = @transform_2, window_bounds = array<i64: 16, 1>}, {transform_indices = @transform_3, window_bounds = array<i64: 16, 256>}]} {
    %c0 = arith.constant 0 : index
    %c0_0 = arith.constant 0 : index
    %0 = vector.load %arg1[%c0, %c0_0] : memref<16x72xbf16, #tpu.memory_space<vmem>>, vector<16x72xbf16>
    %c0_1 = arith.constant 0 : index
    %c0_2 = arith.constant 0 : index
    %1 = vector.load %arg2[%c0_1, %c0_2] : memref<72x256xbf16, #tpu.memory_space<vmem>>, vector<72x256xbf16>
    %cst = arith.constant dense<0.000000e+00> : vector<16x256xf32>
    %2 = tpu.matmul %0, %1, %cst {dimension_numbers = #tpu.dot_dimension_numbers<[1], [0], [0], [1], [0, 0, 1, 1], [], []>} : vector<16x72xbf16>, vector<72x256xbf16>, vector<16x256xf32> -> vector<16x256xf32>
    %c0_3 = arith.constant 0 : index
    %c0_4 = arith.constant 0 : index
    %3 = vector.load %arg3[%c0_3, %c0_4] : memref<16x1xf32, #tpu.memory_space<vmem>>, vector<16x1xf32>
    %4 = vector.broadcast %3 : vector<16x1xf32> to vector<16x256xf32>
    %5 = arith.addf %2, %4 : vector<16x256xf32>
    %cst_5 = arith.constant 0.000000e+00 : f32
    %6 = vector.broadcast %cst_5 : f32 to vector<16x256xf32>
    %7 = arith.subf %6, %5 : vector<16x256xf32>
    %8 = math.exp %7 : vector<16x256xf32>
    %cst_6 = arith.constant 1.000000e+00 : f32
    %9 = vector.broadcast %cst_6 : f32 to vector<16x256xf32>
    %10 = arith.addf %9, %8 : vector<16x256xf32>
    %11 = tpu.reciprocal %10 {approx = true} : vector<16x256xf32> -> vector<16x256xf32>
    %12 = arith.mulf %5, %11 : vector<16x256xf32>
    %c0_7 = arith.constant 0 : index
    %c0_8 = arith.constant 0 : index
    %13 = vector.load %arg4[%c0_7, %c0_8] : memref<16x256xf32, #tpu.memory_space<vmem>>, vector<16x256xf32>
    tpu.vector_store %arg4[%c0_7, %c0_8], %12 {strides = array<i32>} : memref<16x256xf32, #tpu.memory_space<vmem>>, vector<16x256xf32>,
    return
  }
  func.func @transform_0(%arg0: i32) -> (i32, i32) {
    %c0_i32 = arith.constant 0 : i32
    %c0_i32_0 = arith.constant 0 : i32
    %c0_i32_1 = arith.constant 0 : i32
    return %c0_i32, %c0_i32_0 : i32, i32
  }
  func.func @transform_1(%arg0: i32) -> (i32, i32) {
    %c0_i32 = arith.constant 0 : i32
    %c0_i32_0 = arith.constant 0 : i32
    return %c0_i32, %arg0 : i32, i32
  }
  func.func @transform_2(%arg0: i32) -> (i32, i32) {
    %c0_i32 = arith.constant 0 : i32
    %c0_i32_0 = arith.constant 0 : i32
    %c0_i32_1 = arith.constant 0 : i32
    return %c0_i32, %c0_i32_0 : i32, i32
  }
  func.func @transform_3(%arg0: i32) -> (i32, i32) {
    %c0_i32 = arith.constant 0 : i32
    %c0_i32_0 = arith.constant 0 : i32
    return %c0_i32, %arg0 : i32, i32
  }
}

module attributes {stable_mosaic.version = 11 : i64} {
  func.func @_conv_mm_t_kernel(%arg0: i32, %arg1: memref<16x144xbf16, #tpu.memory_space<vmem>>, %arg2: memref<144x256xbf16, #tpu.memory_space<vmem>>, %arg3: memref<16x1xf32, #tpu.memory_space<vmem>>, %arg4: memref<16x256xf32, #tpu.memory_space<vmem>>) attributes {dimension_semantics = [#tpu.dimension_semantics<parallel>], iteration_bounds = array<i64: 2>, scalar_prefetch = 0 : i64, scratch_operands = 0 : i64, tpu.core_type = #tpu.core_type<tc>, window_params = [{pipeline_mode = #tpu.pipeline_mode<synchronous>, transform_indices = @transform_0, window_bounds = array<i64: 16, 144>}, {transform_indices = @transform_1, window_bounds = array<i64: 144, 256>}, {pipeline_mode = #tpu.pipeline_mode<synchronous>, transform_indices = @transform_2, window_bounds = array<i64: 16, 1>}, {transform_indices = @transform_3, window_bounds = array<i64: 16, 256>}]} {
    %c0 = arith.constant 0 : index
    %c0_0 = arith.constant 0 : index
    %0 = vector.load %arg1[%c0, %c0_0] : memref<16x144xbf16, #tpu.memory_space<vmem>>, vector<16x144xbf16>
    %c0_1 = arith.constant 0 : index
    %c0_2 = arith.constant 0 : index
    %1 = vector.load %arg2[%c0_1, %c0_2] : memref<144x256xbf16, #tpu.memory_space<vmem>>, vector<144x256xbf16>
    %cst = arith.constant dense<0.000000e+00> : vector<16x256xf32>
    %2 = tpu.matmul %0, %1, %cst {dimension_numbers = #tpu.dot_dimension_numbers<[1], [0], [0], [1], [0, 0, 1, 1], [], []>} : vector<16x144xbf16>, vector<144x256xbf16>, vector<16x256xf32> -> vector<16x256xf32>
    %c0_3 = arith.constant 0 : index
    %c0_4 = arith.constant 0 : index
    %3 = vector.load %arg3[%c0_3, %c0_4] : memref<16x1xf32, #tpu.memory_space<vmem>>, vector<16x1xf32>
    %4 = vector.broadcast %3 : vector<16x1xf32> to vector<16x256xf32>
    %5 = arith.addf %2, %4 : vector<16x256xf32>
    %cst_5 = arith.constant 0.000000e+00 : f32
    %6 = vector.broadcast %cst_5 : f32 to vector<16x256xf32>
    %7 = arith.subf %6, %5 : vector<16x256xf32>
    %8 = math.exp %7 : vector<16x256xf32>
    %cst_6 = arith.constant 1.000000e+00 : f32
    %9 = vector.broadcast %cst_6 : f32 to vector<16x256xf32>
    %10 = arith.addf %9, %8 : vector<16x256xf32>
    %11 = tpu.reciprocal %10 {approx = true} : vector<16x256xf32> -> vector<16x256xf32>
    %12 = arith.mulf %5, %11 : vector<16x256xf32>
    %c0_7 = arith.constant 0 : index
    %c0_8 = arith.constant 0 : index
    %13 = vector.load %arg4[%c0_7, %c0_8] : memref<16x256xf32, #tpu.memory_space<vmem>>, vector<16x256xf32>
    tpu.vector_store %arg4[%c0_7, %c0_8], %12 {strides = array<i32>} : memref<16x256xf32, #tpu.memory_space<vmem>>, vector<16x256xf32>,
    return
  }
  func.func @transform_0(%arg0: i32) -> (i32, i32) {
    %c0_i32 = arith.constant 0 : i32
    %c0_i32_0 = arith.constant 0 : i32
    %c0_i32_1 = arith.constant 0 : i32
    return %c0_i32, %c0_i32_0 : i32, i32
  }
  func.func @transform_1(%arg0: i32) -> (i32, i32) {
    %c0_i32 = arith.constant 0 : i32
    %c0_i32_0 = arith.constant 0 : i32
    return %c0_i32, %arg0 : i32, i32
  }
  func.func @transform_2(%arg0: i32) -> (i32, i32) {
    %c0_i32 = arith.constant 0 : i32
    %c0_i32_0 = arith.constant 0 : i32
    %c0_i32_1 = arith.constant 0 : i32
    return %c0_i32, %c0_i32_0 : i32, i32
  }
  func.func @transform_3(%arg0: i32) -> (i32, i32) {
    %c0_i32 = arith.constant 0 : i32
    %c0_i32_0 = arith.constant 0 : i32
    return %c0_i32, %arg0 : i32, i32
  }
}

module attributes {stable_mosaic.version = 11 : i64} {
  func.func @_conv_mm_t_kernel(%arg0: i32, %arg1: memref<32x144xbf16, #tpu.memory_space<vmem>>, %arg2: memref<144x128xbf16, #tpu.memory_space<vmem>>, %arg3: memref<32x1xf32, #tpu.memory_space<vmem>>, %arg4: memref<32x128xf32, #tpu.memory_space<vmem>>) attributes {dimension_semantics = [#tpu.dimension_semantics<parallel>], iteration_bounds = array<i64: 1>, scalar_prefetch = 0 : i64, scratch_operands = 0 : i64, tpu.core_type = #tpu.core_type<tc>, window_params = [{pipeline_mode = #tpu.pipeline_mode<synchronous>, transform_indices = @transform_0, window_bounds = array<i64: 32, 144>}, {transform_indices = @transform_1, window_bounds = array<i64: 144, 128>}, {pipeline_mode = #tpu.pipeline_mode<synchronous>, transform_indices = @transform_2, window_bounds = array<i64: 32, 1>}, {transform_indices = @transform_3, window_bounds = array<i64: 32, 128>}]} {
    %c0 = arith.constant 0 : index
    %c0_0 = arith.constant 0 : index
    %0 = vector.load %arg1[%c0, %c0_0] : memref<32x144xbf16, #tpu.memory_space<vmem>>, vector<32x144xbf16>
    %c0_1 = arith.constant 0 : index
    %c0_2 = arith.constant 0 : index
    %1 = vector.load %arg2[%c0_1, %c0_2] : memref<144x128xbf16, #tpu.memory_space<vmem>>, vector<144x128xbf16>
    %cst = arith.constant dense<0.000000e+00> : vector<32x128xf32>
    %2 = tpu.matmul %0, %1, %cst {dimension_numbers = #tpu.dot_dimension_numbers<[1], [0], [0], [1], [0, 0, 1, 1], [], []>} : vector<32x144xbf16>, vector<144x128xbf16>, vector<32x128xf32> -> vector<32x128xf32>
    %c0_3 = arith.constant 0 : index
    %c0_4 = arith.constant 0 : index
    %3 = vector.load %arg3[%c0_3, %c0_4] : memref<32x1xf32, #tpu.memory_space<vmem>>, vector<32x1xf32>
    %4 = vector.broadcast %3 : vector<32x1xf32> to vector<32x128xf32>
    %5 = arith.addf %2, %4 : vector<32x128xf32>
    %cst_5 = arith.constant 0.000000e+00 : f32
    %6 = vector.broadcast %cst_5 : f32 to vector<32x128xf32>
    %7 = arith.subf %6, %5 : vector<32x128xf32>
    %8 = math.exp %7 : vector<32x128xf32>
    %cst_6 = arith.constant 1.000000e+00 : f32
    %9 = vector.broadcast %cst_6 : f32 to vector<32x128xf32>
    %10 = arith.addf %9, %8 : vector<32x128xf32>
    %11 = tpu.reciprocal %10 {approx = true} : vector<32x128xf32> -> vector<32x128xf32>
    %12 = arith.mulf %5, %11 : vector<32x128xf32>
    %c0_7 = arith.constant 0 : index
    %c0_8 = arith.constant 0 : index
    %13 = vector.load %arg4[%c0_7, %c0_8] : memref<32x128xf32, #tpu.memory_space<vmem>>, vector<32x128xf32>
    tpu.vector_store %arg4[%c0_7, %c0_8], %12 {strides = array<i32>} : memref<32x128xf32, #tpu.memory_space<vmem>>, vector<32x128xf32>,
    return
  }
  func.func @transform_0(%arg0: i32) -> (i32, i32) {
    %c0_i32 = arith.constant 0 : i32
    %c0_i32_0 = arith.constant 0 : i32
    %c0_i32_1 = arith.constant 0 : i32
    return %c0_i32, %c0_i32_0 : i32, i32
  }
  func.func @transform_1(%arg0: i32) -> (i32, i32) {
    %c0_i32 = arith.constant 0 : i32
    %c0_i32_0 = arith.constant 0 : i32
    return %c0_i32, %arg0 : i32, i32
  }
  func.func @transform_2(%arg0: i32) -> (i32, i32) {
    %c0_i32 = arith.constant 0 : i32
    %c0_i32_0 = arith.constant 0 : i32
    %c0_i32_1 = arith.constant 0 : i32
    return %c0_i32, %c0_i32_0 : i32, i32
  }
  func.func @transform_3(%arg0: i32) -> (i32, i32) {
    %c0_i32 = arith.constant 0 : i32
    %c0_i32_0 = arith.constant 0 : i32
    return %c0_i32, %arg0 : i32, i32
  }
}

module attributes {stable_mosaic.version = 11 : i64} {
  func.func @_conv_mm_t_kernel(%arg0: i32, %arg1: memref<32x288xbf16, #tpu.memory_space<vmem>>, %arg2: memref<288x128xbf16, #tpu.memory_space<vmem>>, %arg3: memref<32x1xf32, #tpu.memory_space<vmem>>, %arg4: memref<32x128xf32, #tpu.memory_space<vmem>>) attributes {dimension_semantics = [#tpu.dimension_semantics<parallel>], iteration_bounds = array<i64: 1>, scalar_prefetch = 0 : i64, scratch_operands = 0 : i64, tpu.core_type = #tpu.core_type<tc>, window_params = [{pipeline_mode = #tpu.pipeline_mode<synchronous>, transform_indices = @transform_0, window_bounds = array<i64: 32, 288>}, {transform_indices = @transform_1, window_bounds = array<i64: 288, 128>}, {pipeline_mode = #tpu.pipeline_mode<synchronous>, transform_indices = @transform_2, window_bounds = array<i64: 32, 1>}, {transform_indices = @transform_3, window_bounds = array<i64: 32, 128>}]} {
    %c0 = arith.constant 0 : index
    %c0_0 = arith.constant 0 : index
    %0 = vector.load %arg1[%c0, %c0_0] : memref<32x288xbf16, #tpu.memory_space<vmem>>, vector<32x288xbf16>
    %c0_1 = arith.constant 0 : index
    %c0_2 = arith.constant 0 : index
    %1 = vector.load %arg2[%c0_1, %c0_2] : memref<288x128xbf16, #tpu.memory_space<vmem>>, vector<288x128xbf16>
    %cst = arith.constant dense<0.000000e+00> : vector<32x128xf32>
    %2 = tpu.matmul %0, %1, %cst {dimension_numbers = #tpu.dot_dimension_numbers<[1], [0], [0], [1], [0, 0, 1, 1], [], []>} : vector<32x288xbf16>, vector<288x128xbf16>, vector<32x128xf32> -> vector<32x128xf32>
    %c0_3 = arith.constant 0 : index
    %c0_4 = arith.constant 0 : index
    %3 = vector.load %arg3[%c0_3, %c0_4] : memref<32x1xf32, #tpu.memory_space<vmem>>, vector<32x1xf32>
    %4 = vector.broadcast %3 : vector<32x1xf32> to vector<32x128xf32>
    %5 = arith.addf %2, %4 : vector<32x128xf32>
    %cst_5 = arith.constant 0.000000e+00 : f32
    %6 = vector.broadcast %cst_5 : f32 to vector<32x128xf32>
    %7 = arith.subf %6, %5 : vector<32x128xf32>
    %8 = math.exp %7 : vector<32x128xf32>
    %cst_6 = arith.constant 1.000000e+00 : f32
    %9 = vector.broadcast %cst_6 : f32 to vector<32x128xf32>
    %10 = arith.addf %9, %8 : vector<32x128xf32>
    %11 = tpu.reciprocal %10 {approx = true} : vector<32x128xf32> -> vector<32x128xf32>
    %12 = arith.mulf %5, %11 : vector<32x128xf32>
    %c0_7 = arith.constant 0 : index
    %c0_8 = arith.constant 0 : index
    %13 = vector.load %arg4[%c0_7, %c0_8] : memref<32x128xf32, #tpu.memory_space<vmem>>, vector<32x128xf32>
    tpu.vector_store %arg4[%c0_7, %c0_8], %12 {strides = array<i32>} : memref<32x128xf32, #tpu.memory_space<vmem>>, vector<32x128xf32>,
    return
  }
  func.func @transform_0(%arg0: i32) -> (i32, i32) {
    %c0_i32 = arith.constant 0 : i32
    %c0_i32_0 = arith.constant 0 : i32
    %c0_i32_1 = arith.constant 0 : i32
    return %c0_i32, %c0_i32_0 : i32, i32
  }
  func.func @transform_1(%arg0: i32) -> (i32, i32) {
    %c0_i32 = arith.constant 0 : i32
    %c0_i32_0 = arith.constant 0 : i32
    return %c0_i32, %arg0 : i32, i32
  }
  func.func @transform_2(%arg0: i32) -> (i32, i32) {
    %c0_i32 = arith.constant 0 : i32
    %c0_i32_0 = arith.constant 0 : i32
    %c0_i32_1 = arith.constant 0 : i32
    return %c0_i32, %c0_i32_0 : i32, i32
  }
  func.func @transform_3(%arg0: i32) -> (i32, i32) {
    %c0_i32 = arith.constant 0 : i32
    %c0_i32_0 = arith.constant 0 : i32
    return %c0_i32, %arg0 : i32, i32
  }
}

module attributes {stable_mosaic.version = 11 : i64} {
  func.func @_conv_mm_t_kernel(%arg0: i32, %arg1: memref<32x288xbf16, #tpu.memory_space<vmem>>, %arg2: memref<288x32xbf16, #tpu.memory_space<vmem>>, %arg3: memref<32x1xf32, #tpu.memory_space<vmem>>, %arg4: memref<32x32xf32, #tpu.memory_space<vmem>>) attributes {dimension_semantics = [#tpu.dimension_semantics<parallel>], iteration_bounds = array<i64: 1>, scalar_prefetch = 0 : i64, scratch_operands = 0 : i64, tpu.core_type = #tpu.core_type<tc>, window_params = [{pipeline_mode = #tpu.pipeline_mode<synchronous>, transform_indices = @transform_0, window_bounds = array<i64: 32, 288>}, {transform_indices = @transform_1, window_bounds = array<i64: 288, 32>}, {pipeline_mode = #tpu.pipeline_mode<synchronous>, transform_indices = @transform_2, window_bounds = array<i64: 32, 1>}, {transform_indices = @transform_3, window_bounds = array<i64: 32, 32>}]} {
    %c0 = arith.constant 0 : index
    %c0_0 = arith.constant 0 : index
    %0 = vector.load %arg1[%c0, %c0_0] : memref<32x288xbf16, #tpu.memory_space<vmem>>, vector<32x288xbf16>
    %c0_1 = arith.constant 0 : index
    %c0_2 = arith.constant 0 : index
    %1 = vector.load %arg2[%c0_1, %c0_2] : memref<288x32xbf16, #tpu.memory_space<vmem>>, vector<288x32xbf16>
    %cst = arith.constant dense<0.000000e+00> : vector<32x32xf32>
    %2 = tpu.matmul %0, %1, %cst {dimension_numbers = #tpu.dot_dimension_numbers<[1], [0], [0], [1], [0, 0, 1, 1], [], []>} : vector<32x288xbf16>, vector<288x32xbf16>, vector<32x32xf32> -> vector<32x32xf32>
    %c0_3 = arith.constant 0 : index
    %c0_4 = arith.constant 0 : index
    %3 = vector.load %arg3[%c0_3, %c0_4] : memref<32x1xf32, #tpu.memory_space<vmem>>, vector<32x1xf32>
    %4 = vector.broadcast %3 : vector<32x1xf32> to vector<32x32xf32>
    %5 = arith.addf %2, %4 : vector<32x32xf32>
    %cst_5 = arith.constant 0.000000e+00 : f32
    %6 = vector.broadcast %cst_5 : f32 to vector<32x32xf32>
    %7 = arith.subf %6, %5 : vector<32x32xf32>
    %8 = math.exp %7 : vector<32x32xf32>
    %cst_6 = arith.constant 1.000000e+00 : f32
    %9 = vector.broadcast %cst_6 : f32 to vector<32x32xf32>
    %10 = arith.addf %9, %8 : vector<32x32xf32>
    %11 = tpu.reciprocal %10 {approx = true} : vector<32x32xf32> -> vector<32x32xf32>
    %12 = arith.mulf %5, %11 : vector<32x32xf32>
    %c0_7 = arith.constant 0 : index
    %c0_8 = arith.constant 0 : index
    %13 = vector.load %arg4[%c0_7, %c0_8] : memref<32x32xf32, #tpu.memory_space<vmem>>, vector<32x32xf32>
    tpu.vector_store %arg4[%c0_7, %c0_8], %12 {strides = array<i32>} : memref<32x32xf32, #tpu.memory_space<vmem>>, vector<32x32xf32>,
    return
  }
  func.func @transform_0(%arg0: i32) -> (i32, i32) {
    %c0_i32 = arith.constant 0 : i32
    %c0_i32_0 = arith.constant 0 : i32
    %c0_i32_1 = arith.constant 0 : i32
    return %c0_i32, %c0_i32_0 : i32, i32
  }
  func.func @transform_1(%arg0: i32) -> (i32, i32) {
    %c0_i32 = arith.constant 0 : i32
    %c0_i32_0 = arith.constant 0 : i32
    return %c0_i32, %arg0 : i32, i32
  }
  func.func @transform_2(%arg0: i32) -> (i32, i32) {
    %c0_i32 = arith.constant 0 : i32
    %c0_i32_0 = arith.constant 0 : i32
    %c0_i32_1 = arith.constant 0 : i32
    return %c0_i32, %c0_i32_0 : i32, i32
  }
  func.func @transform_3(%arg0: i32) -> (i32, i32) {
    %c0_i32 = arith.constant 0 : i32
    %c0_i32_0 = arith.constant 0 : i32
    return %c0_i32, %arg0 : i32, i32
  }
}

module attributes {stable_mosaic.version = 11 : i64} {
  func.func @_conv_mm_t_kernel(%arg0: i32, %arg1: memref<64x288xbf16, #tpu.memory_space<vmem>>, %arg2: memref<288x8xbf16, #tpu.memory_space<vmem>>, %arg3: memref<64x1xf32, #tpu.memory_space<vmem>>, %arg4: memref<64x8xf32, #tpu.memory_space<vmem>>) attributes {dimension_semantics = [#tpu.dimension_semantics<parallel>], iteration_bounds = array<i64: 1>, scalar_prefetch = 0 : i64, scratch_operands = 0 : i64, tpu.core_type = #tpu.core_type<tc>, window_params = [{pipeline_mode = #tpu.pipeline_mode<synchronous>, transform_indices = @transform_0, window_bounds = array<i64: 64, 288>}, {transform_indices = @transform_1, window_bounds = array<i64: 288, 8>}, {pipeline_mode = #tpu.pipeline_mode<synchronous>, transform_indices = @transform_2, window_bounds = array<i64: 64, 1>}, {transform_indices = @transform_3, window_bounds = array<i64: 64, 8>}]} {
    %c0 = arith.constant 0 : index
    %c0_0 = arith.constant 0 : index
    %0 = vector.load %arg1[%c0, %c0_0] : memref<64x288xbf16, #tpu.memory_space<vmem>>, vector<64x288xbf16>
    %c0_1 = arith.constant 0 : index
    %c0_2 = arith.constant 0 : index
    %1 = vector.load %arg2[%c0_1, %c0_2] : memref<288x8xbf16, #tpu.memory_space<vmem>>, vector<288x8xbf16>
    %cst = arith.constant dense<0.000000e+00> : vector<64x8xf32>
    %2 = tpu.matmul %0, %1, %cst {dimension_numbers = #tpu.dot_dimension_numbers<[1], [0], [0], [1], [0, 0, 1, 1], [], []>} : vector<64x288xbf16>, vector<288x8xbf16>, vector<64x8xf32> -> vector<64x8xf32>
    %c0_3 = arith.constant 0 : index
    %c0_4 = arith.constant 0 : index
    %3 = vector.load %arg3[%c0_3, %c0_4] : memref<64x1xf32, #tpu.memory_space<vmem>>, vector<64x1xf32>
    %4 = vector.broadcast %3 : vector<64x1xf32> to vector<64x8xf32>
    %5 = arith.addf %2, %4 : vector<64x8xf32>
    %cst_5 = arith.constant 0.000000e+00 : f32
    %6 = vector.broadcast %cst_5 : f32 to vector<64x8xf32>
    %7 = arith.subf %6, %5 : vector<64x8xf32>
    %8 = math.exp %7 : vector<64x8xf32>
    %cst_6 = arith.constant 1.000000e+00 : f32
    %9 = vector.broadcast %cst_6 : f32 to vector<64x8xf32>
    %10 = arith.addf %9, %8 : vector<64x8xf32>
    %11 = tpu.reciprocal %10 {approx = true} : vector<64x8xf32> -> vector<64x8xf32>
    %12 = arith.mulf %5, %11 : vector<64x8xf32>
    %c0_7 = arith.constant 0 : index
    %c0_8 = arith.constant 0 : index
    %13 = vector.load %arg4[%c0_7, %c0_8] : memref<64x8xf32, #tpu.memory_space<vmem>>, vector<64x8xf32>
    tpu.vector_store %arg4[%c0_7, %c0_8], %12 {strides = array<i32>} : memref<64x8xf32, #tpu.memory_space<vmem>>, vector<64x8xf32>,
    return
  }
  func.func @transform_0(%arg0: i32) -> (i32, i32) {
    %c0_i32 = arith.constant 0 : i32
    %c0_i32_0 = arith.constant 0 : i32
    %c0_i32_1 = arith.constant 0 : i32
    return %c0_i32, %c0_i32_0 : i32, i32
  }
  func.func @transform_1(%arg0: i32) -> (i32, i32) {
    %c0_i32 = arith.constant 0 : i32
    %c0_i32_0 = arith.constant 0 : i32
    return %c0_i32, %arg0 : i32, i32
  }
  func.func @transform_2(%arg0: i32) -> (i32, i32) {
    %c0_i32 = arith.constant 0 : i32
    %c0_i32_0 = arith.constant 0 : i32
    %c0_i32_1 = arith.constant 0 : i32
    return %c0_i32, %c0_i32_0 : i32, i32
  }
  func.func @transform_3(%arg0: i32) -> (i32, i32) {
    %c0_i32 = arith.constant 0 : i32
    %c0_i32_0 = arith.constant 0 : i32
    return %c0_i32, %arg0 : i32, i32
  }
}

module attributes {stable_mosaic.version = 11 : i64} {
  func.func @_conv_mm_t_kernel(%arg0: i32, %arg1: memref<64x576xbf16, #tpu.memory_space<vmem>>, %arg2: memref<576x8xbf16, #tpu.memory_space<vmem>>, %arg3: memref<64x1xf32, #tpu.memory_space<vmem>>, %arg4: memref<64x8xf32, #tpu.memory_space<vmem>>) attributes {dimension_semantics = [#tpu.dimension_semantics<parallel>], iteration_bounds = array<i64: 1>, scalar_prefetch = 0 : i64, scratch_operands = 0 : i64, tpu.core_type = #tpu.core_type<tc>, window_params = [{pipeline_mode = #tpu.pipeline_mode<synchronous>, transform_indices = @transform_0, window_bounds = array<i64: 64, 576>}, {transform_indices = @transform_1, window_bounds = array<i64: 576, 8>}, {pipeline_mode = #tpu.pipeline_mode<synchronous>, transform_indices = @transform_2, window_bounds = array<i64: 64, 1>}, {transform_indices = @transform_3, window_bounds = array<i64: 64, 8>}]} {
    %c0 = arith.constant 0 : index
    %c0_0 = arith.constant 0 : index
    %0 = vector.load %arg1[%c0, %c0_0] : memref<64x576xbf16, #tpu.memory_space<vmem>>, vector<64x576xbf16>
    %c0_1 = arith.constant 0 : index
    %c0_2 = arith.constant 0 : index
    %1 = vector.load %arg2[%c0_1, %c0_2] : memref<576x8xbf16, #tpu.memory_space<vmem>>, vector<576x8xbf16>
    %cst = arith.constant dense<0.000000e+00> : vector<64x8xf32>
    %2 = tpu.matmul %0, %1, %cst {dimension_numbers = #tpu.dot_dimension_numbers<[1], [0], [0], [1], [0, 0, 1, 1], [], []>} : vector<64x576xbf16>, vector<576x8xbf16>, vector<64x8xf32> -> vector<64x8xf32>
    %c0_3 = arith.constant 0 : index
    %c0_4 = arith.constant 0 : index
    %3 = vector.load %arg3[%c0_3, %c0_4] : memref<64x1xf32, #tpu.memory_space<vmem>>, vector<64x1xf32>
    %4 = vector.broadcast %3 : vector<64x1xf32> to vector<64x8xf32>
    %5 = arith.addf %2, %4 : vector<64x8xf32>
    %cst_5 = arith.constant 0.000000e+00 : f32
    %6 = vector.broadcast %cst_5 : f32 to vector<64x8xf32>
    %7 = arith.subf %6, %5 : vector<64x8xf32>
    %8 = math.exp %7 : vector<64x8xf32>
    %cst_6 = arith.constant 1.000000e+00 : f32
    %9 = vector.broadcast %cst_6 : f32 to vector<64x8xf32>
    %10 = arith.addf %9, %8 : vector<64x8xf32>
    %11 = tpu.reciprocal %10 {approx = true} : vector<64x8xf32> -> vector<64x8xf32>
    %12 = arith.mulf %5, %11 : vector<64x8xf32>
    %c0_7 = arith.constant 0 : index
    %c0_8 = arith.constant 0 : index
    %13 = vector.load %arg4[%c0_7, %c0_8] : memref<64x8xf32, #tpu.memory_space<vmem>>, vector<64x8xf32>
    tpu.vector_store %arg4[%c0_7, %c0_8], %12 {strides = array<i32>} : memref<64x8xf32, #tpu.memory_space<vmem>>, vector<64x8xf32>,
    return
  }
  func.func @transform_0(%arg0: i32) -> (i32, i32) {
    %c0_i32 = arith.constant 0 : i32
    %c0_i32_0 = arith.constant 0 : i32
    %c0_i32_1 = arith.constant 0 : i32
    return %c0_i32, %c0_i32_0 : i32, i32
  }
  func.func @transform_1(%arg0: i32) -> (i32, i32) {
    %c0_i32 = arith.constant 0 : i32
    %c0_i32_0 = arith.constant 0 : i32
    return %c0_i32, %arg0 : i32, i32
  }
  func.func @transform_2(%arg0: i32) -> (i32, i32) {
    %c0_i32 = arith.constant 0 : i32
    %c0_i32_0 = arith.constant 0 : i32
    %c0_i32_1 = arith.constant 0 : i32
    return %c0_i32, %c0_i32_0 : i32, i32
  }
  func.func @transform_3(%arg0: i32) -> (i32, i32) {
    %c0_i32 = arith.constant 0 : i32
    %c0_i32_0 = arith.constant 0 : i32
    return %c0_i32, %arg0 : i32, i32
  }
}

module attributes {stable_mosaic.version = 11 : i64} {
  func.func @_conv_mm_t_kernel(%arg0: i32, %arg1: memref<32x864xbf16, #tpu.memory_space<vmem>>, %arg2: memref<864x32xbf16, #tpu.memory_space<vmem>>, %arg3: memref<32x1xf32, #tpu.memory_space<vmem>>, %arg4: memref<32x32xf32, #tpu.memory_space<vmem>>) attributes {dimension_semantics = [#tpu.dimension_semantics<parallel>], iteration_bounds = array<i64: 1>, scalar_prefetch = 0 : i64, scratch_operands = 0 : i64, tpu.core_type = #tpu.core_type<tc>, window_params = [{pipeline_mode = #tpu.pipeline_mode<synchronous>, transform_indices = @transform_0, window_bounds = array<i64: 32, 864>}, {transform_indices = @transform_1, window_bounds = array<i64: 864, 32>}, {pipeline_mode = #tpu.pipeline_mode<synchronous>, transform_indices = @transform_2, window_bounds = array<i64: 32, 1>}, {transform_indices = @transform_3, window_bounds = array<i64: 32, 32>}]} {
    %c0 = arith.constant 0 : index
    %c0_0 = arith.constant 0 : index
    %0 = vector.load %arg1[%c0, %c0_0] : memref<32x864xbf16, #tpu.memory_space<vmem>>, vector<32x864xbf16>
    %c0_1 = arith.constant 0 : index
    %c0_2 = arith.constant 0 : index
    %1 = vector.load %arg2[%c0_1, %c0_2] : memref<864x32xbf16, #tpu.memory_space<vmem>>, vector<864x32xbf16>
    %cst = arith.constant dense<0.000000e+00> : vector<32x32xf32>
    %2 = tpu.matmul %0, %1, %cst {dimension_numbers = #tpu.dot_dimension_numbers<[1], [0], [0], [1], [0, 0, 1, 1], [], []>} : vector<32x864xbf16>, vector<864x32xbf16>, vector<32x32xf32> -> vector<32x32xf32>
    %c0_3 = arith.constant 0 : index
    %c0_4 = arith.constant 0 : index
    %3 = vector.load %arg3[%c0_3, %c0_4] : memref<32x1xf32, #tpu.memory_space<vmem>>, vector<32x1xf32>
    %4 = vector.broadcast %3 : vector<32x1xf32> to vector<32x32xf32>
    %5 = arith.addf %2, %4 : vector<32x32xf32>
    %cst_5 = arith.constant 0.000000e+00 : f32
    %6 = vector.broadcast %cst_5 : f32 to vector<32x32xf32>
    %7 = arith.subf %6, %5 : vector<32x32xf32>
    %8 = math.exp %7 : vector<32x32xf32>
    %cst_6 = arith.constant 1.000000e+00 : f32
    %9 = vector.broadcast %cst_6 : f32 to vector<32x32xf32>
    %10 = arith.addf %9, %8 : vector<32x32xf32>
    %11 = tpu.reciprocal %10 {approx = true} : vector<32x32xf32> -> vector<32x32xf32>
    %12 = arith.mulf %5, %11 : vector<32x32xf32>
    %c0_7 = arith.constant 0 : index
    %c0_8 = arith.constant 0 : index
    %13 = vector.load %arg4[%c0_7, %c0_8] : memref<32x32xf32, #tpu.memory_space<vmem>>, vector<32x32xf32>
    tpu.vector_store %arg4[%c0_7, %c0_8], %12 {strides = array<i32>} : memref<32x32xf32, #tpu.memory_space<vmem>>, vector<32x32xf32>,
    return
  }
  func.func @transform_0(%arg0: i32) -> (i32, i32) {
    %c0_i32 = arith.constant 0 : i32
    %c0_i32_0 = arith.constant 0 : i32
    %c0_i32_1 = arith.constant 0 : i32
    return %c0_i32, %c0_i32_0 : i32, i32
  }
  func.func @transform_1(%arg0: i32) -> (i32, i32) {
    %c0_i32 = arith.constant 0 : i32
    %c0_i32_0 = arith.constant 0 : i32
    return %c0_i32, %arg0 : i32, i32
  }
  func.func @transform_2(%arg0: i32) -> (i32, i32) {
    %c0_i32 = arith.constant 0 : i32
    %c0_i32_0 = arith.constant 0 : i32
    %c0_i32_1 = arith.constant 0 : i32
    return %c0_i32, %c0_i32_0 : i32, i32
  }
  func.func @transform_3(%arg0: i32) -> (i32, i32) {
    %c0_i32 = arith.constant 0 : i32
    %c0_i32_0 = arith.constant 0 : i32
    return %c0_i32, %arg0 : i32, i32
  }
}

module attributes {stable_mosaic.version = 11 : i64} {
  func.func @_conv_mm_t_kernel(%arg0: i32, %arg1: memref<16x576xbf16, #tpu.memory_space<vmem>>, %arg2: memref<576x128xbf16, #tpu.memory_space<vmem>>, %arg3: memref<16x1xf32, #tpu.memory_space<vmem>>, %arg4: memref<16x128xf32, #tpu.memory_space<vmem>>) attributes {dimension_semantics = [#tpu.dimension_semantics<parallel>], iteration_bounds = array<i64: 1>, scalar_prefetch = 0 : i64, scratch_operands = 0 : i64, tpu.core_type = #tpu.core_type<tc>, window_params = [{pipeline_mode = #tpu.pipeline_mode<synchronous>, transform_indices = @transform_0, window_bounds = array<i64: 16, 576>}, {transform_indices = @transform_1, window_bounds = array<i64: 576, 128>}, {pipeline_mode = #tpu.pipeline_mode<synchronous>, transform_indices = @transform_2, window_bounds = array<i64: 16, 1>}, {transform_indices = @transform_3, window_bounds = array<i64: 16, 128>}]} {
    %c0 = arith.constant 0 : index
    %c0_0 = arith.constant 0 : index
    %0 = vector.load %arg1[%c0, %c0_0] : memref<16x576xbf16, #tpu.memory_space<vmem>>, vector<16x576xbf16>
    %c0_1 = arith.constant 0 : index
    %c0_2 = arith.constant 0 : index
    %1 = vector.load %arg2[%c0_1, %c0_2] : memref<576x128xbf16, #tpu.memory_space<vmem>>, vector<576x128xbf16>
    %cst = arith.constant dense<0.000000e+00> : vector<16x128xf32>
    %2 = tpu.matmul %0, %1, %cst {dimension_numbers = #tpu.dot_dimension_numbers<[1], [0], [0], [1], [0, 0, 1, 1], [], []>} : vector<16x576xbf16>, vector<576x128xbf16>, vector<16x128xf32> -> vector<16x128xf32>
    %c0_3 = arith.constant 0 : index
    %c0_4 = arith.constant 0 : index
    %3 = vector.load %arg3[%c0_3, %c0_4] : memref<16x1xf32, #tpu.memory_space<vmem>>, vector<16x1xf32>
    %4 = vector.broadcast %3 : vector<16x1xf32> to vector<16x128xf32>
    %5 = arith.addf %2, %4 : vector<16x128xf32>
    %cst_5 = arith.constant 0.000000e+00 : f32
    %6 = vector.broadcast %cst_5 : f32 to vector<16x128xf32>
    %7 = arith.subf %6, %5 : vector<16x128xf32>
    %8 = math.exp %7 : vector<16x128xf32>
    %cst_6 = arith.constant 1.000000e+00 : f32
    %9 = vector.broadcast %cst_6 : f32 to vector<16x128xf32>
    %10 = arith.addf %9, %8 : vector<16x128xf32>
    %11 = tpu.reciprocal %10 {approx = true} : vector<16x128xf32> -> vector<16x128xf32>
    %12 = arith.mulf %5, %11 : vector<16x128xf32>
    %c0_7 = arith.constant 0 : index
    %c0_8 = arith.constant 0 : index
    %13 = vector.load %arg4[%c0_7, %c0_8] : memref<16x128xf32, #tpu.memory_space<vmem>>, vector<16x128xf32>
    tpu.vector_store %arg4[%c0_7, %c0_8], %12 {strides = array<i32>} : memref<16x128xf32, #tpu.memory_space<vmem>>, vector<16x128xf32>,
    return
  }
  func.func @transform_0(%arg0: i32) -> (i32, i32) {
    %c0_i32 = arith.constant 0 : i32
    %c0_i32_0 = arith.constant 0 : i32
    %c0_i32_1 = arith.constant 0 : i32
    return %c0_i32, %c0_i32_0 : i32, i32
  }
  func.func @transform_1(%arg0: i32) -> (i32, i32) {
    %c0_i32 = arith.constant 0 : i32
    %c0_i32_0 = arith.constant 0 : i32
    return %c0_i32, %arg0 : i32, i32
  }
  func.func @transform_2(%arg0: i32) -> (i32, i32) {
    %c0_i32 = arith.constant 0 : i32
    %c0_i32_0 = arith.constant 0 : i32
    %c0_i32_1 = arith.constant 0 : i32
    return %c0_i32, %c0_i32_0 : i32, i32
  }
  func.func @transform_3(%arg0: i32) -> (i32, i32) {
    %c0_i32 = arith.constant 0 : i32
    %c0_i32_0 = arith.constant 0 : i32
    return %c0_i32, %arg0 : i32, i32
  }
}

module attributes {stable_mosaic.version = 11 : i64} {
  func.func @_conv_mm_t_kernel(%arg0: i32, %arg1: memref<16x144xbf16, #tpu.memory_space<vmem>>, %arg2: memref<144x128xbf16, #tpu.memory_space<vmem>>, %arg3: memref<16x1xf32, #tpu.memory_space<vmem>>, %arg4: memref<16x128xf32, #tpu.memory_space<vmem>>) attributes {dimension_semantics = [#tpu.dimension_semantics<parallel>], iteration_bounds = array<i64: 1>, scalar_prefetch = 0 : i64, scratch_operands = 0 : i64, tpu.core_type = #tpu.core_type<tc>, window_params = [{pipeline_mode = #tpu.pipeline_mode<synchronous>, transform_indices = @transform_0, window_bounds = array<i64: 16, 144>}, {transform_indices = @transform_1, window_bounds = array<i64: 144, 128>}, {pipeline_mode = #tpu.pipeline_mode<synchronous>, transform_indices = @transform_2, window_bounds = array<i64: 16, 1>}, {transform_indices = @transform_3, window_bounds = array<i64: 16, 128>}]} {
    %c0 = arith.constant 0 : index
    %c0_0 = arith.constant 0 : index
    %0 = vector.load %arg1[%c0, %c0_0] : memref<16x144xbf16, #tpu.memory_space<vmem>>, vector<16x144xbf16>
    %c0_1 = arith.constant 0 : index
    %c0_2 = arith.constant 0 : index
    %1 = vector.load %arg2[%c0_1, %c0_2] : memref<144x128xbf16, #tpu.memory_space<vmem>>, vector<144x128xbf16>
    %cst = arith.constant dense<0.000000e+00> : vector<16x128xf32>
    %2 = tpu.matmul %0, %1, %cst {dimension_numbers = #tpu.dot_dimension_numbers<[1], [0], [0], [1], [0, 0, 1, 1], [], []>} : vector<16x144xbf16>, vector<144x128xbf16>, vector<16x128xf32> -> vector<16x128xf32>
    %c0_3 = arith.constant 0 : index
    %c0_4 = arith.constant 0 : index
    %3 = vector.load %arg3[%c0_3, %c0_4] : memref<16x1xf32, #tpu.memory_space<vmem>>, vector<16x1xf32>
    %4 = vector.broadcast %3 : vector<16x1xf32> to vector<16x128xf32>
    %5 = arith.addf %2, %4 : vector<16x128xf32>
    %cst_5 = arith.constant 0.000000e+00 : f32
    %6 = vector.broadcast %cst_5 : f32 to vector<16x128xf32>
    %7 = arith.subf %6, %5 : vector<16x128xf32>
    %8 = math.exp %7 : vector<16x128xf32>
    %cst_6 = arith.constant 1.000000e+00 : f32
    %9 = vector.broadcast %cst_6 : f32 to vector<16x128xf32>
    %10 = arith.addf %9, %8 : vector<16x128xf32>
    %11 = tpu.reciprocal %10 {approx = true} : vector<16x128xf32> -> vector<16x128xf32>
    %12 = arith.mulf %5, %11 : vector<16x128xf32>
    %c0_7 = arith.constant 0 : index
    %c0_8 = arith.constant 0 : index
    %13 = vector.load %arg4[%c0_7, %c0_8] : memref<16x128xf32, #tpu.memory_space<vmem>>, vector<16x128xf32>
    tpu.vector_store %arg4[%c0_7, %c0_8], %12 {strides = array<i32>} : memref<16x128xf32, #tpu.memory_space<vmem>>, vector<16x128xf32>,
    return
  }
  func.func @transform_0(%arg0: i32) -> (i32, i32) {
    %c0_i32 = arith.constant 0 : i32
    %c0_i32_0 = arith.constant 0 : i32
    %c0_i32_1 = arith.constant 0 : i32
    return %c0_i32, %c0_i32_0 : i32, i32
  }
  func.func @transform_1(%arg0: i32) -> (i32, i32) {
    %c0_i32 = arith.constant 0 : i32
    %c0_i32_0 = arith.constant 0 : i32
    return %c0_i32, %arg0 : i32, i32
  }
  func.func @transform_2(%arg0: i32) -> (i32, i32) {
    %c0_i32 = arith.constant 0 : i32
    %c0_i32_0 = arith.constant 0 : i32
    %c0_i32_1 = arith.constant 0 : i32
    return %c0_i32, %c0_i32_0 : i32, i32
  }
  func.func @transform_3(%arg0: i32) -> (i32, i32) {
    %c0_i32 = arith.constant 0 : i32
    %c0_i32_0 = arith.constant 0 : i32
    return %c0_i32, %arg0 : i32, i32
  }
}

module attributes {stable_mosaic.version = 11 : i64} {
  func.func @_conv_mm_t_kernel(%arg0: i32, %arg1: memref<8x16xbf16, #tpu.memory_space<vmem>>, %arg2: memref<16x256xbf16, #tpu.memory_space<vmem>>, %arg3: memref<8x1xf32, #tpu.memory_space<vmem>>, %arg4: memref<8x256xf32, #tpu.memory_space<vmem>>) attributes {dimension_semantics = [#tpu.dimension_semantics<parallel>], iteration_bounds = array<i64: 2>, scalar_prefetch = 0 : i64, scratch_operands = 0 : i64, tpu.core_type = #tpu.core_type<tc>, window_params = [{pipeline_mode = #tpu.pipeline_mode<synchronous>, transform_indices = @transform_0, window_bounds = array<i64: 8, 16>}, {transform_indices = @transform_1, window_bounds = array<i64: 16, 256>}, {pipeline_mode = #tpu.pipeline_mode<synchronous>, transform_indices = @transform_2, window_bounds = array<i64: 8, 1>}, {transform_indices = @transform_3, window_bounds = array<i64: 8, 256>}]} {
    %c0 = arith.constant 0 : index
    %c0_0 = arith.constant 0 : index
    %0 = vector.load %arg1[%c0, %c0_0] : memref<8x16xbf16, #tpu.memory_space<vmem>>, vector<8x16xbf16>
    %c0_1 = arith.constant 0 : index
    %c0_2 = arith.constant 0 : index
    %1 = vector.load %arg2[%c0_1, %c0_2] : memref<16x256xbf16, #tpu.memory_space<vmem>>, vector<16x256xbf16>
    %cst = arith.constant dense<0.000000e+00> : vector<8x256xf32>
    %2 = tpu.matmul %0, %1, %cst {dimension_numbers = #tpu.dot_dimension_numbers<[1], [0], [0], [1], [0, 0, 1, 1], [], []>} : vector<8x16xbf16>, vector<16x256xbf16>, vector<8x256xf32> -> vector<8x256xf32>
    %c0_3 = arith.constant 0 : index
    %c0_4 = arith.constant 0 : index
    %3 = vector.load %arg3[%c0_3, %c0_4] : memref<8x1xf32, #tpu.memory_space<vmem>>, vector<8x1xf32>
    %4 = vector.broadcast %3 : vector<8x1xf32> to vector<8x256xf32>
    %5 = arith.addf %2, %4 : vector<8x256xf32>
    %c0_5 = arith.constant 0 : index
    %c0_6 = arith.constant 0 : index
    %6 = vector.load %arg4[%c0_5, %c0_6] : memref<8x256xf32, #tpu.memory_space<vmem>>, vector<8x256xf32>
    tpu.vector_store %arg4[%c0_5, %c0_6], %5 {strides = array<i32>} : memref<8x256xf32, #tpu.memory_space<vmem>>, vector<8x256xf32>,
    return
  }
  func.func @transform_0(%arg0: i32) -> (i32, i32) {
    %c0_i32 = arith.constant 0 : i32
    %c0_i32_0 = arith.constant 0 : i32
    %c0_i32_1 = arith.constant 0 : i32
    return %c0_i32, %c0_i32_0 : i32, i32
  }
  func.func @transform_1(%arg0: i32) -> (i32, i32) {
    %c0_i32 = arith.constant 0 : i32
    %c0_i32_0 = arith.constant 0 : i32
    return %c0_i32, %arg0 : i32, i32
  }
  func.func @transform_2(%arg0: i32) -> (i32, i32) {
    %c0_i32 = arith.constant 0 : i32
    %c0_i32_0 = arith.constant 0 : i32
    %c0_i32_1 = arith.constant 0 : i32
    return %c0_i32, %c0_i32_0 : i32, i32
  }
  func.func @transform_3(%arg0: i32) -> (i32, i32) {
    %c0_i32 = arith.constant 0 : i32
    %c0_i32_0 = arith.constant 0 : i32
    return %c0_i32, %arg0 : i32, i32
  }
}

module attributes {stable_mosaic.version = 11 : i64} {
  func.func @_conv_mm_t_kernel(%arg0: i32, %arg1: memref<16x144xbf16, #tpu.memory_space<vmem>>, %arg2: memref<144x32xbf16, #tpu.memory_space<vmem>>, %arg3: memref<16x1xf32, #tpu.memory_space<vmem>>, %arg4: memref<16x32xf32, #tpu.memory_space<vmem>>) attributes {dimension_semantics = [#tpu.dimension_semantics<parallel>], iteration_bounds = array<i64: 1>, scalar_prefetch = 0 : i64, scratch_operands = 0 : i64, tpu.core_type = #tpu.core_type<tc>, window_params = [{pipeline_mode = #tpu.pipeline_mode<synchronous>, transform_indices = @transform_0, window_bounds = array<i64: 16, 144>}, {transform_indices = @transform_1, window_bounds = array<i64: 144, 32>}, {pipeline_mode = #tpu.pipeline_mode<synchronous>, transform_indices = @transform_2, window_bounds = array<i64: 16, 1>}, {transform_indices = @transform_3, window_bounds = array<i64: 16, 32>}]} {
    %c0 = arith.constant 0 : index
    %c0_0 = arith.constant 0 : index
    %0 = vector.load %arg1[%c0, %c0_0] : memref<16x144xbf16, #tpu.memory_space<vmem>>, vector<16x144xbf16>
    %c0_1 = arith.constant 0 : index
    %c0_2 = arith.constant 0 : index
    %1 = vector.load %arg2[%c0_1, %c0_2] : memref<144x32xbf16, #tpu.memory_space<vmem>>, vector<144x32xbf16>
    %cst = arith.constant dense<0.000000e+00> : vector<16x32xf32>
    %2 = tpu.matmul %0, %1, %cst {dimension_numbers = #tpu.dot_dimension_numbers<[1], [0], [0], [1], [0, 0, 1, 1], [], []>} : vector<16x144xbf16>, vector<144x32xbf16>, vector<16x32xf32> -> vector<16x32xf32>
    %c0_3 = arith.constant 0 : index
    %c0_4 = arith.constant 0 : index
    %3 = vector.load %arg3[%c0_3, %c0_4] : memref<16x1xf32, #tpu.memory_space<vmem>>, vector<16x1xf32>
    %4 = vector.broadcast %3 : vector<16x1xf32> to vector<16x32xf32>
    %5 = arith.addf %2, %4 : vector<16x32xf32>
    %cst_5 = arith.constant 0.000000e+00 : f32
    %6 = vector.broadcast %cst_5 : f32 to vector<16x32xf32>
    %7 = arith.subf %6, %5 : vector<16x32xf32>
    %8 = math.exp %7 : vector<16x32xf32>
    %cst_6 = arith.constant 1.000000e+00 : f32
    %9 = vector.broadcast %cst_6 : f32 to vector<16x32xf32>
    %10 = arith.addf %9, %8 : vector<16x32xf32>
    %11 = tpu.reciprocal %10 {approx = true} : vector<16x32xf32> -> vector<16x32xf32>
    %12 = arith.mulf %5, %11 : vector<16x32xf32>
    %c0_7 = arith.constant 0 : index
    %c0_8 = arith.constant 0 : index
    %13 = vector.load %arg4[%c0_7, %c0_8] : memref<16x32xf32, #tpu.memory_space<vmem>>, vector<16x32xf32>
    tpu.vector_store %arg4[%c0_7, %c0_8], %12 {strides = array<i32>} : memref<16x32xf32, #tpu.memory_space<vmem>>, vector<16x32xf32>,
    return
  }
  func.func @transform_0(%arg0: i32) -> (i32, i32) {
    %c0_i32 = arith.constant 0 : i32
    %c0_i32_0 = arith.constant 0 : i32
    %c0_i32_1 = arith.constant 0 : i32
    return %c0_i32, %c0_i32_0 : i32, i32
  }
  func.func @transform_1(%arg0: i32) -> (i32, i32) {
    %c0_i32 = arith.constant 0 : i32
    %c0_i32_0 = arith.constant 0 : i32
    return %c0_i32, %arg0 : i32, i32
  }
  func.func @transform_2(%arg0: i32) -> (i32, i32) {
    %c0_i32 = arith.constant 0 : i32
    %c0_i32_0 = arith.constant 0 : i32
    %c0_i32_1 = arith.constant 0 : i32
    return %c0_i32, %c0_i32_0 : i32, i32
  }
  func.func @transform_3(%arg0: i32) -> (i32, i32) {
    %c0_i32 = arith.constant 0 : i32
    %c0_i32_0 = arith.constant 0 : i32
    return %c0_i32, %arg0 : i32, i32
  }
}

module attributes {stable_mosaic.version = 11 : i64} {
  func.func @_conv_mm_t_kernel(%arg0: i32, %arg1: memref<32x288xbf16, #tpu.memory_space<vmem>>, %arg2: memref<288x8xbf16, #tpu.memory_space<vmem>>, %arg3: memref<32x1xf32, #tpu.memory_space<vmem>>, %arg4: memref<32x8xf32, #tpu.memory_space<vmem>>) attributes {dimension_semantics = [#tpu.dimension_semantics<parallel>], iteration_bounds = array<i64: 1>, scalar_prefetch = 0 : i64, scratch_operands = 0 : i64, tpu.core_type = #tpu.core_type<tc>, window_params = [{pipeline_mode = #tpu.pipeline_mode<synchronous>, transform_indices = @transform_0, window_bounds = array<i64: 32, 288>}, {transform_indices = @transform_1, window_bounds = array<i64: 288, 8>}, {pipeline_mode = #tpu.pipeline_mode<synchronous>, transform_indices = @transform_2, window_bounds = array<i64: 32, 1>}, {transform_indices = @transform_3, window_bounds = array<i64: 32, 8>}]} {
    %c0 = arith.constant 0 : index
    %c0_0 = arith.constant 0 : index
    %0 = vector.load %arg1[%c0, %c0_0] : memref<32x288xbf16, #tpu.memory_space<vmem>>, vector<32x288xbf16>
    %c0_1 = arith.constant 0 : index
    %c0_2 = arith.constant 0 : index
    %1 = vector.load %arg2[%c0_1, %c0_2] : memref<288x8xbf16, #tpu.memory_space<vmem>>, vector<288x8xbf16>
    %cst = arith.constant dense<0.000000e+00> : vector<32x8xf32>
    %2 = tpu.matmul %0, %1, %cst {dimension_numbers = #tpu.dot_dimension_numbers<[1], [0], [0], [1], [0, 0, 1, 1], [], []>} : vector<32x288xbf16>, vector<288x8xbf16>, vector<32x8xf32> -> vector<32x8xf32>
    %c0_3 = arith.constant 0 : index
    %c0_4 = arith.constant 0 : index
    %3 = vector.load %arg3[%c0_3, %c0_4] : memref<32x1xf32, #tpu.memory_space<vmem>>, vector<32x1xf32>
    %4 = vector.broadcast %3 : vector<32x1xf32> to vector<32x8xf32>
    %5 = arith.addf %2, %4 : vector<32x8xf32>
    %cst_5 = arith.constant 0.000000e+00 : f32
    %6 = vector.broadcast %cst_5 : f32 to vector<32x8xf32>
    %7 = arith.subf %6, %5 : vector<32x8xf32>
    %8 = math.exp %7 : vector<32x8xf32>
    %cst_6 = arith.constant 1.000000e+00 : f32
    %9 = vector.broadcast %cst_6 : f32 to vector<32x8xf32>
    %10 = arith.addf %9, %8 : vector<32x8xf32>
    %11 = tpu.reciprocal %10 {approx = true} : vector<32x8xf32> -> vector<32x8xf32>
    %12 = arith.mulf %5, %11 : vector<32x8xf32>
    %c0_7 = arith.constant 0 : index
    %c0_8 = arith.constant 0 : index
    %13 = vector.load %arg4[%c0_7, %c0_8] : memref<32x8xf32, #tpu.memory_space<vmem>>, vector<32x8xf32>
    tpu.vector_store %arg4[%c0_7, %c0_8], %12 {strides = array<i32>} : memref<32x8xf32, #tpu.memory_space<vmem>>, vector<32x8xf32>,
    return
  }
  func.func @transform_0(%arg0: i32) -> (i32, i32) {
    %c0_i32 = arith.constant 0 : i32
    %c0_i32_0 = arith.constant 0 : i32
    %c0_i32_1 = arith.constant 0 : i32
    return %c0_i32, %c0_i32_0 : i32, i32
  }
  func.func @transform_1(%arg0: i32) -> (i32, i32) {
    %c0_i32 = arith.constant 0 : i32
    %c0_i32_0 = arith.constant 0 : i32
    return %c0_i32, %arg0 : i32, i32
  }
  func.func @transform_2(%arg0: i32) -> (i32, i32) {
    %c0_i32 = arith.constant 0 : i32
    %c0_i32_0 = arith.constant 0 : i32
    %c0_i32_1 = arith.constant 0 : i32
    return %c0_i32, %c0_i32_0 : i32, i32
  }
  func.func @transform_3(%arg0: i32) -> (i32, i32) {
    %c0_i32 = arith.constant 0 : i32
    %c0_i32_0 = arith.constant 0 : i32
    return %c0_i32, %arg0 : i32, i32
  }
}

module attributes {stable_mosaic.version = 11 : i64} {
  func.func @_conv_mm_t_kernel(%arg0: i32, %arg1: memref<32x432xbf16, #tpu.memory_space<vmem>>, %arg2: memref<432x32xbf16, #tpu.memory_space<vmem>>, %arg3: memref<32x1xf32, #tpu.memory_space<vmem>>, %arg4: memref<32x32xf32, #tpu.memory_space<vmem>>) attributes {dimension_semantics = [#tpu.dimension_semantics<parallel>], iteration_bounds = array<i64: 1>, scalar_prefetch = 0 : i64, scratch_operands = 0 : i64, tpu.core_type = #tpu.core_type<tc>, window_params = [{pipeline_mode = #tpu.pipeline_mode<synchronous>, transform_indices = @transform_0, window_bounds = array<i64: 32, 432>}, {transform_indices = @transform_1, window_bounds = array<i64: 432, 32>}, {pipeline_mode = #tpu.pipeline_mode<synchronous>, transform_indices = @transform_2, window_bounds = array<i64: 32, 1>}, {transform_indices = @transform_3, window_bounds = array<i64: 32, 32>}]} {
    %c0 = arith.constant 0 : index
    %c0_0 = arith.constant 0 : index
    %0 = vector.load %arg1[%c0, %c0_0] : memref<32x432xbf16, #tpu.memory_space<vmem>>, vector<32x432xbf16>
    %c0_1 = arith.constant 0 : index
    %c0_2 = arith.constant 0 : index
    %1 = vector.load %arg2[%c0_1, %c0_2] : memref<432x32xbf16, #tpu.memory_space<vmem>>, vector<432x32xbf16>
    %cst = arith.constant dense<0.000000e+00> : vector<32x32xf32>
    %2 = tpu.matmul %0, %1, %cst {dimension_numbers = #tpu.dot_dimension_numbers<[1], [0], [0], [1], [0, 0, 1, 1], [], []>} : vector<32x432xbf16>, vector<432x32xbf16>, vector<32x32xf32> -> vector<32x32xf32>
    %c0_3 = arith.constant 0 : index
    %c0_4 = arith.constant 0 : index
    %3 = vector.load %arg3[%c0_3, %c0_4] : memref<32x1xf32, #tpu.memory_space<vmem>>, vector<32x1xf32>
    %4 = vector.broadcast %3 : vector<32x1xf32> to vector<32x32xf32>
    %5 = arith.addf %2, %4 : vector<32x32xf32>
    %cst_5 = arith.constant 0.000000e+00 : f32
    %6 = vector.broadcast %cst_5 : f32 to vector<32x32xf32>
    %7 = arith.subf %6, %5 : vector<32x32xf32>
    %8 = math.exp %7 : vector<32x32xf32>
    %cst_6 = arith.constant 1.000000e+00 : f32
    %9 = vector.broadcast %cst_6 : f32 to vector<32x32xf32>
    %10 = arith.addf %9, %8 : vector<32x32xf32>
    %11 = tpu.reciprocal %10 {approx = true} : vector<32x32xf32> -> vector<32x32xf32>
    %12 = arith.mulf %5, %11 : vector<32x32xf32>
    %c0_7 = arith.constant 0 : index
    %c0_8 = arith.constant 0 : index
    %13 = vector.load %arg4[%c0_7, %c0_8] : memref<32x32xf32, #tpu.memory_space<vmem>>, vector<32x32xf32>
    tpu.vector_store %arg4[%c0_7, %c0_8], %12 {strides = array<i32>} : memref<32x32xf32, #tpu.memory_space<vmem>>, vector<32x32xf32>,
    return
  }
  func.func @transform_0(%arg0: i32) -> (i32, i32) {
    %c0_i32 = arith.constant 0 : i32
    %c0_i32_0 = arith.constant 0 : i32
    %c0_i32_1 = arith.constant 0 : i32
    return %c0_i32, %c0_i32_0 : i32, i32
  }
  func.func @transform_1(%arg0: i32) -> (i32, i32) {
    %c0_i32 = arith.constant 0 : i32
    %c0_i32_0 = arith.constant 0 : i32
    return %c0_i32, %arg0 : i32, i32
  }
  func.func @transform_2(%arg0: i32) -> (i32, i32) {
    %c0_i32 = arith.constant 0 : i32
    %c0_i32_0 = arith.constant 0 : i32
    %c0_i32_1 = arith.constant 0 : i32
    return %c0_i32, %c0_i32_0 : i32, i32
  }
  func.func @transform_3(%arg0: i32) -> (i32, i32) {
    %c0_i32 = arith.constant 0 : i32
    %c0_i32_0 = arith.constant 0 : i32
    return %c0_i32, %arg0 : i32, i32
  }
}

module attributes {stable_mosaic.version = 11 : i64} {
  func.func @_conv_mm_t_kernel(%arg0: i32, %arg1: memref<64x864xbf16, #tpu.memory_space<vmem>>, %arg2: memref<864x8xbf16, #tpu.memory_space<vmem>>, %arg3: memref<64x1xf32, #tpu.memory_space<vmem>>, %arg4: memref<64x8xf32, #tpu.memory_space<vmem>>) attributes {dimension_semantics = [#tpu.dimension_semantics<parallel>], iteration_bounds = array<i64: 1>, scalar_prefetch = 0 : i64, scratch_operands = 0 : i64, tpu.core_type = #tpu.core_type<tc>, window_params = [{pipeline_mode = #tpu.pipeline_mode<synchronous>, transform_indices = @transform_0, window_bounds = array<i64: 64, 864>}, {transform_indices = @transform_1, window_bounds = array<i64: 864, 8>}, {pipeline_mode = #tpu.pipeline_mode<synchronous>, transform_indices = @transform_2, window_bounds = array<i64: 64, 1>}, {transform_indices = @transform_3, window_bounds = array<i64: 64, 8>}]} {
    %c0 = arith.constant 0 : index
    %c0_0 = arith.constant 0 : index
    %0 = vector.load %arg1[%c0, %c0_0] : memref<64x864xbf16, #tpu.memory_space<vmem>>, vector<64x864xbf16>
    %c0_1 = arith.constant 0 : index
    %c0_2 = arith.constant 0 : index
    %1 = vector.load %arg2[%c0_1, %c0_2] : memref<864x8xbf16, #tpu.memory_space<vmem>>, vector<864x8xbf16>
    %cst = arith.constant dense<0.000000e+00> : vector<64x8xf32>
    %2 = tpu.matmul %0, %1, %cst {dimension_numbers = #tpu.dot_dimension_numbers<[1], [0], [0], [1], [0, 0, 1, 1], [], []>} : vector<64x864xbf16>, vector<864x8xbf16>, vector<64x8xf32> -> vector<64x8xf32>
    %c0_3 = arith.constant 0 : index
    %c0_4 = arith.constant 0 : index
    %3 = vector.load %arg3[%c0_3, %c0_4] : memref<64x1xf32, #tpu.memory_space<vmem>>, vector<64x1xf32>
    %4 = vector.broadcast %3 : vector<64x1xf32> to vector<64x8xf32>
    %5 = arith.addf %2, %4 : vector<64x8xf32>
    %cst_5 = arith.constant 0.000000e+00 : f32
    %6 = vector.broadcast %cst_5 : f32 to vector<64x8xf32>
    %7 = arith.subf %6, %5 : vector<64x8xf32>
    %8 = math.exp %7 : vector<64x8xf32>
    %cst_6 = arith.constant 1.000000e+00 : f32
    %9 = vector.broadcast %cst_6 : f32 to vector<64x8xf32>
    %10 = arith.addf %9, %8 : vector<64x8xf32>
    %11 = tpu.reciprocal %10 {approx = true} : vector<64x8xf32> -> vector<64x8xf32>
    %12 = arith.mulf %5, %11 : vector<64x8xf32>
    %c0_7 = arith.constant 0 : index
    %c0_8 = arith.constant 0 : index
    %13 = vector.load %arg4[%c0_7, %c0_8] : memref<64x8xf32, #tpu.memory_space<vmem>>, vector<64x8xf32>
    tpu.vector_store %arg4[%c0_7, %c0_8], %12 {strides = array<i32>} : memref<64x8xf32, #tpu.memory_space<vmem>>, vector<64x8xf32>,
    return
  }
  func.func @transform_0(%arg0: i32) -> (i32, i32) {
    %c0_i32 = arith.constant 0 : i32
    %c0_i32_0 = arith.constant 0 : i32
    %c0_i32_1 = arith.constant 0 : i32
    return %c0_i32, %c0_i32_0 : i32, i32
  }
  func.func @transform_1(%arg0: i32) -> (i32, i32) {
    %c0_i32 = arith.constant 0 : i32
    %c0_i32_0 = arith.constant 0 : i32
    return %c0_i32, %arg0 : i32, i32
  }
  func.func @transform_2(%arg0: i32) -> (i32, i32) {
    %c0_i32 = arith.constant 0 : i32
    %c0_i32_0 = arith.constant 0 : i32
    %c0_i32_1 = arith.constant 0 : i32
    return %c0_i32, %c0_i32_0 : i32, i32
  }
  func.func @transform_3(%arg0: i32) -> (i32, i32) {
    %c0_i32 = arith.constant 0 : i32
    %c0_i32_0 = arith.constant 0 : i32
    return %c0_i32, %arg0 : i32, i32
  }
}

module attributes {stable_mosaic.version = 11 : i64} {
  func.func @_conv_mm_t_kernel(%arg0: i32, %arg1: memref<28x64xbf16, #tpu.memory_space<vmem>>, %arg2: memref<64x8xbf16, #tpu.memory_space<vmem>>, %arg3: memref<28x1xf32, #tpu.memory_space<vmem>>, %arg4: memref<28x8xf32, #tpu.memory_space<vmem>>) attributes {dimension_semantics = [#tpu.dimension_semantics<parallel>], iteration_bounds = array<i64: 1>, scalar_prefetch = 0 : i64, scratch_operands = 0 : i64, tpu.core_type = #tpu.core_type<tc>, window_params = [{pipeline_mode = #tpu.pipeline_mode<synchronous>, transform_indices = @transform_0, window_bounds = array<i64: 28, 64>}, {transform_indices = @transform_1, window_bounds = array<i64: 64, 8>}, {pipeline_mode = #tpu.pipeline_mode<synchronous>, transform_indices = @transform_2, window_bounds = array<i64: 28, 1>}, {transform_indices = @transform_3, window_bounds = array<i64: 28, 8>}]} {
    %c0 = arith.constant 0 : index
    %c0_0 = arith.constant 0 : index
    %0 = vector.load %arg1[%c0, %c0_0] : memref<28x64xbf16, #tpu.memory_space<vmem>>, vector<28x64xbf16>
    %c0_1 = arith.constant 0 : index
    %c0_2 = arith.constant 0 : index
    %1 = vector.load %arg2[%c0_1, %c0_2] : memref<64x8xbf16, #tpu.memory_space<vmem>>, vector<64x8xbf16>
    %cst = arith.constant dense<0.000000e+00> : vector<28x8xf32>
    %2 = tpu.matmul %0, %1, %cst {dimension_numbers = #tpu.dot_dimension_numbers<[1], [0], [0], [1], [0, 0, 1, 1], [], []>} : vector<28x64xbf16>, vector<64x8xbf16>, vector<28x8xf32> -> vector<28x8xf32>
    %c0_3 = arith.constant 0 : index
    %c0_4 = arith.constant 0 : index
    %3 = vector.load %arg3[%c0_3, %c0_4] : memref<28x1xf32, #tpu.memory_space<vmem>>, vector<28x1xf32>
    %4 = vector.broadcast %3 : vector<28x1xf32> to vector<28x8xf32>
    %5 = arith.addf %2, %4 : vector<28x8xf32>
    %c0_5 = arith.constant 0 : index
    %c0_6 = arith.constant 0 : index
    %6 = vector.load %arg4[%c0_5, %c0_6] : memref<28x8xf32, #tpu.memory_space<vmem>>, vector<28x8xf32>
    tpu.vector_store %arg4[%c0_5, %c0_6], %5 {strides = array<i32>} : memref<28x8xf32, #tpu.memory_space<vmem>>, vector<28x8xf32>,
    return
  }
  func.func @transform_0(%arg0: i32) -> (i32, i32) {
    %c0_i32 = arith.constant 0 : i32
    %c0_i32_0 = arith.constant 0 : i32
    %c0_i32_1 = arith.constant 0 : i32
    return %c0_i32, %c0_i32_0 : i32, i32
  }
  func.func @transform_1(%arg0: i32) -> (i32, i32) {
    %c0_i32 = arith.constant 0 : i32
    %c0_i32_0 = arith.constant 0 : i32
    return %c0_i32, %arg0 : i32, i32
  }
  func.func @transform_2(%arg0: i32) -> (i32, i32) {
    %c0_i32 = arith.constant 0 : i32
    %c0_i32_0 = arith.constant 0 : i32
    %c0_i32_1 = arith.constant 0 : i32
    return %c0_i32, %c0_i32_0 : i32, i32
  }
  func.func @transform_3(%arg0: i32) -> (i32, i32) {
    %c0_i32 = arith.constant 0 : i32
    %c0_i32_0 = arith.constant 0 : i32
    return %c0_i32, %arg0 : i32, i32
  }
}

module attributes {stable_mosaic.version = 11 : i64} {
  func.func @_conv_mm_t_kernel(%arg0: i32, %arg1: memref<28x32xbf16, #tpu.memory_space<vmem>>, %arg2: memref<32x32xbf16, #tpu.memory_space<vmem>>, %arg3: memref<28x1xf32, #tpu.memory_space<vmem>>, %arg4: memref<28x32xf32, #tpu.memory_space<vmem>>) attributes {dimension_semantics = [#tpu.dimension_semantics<parallel>], iteration_bounds = array<i64: 1>, scalar_prefetch = 0 : i64, scratch_operands = 0 : i64, tpu.core_type = #tpu.core_type<tc>, window_params = [{pipeline_mode = #tpu.pipeline_mode<synchronous>, transform_indices = @transform_0, window_bounds = array<i64: 28, 32>}, {transform_indices = @transform_1, window_bounds = array<i64: 32, 32>}, {pipeline_mode = #tpu.pipeline_mode<synchronous>, transform_indices = @transform_2, window_bounds = array<i64: 28, 1>}, {transform_indices = @transform_3, window_bounds = array<i64: 28, 32>}]} {
    %c0 = arith.constant 0 : index
    %c0_0 = arith.constant 0 : index
    %0 = vector.load %arg1[%c0, %c0_0] : memref<28x32xbf16, #tpu.memory_space<vmem>>, vector<28x32xbf16>
    %c0_1 = arith.constant 0 : index
    %c0_2 = arith.constant 0 : index
    %1 = vector.load %arg2[%c0_1, %c0_2] : memref<32x32xbf16, #tpu.memory_space<vmem>>, vector<32x32xbf16>
    %cst = arith.constant dense<0.000000e+00> : vector<28x32xf32>
    %2 = tpu.matmul %0, %1, %cst {dimension_numbers = #tpu.dot_dimension_numbers<[1], [0], [0], [1], [0, 0, 1, 1], [], []>} : vector<28x32xbf16>, vector<32x32xbf16>, vector<28x32xf32> -> vector<28x32xf32>
    %c0_3 = arith.constant 0 : index
    %c0_4 = arith.constant 0 : index
    %3 = vector.load %arg3[%c0_3, %c0_4] : memref<28x1xf32, #tpu.memory_space<vmem>>, vector<28x1xf32>
    %4 = vector.broadcast %3 : vector<28x1xf32> to vector<28x32xf32>
    %5 = arith.addf %2, %4 : vector<28x32xf32>
    %c0_5 = arith.constant 0 : index
    %c0_6 = arith.constant 0 : index
    %6 = vector.load %arg4[%c0_5, %c0_6] : memref<28x32xf32, #tpu.memory_space<vmem>>, vector<28x32xf32>
    tpu.vector_store %arg4[%c0_5, %c0_6], %5 {strides = array<i32>} : memref<28x32xf32, #tpu.memory_space<vmem>>, vector<28x32xf32>,
    return
  }
  func.func @transform_0(%arg0: i32) -> (i32, i32) {
    %c0_i32 = arith.constant 0 : i32
    %c0_i32_0 = arith.constant 0 : i32
    %c0_i32_1 = arith.constant 0 : i32
    return %c0_i32, %c0_i32_0 : i32, i32
  }
  func.func @transform_1(%arg0: i32) -> (i32, i32) {
    %c0_i32 = arith.constant 0 : i32
    %c0_i32_0 = arith.constant 0 : i32
    return %c0_i32, %arg0 : i32, i32
  }
  func.func @transform_2(%arg0: i32) -> (i32, i32) {
    %c0_i32 = arith.constant 0 : i32
    %c0_i32_0 = arith.constant 0 : i32
    %c0_i32_1 = arith.constant 0 : i32
    return %c0_i32, %c0_i32_0 : i32, i32
  }
  func.func @transform_3(%arg0: i32) -> (i32, i32) {
    %c0_i32 = arith.constant 0 : i32
    %c0_i32_0 = arith.constant 0 : i32
    return %c0_i32, %arg0 : i32, i32
  }
}

module attributes {stable_mosaic.version = 11 : i64} {
  func.func @_conv_mm_t_kernel(%arg0: i32, %arg1: memref<28x16xbf16, #tpu.memory_space<vmem>>, %arg2: memref<16x128xbf16, #tpu.memory_space<vmem>>, %arg3: memref<28x1xf32, #tpu.memory_space<vmem>>, %arg4: memref<28x128xf32, #tpu.memory_space<vmem>>) attributes {dimension_semantics = [#tpu.dimension_semantics<parallel>], iteration_bounds = array<i64: 1>, scalar_prefetch = 0 : i64, scratch_operands = 0 : i64, tpu.core_type = #tpu.core_type<tc>, window_params = [{pipeline_mode = #tpu.pipeline_mode<synchronous>, transform_indices = @transform_0, window_bounds = array<i64: 28, 16>}, {transform_indices = @transform_1, window_bounds = array<i64: 16, 128>}, {pipeline_mode = #tpu.pipeline_mode<synchronous>, transform_indices = @transform_2, window_bounds = array<i64: 28, 1>}, {transform_indices = @transform_3, window_bounds = array<i64: 28, 128>}]} {
    %c0 = arith.constant 0 : index
    %c0_0 = arith.constant 0 : index
    %0 = vector.load %arg1[%c0, %c0_0] : memref<28x16xbf16, #tpu.memory_space<vmem>>, vector<28x16xbf16>
    %c0_1 = arith.constant 0 : index
    %c0_2 = arith.constant 0 : index
    %1 = vector.load %arg2[%c0_1, %c0_2] : memref<16x128xbf16, #tpu.memory_space<vmem>>, vector<16x128xbf16>
    %cst = arith.constant dense<0.000000e+00> : vector<28x128xf32>
    %2 = tpu.matmul %0, %1, %cst {dimension_numbers = #tpu.dot_dimension_numbers<[1], [0], [0], [1], [0, 0, 1, 1], [], []>} : vector<28x16xbf16>, vector<16x128xbf16>, vector<28x128xf32> -> vector<28x128xf32>
    %c0_3 = arith.constant 0 : index
    %c0_4 = arith.constant 0 : index
    %3 = vector.load %arg3[%c0_3, %c0_4] : memref<28x1xf32, #tpu.memory_space<vmem>>, vector<28x1xf32>
    %4 = vector.broadcast %3 : vector<28x1xf32> to vector<28x128xf32>
    %5 = arith.addf %2, %4 : vector<28x128xf32>
    %c0_5 = arith.constant 0 : index
    %c0_6 = arith.constant 0 : index
    %6 = vector.load %arg4[%c0_5, %c0_6] : memref<28x128xf32, #tpu.memory_space<vmem>>, vector<28x128xf32>
    tpu.vector_store %arg4[%c0_5, %c0_6], %5 {strides = array<i32>} : memref<28x128xf32, #tpu.memory_space<vmem>>, vector<28x128xf32>,
    return
  }
  func.func @transform_0(%arg0: i32) -> (i32, i32) {
    %c0_i32 = arith.constant 0 : i32
    %c0_i32_0 = arith.constant 0 : i32
    %c0_i32_1 = arith.constant 0 : i32
    return %c0_i32, %c0_i32_0 : i32, i32
  }
  func.func @transform_1(%arg0: i32) -> (i32, i32) {
    %c0_i32 = arith.constant 0 : i32
    %c0_i32_0 = arith.constant 0 : i32
    return %c0_i32, %arg0 : i32, i32
  }
  func.func @transform_2(%arg0: i32) -> (i32, i32) {
    %c0_i32 = arith.constant 0 : i32
    %c0_i32_0 = arith.constant 0 : i32
    %c0_i32_1 = arith.constant 0 : i32
    return %c0_i32, %c0_i32_0 : i32, i32
  }
  func.func @transform_3(%arg0: i32) -> (i32, i32) {
    %c0_i32 = arith.constant 0 : i32
    %c0_i32_0 = arith.constant 0 : i32
    return %c0_i32, %arg0 : i32, i32
  }
}

</mosaic_0001>

<llo_original>
// kernel: multitask_yolo_forward.21
$region0: #{multitask_yolo_forward.21}
  #allocation0 [shape = 'u32[]', space=smem, size = 0x4, offset = 0x4, fixed_abs, tag = 'smem constant byte address 0x4 - core index']
  #allocation1 [shape = 'u32[72,128]{1,0:T(1,128)}', space=vmem, size = 0x9000, scoped, tag = 'internal scratch']
  %s0 = inlined_call_operand.vmem [shape: bf16[8,27], index: 0, kind: input, shape index: {}]
  %s1 = inlined_call_operand.vmem [shape: bf16[27,2048], index: 1, kind: input, shape index: {}]
  %s2 = inlined_call_operand.vmem [shape: f32[8,1], index: 2, kind: input, shape index: {}]
  %s3 = inlined_call_operand.vmem [shape: f32[8,2048], index: 3, kind: output, shape index: {}]
  %s4 = sld [smem:[#allocation0]]
  $region68: #{multitask_yolo_forward.21} parent=0
    _
  %s6 = ssub.s32 1, %s4
  %s7 = scalar_select 0, %s6, %s4
  $region1: #{multitask_yolo_forward.21} parent=0
    #allocation2 [shape = 'u8[131072]{0}', space=vmem, size = 0x20000, scoped, tag = 'input window, operand 1']
    loop: start=0, step=1, limit=4
    $region2: #{multitask_yolo_forward.21} parent=1 // loop_pre_header
      _
    $region3: #{multitask_yolo_forward.21} parent=1 // loop_header
      %s9 = sphi 0, %s13
      %p10 = scmp.ge.s32.totalorder %s9, 4
      %s17 = sphi 0, %s17
      %s19 = sphi 0, %s17
      %s20 = sphi 0, %s19
      %s34 = sphi 0, %s20
      %s40 = sphi 0, %s42
      %s43 = sphi 0, %s40
      %s44 = sphi 0, %s43
      %s60 = sphi 0, %s44
      %s64 = sphi 0, %s64
      %s66 = sphi 0, %s64
      %s67 = sphi 0, %s66
      %s81 = sphi 0, %s67
      %s87 = sphi 0, %s89
      %s90 = sphi 0, %s87
      %s91 = sphi 0, %s90
      %s107 = sphi 0, %s91
    $region4: #{multitask_yolo_forward.21} parent=1 // loop_header_branch
      %12 = sbr.rel (%p10) target = $region8
    $region5: #{multitask_yolo_forward.21} parent=1 // loop_body
      %s14 = ssub.s32 %s9, 1
      %s15 = ssub.s32 %s9, 2
      %s16 = sadd.s32 %s9, 1
      %s18 = sadd.s32 %s17, 1
      %p21 = scmp.eq.s32.totalorder %s9, 1
      %p22 = scmp.ne.s32.totalorder %s17, %s19
      %p23 = scmp.eq.s32.totalorder %s9, 0
      %p24 = por %p22, %p23
      %p25 = scmp.ne.s32.totalorder %s17, %s19
      %p26 = scmp.eq.s32.totalorder %s14, 1
      %p27 = por %p25, %p26
      %p28 = scmp.ne.s32.totalorder %s19, %s20
      %p29 = scmp.eq.s32.totalorder %s14, 0
      %p30 = por %p28, %p29
      %p31 = scmp.ne.s32.totalorder %s19, %s20
      %p32 = scmp.eq.s32.totalorder %s15, 1
      %p33 = por %p31, %p32
      %p35 = scmp.ne.s32.totalorder %s20, %s34
      %p36 = scmp.eq.s32.totalorder %s15, 0
      %p37 = por %p35, %p36
      %s38 = ssub.s32 %s9, %s16
      %p39 = scmp.eq.s32.totalorder %s38, 0
      %s41 = sadd.s32 %s40, 1
      %s42 = scalar_select %p39, %s40, %s41
      %p45 = pneg %p39
      %p46 = scmp.eq.s32.totalorder %s9, 1
      %p47 = por %p45, %p46
      %p48 = scmp.ne.s32.totalorder %s40, %s43
      %p49 = scmp.eq.s32.totalorder %s9, 0
      %p50 = por %p48, %p49
      %p51 = scmp.ne.s32.totalorder %s40, %s43
      %p52 = scmp.eq.s32.totalorder %s14, 1
      %p53 = por %p51, %p52
      %p54 = scmp.ne.s32.totalorder %s43, %s44
      %p55 = scmp.eq.s32.totalorder %s14, 0
      %p56 = por %p54, %p55
      %p57 = scmp.ne.s32.totalorder %s43, %s44
      %p58 = scmp.eq.s32.totalorder %s15, 1
      %p59 = por %p57, %p58
      %p61 = scmp.ne.s32.totalorder %s44, %s60
      %p62 = scmp.eq.s32.totalorder %s15, 0
      %p63 = por %p61, %p62
      %s65 = sadd.s32 %s64, 1
      %p68 = scmp.eq.s32.totalorder %s9, 1
      %p69 = scmp.ne.s32.totalorder %s64, %s66
      %p70 = scmp.eq.s32.totalorder %s9, 0
      %p71 = por %p69, %p70
      %p72 = scmp.ne.s32.totalorder %s64, %s66
      %p73 = scmp.eq.s32.totalorder %s14, 1
      %p74 = por %p72, %p73
      %p75 = scmp.ne.s32.totalorder %s66, %s67
      %p76 = scmp.eq.s32.totalorder %s14, 0
      %p77 = por %p75, %p76
      %p78 = scmp.ne.s32.totalorder %s66, %s67
      %p79 = scmp.eq.s32.totalorder %s15, 1
      %p80 = por %p78, %p79
      %p82 = scmp.ne.s32.totalorder %s67, %s81
      %p83 = scmp.eq.s32.totalorder %s15, 0
      %p84 = por %p82, %p83
      %s85 = ssub.s32 %s9, %s16
      %p86 = scmp.eq.s32.totalorder %s85, 0
      %s88 = sadd.s32 %s87, 1
      %s89 = scalar_select %p86, %s87, %s88
      %p92 = pneg %p86
      %p93 = scmp.eq.s32.totalorder %s9, 1
      %p94 = por %p92, %p93
      %p95 = scmp.ne.s32.totalorder %s87, %s90
      %p96 = scmp.eq.s32.totalorder %s9, 0
      %p97 = por %p95, %p96
      %p98 = scmp.ne.s32.totalorder %s87, %s90
      %p99 = scmp.eq.s32.totalorder %s14, 1
      %p100 = por %p98, %p99
      %p101 = scmp.ne.s32.totalorder %s90, %s91
      %p102 = scmp.eq.s32.totalorder %s14, 0
      %p103 = por %p101, %p102
      %p104 = scmp.ne.s32.totalorder %s90, %s91
      %p105 = scmp.eq.s32.totalorder %s15, 1
      %p106 = por %p104, %p105
      %p108 = scmp.ne.s32.totalorder %s91, %s107
      %p109 = scmp.eq.s32.totalorder %s15, 0
      %p110 = por %p108, %p109
      %p111 = scmp.le.s32.totalorder 1, %s9
      %p112 = scmp.lt.s32.totalorder %s9, 3
      %p113 = pnand %p111, %p112
      %p114 = pneg %p113
      // Predicated region
      $region9: #{multitask_yolo_forward.21} parent=5 // pred_check
        _
      $region10: #{multitask_yolo_forward.21} parent=5 // pred_check_branch
        %116 = sbr.rel (%p113) target = $region12
      $region11: #{multitask_yolo_forward.21} parent=5 // pred_region
        %s117 = ssub.s32 %s9, 1
        // Predicated region
        $region13: #{multitask_yolo_forward.21} parent=11 // pred_check
          %p118 = pneg %p30
        $region14: #{multitask_yolo_forward.21} parent=11 // pred_check_branch
          %120 = sbr.rel (%p118) target = $region16
        $region15: #{multitask_yolo_forward.21} parent=11 // pred_region
          _
        $region16: #{multitask_yolo_forward.21} parent=11 // pred_fallthru
          _
        // Predicated region
        $region17: #{multitask_yolo_forward.21} parent=11 // pred_check
          %p121 = pneg %p77
        $region18: #{multitask_yolo_forward.21} parent=11 // pred_check_branch
          %123 = sbr.rel (%p121) target = $region20
        $region19: #{multitask_yolo_forward.21} parent=11 // pred_region
          _
        $region20: #{multitask_yolo_forward.21} parent=11 // pred_fallthru
          _
      $region12: #{multitask_yolo_forward.21} parent=5 // pred_fallthru
        _
      %p124 = scmp.lt.s32.totalorder %s9, 2
      // Predicated region
      $region21: #{multitask_yolo_forward.21} parent=5 // pred_check
        %p125 = pneg %p124
      $region22: #{multitask_yolo_forward.21} parent=5 // pred_check_branch
        %127 = sbr.rel (%p125) target = $region24
      $region23: #{multitask_yolo_forward.21} parent=5 // pred_region
        // Predicated region
        $region25: #{multitask_yolo_forward.21} parent=23 // pred_check
          %p128 = pneg %p50
        $region26: #{multitask_yolo_forward.21} parent=23 // pred_check_branch
          %130 = sbr.rel (%p128) target = $region28
        $region27: #{multitask_yolo_forward.21} parent=23 // pred_region
          %s131 = sand.u32 %s40, 1
          %s132 = sand.u32 %s40, 1
          %s133 = smul.addr %s132, 128
          %s134 = scalar_lea.vmem [#allocation2], %s133
          %s135 = smul.u32 8, %s9
          %s136 = smul.addr %s135, 4
          %s137 = scalar_lea.vmem %s1, %s136
          // Predicated region
          $region29: #{multitask_yolo_forward.21} parent=27 // pred_check
            _
          $region30: #{multitask_yolo_forward.21} parent=27 // pred_check_branch
            %139 = sbr.rel (0) target = $region32
          $region31: #{multitask_yolo_forward.21} parent=27 // pred_region
            // Predicated region
            $region33: #{multitask_yolo_forward.21} parent=31 // pred_check
              _
            $region34: #{multitask_yolo_forward.21} parent=31 // pred_check_branch
              %141 = sbr.rel (0) target = $region36
            $region35: #{multitask_yolo_forward.21} parent=31 // pred_region
              loop: start=0, step=1, limit=1
              $region37: #{multitask_yolo_forward.21} parent=35 // loop_pre_header
                _
              $region38: #{multitask_yolo_forward.21} parent=35 // loop_header
                %s143 = sphi 0, %s147
                %p144 = scmp.ge.s32.totalorder %s143, 1
                %s148 = sphi %s137, %s137
                %s149 = sphi %s134, %s134
              $region39: #{multitask_yolo_forward.21} parent=35 // loop_header_branch
                %146 = sbr.rel (%p144) target = $region43
              $region40: #{multitask_yolo_forward.21} parent=35 // loop_body
                %v150 = vld [vmem:[%s148] sm:$0xff]
                %151 = vst [vmem:[%s149] sm:$0xff] %v150
                %v152 = vld [vmem:[%s148 + $0x8] sm:$0xff]
                %153 = vst [vmem:[%s149 + $0x8] sm:$0xff] %v152
                %v154 = vld [vmem:[%s148 + $0x10] sm:$0xff]
                %155 = vst [vmem:[%s149 + $0x10] sm:$0xff] %v154
                %v156 = vld [vmem:[%s148 + $0x18] sm:$0xff]
                %157 = vst [vmem:[%s149 + $0x18] sm:$0xff] %v156
                %v158 = vld [vmem:[%s148 + $0x40] sm:$0xff]
                %159 = vst [vmem:[%s149 + $0x20] sm:$0xff] %v158
                %v160 = vld [vmem:[%s148 + $0x48] sm:$0xff]
                %161 = vst [vmem:[%s149 + $0x28] sm:$0xff] %v160
                %v162 = vld [vmem:[%s148 + $0x50] sm:$0xff]
                %163 = vst [vmem:[%s149 + $0x30] sm:$0xff] %v162
                %v164 = vld [vmem:[%s148 + $0x58] sm:$0xff]
                %165 = vst [vmem:[%s149 + $0x38] sm:$0xff] %v164
                %v166 = vld [vmem:[%s148 + $0x80] sm:$0xff]
                %167 = vst [vmem:[%s149 + $0x40] sm:$0xff] %v166
                %v168 = vld [vmem:[%s148 + $0x88] sm:$0xff]
                %169 = vst [vmem:[%s149 + $0x48] sm:$0xff] %v168
                %v170 = vld [vmem:[%s148 + $0x90] sm:$0xff]
                %171 = vst [vmem:[%s149 + $0x50] sm:$0xff] %v170
                %v172 = vld [vmem:[%s148 + $0x98] sm:$0xff]
                %173 = vst [vmem:[%s149 + $0x58] sm:$0xff] %v172
                %v174 = vld [vmem:[%s148 + $0xc0] sm:$0xff]
                %175 = vst [vmem:[%s149 + $0x60] sm:$0xff] %v174
                %v176 = vld [vmem:[%s148 + $0xc8] sm:$0xff]
                %177 = vst [vmem:[%s149 + $0x68] sm:$0xff] %v176
                %v178 = vld [vmem:[%s148 + $0xd0] sm:$0xff]
                %179 = vst [vmem:[%s149 + $0x70] sm:$0xff] %v178
                %v180 = vld [vmem:[%s148 + $0xd8] sm:$0xff]
                %181 = vst [vmem:[%s149 + $0x78] sm:$0xff] %v180
              $region41: #{multitask_yolo_forward.21} parent=35 // loop_footer
                %s147 = sadd.s32 1, %s143
              $region42: #{multitask_yolo_forward.21} parent=35 // loop_footer_branch
                %142 = sbr.rel target = $region38
              $region43: #{multitask_yolo_forward.21} parent=35 // loop_exit
                _
            $region36: #{multitask_yolo_forward.21} parent=31 // pred_fallthru
              _
            // Predicated region
            $region44: #{multitask_yolo_forward.21} parent=31 // pred_check
              _
            $region45: #{multitask_yolo_forward.21} parent=31 // pred_check_branch
              %183 = sbr.rel target = $region47
            $region46: #{multitask_yolo_forward.21} parent=31 // pred_region
              _
            $region47: #{multitask_yolo_forward.21} parent=31 // pred_fallthru
              _
          $region32: #{multitask_yolo_forward.21} parent=27 // pred_fallthru
            _
          %184 = vnop
        $region28: #{multitask_yolo_forward.21} parent=23 // pred_fallthru
          _
      $region24: #{multitask_yolo_forward.21} parent=5 // pred_fallthru
        _
      %p185 = scmp.le.s32.totalorder 1, %s9
      %p186 = scmp.lt.s32.totalorder %s9, 3
      %p187 = pnand %p185, %p186
      %p188 = pneg %p187
      // Predicated region
      $region48: #{multitask_yolo_forward.21} parent=5 // pred_check
        _
      $region49: #{multitask_yolo_forward.21} parent=5 // pred_check_branch
        %190 = sbr.rel (%p187) target = $region51
      $region50: #{multitask_yolo_forward.21} parent=5 // pred_region
        %s191 = ssub.s32 %s9, 1
        %s192 = sand.u32 %s43, 1
        %s193 = sand.u32 %s43, 1
        %s194 = smul.addr %s193, 128
        %s195 = scalar_lea.vmem [#allocation2], %s194
        // Predicated region
        $region52: #{multitask_yolo_forward.21} parent=50 // pred_check
          %p196 = pneg %p56
        $region53: #{multitask_yolo_forward.21} parent=50 // pred_check_branch
          %198 = sbr.rel (%p196) target = $region55
        $region54: #{multitask_yolo_forward.21} parent=50 // pred_region
          _
        $region55: #{multitask_yolo_forward.21} parent=50 // pred_fallthru
          _
        %p199 = pneg %p30
        %p200 = pneg %p27
        %s201 = sand.u32 %s43, 1
        %s202 = sand.u32 %s43, 1
        %s203 = smul.addr %s202, 128
        %s204 = scalar_lea.vmem [#allocation2], %s203
        %p205 = pneg %p56
        %p206 = pneg %p53
        %p207 = pneg %p77
        %p208 = pneg %p74
        %p209 = pneg %p103
        %p210 = pneg %p100
        %s211 = smul.u32 8, %s14
        %p212 = scmp.lt.s32.totalorder %s211, 15
        %s213 = scalar_select %p212, %s211, 15
        %s214 = smul.addr %s213, 8
        %s215 = scalar_lea.vmem %s3, %s214
        %s216 = smul.u32 8, %s14
        %s217 = smul.u32 8, %s14
        %p218 = scmp.lt.s32.totalorder %s217, 15
        %s219 = scalar_select %p218, %s217, 15
        %s220 = smul.addr %s219, 8
        %s221 = scalar_lea.vmem %s3, %s220
        %s222 = smul.u32 8, %s14
        %v224 = vld [vmem:[%s0] sm:$0xf]
        %v225 = vld [vmem:[%s195] sm:$0xff]
        %v226 = vld [vmem:[%s195 + $0x8] sm:$0xff]
        %v227 = vld [vmem:[%s195 + $0x10] sm:$0xff]
        %v228 = vld [vmem:[%s195 + $0x18] sm:$0xff]
        %v229 = vld [vmem:[%s195 + $0x20] sm:$0xff]
        %v230 = vld [vmem:[%s195 + $0x28] sm:$0xff]
        %v231 = vld [vmem:[%s195 + $0x30] sm:$0xff]
        %v232 = vld [vmem:[%s195 + $0x38] sm:$0xff]
        %v233 = vld [vmem:[%s195 + $0x40] sm:$0xff]
        %v234 = vld [vmem:[%s195 + $0x48] sm:$0xff]
        %v235 = vld [vmem:[%s195 + $0x50] sm:$0xff]
        %v236 = vld [vmem:[%s195 + $0x58] sm:$0xff]
        %v237 = vld [vmem:[%s195 + $0x60] sm:$0x33]
        %v238 = vld [vmem:[%s195 + $0x68] sm:$0x33]
        %v239 = vld [vmem:[%s195 + $0x70] sm:$0x33]
        %v240 = vld [vmem:[%s195 + $0x78] sm:$0x33]
        %v241 = vld [vmem:[%s2] sm:$0xff]
        %243 = vset.pattern.permute.xlu0 0
        %244 = vperm.xlu0 %243, %v241
        %v245 = vpop.permute.xlu0 %244
        %v263 = vunpack.c.l.b16 %v225
        %v264 = vunpack.c.h.b16 %v225
        %v265 = vunpack.c.l.b16 %v226
        %v266 = vunpack.c.h.b16 %v226
        %v267 = vunpack.c.l.b16 %v227
        %v268 = vunpack.c.h.b16 %v227
        %v269 = vunpack.c.l.b16 %v228
        %v270 = vunpack.c.h.b16 %v228
        %v271 = vunpack.c.l.b16 %v229
        %v272 = vunpack.c.h.b16 %v229
        %v273 = vunpack.c.l.b16 %v230
        %v274 = vunpack.c.h.b16 %v230
        %v275 = vunpack.c.l.b16 %v231
        %v276 = vunpack.c.h.b16 %v231
        %v277 = vunpack.c.l.b16 %v232
        %v278 = vunpack.c.h.b16 %v232
        %v279 = vunpack.c.l.b16 %v233
        %v280 = vunpack.c.h.b16 %v233
        %v281 = vunpack.c.l.b16 %v234
        %v282 = vunpack.c.h.b16 %v234
        %v283 = vunpack.c.l.b16 %v235
        %v284 = vunpack.c.h.b16 %v235
        %v285 = vunpack.c.l.b16 %v236
        %v286 = vunpack.c.h.b16 %v236
        %v287 = vunpack.c.l.b16 %v237
        %v288 = vunpack.c.h.b16 %v237
        %v289 = vunpack.c.l.b16 %v238
        %v290 = vunpack.c.h.b16 %v238
        %v291 = vunpack.c.l.b16 %v239
        %v292 = vunpack.c.h.b16 %v239
        %v293 = vunpack.c.l.b16 %v240
        %v294 = vunpack.c.h.b16 %v240
        %v295 = vpack.c.b16 %v271, %v263
        %v296 = vpack.c.b16 %v272, %v264
        %v297 = vpack.c.b16 %v273, %v265
        %v298 = vpack.c.b16 %v274, %v266
        %v299 = vpack.c.b16 %v275, %v267
        %v300 = vpack.c.b16 %v276, %v268
        %v301 = vpack.c.b16 %v277, %v269
        %v302 = vpack.c.b16 %v278, %v270
        %v303 = vpack.c.b16 %v287, %v279
        %v304 = vpack.c.b16 %v288, %v280
        %v305 = vpack.c.b16 %v289, %v281
        %v306 = vpack.c.b16 %v290, %v282
        %v307 = vpack.c.b16 %v291, %v283
        %v308 = vpack.c.b16 %v292, %v284
        %v309 = vpack.c.b16 %v293, %v285
        %v310 = vpack.c.b16 %v294, %v286
        %vm319 = vcmask 220160
        %v321 = vsel %vm319, %v224, 0
        %vm323 = vcmask 1044480
        %vm324 = vcmask 1045504
        %v325 = vsel %vm323, 4294967295, 65535
        %v326 = vsel %vm324, %v325, 0
        %v328 = vand.u32 %v303, %v326
        %v331 = vand.u32 %v304, %v326
        %v334 = vand.u32 %v305, %v326
        %v337 = vand.u32 %v306, %v326
        %v340 = vand.u32 %v307, %v326
        %v343 = vand.u32 %v308, %v326
        %v346 = vand.u32 %v309, %v326
        %v349 = vand.u32 %v310, %v326
        %351 = vmatpush.bf16.msra.mxu0 0
        %352 = vmatpush.bf16.msra.mxu0 0
        %353 = vmatpush.bf16.msra.mxu0 0
        %354 = vmatpush.bf16.msra.mxu0 0
        %355 = vmatpush.bf16.msra.mxu0 0
        %356 = vmatpush.bf16.msra.mxu0 0
        %357 = vmatpush.bf16.msra.mxu0 %v328
        %358 = vmatpush.bf16.msra.mxu0 %v295
        %359 = vmatmul.bf16.gmra.mxu0 %v321
        %v360 = vpop.f32.mrf.mxu0
        %v361 = vadd.f32 %v245, %v360
        %v362 = vpop.f32.mrf.mxu0
        %363 = vdwg.mxu0
        %364 = vmatpush.bf16.msra.mxu0 0
        %365 = vmatpush.bf16.msra.mxu0 0
        %366 = vmatpush.bf16.msra.mxu0 0
        %367 = vmatpush.bf16.msra.mxu0 0
        %368 = vmatpush.bf16.msra.mxu0 0
        %369 = vmatpush.bf16.msra.mxu0 0
        %370 = vmatpush.bf16.msra.mxu0 %v331
        %371 = vmatpush.bf16.msra.mxu0 %v296
        %372 = vmatmul.bf16.gmra.mxu0 %v321
        %v373 = vpop.f32.mrf.mxu0
        %v374 = vadd.f32 %v245, %v373
        %v375 = vpop.f32.mrf.mxu0
        %376 = vdwg.mxu0
        %377 = vmatpush.bf16.msra.mxu0 0
        %378 = vmatpush.bf16.msra.mxu0 0
        %379 = vmatpush.bf16.msra.mxu0 0
        %380 = vmatpush.bf16.msra.mxu0 0
        %381 = vmatpush.bf16.msra.mxu0 0
        %382 = vmatpush.bf16.msra.mxu0 0
        %383 = vmatpush.bf16.msra.mxu0 %v334
        %384 = vmatpush.bf16.msra.mxu0 %v297
        %385 = vmatmul.bf16.gmra.mxu0 %v321
        %v386 = vpop.f32.mrf.mxu0
        %v387 = vadd.f32 %v245, %v386
        %v388 = vpop.f32.mrf.mxu0
        %389 = vdwg.mxu0
        %390 = vmatpush.bf16.msra.mxu0 0
        %391 = vmatpush.bf16.msra.mxu0 0
        %392 = vmatpush.bf16.msra.mxu0 0
        %393 = vmatpush.bf16.msra.mxu0 0
        %394 = vmatpush.bf16.msra.mxu0 0
        %395 = vmatpush.bf16.msra.mxu0 0
        %396 = vmatpush.bf16.msra.mxu0 %v337
        %397 = vmatpush.bf16.msra.mxu0 %v298
        %398 = vmatmul.bf16.gmra.mxu0 %v321
        %v399 = vpop.f32.mrf.mxu0
        %v400 = vadd.f32 %v245, %v399
        %v401 = vpop.f32.mrf.mxu0
        %402 = vdwg.mxu0
        %403 = vmatpush.bf16.msra.mxu0 0
        %404 = vmatpush.bf16.msra.mxu0 0
        %405 = vmatpush.bf16.msra.mxu0 0
        %406 = vmatpush.bf16.msra.mxu0 0
        %407 = vmatpush.bf16.msra.mxu0 0
        %408 = vmatpush.bf16.msra.mxu0 0
        %409 = vmatpush.bf16.msra.mxu0 %v340
        %410 = vmatpush.bf16.msra.mxu0 %v299
        %411 = vmatmul.bf16.gmra.mxu0 %v321
        %v412 = vpop.f32.mrf.mxu0
        %v413 = vadd.f32 %v245, %v412
        %v414 = vpop.f32.mrf.mxu0
        %415 = vdwg.mxu0
        %416 = vmatpush.bf16.msra.mxu0 0
        %417 = vmatpush.bf16.msra.mxu0 0
        %418 = vmatpush.bf16.msra.mxu0 0
        %419 = vmatpush.bf16.msra.mxu0 0
        %420 = vmatpush.bf16.msra.mxu0 0
        %421 = vmatpush.bf16.msra.mxu0 0
        %422 = vmatpush.bf16.msra.mxu0 %v343
        %423 = vmatpush.bf16.msra.mxu0 %v300
        %424 = vmatmul.bf16.gmra.mxu0 %v321
        %v425 = vpop.f32.mrf.mxu0
        %v426 = vadd.f32 %v245, %v425
        %v427 = vpop.f32.mrf.mxu0
        %428 = vdwg.mxu0
        %429 = vmatpush.bf16.msra.mxu0 0
        %430 = vmatpush.bf16.msra.mxu0 0
        %431 = vmatpush.bf16.msra.mxu0 0
        %432 = vmatpush.bf16.msra.mxu0 0
        %433 = vmatpush.bf16.msra.mxu0 0
        %434 = vmatpush.bf16.msra.mxu0 0
        %435 = vmatpush.bf16.msra.mxu0 %v346
        %436 = vmatpush.bf16.msra.mxu0 %v301
        %437 = vmatmul.bf16.gmra.mxu0 %v321
        %v438 = vpop.f32.mrf.mxu0
        %v439 = vadd.f32 %v245, %v438
        %v440 = vpop.f32.mrf.mxu0
        %441 = vdwg.mxu0
        %442 = vmatpush.bf16.msra.mxu0 0
        %443 = vmatpush.bf16.msra.mxu0 0
        %444 = vmatpush.bf16.msra.mxu0 0
        %445 = vmatpush.bf16.msra.mxu0 0
        %446 = vmatpush.bf16.msra.mxu0 0
        %447 = vmatpush.bf16.msra.mxu0 0
        %448 = vmatpush.bf16.msra.mxu0 %v349
        %449 = vmatpush.bf16.msra.mxu0 %v302
        %450 = vmatmul.bf16.gmra.mxu0 %v321
        %v451 = vpop.f32.mrf.mxu0
        %v452 = vadd.f32 %v245, %v451
        %v453 = vpop.f32.mrf.mxu0
        %454 = vdwg.mxu0
        %v455 = vsub.f32 0.0, %v361
        %v456 = vsub.f32 0.0, %v374
        %v457 = vsub.f32 0.0, %v387
        %v458 = vsub.f32 0.0, %v400
        %v459 = vsub.f32 0.0, %v413
        %v460 = vsub.f32 0.0, %v426
        %v461 = vsub.f32 0.0, %v439
        %v462 = vsub.f32 0.0, %v452
        %v463 = vmul.f32 %v455, 1.442695
        %v464 = vpow.pop %v463
        %v465 = vmul.f32 %v456, 1.442695
        %v466 = vpow.pop %v465
        %v467 = vmul.f32 %v457, 1.442695
        %v468 = vpow.pop %v467
        %v469 = vmul.f32 %v458, 1.442695
        %v470 = vpow.pop %v469
        %v471 = vmul.f32 %v459, 1.442695
        %v472 = vpow.pop %v471
        %v473 = vmul.f32 %v460, 1.442695
        %v474 = vpow.pop %v473
        %v475 = vmul.f32 %v461, 1.442695
        %v476 = vpow.pop %v475
        %v477 = vmul.f32 %v462, 1.442695
        %v478 = vpow.pop %v477
        %v479 = vadd.f32 %v464, 1.0
        %v480 = vadd.f32 %v466, 1.0
        %v481 = vadd.f32 %v468, 1.0
        %v482 = vadd.f32 %v470, 1.0
        %v483 = vadd.f32 %v472, 1.0
        %v484 = vadd.f32 %v474, 1.0
        %v485 = vadd.f32 %v476, 1.0
        %v486 = vadd.f32 %v478, 1.0
        %v487 = vrcp.pop %v479
        %v488 = vrcp.pop %v480
        %v489 = vrcp.pop %v481
        %v490 = vrcp.pop %v482
        %v491 = vrcp.pop %v483
        %v492 = vrcp.pop %v484
        %v493 = vrcp.pop %v485
        %v494 = vrcp.pop %v486
        %v495 = vmul.f32 %v361, %v487
        %v496 = vmul.f32 %v374, %v488
        %v497 = vmul.f32 %v387, %v489
        %v498 = vmul.f32 %v400, %v490
        %v499 = vmul.f32 %v413, %v491
        %v500 = vmul.f32 %v426, %v492
        %v501 = vmul.f32 %v439, %v493
        %v502 = vmul.f32 %v452, %v494
        %503 = vst [vmem:[%s221] sm:$0xff] %v495
        %504 = vst [vmem:[%s221 + $0x8] sm:$0xff] %v496
        %505 = vst [vmem:[%s221 + $0x10] sm:$0xff] %v497
        %506 = vst [vmem:[%s221 + $0x18] sm:$0xff] %v498
        %507 = vst [vmem:[%s221 + $0x20] sm:$0xff] %v499
        %508 = vst [vmem:[%s221 + $0x28] sm:$0xff] %v500
        %509 = vst [vmem:[%s221 + $0x30] sm:$0xff] %v501
        %510 = vst [vmem:[%s221 + $0x38] sm:$0xff] %v502
        %s511 = smul.u32 8, %s14
        %p512 = scmp.lt.s32.totalorder %s511, 15
        %s513 = scalar_select %p512, %s511, 15
        %s514 = smul.addr %s513, 8
        %s515 = scalar_lea.vmem %s3, %s514
        // Predicated region
        $region56: #{multitask_yolo_forward.21} parent=50 // pred_check
          %p516 = pneg %p100
        $region57: #{multitask_yolo_forward.21} parent=50 // pred_check_branch
          %518 = sbr.rel (%p516) target = $region59
        $region58: #{multitask_yolo_forward.21} parent=50 // pred_region
          %s519 = smul.u32 8, %s14
        $region59: #{multitask_yolo_forward.21} parent=50 // pred_fallthru
          _
      $region51: #{multitask_yolo_forward.21} parent=5 // pred_fallthru
        _
      %p520 = scmp.le.s32.totalorder 2, %s9
      // Predicated region
      $region60: #{multitask_yolo_forward.21} parent=5 // pred_check
        %p521 = pneg %p520
      $region61: #{multitask_yolo_forward.21} parent=5 // pred_check_branch
        %523 = sbr.rel (%p521) target = $region63
      $region62: #{multitask_yolo_forward.21} parent=5 // pred_region
        %s524 = ssub.s32 %s9, 2
        // Predicated region
        $region64: #{multitask_yolo_forward.21} parent=62 // pred_check
          %p525 = pneg %p106
        $region65: #{multitask_yolo_forward.21} parent=62 // pred_check_branch
          %527 = sbr.rel (%p525) target = $region67
        $region66: #{multitask_yolo_forward.21} parent=62 // pred_region
          %s528 = smul.u32 8, %s15
          %p529 = scmp.lt.s32.totalorder %s528, 15
          %s530 = scalar_select %p529, %s528, 15
          %s531 = smul.addr %s530, 8
          %s532 = scalar_lea.vmem %s3, %s531
        $region67: #{multitask_yolo_forward.21} parent=62 // pred_fallthru
          _
      $region63: #{multitask_yolo_forward.21} parent=5 // pred_fallthru
        _
    $region6: #{multitask_yolo_forward.21} parent=1 // loop_footer
      %s13 = sadd.s32 1, %s9
    $region7: #{multitask_yolo_forward.21} parent=1 // loop_footer_branch
      %8 = sbr.rel target = $region3
    $region8: #{multitask_yolo_forward.21} parent=1 // loop_exit
      _

// kernel: multitask_yolo_forward.22
$region0: #{multitask_yolo_forward.22}
  #allocation0 [shape = 'u32[]', space=smem, size = 0x4, offset = 0x4, fixed_abs, tag = 'smem constant byte address 0x4 - core index']
  #allocation1 [shape = 'u32[72,128]{1,0:T(1,128)}', space=vmem, size = 0x9000, scoped, tag = 'internal scratch']
  %s0 = inlined_call_operand.vmem [shape: bf16[16,72], index: 0, kind: input, shape index: {}]
  %s1 = inlined_call_operand.vmem [shape: bf16[72,512], index: 1, kind: input, shape index: {}]
  %s2 = inlined_call_operand.vmem [shape: f32[16,1], index: 2, kind: input, shape index: {}]
  %s3 = inlined_call_operand.vmem [shape: f32[16,512], index: 3, kind: output, shape index: {}]
  %s4 = sld [smem:[#allocation0]]
  $region102: #{multitask_yolo_forward.22} parent=0
    _
  %s6 = ssub.s32 1, %s4
  %s7 = scalar_select 0, %s6, %s4
  $region1: #{multitask_yolo_forward.22} parent=0
    #allocation2 [shape = 'u8[73728]{0}', space=vmem, size = 0x12000, scoped, tag = 'input window, operand 1']
    #allocation3 [shape = 'u8[32768]{0}', space=vmem, size = 0x8000, scoped, tag = 'output window, operand 0']
    loop: start=0, step=1, limit=4
    $region2: #{multitask_yolo_forward.22} parent=1 // loop_pre_header
      _
    $region3: #{multitask_yolo_forward.22} parent=1 // loop_header
      %s9 = sphi 0, %s13
      %p10 = scmp.ge.s32.totalorder %s9, 4
      %s17 = sphi 0, %s17
      %s19 = sphi 0, %s17
      %s20 = sphi 0, %s19
      %s34 = sphi 0, %s20
      %s40 = sphi 0, %s42
      %s43 = sphi 0, %s40
      %s44 = sphi 0, %s43
      %s60 = sphi 0, %s44
      %s64 = sphi 0, %s64
      %s66 = sphi 0, %s64
      %s67 = sphi 0, %s66
      %s81 = sphi 0, %s67
      %s87 = sphi 0, %s89
      %s90 = sphi 0, %s87
      %s91 = sphi 0, %s90
      %s107 = sphi 0, %s91
    $region4: #{multitask_yolo_forward.22} parent=1 // loop_header_branch
      %12 = sbr.rel (%p10) target = $region8
    $region5: #{multitask_yolo_forward.22} parent=1 // loop_body
      %s14 = ssub.s32 %s9, 1
      %s15 = ssub.s32 %s9, 2
      %s16 = sadd.s32 %s9, 1
      %s18 = sadd.s32 %s17, 1
      %p21 = scmp.eq.s32.totalorder %s9, 1
      %p22 = scmp.ne.s32.totalorder %s17, %s19
      %p23 = scmp.eq.s32.totalorder %s9, 0
      %p24 = por %p22, %p23
      %p25 = scmp.ne.s32.totalorder %s17, %s19
      %p26 = scmp.eq.s32.totalorder %s14, 1
      %p27 = por %p25, %p26
      %p28 = scmp.ne.s32.totalorder %s19, %s20
      %p29 = scmp.eq.s32.totalorder %s14, 0
      %p30 = por %p28, %p29
      %p31 = scmp.ne.s32.totalorder %s19, %s20
      %p32 = scmp.eq.s32.totalorder %s15, 1
      %p33 = por %p31, %p32
      %p35 = scmp.ne.s32.totalorder %s20, %s34
      %p36 = scmp.eq.s32.totalorder %s15, 0
      %p37 = por %p35, %p36
      %s38 = ssub.s32 %s9, %s16
      %p39 = scmp.eq.s32.totalorder %s38, 0
      %s41 = sadd.s32 %s40, 1
      %s42 = scalar_select %p39, %s40, %s41
      %p45 = pneg %p39
      %p46 = scmp.eq.s32.totalorder %s9, 1
      %p47 = por %p45, %p46
      %p48 = scmp.ne.s32.totalorder %s40, %s43
      %p49 = scmp.eq.s32.totalorder %s9, 0
      %p50 = por %p48, %p49
      %p51 = scmp.ne.s32.totalorder %s40, %s43
      %p52 = scmp.eq.s32.totalorder %s14, 1
      %p53 = por %p51, %p52
      %p54 = scmp.ne.s32.totalorder %s43, %s44
      %p55 = scmp.eq.s32.totalorder %s14, 0
      %p56 = por %p54, %p55
      %p57 = scmp.ne.s32.totalorder %s43, %s44
      %p58 = scmp.eq.s32.totalorder %s15, 1
      %p59 = por %p57, %p58
      %p61 = scmp.ne.s32.totalorder %s44, %s60
      %p62 = scmp.eq.s32.totalorder %s15, 0
      %p63 = por %p61, %p62
      %s65 = sadd.s32 %s64, 1
      %p68 = scmp.eq.s32.totalorder %s9, 1
      %p69 = scmp.ne.s32.totalorder %s64, %s66
      %p70 = scmp.eq.s32.totalorder %s9, 0
      %p71 = por %p69, %p70
      %p72 = scmp.ne.s32.totalorder %s64, %s66
      %p73 = scmp.eq.s32.totalorder %s14, 1
      %p74 = por %p72, %p73
      %p75 = scmp.ne.s32.totalorder %s66, %s67
      %p76 = scmp.eq.s32.totalorder %s14, 0
      %p77 = por %p75, %p76
      %p78 = scmp.ne.s32.totalorder %s66, %s67
      %p79 = scmp.eq.s32.totalorder %s15, 1
      %p80 = por %p78, %p79
      %p82 = scmp.ne.s32.totalorder %s67, %s81
      %p83 = scmp.eq.s32.totalorder %s15, 0
      %p84 = por %p82, %p83
      %s85 = ssub.s32 %s9, %s16
      %p86 = scmp.eq.s32.totalorder %s85, 0
      %s88 = sadd.s32 %s87, 1
      %s89 = scalar_select %p86, %s87, %s88
      %p92 = pneg %p86
      %p93 = scmp.eq.s32.totalorder %s9, 1
      %p94 = por %p92, %p93
      %p95 = scmp.ne.s32.totalorder %s87, %s90
      %p96 = scmp.eq.s32.totalorder %s9, 0
      %p97 = por %p95, %p96
      %p98 = scmp.ne.s32.totalorder %s87, %s90
      %p99 = scmp.eq.s32.totalorder %s14, 1
      %p100 = por %p98, %p99
      %p101 = scmp.ne.s32.totalorder %s90, %s91
      %p102 = scmp.eq.s32.totalorder %s14, 0
      %p103 = por %p101, %p102
      %p104 = scmp.ne.s32.totalorder %s90, %s91
      %p105 = scmp.eq.s32.totalorder %s15, 1
      %p106 = por %p104, %p105
      %p108 = scmp.ne.s32.totalorder %s91, %s107
      %p109 = scmp.eq.s32.totalorder %s15, 0
      %p110 = por %p108, %p109
      %p111 = scmp.le.s32.totalorder 1, %s9
      %p112 = scmp.lt.s32.totalorder %s9, 3
      %p113 = pnand %p111, %p112
      %p114 = pneg %p113
      // Predicated region
      $region9: #{multitask_yolo_forward.22} parent=5 // pred_check
        _
      $region10: #{multitask_yolo_forward.22} parent=5 // pred_check_branch
        %116 = sbr.rel (%p113) target = $region12
      $region11: #{multitask_yolo_forward.22} parent=5 // pred_region
        %s117 = ssub.s32 %s9, 1
        // Predicated region
        $region13: #{multitask_yolo_forward.22} parent=11 // pred_check
          %p118 = pneg %p30
        $region14: #{multitask_yolo_forward.22} parent=11 // pred_check_branch
          %120 = sbr.rel (%p118) target = $region16
        $region15: #{multitask_yolo_forward.22} parent=11 // pred_region
          _
        $region16: #{multitask_yolo_forward.22} parent=11 // pred_fallthru
          _
        // Predicated region
        $region17: #{multitask_yolo_forward.22} parent=11 // pred_check
          %p121 = pneg %p77
        $region18: #{multitask_yolo_forward.22} parent=11 // pred_check_branch
          %123 = sbr.rel (%p121) target = $region20
        $region19: #{multitask_yolo_forward.22} parent=11 // pred_region
          _
        $region20: #{multitask_yolo_forward.22} parent=11 // pred_fallthru
          _
      $region12: #{multitask_yolo_forward.22} parent=5 // pred_fallthru
        _
      %p124 = scmp.lt.s32.totalorder %s9, 2
      // Predicated region
      $region21: #{multitask_yolo_forward.22} parent=5 // pred_check
        %p125 = pneg %p124
      $region22: #{multitask_yolo_forward.22} parent=5 // pred_check_branch
        %127 = sbr.rel (%p125) target = $region24
      $region23: #{multitask_yolo_forward.22} parent=5 // pred_region
        // Predicated region
        $region25: #{multitask_yolo_forward.22} parent=23 // pred_check
          %p128 = pneg %p50
        $region26: #{multitask_yolo_forward.22} parent=23 // pred_check_branch
          %130 = sbr.rel (%p128) target = $region28
        $region27: #{multitask_yolo_forward.22} parent=23 // pred_region
          %s131 = sand.u32 %s40, 1
          %s132 = sand.u32 %s40, 1
          %s133 = smul.addr %s132, 72
          %s134 = scalar_lea.vmem [#allocation2], %s133
          %s135 = smul.u32 2, %s9
          %s136 = smul.addr %s135, 4
          %s137 = scalar_lea.vmem %s1, %s136
          // Predicated region
          $region29: #{multitask_yolo_forward.22} parent=27 // pred_check
            _
          $region30: #{multitask_yolo_forward.22} parent=27 // pred_check_branch
            %139 = sbr.rel (0) target = $region32
          $region31: #{multitask_yolo_forward.22} parent=27 // pred_region
            // Predicated region
            $region33: #{multitask_yolo_forward.22} parent=31 // pred_check
              _
            $region34: #{multitask_yolo_forward.22} parent=31 // pred_check_branch
              %141 = sbr.rel (0) target = $region36
            $region35: #{multitask_yolo_forward.22} parent=31 // pred_region
              // Predicated region
              $region48: #{multitask_yolo_forward.22} parent=35 // pred_check
                _
              $region49: #{multitask_yolo_forward.22} parent=35 // pred_check_branch
                %173 = sbr.rel (0) target = $region51
              $region50: #{multitask_yolo_forward.22} parent=35 // pred_region
                loop: start=0, step=1, limit=1
                $region52: #{multitask_yolo_forward.22} parent=50 // loop_pre_header
                  _
                $region53: #{multitask_yolo_forward.22} parent=50 // loop_header
                  %s175 = sphi 0, %s179
                  %p176 = scmp.ge.s32.totalorder %s175, 1
                  %s180 = sphi %s137, %s137
                  %s181 = sphi %s134, %s134
                $region54: #{multitask_yolo_forward.22} parent=50 // loop_header_branch
                  %178 = sbr.rel (%p176) target = $region58
                $region55: #{multitask_yolo_forward.22} parent=50 // loop_body
                  %v182 = vld [vmem:[%s180] sm:$0xff]
                  %183 = vst [vmem:[%s181] sm:$0xff] %v182
                  %v184 = vld [vmem:[%s180 + $0x10] sm:$0xff]
                  %185 = vst [vmem:[%s181 + $0x8] sm:$0xff] %v184
                  %v186 = vld [vmem:[%s180 + $0x20] sm:$0xff]
                  %187 = vst [vmem:[%s181 + $0x10] sm:$0xff] %v186
                  %v188 = vld [vmem:[%s180 + $0x30] sm:$0xff]
                  %189 = vst [vmem:[%s181 + $0x18] sm:$0xff] %v188
                  %v190 = vld [vmem:[%s180 + $0x40] sm:$0xff]
                  %191 = vst [vmem:[%s181 + $0x20] sm:$0xff] %v190
                  %v192 = vld [vmem:[%s180 + $0x50] sm:$0xff]
                  %193 = vst [vmem:[%s181 + $0x28] sm:$0xff] %v192
                  %v194 = vld [vmem:[%s180 + $0x60] sm:$0xff]
                  %195 = vst [vmem:[%s181 + $0x30] sm:$0xff] %v194
                  %v196 = vld [vmem:[%s180 + $0x70] sm:$0xff]
                  %197 = vst [vmem:[%s181 + $0x38] sm:$0xff] %v196
                  %v198 = vld [vmem:[%s180 + $0x80] sm:$0xff]
                  %199 = vst [vmem:[%s181 + $0x40] sm:$0xff] %v198
                $region56: #{multitask_yolo_forward.22} parent=50 // loop_footer
                  %s179 = sadd.s32 1, %s175
                $region57: #{multitask_yolo_forward.22} parent=50 // loop_footer_branch
                  %174 = sbr.rel target = $region53
                $region58: #{multitask_yolo_forward.22} parent=50 // loop_exit
                  _
              $region51: #{multitask_yolo_forward.22} parent=35 // pred_fallthru
                _
              // Predicated region
              $region59: #{multitask_yolo_forward.22} parent=35 // pred_check
                _
              $region60: #{multitask_yolo_forward.22} parent=35 // pred_check_branch
                %201 = sbr.rel target = $region62
              $region61: #{multitask_yolo_forward.22} parent=35 // pred_region
                _
              $region62: #{multitask_yolo_forward.22} parent=35 // pred_fallthru
                _
            $region36: #{multitask_yolo_forward.22} parent=31 // pred_fallthru
              _
            // Predicated region
            $region37: #{multitask_yolo_forward.22} parent=31 // pred_check
              _
            $region38: #{multitask_yolo_forward.22} parent=31 // pred_check_branch
              %143 = sbr.rel target = $region40
            $region39: #{multitask_yolo_forward.22} parent=31 // pred_region
              %s145 = ssub.s32 256, 1
              loop: start=0, step=1, limit=1
              $region41: #{multitask_yolo_forward.22} parent=39 // loop_pre_header
                _
              $region42: #{multitask_yolo_forward.22} parent=39 // loop_header
                %s147 = sphi 0, %s151
                %p148 = scmp.ge.s32.totalorder %s147, 1
                %s152 = sphi %s137, %s137
                %s153 = sphi %s134, %s134
              $region43: #{multitask_yolo_forward.22} parent=39 // loop_header_branch
                %150 = sbr.rel (%p148) target = $region47
              $region44: #{multitask_yolo_forward.22} parent=39 // loop_body
                %v154 = vld [vmem:[%s152] sm:%s145]
                %155 = vst [vmem:[%s153] sm:%s145] %v154
                %v156 = vld [vmem:[%s152 + $0x10] sm:%s145]
                %157 = vst [vmem:[%s153 + $0x8] sm:%s145] %v156
                %v158 = vld [vmem:[%s152 + $0x20] sm:%s145]
                %159 = vst [vmem:[%s153 + $0x10] sm:%s145] %v158
                %v160 = vld [vmem:[%s152 + $0x30] sm:%s145]
                %161 = vst [vmem:[%s153 + $0x18] sm:%s145] %v160
                %v162 = vld [vmem:[%s152 + $0x40] sm:%s145]
                %163 = vst [vmem:[%s153 + $0x20] sm:%s145] %v162
                %v164 = vld [vmem:[%s152 + $0x50] sm:%s145]
                %165 = vst [vmem:[%s153 + $0x28] sm:%s145] %v164
                %v166 = vld [vmem:[%s152 + $0x60] sm:%s145]
                %167 = vst [vmem:[%s153 + $0x30] sm:%s145] %v166
                %v168 = vld [vmem:[%s152 + $0x70] sm:%s145]
                %169 = vst [vmem:[%s153 + $0x38] sm:%s145] %v168
                %v170 = vld [vmem:[%s152 + $0x80] sm:%s145]
                %171 = vst [vmem:[%s153 + $0x40] sm:%s145] %v170
              $region45: #{multitask_yolo_forward.22} parent=39 // loop_footer
                %s151 = sadd.s32 1, %s147
              $region46: #{multitask_yolo_forward.22} parent=39 // loop_footer_branch
                %146 = sbr.rel target = $region42
              $region47: #{multitask_yolo_forward.22} parent=39 // loop_exit
                _
            $region40: #{multitask_yolo_forward.22} parent=31 // pred_fallthru
              _
          $region32: #{multitask_yolo_forward.22} parent=27 // pred_fallthru
            _
          %202 = vnop
        $region28: #{multitask_yolo_forward.22} parent=23 // pred_fallthru
          _
      $region24: #{multitask_yolo_forward.22} parent=5 // pred_fallthru
        _
      %p203 = scmp.le.s32.totalorder 1, %s9
      %p204 = scmp.lt.s32.totalorder %s9, 3
      %p205 = pnand %p203, %p204
      %p206 = pneg %p205
      // Predicated region
      $region63: #{multitask_yolo_forward.22} parent=5 // pred_check
        _
      $region64: #{multitask_yolo_forward.22} parent=5 // pred_check_branch
        %208 = sbr.rel (%p205) target = $region66
      $region65: #{multitask_yolo_forward.22} parent=5 // pred_region
        %s209 = ssub.s32 %s9, 1
        %s210 = sand.u32 %s43, 1
        %s211 = sand.u32 %s43, 1
        %s212 = smul.addr %s211, 72
        %s213 = scalar_lea.vmem [#allocation2], %s212
        // Predicated region
        $region67: #{multitask_yolo_forward.22} parent=65 // pred_check
          %p214 = pneg %p56
        $region68: #{multitask_yolo_forward.22} parent=65 // pred_check_branch
          %216 = sbr.rel (%p214) target = $region70
        $region69: #{multitask_yolo_forward.22} parent=65 // pred_region
          _
        $region70: #{multitask_yolo_forward.22} parent=65 // pred_fallthru
          _
        %p217 = pneg %p30
        %p218 = pneg %p27
        %s219 = sand.u32 %s43, 1
        %s220 = sand.u32 %s43, 1
        %s221 = smul.addr %s220, 72
        %s222 = scalar_lea.vmem [#allocation2], %s221
        %p223 = pneg %p56
        %p224 = pneg %p53
        %p225 = pneg %p77
        %p226 = pneg %p74
        %p227 = pneg %p103
        %p228 = pneg %p100
        %s229 = sand.u32 %s90, 1
        %s230 = sand.u32 %s90, 1
        %s231 = smul.addr %s230, 32
        %s232 = scalar_lea.vmem [#allocation3], %s231
        %s233 = smul.u32 2, %s14
        %s234 = smul.u32 2, %s14
        %v236 = vld [vmem:[%s0] sm:$0xf]
        %v237 = vld [vmem:[%s0 + $0x4] sm:$0xf]
        %v238 = vld [vmem:[%s213] sm:$0xff]
        %v239 = vld [vmem:[%s213 + $0x8] sm:$0xff]
        %v240 = vld [vmem:[%s213 + $0x10] sm:$0xff]
        %v241 = vld [vmem:[%s213 + $0x18] sm:$0xff]
        %v242 = vld [vmem:[%s213 + $0x20] sm:$0xff]
        %v243 = vld [vmem:[%s213 + $0x28] sm:$0xff]
        %v244 = vld [vmem:[%s213 + $0x30] sm:$0xff]
        %v245 = vld [vmem:[%s213 + $0x38] sm:$0xff]
        %v246 = vld [vmem:[%s213 + $0x40] sm:$0xff]
        %v247 = vld [vmem:[%s2] sm:$0xff]
        %v248 = vld [vmem:[%s2 + $0x8] sm:$0xff]
        %250 = vset.pattern.permute.xlu0 0
        %251 = vperm.xlu0 %250, %v247
        %v252 = vpop.permute.xlu0 %251
        %255 = vset.pattern.permute.xlu0 0
        %256 = vperm.xlu0 %255, %v248
        %v257 = vpop.permute.xlu0 %256
        %v261 = vunpack.c.l.b16 %v236
        %v262 = vunpack.c.l.b16 %v237
        %v263 = vpack.c.b16 %v262, %v261
        %v273 = vunpack.c.l.b16 %v238
        %v274 = vunpack.c.h.b16 %v238
        %v275 = vunpack.c.l.b16 %v239
        %v276 = vunpack.c.h.b16 %v239
        %v277 = vunpack.c.l.b16 %v240
        %v278 = vunpack.c.h.b16 %v240
        %v279 = vunpack.c.l.b16 %v241
        %v280 = vunpack.c.h.b16 %v241
        %v281 = vunpack.c.l.b16 %v242
        %v282 = vunpack.c.h.b16 %v242
        %v283 = vunpack.c.l.b16 %v243
        %v284 = vunpack.c.h.b16 %v243
        %v285 = vunpack.c.l.b16 %v244
        %v286 = vunpack.c.h.b16 %v244
        %v287 = vunpack.c.l.b16 %v245
        %v288 = vunpack.c.h.b16 %v245
        %v289 = vunpack.c.l.b16 %v246
        %v290 = vunpack.c.h.b16 %v246
        %v291 = vpack.c.b16 %v275, %v273
        %v292 = vpack.c.b16 %v276, %v274
        %v293 = vpack.c.b16 %v279, %v277
        %v294 = vpack.c.b16 %v280, %v278
        %v295 = vpack.c.b16 %v283, %v281
        %v296 = vpack.c.b16 %v284, %v282
        %v297 = vpack.c.b16 %v287, %v285
        %v298 = vpack.c.b16 %v288, %v286
        %v299 = vpack.c.b16 %v289, %v289
        %v300 = vpack.c.b16 %v290, %v290
        %vm309 = vcmask 588800
        %v311 = vsel %vm309, %v263, 0
        %vm313 = vcmask 1043456
        %v315 = vsel %vm313, %v299, 0
        %v318 = vsel %vm313, %v300, 0
        %320 = vmatpush.bf16.msra.mxu0 0
        %321 = vmatpush.bf16.msra.mxu0 0
        %322 = vmatpush.bf16.msra.mxu0 0
        %323 = vmatpush.bf16.msra.mxu0 %v315
        %324 = vmatpush.bf16.msra.mxu0 %v297
        %325 = vmatpush.bf16.msra.mxu0 %v295
        %326 = vmatpush.bf16.msra.mxu0 %v293
        %327 = vmatpush.bf16.msra.mxu0 %v291
        %328 = vmatmul.bf16.gmra.mxu0 %v311
        %v329 = vpop.f32.mrf.mxu0
        %v330 = vadd.f32 %v252, %v329
        %v331 = vpop.f32.mrf.mxu0
        %v332 = vadd.f32 %v257, %v331
        %333 = vdwg.mxu0
        %334 = vmatpush.bf16.msra.mxu0 0
        %335 = vmatpush.bf16.msra.mxu0 0
        %336 = vmatpush.bf16.msra.mxu0 0
        %337 = vmatpush.bf16.msra.mxu0 %v318
        %338 = vmatpush.bf16.msra.mxu0 %v298
        %339 = vmatpush.bf16.msra.mxu0 %v296
        %340 = vmatpush.bf16.msra.mxu0 %v294
        %341 = vmatpush.bf16.msra.mxu0 %v292
        %342 = vmatmul.bf16.gmra.mxu0 %v311
        %v343 = vpop.f32.mrf.mxu0
        %v344 = vadd.f32 %v252, %v343
        %v345 = vpop.f32.mrf.mxu0
        %v346 = vadd.f32 %v257, %v345
        %347 = vdwg.mxu0
        %v348 = vsub.f32 0.0, %v330
        %v349 = vsub.f32 0.0, %v344
        %v350 = vsub.f32 0.0, %v332
        %v351 = vsub.f32 0.0, %v346
        %v352 = vmul.f32 %v348, 1.442695
        %v353 = vpow.pop %v352
        %v354 = vmul.f32 %v349, 1.442695
        %v355 = vpow.pop %v354
        %v356 = vmul.f32 %v350, 1.442695
        %v357 = vpow.pop %v356
        %v358 = vmul.f32 %v351, 1.442695
        %v359 = vpow.pop %v358
        %v360 = vadd.f32 %v353, 1.0
        %v361 = vadd.f32 %v355, 1.0
        %v362 = vadd.f32 %v357, 1.0
        %v363 = vadd.f32 %v359, 1.0
        %v364 = vrcp.pop %v360
        %v365 = vrcp.pop %v361
        %v366 = vrcp.pop %v362
        %v367 = vrcp.pop %v363
        %v368 = vmul.f32 %v330, %v364
        %v369 = vmul.f32 %v344, %v365
        %v370 = vmul.f32 %v332, %v366
        %v371 = vmul.f32 %v346, %v367
        %372 = vst [vmem:[%s232] sm:$0xff] %v368
        %373 = vst [vmem:[%s232 + $0x8] sm:$0xff] %v369
        %374 = vst [vmem:[%s232 + $0x10] sm:$0xff] %v370
        %375 = vst [vmem:[%s232 + $0x18] sm:$0xff] %v371
        %s376 = sand.u32 %s90, 1
        %s377 = sand.u32 %s90, 1
        %s378 = smul.addr %s377, 32
        %s379 = scalar_lea.vmem [#allocation3], %s378
        // Predicated region
        $region71: #{multitask_yolo_forward.22} parent=65 // pred_check
          %p380 = pneg %p100
        $region72: #{multitask_yolo_forward.22} parent=65 // pred_check_branch
          %382 = sbr.rel (%p380) target = $region74
        $region73: #{multitask_yolo_forward.22} parent=65 // pred_region
          %s383 = smul.u32 2, %s14
          %s384 = smul.addr %s383, 8
          %s385 = scalar_lea.vmem %s3, %s384
          // Predicated region
          $region75: #{multitask_yolo_forward.22} parent=73 // pred_check
            _
          $region76: #{multitask_yolo_forward.22} parent=73 // pred_check_branch
            %387 = sbr.rel (0) target = $region78
          $region77: #{multitask_yolo_forward.22} parent=73 // pred_region
            // Predicated region
            $region79: #{multitask_yolo_forward.22} parent=77 // pred_check
              _
            $region80: #{multitask_yolo_forward.22} parent=77 // pred_check_branch
              %389 = sbr.rel (0) target = $region82
            $region81: #{multitask_yolo_forward.22} parent=77 // pred_region
              loop: start=0, step=1, limit=1
              $region83: #{multitask_yolo_forward.22} parent=81 // loop_pre_header
                _
              $region84: #{multitask_yolo_forward.22} parent=81 // loop_header
                %s391 = sphi 0, %s395
                %p392 = scmp.ge.s32.totalorder %s391, 1
                %s396 = sphi %s379, %s379
                %s397 = sphi %s385, %s385
              $region85: #{multitask_yolo_forward.22} parent=81 // loop_header_branch
                %394 = sbr.rel (%p392) target = $region89
              $region86: #{multitask_yolo_forward.22} parent=81 // loop_body
                %v398 = vld [vmem:[%s396] sm:$0xff]
                %399 = vst [vmem:[%s397] sm:$0xff] %v398
                %v400 = vld [vmem:[%s396 + $0x8] sm:$0xff]
                %401 = vst [vmem:[%s397 + $0x8] sm:$0xff] %v400
                %v402 = vld [vmem:[%s396 + $0x10] sm:$0xff]
                %403 = vst [vmem:[%s397 + $0x20] sm:$0xff] %v402
                %v404 = vld [vmem:[%s396 + $0x18] sm:$0xff]
                %405 = vst [vmem:[%s397 + $0x28] sm:$0xff] %v404
              $region87: #{multitask_yolo_forward.22} parent=81 // loop_footer
                %s395 = sadd.s32 1, %s391
              $region88: #{multitask_yolo_forward.22} parent=81 // loop_footer_branch
                %390 = sbr.rel target = $region84
              $region89: #{multitask_yolo_forward.22} parent=81 // loop_exit
                _
            $region82: #{multitask_yolo_forward.22} parent=77 // pred_fallthru
              _
            // Predicated region
            $region90: #{multitask_yolo_forward.22} parent=77 // pred_check
              _
            $region91: #{multitask_yolo_forward.22} parent=77 // pred_check_branch
              %407 = sbr.rel target = $region93
            $region92: #{multitask_yolo_forward.22} parent=77 // pred_region
              _
            $region93: #{multitask_yolo_forward.22} parent=77 // pred_fallthru
              _
          $region78: #{multitask_yolo_forward.22} parent=73 // pred_fallthru
            _
          %408 = vnop
        $region74: #{multitask_yolo_forward.22} parent=65 // pred_fallthru
          _
      $region66: #{multitask_yolo_forward.22} parent=5 // pred_fallthru
        _
      %p409 = scmp.le.s32.totalorder 2, %s9
      // Predicated region
      $region94: #{multitask_yolo_forward.22} parent=5 // pred_check
        %p410 = pneg %p409
      $region95: #{multitask_yolo_forward.22} parent=5 // pred_check_branch
        %412 = sbr.rel (%p410) target = $region97
      $region96: #{multitask_yolo_forward.22} parent=5 // pred_region
        %s413 = ssub.s32 %s9, 2
        // Predicated region
        $region98: #{multitask_yolo_forward.22} parent=96 // pred_check
          %p414 = pneg %p106
        $region99: #{multitask_yolo_forward.22} parent=96 // pred_check_branch
          %416 = sbr.rel (%p414) target = $region101
        $region100: #{multitask_yolo_forward.22} parent=96 // pred_region
          %s417 = sand.u32 %s91, 1
          %s418 = sand.u32 %s91, 1
          %s419 = smul.addr %s418, 32
          %s420 = scalar_lea.vmem [#allocation3], %s419
        $region101: #{multitask_yolo_forward.22} parent=96 // pred_fallthru
          _
      $region97: #{multitask_yolo_forward.22} parent=5 // pred_fallthru
        _
    $region6: #{multitask_yolo_forward.22} parent=1 // loop_footer
      %s13 = sadd.s32 1, %s9
    $region7: #{multitask_yolo_forward.22} parent=1 // loop_footer_branch
      %8 = sbr.rel target = $region3
    $region8: #{multitask_yolo_forward.22} parent=1 // loop_exit
      _

// kernel: multitask_yolo_forward.23
$region0: #{multitask_yolo_forward.23}
  #allocation0 [shape = 'u32[]', space=smem, size = 0x4, offset = 0x4, fixed_abs, tag = 'smem constant byte address 0x4 - core index']
  #allocation1 [shape = 'u32[72,128]{1,0:T(1,128)}', space=vmem, size = 0x9000, scoped, tag = 'internal scratch']
  %s0 = inlined_call_operand.vmem [shape: bf16[16,144], index: 0, kind: input, shape index: {}]
  %s1 = inlined_call_operand.vmem [shape: bf16[144,512], index: 1, kind: input, shape index: {}]
  %s2 = inlined_call_operand.vmem [shape: f32[16,1], index: 2, kind: input, shape index: {}]
  %s3 = inlined_call_operand.vmem [shape: f32[16,512], index: 3, kind: output, shape index: {}]
  %s4 = sld [smem:[#allocation0]]
  $region102: #{multitask_yolo_forward.23} parent=0
    _
  %s6 = ssub.s32 1, %s4
  %s7 = scalar_select 0, %s6, %s4
  $region1: #{multitask_yolo_forward.23} parent=0
    #allocation2 [shape = 'u8[147456]{0}', space=vmem, size = 0x24000, scoped, tag = 'input window, operand 1']
    #allocation3 [shape = 'u8[32768]{0}', space=vmem, size = 0x8000, scoped, tag = 'output window, operand 0']
    loop: start=0, step=1, limit=4
    $region2: #{multitask_yolo_forward.23} parent=1 // loop_pre_header
      _
    $region3: #{multitask_yolo_forward.23} parent=1 // loop_header
      %s9 = sphi 0, %s13
      %p10 = scmp.ge.s32.totalorder %s9, 4
      %s17 = sphi 0, %s17
      %s19 = sphi 0, %s17
      %s20 = sphi 0, %s19
      %s34 = sphi 0, %s20
      %s40 = sphi 0, %s42
      %s43 = sphi 0, %s40
      %s44 = sphi 0, %s43
      %s60 = sphi 0, %s44
      %s64 = sphi 0, %s64
      %s66 = sphi 0, %s64
      %s67 = sphi 0, %s66
      %s81 = sphi 0, %s67
      %s87 = sphi 0, %s89
      %s90 = sphi 0, %s87
      %s91 = sphi 0, %s90
      %s107 = sphi 0, %s91
    $region4: #{multitask_yolo_forward.23} parent=1 // loop_header_branch
      %12 = sbr.rel (%p10) target = $region8
    $region5: #{multitask_yolo_forward.23} parent=1 // loop_body
      %s14 = ssub.s32 %s9, 1
      %s15 = ssub.s32 %s9, 2
      %s16 = sadd.s32 %s9, 1
      %s18 = sadd.s32 %s17, 1
      %p21 = scmp.eq.s32.totalorder %s9, 1
      %p22 = scmp.ne.s32.totalorder %s17, %s19
      %p23 = scmp.eq.s32.totalorder %s9, 0
      %p24 = por %p22, %p23
      %p25 = scmp.ne.s32.totalorder %s17, %s19
      %p26 = scmp.eq.s32.totalorder %s14, 1
      %p27 = por %p25, %p26
      %p28 = scmp.ne.s32.totalorder %s19, %s20
      %p29 = scmp.eq.s32.totalorder %s14, 0
      %p30 = por %p28, %p29
      %p31 = scmp.ne.s32.totalorder %s19, %s20
      %p32 = scmp.eq.s32.totalorder %s15, 1
      %p33 = por %p31, %p32
      %p35 = scmp.ne.s32.totalorder %s20, %s34
      %p36 = scmp.eq.s32.totalorder %s15, 0
      %p37 = por %p35, %p36
      %s38 = ssub.s32 %s9, %s16
      %p39 = scmp.eq.s32.totalorder %s38, 0
      %s41 = sadd.s32 %s40, 1
      %s42 = scalar_select %p39, %s40, %s41
      %p45 = pneg %p39
      %p46 = scmp.eq.s32.totalorder %s9, 1
      %p47 = por %p45, %p46
      %p48 = scmp.ne.s32.totalorder %s40, %s43
      %p49 = scmp.eq.s32.totalorder %s9, 0
      %p50 = por %p48, %p49
      %p51 = scmp.ne.s32.totalorder %s40, %s43
      %p52 = scmp.eq.s32.totalorder %s14, 1
      %p53 = por %p51, %p52
      %p54 = scmp.ne.s32.totalorder %s43, %s44
      %p55 = scmp.eq.s32.totalorder %s14, 0
      %p56 = por %p54, %p55
      %p57 = scmp.ne.s32.totalorder %s43, %s44
      %p58 = scmp.eq.s32.totalorder %s15, 1
      %p59 = por %p57, %p58
      %p61 = scmp.ne.s32.totalorder %s44, %s60
      %p62 = scmp.eq.s32.totalorder %s15, 0
      %p63 = por %p61, %p62
      %s65 = sadd.s32 %s64, 1
      %p68 = scmp.eq.s32.totalorder %s9, 1
      %p69 = scmp.ne.s32.totalorder %s64, %s66
      %p70 = scmp.eq.s32.totalorder %s9, 0
      %p71 = por %p69, %p70
      %p72 = scmp.ne.s32.totalorder %s64, %s66
      %p73 = scmp.eq.s32.totalorder %s14, 1
      %p74 = por %p72, %p73
      %p75 = scmp.ne.s32.totalorder %s66, %s67
      %p76 = scmp.eq.s32.totalorder %s14, 0
      %p77 = por %p75, %p76
      %p78 = scmp.ne.s32.totalorder %s66, %s67
      %p79 = scmp.eq.s32.totalorder %s15, 1
      %p80 = por %p78, %p79
      %p82 = scmp.ne.s32.totalorder %s67, %s81
      %p83 = scmp.eq.s32.totalorder %s15, 0
      %p84 = por %p82, %p83
      %s85 = ssub.s32 %s9, %s16
      %p86 = scmp.eq.s32.totalorder %s85, 0
      %s88 = sadd.s32 %s87, 1
      %s89 = scalar_select %p86, %s87, %s88
      %p92 = pneg %p86
      %p93 = scmp.eq.s32.totalorder %s9, 1
      %p94 = por %p92, %p93
      %p95 = scmp.ne.s32.totalorder %s87, %s90
      %p96 = scmp.eq.s32.totalorder %s9, 0
      %p97 = por %p95, %p96
      %p98 = scmp.ne.s32.totalorder %s87, %s90
      %p99 = scmp.eq.s32.totalorder %s14, 1
      %p100 = por %p98, %p99
      %p101 = scmp.ne.s32.totalorder %s90, %s91
      %p102 = scmp.eq.s32.totalorder %s14, 0
      %p103 = por %p101, %p102
      %p104 = scmp.ne.s32.totalorder %s90, %s91
      %p105 = scmp.eq.s32.totalorder %s15, 1
      %p106 = por %p104, %p105
      %p108 = scmp.ne.s32.totalorder %s91, %s107
      %p109 = scmp.eq.s32.totalorder %s15, 0
      %p110 = por %p108, %p109
      %p111 = scmp.le.s32.totalorder 1, %s9
      %p112 = scmp.lt.s32.totalorder %s9, 3
      %p113 = pnand %p111, %p112
      %p114 = pneg %p113
      // Predicated region
      $region9: #{multitask_yolo_forward.23} parent=5 // pred_check
        _
      $region10: #{multitask_yolo_forward.23} parent=5 // pred_check_branch
        %116 = sbr.rel (%p113) target = $region12
      $region11: #{multitask_yolo_forward.23} parent=5 // pred_region
        %s117 = ssub.s32 %s9, 1
        // Predicated region
        $region13: #{multitask_yolo_forward.23} parent=11 // pred_check
          %p118 = pneg %p30
        $region14: #{multitask_yolo_forward.23} parent=11 // pred_check_branch
          %120 = sbr.rel (%p118) target = $region16
        $region15: #{multitask_yolo_forward.23} parent=11 // pred_region
          _
        $region16: #{multitask_yolo_forward.23} parent=11 // pred_fallthru
          _
        // Predicated region
        $region17: #{multitask_yolo_forward.23} parent=11 // pred_check
          %p121 = pneg %p77
        $region18: #{multitask_yolo_forward.23} parent=11 // pred_check_branch
          %123 = sbr.rel (%p121) target = $region20
        $region19: #{multitask_yolo_forward.23} parent=11 // pred_region
          _
        $region20: #{multitask_yolo_forward.23} parent=11 // pred_fallthru
          _
      $region12: #{multitask_yolo_forward.23} parent=5 // pred_fallthru
        _
      %p124 = scmp.lt.s32.totalorder %s9, 2
      // Predicated region
      $region21: #{multitask_yolo_forward.23} parent=5 // pred_check
        %p125 = pneg %p124
      $region22: #{multitask_yolo_forward.23} parent=5 // pred_check_branch
        %127 = sbr.rel (%p125) target = $region24
      $region23: #{multitask_yolo_forward.23} parent=5 // pred_region
        // Predicated region
        $region25: #{multitask_yolo_forward.23} parent=23 // pred_check
          %p128 = pneg %p50
        $region26: #{multitask_yolo_forward.23} parent=23 // pred_check_branch
          %130 = sbr.rel (%p128) target = $region28
        $region27: #{multitask_yolo_forward.23} parent=23 // pred_region
          %s131 = sand.u32 %s40, 1
          %s132 = sand.u32 %s40, 1
          %s133 = smul.addr %s132, 144
          %s134 = scalar_lea.vmem [#allocation2], %s133
          %s135 = smul.u32 2, %s9
          %s136 = smul.addr %s135, 4
          %s137 = scalar_lea.vmem %s1, %s136
          // Predicated region
          $region29: #{multitask_yolo_forward.23} parent=27 // pred_check
            _
          $region30: #{multitask_yolo_forward.23} parent=27 // pred_check_branch
            %139 = sbr.rel (0) target = $region32
          $region31: #{multitask_yolo_forward.23} parent=27 // pred_region
            // Predicated region
            $region33: #{multitask_yolo_forward.23} parent=31 // pred_check
              _
            $region34: #{multitask_yolo_forward.23} parent=31 // pred_check_branch
              %141 = sbr.rel (0) target = $region36
            $region35: #{multitask_yolo_forward.23} parent=31 // pred_region
              // Predicated region
              $region48: #{multitask_yolo_forward.23} parent=35 // pred_check
                _
              $region49: #{multitask_yolo_forward.23} parent=35 // pred_check_branch
                %191 = sbr.rel (0) target = $region51
              $region50: #{multitask_yolo_forward.23} parent=35 // pred_region
                loop: start=0, step=1, limit=1
                $region52: #{multitask_yolo_forward.23} parent=50 // loop_pre_header
                  _
                $region53: #{multitask_yolo_forward.23} parent=50 // loop_header
                  %s193 = sphi 0, %s197
                  %p194 = scmp.ge.s32.totalorder %s193, 1
                  %s198 = sphi %s137, %s137
                  %s199 = sphi %s134, %s134
                $region54: #{multitask_yolo_forward.23} parent=50 // loop_header_branch
                  %196 = sbr.rel (%p194) target = $region58
                $region55: #{multitask_yolo_forward.23} parent=50 // loop_body
                  %v200 = vld [vmem:[%s198] sm:$0xff]
                  %201 = vst [vmem:[%s199] sm:$0xff] %v200
                  %v202 = vld [vmem:[%s198 + $0x10] sm:$0xff]
                  %203 = vst [vmem:[%s199 + $0x8] sm:$0xff] %v202
                  %v204 = vld [vmem:[%s198 + $0x20] sm:$0xff]
                  %205 = vst [vmem:[%s199 + $0x10] sm:$0xff] %v204
                  %v206 = vld [vmem:[%s198 + $0x30] sm:$0xff]
                  %207 = vst [vmem:[%s199 + $0x18] sm:$0xff] %v206
                  %v208 = vld [vmem:[%s198 + $0x40] sm:$0xff]
                  %209 = vst [vmem:[%s199 + $0x20] sm:$0xff] %v208
                  %v210 = vld [vmem:[%s198 + $0x50] sm:$0xff]
                  %211 = vst [vmem:[%s199 + $0x28] sm:$0xff] %v210
                  %v212 = vld [vmem:[%s198 + $0x60] sm:$0xff]
                  %213 = vst [vmem:[%s199 + $0x30] sm:$0xff] %v212
                  %v214 = vld [vmem:[%s198 + $0x70] sm:$0xff]
                  %215 = vst [vmem:[%s199 + $0x38] sm:$0xff] %v214
                  %v216 = vld [vmem:[%s198 + $0x80] sm:$0xff]
                  %217 = vst [vmem:[%s199 + $0x40] sm:$0xff] %v216
                  %v218 = vld [vmem:[%s198 + $0x90] sm:$0xff]
                  %219 = vst [vmem:[%s199 + $0x48] sm:$0xff] %v218
                  %v220 = vld [vmem:[%s198 + $0xa0] sm:$0xff]
                  %221 = vst [vmem:[%s199 + $0x50] sm:$0xff] %v220
                  %v222 = vld [vmem:[%s198 + $0xb0] sm:$0xff]
                  %223 = vst [vmem:[%s199 + $0x58] sm:$0xff] %v222
                  %v224 = vld [vmem:[%s198 + $0xc0] sm:$0xff]
                  %225 = vst [vmem:[%s199 + $0x60] sm:$0xff] %v224
                  %v226 = vld [vmem:[%s198 + $0xd0] sm:$0xff]
                  %227 = vst [vmem:[%s199 + $0x68] sm:$0xff] %v226
                  %v228 = vld [vmem:[%s198 + $0xe0] sm:$0xff]
                  %229 = vst [vmem:[%s199 + $0x70] sm:$0xff] %v228
                  %v230 = vld [vmem:[%s198 + $0xf0] sm:$0xff]
                  %231 = vst [vmem:[%s199 + $0x78] sm:$0xff] %v230
                  %v232 = vld [vmem:[%s198 + $0x100] sm:$0xff]
                  %233 = vst [vmem:[%s199 + $0x80] sm:$0xff] %v232
                  %v234 = vld [vmem:[%s198 + $0x110] sm:$0xff]
                  %235 = vst [vmem:[%s199 + $0x88] sm:$0xff] %v234
                $region56: #{multitask_yolo_forward.23} parent=50 // loop_footer
                  %s197 = sadd.s32 1, %s193
                $region57: #{multitask_yolo_forward.23} parent=50 // loop_footer_branch
                  %192 = sbr.rel target = $region53
                $region58: #{multitask_yolo_forward.23} parent=50 // loop_exit
                  _
              $region51: #{multitask_yolo_forward.23} parent=35 // pred_fallthru
                _
              // Predicated region
              $region59: #{multitask_yolo_forward.23} parent=35 // pred_check
                _
              $region60: #{multitask_yolo_forward.23} parent=35 // pred_check_branch
                %237 = sbr.rel target = $region62
              $region61: #{multitask_yolo_forward.23} parent=35 // pred_region
                _
              $region62: #{multitask_yolo_forward.23} parent=35 // pred_fallthru
                _
            $region36: #{multitask_yolo_forward.23} parent=31 // pred_fallthru
              _
            // Predicated region
            $region37: #{multitask_yolo_forward.23} parent=31 // pred_check
              _
            $region38: #{multitask_yolo_forward.23} parent=31 // pred_check_branch
              %143 = sbr.rel target = $region40
            $region39: #{multitask_yolo_forward.23} parent=31 // pred_region
              %s145 = ssub.s32 256, 1
              loop: start=0, step=1, limit=1
              $region41: #{multitask_yolo_forward.23} parent=39 // loop_pre_header
                _
              $region42: #{multitask_yolo_forward.23} parent=39 // loop_header
                %s147 = sphi 0, %s151
                %p148 = scmp.ge.s32.totalorder %s147, 1
                %s152 = sphi %s137, %s137
                %s153 = sphi %s134, %s134
              $region43: #{multitask_yolo_forward.23} parent=39 // loop_header_branch
                %150 = sbr.rel (%p148) target = $region47
              $region44: #{multitask_yolo_forward.23} parent=39 // loop_body
                %v154 = vld [vmem:[%s152] sm:%s145]
                %155 = vst [vmem:[%s153] sm:%s145] %v154
                %v156 = vld [vmem:[%s152 + $0x10] sm:%s145]
                %157 = vst [vmem:[%s153 + $0x8] sm:%s145] %v156
                %v158 = vld [vmem:[%s152 + $0x20] sm:%s145]
                %159 = vst [vmem:[%s153 + $0x10] sm:%s145] %v158
                %v160 = vld [vmem:[%s152 + $0x30] sm:%s145]
                %161 = vst [vmem:[%s153 + $0x18] sm:%s145] %v160
                %v162 = vld [vmem:[%s152 + $0x40] sm:%s145]
                %163 = vst [vmem:[%s153 + $0x20] sm:%s145] %v162
                %v164 = vld [vmem:[%s152 + $0x50] sm:%s145]
                %165 = vst [vmem:[%s153 + $0x28] sm:%s145] %v164
                %v166 = vld [vmem:[%s152 + $0x60] sm:%s145]
                %167 = vst [vmem:[%s153 + $0x30] sm:%s145] %v166
                %v168 = vld [vmem:[%s152 + $0x70] sm:%s145]
                %169 = vst [vmem:[%s153 + $0x38] sm:%s145] %v168
                %v170 = vld [vmem:[%s152 + $0x80] sm:%s145]
                %171 = vst [vmem:[%s153 + $0x40] sm:%s145] %v170
                %v172 = vld [vmem:[%s152 + $0x90] sm:%s145]
                %173 = vst [vmem:[%s153 + $0x48] sm:%s145] %v172
                %v174 = vld [vmem:[%s152 + $0xa0] sm:%s145]
                %175 = vst [vmem:[%s153 + $0x50] sm:%s145] %v174
                %v176 = vld [vmem:[%s152 + $0xb0] sm:%s145]
                %177 = vst [vmem:[%s153 + $0x58] sm:%s145] %v176
                %v178 = vld [vmem:[%s152 + $0xc0] sm:%s145]
                %179 = vst [vmem:[%s153 + $0x60] sm:%s145] %v178
                %v180 = vld [vmem:[%s152 + $0xd0] sm:%s145]
                %181 = vst [vmem:[%s153 + $0x68] sm:%s145] %v180
                %v182 = vld [vmem:[%s152 + $0xe0] sm:%s145]
                %183 = vst [vmem:[%s153 + $0x70] sm:%s145] %v182
                %v184 = vld [vmem:[%s152 + $0xf0] sm:%s145]
                %185 = vst [vmem:[%s153 + $0x78] sm:%s145] %v184
                %v186 = vld [vmem:[%s152 + $0x100] sm:%s145]
                %187 = vst [vmem:[%s153 + $0x80] sm:%s145] %v186
                %v188 = vld [vmem:[%s152 + $0x110] sm:%s145]
                %189 = vst [vmem:[%s153 + $0x88] sm:%s145] %v188
              $region45: #{multitask_yolo_forward.23} parent=39 // loop_footer
                %s151 = sadd.s32 1, %s147
              $region46: #{multitask_yolo_forward.23} parent=39 // loop_footer_branch
                %146 = sbr.rel target = $region42
              $region47: #{multitask_yolo_forward.23} parent=39 // loop_exit
                _
            $region40: #{multitask_yolo_forward.23} parent=31 // pred_fallthru
              _
          $region32: #{multitask_yolo_forward.23} parent=27 // pred_fallthru
            _
          %238 = vnop
        $region28: #{multitask_yolo_forward.23} parent=23 // pred_fallthru
          _
      $region24: #{multitask_yolo_forward.23} parent=5 // pred_fallthru
        _
      %p239 = scmp.le.s32.totalorder 1, %s9
      %p240 = scmp.lt.s32.totalorder %s9, 3
      %p241 = pnand %p239, %p240
      %p242 = pneg %p241
      // Predicated region
      $region63: #{multitask_yolo_forward.23} parent=5 // pred_check
        _
      $region64: #{multitask_yolo_forward.23} parent=5 // pred_check_branch
        %244 = sbr.rel (%p241) target = $region66
      $region65: #{multitask_yolo_forward.23} parent=5 // pred_region
        %s245 = ssub.s32 %s9, 1
        %s246 = sand.u32 %s43, 1
        %s247 = sand.u32 %s43, 1
        %s248 = smul.addr %s247, 144
        %s249 = scalar_lea.vmem [#allocation2], %s248
        // Predicated region
        $region67: #{multitask_yolo_forward.23} parent=65 // pred_check
          %p250 = pneg %p56
        $region68: #{multitask_yolo_forward.23} parent=65 // pred_check_branch
          %252 = sbr.rel (%p250) target = $region70
        $region69: #{multitask_yolo_forward.23} parent=65 // pred_region
          _
        $region70: #{multitask_yolo_forward.23} parent=65 // pred_fallthru
          _
        %p253 = pneg %p30
        %p254 = pneg %p27
        %s255 = sand.u32 %s43, 1
        %s256 = sand.u32 %s43, 1
        %s257 = smul.addr %s256, 144
        %s258 = scalar_lea.vmem [#allocation2], %s257
        %p259 = pneg %p56
        %p260 = pneg %p53
        %p261 = pneg %p77
        %p262 = pneg %p74
        %p263 = pneg %p103
        %p264 = pneg %p100
        %s265 = sand.u32 %s90, 1
        %s266 = sand.u32 %s90, 1
        %s267 = smul.addr %s266, 32
        %s268 = scalar_lea.vmem [#allocation3], %s267
        %s269 = smul.u32 2, %s14
        %s270 = smul.u32 2, %s14
        %v272 = vld [vmem:[%s0] sm:$0xff]
        %v273 = vld [vmem:[%s0 + $0x8] sm:$0xff]
        %v274 = vld [vmem:[%s249] sm:$0xff]
        %v275 = vld [vmem:[%s249 + $0x8] sm:$0xff]
        %v276 = vld [vmem:[%s249 + $0x10] sm:$0xff]
        %v277 = vld [vmem:[%s249 + $0x18] sm:$0xff]
        %v278 = vld [vmem:[%s249 + $0x20] sm:$0xff]
        %v279 = vld [vmem:[%s249 + $0x28] sm:$0xff]
        %v280 = vld [vmem:[%s249 + $0x30] sm:$0xff]
        %v281 = vld [vmem:[%s249 + $0x38] sm:$0xff]
        %v282 = vld [vmem:[%s249 + $0x40] sm:$0xff]
        %v283 = vld [vmem:[%s249 + $0x48] sm:$0xff]
        %v284 = vld [vmem:[%s249 + $0x50] sm:$0xff]
        %v285 = vld [vmem:[%s249 + $0x58] sm:$0xff]
        %v286 = vld [vmem:[%s249 + $0x60] sm:$0xff]
        %v287 = vld [vmem:[%s249 + $0x68] sm:$0xff]
        %v288 = vld [vmem:[%s249 + $0x70] sm:$0xff]
        %v289 = vld [vmem:[%s249 + $0x78] sm:$0xff]
        %v290 = vld [vmem:[%s249 + $0x80] sm:$0xff]
        %v291 = vld [vmem:[%s249 + $0x88] sm:$0xff]
        %v292 = vld [vmem:[%s2] sm:$0xff]
        %v293 = vld [vmem:[%s2 + $0x8] sm:$0xff]
        %295 = vset.pattern.permute.xlu0 0
        %296 = vperm.xlu0 %295, %v292
        %v297 = vpop.permute.xlu0 %296
        %300 = vset.pattern.permute.xlu0 0
        %301 = vperm.xlu0 %300, %v293
        %v302 = vpop.permute.xlu0 %301
        %v306 = vunpack.c.l.b16 %v272
        %v307 = vunpack.c.h.b16 %v272
        %v308 = vunpack.c.l.b16 %v273
        %v309 = vunpack.c.h.b16 %v273
        %v310 = vpack.c.b16 %v308, %v306
        %v311 = vpack.c.b16 %v309, %v307
        %v331 = vunpack.c.l.b16 %v274
        %v332 = vunpack.c.h.b16 %v274
        %v333 = vunpack.c.l.b16 %v275
        %v334 = vunpack.c.h.b16 %v275
        %v335 = vunpack.c.l.b16 %v276
        %v336 = vunpack.c.h.b16 %v276
        %v337 = vunpack.c.l.b16 %v277
        %v338 = vunpack.c.h.b16 %v277
        %v339 = vunpack.c.l.b16 %v278
        %v340 = vunpack.c.h.b16 %v278
        %v341 = vunpack.c.l.b16 %v279
        %v342 = vunpack.c.h.b16 %v279
        %v343 = vunpack.c.l.b16 %v280
        %v344 = vunpack.c.h.b16 %v280
        %v345 = vunpack.c.l.b16 %v281
        %v346 = vunpack.c.h.b16 %v281
        %v347 = vunpack.c.l.b16 %v282
        %v348 = vunpack.c.h.b16 %v282
        %v349 = vunpack.c.l.b16 %v283
        %v350 = vunpack.c.h.b16 %v283
        %v351 = vunpack.c.l.b16 %v284
        %v352 = vunpack.c.h.b16 %v284
        %v353 = vunpack.c.l.b16 %v285
        %v354 = vunpack.c.h.b16 %v285
        %v355 = vunpack.c.l.b16 %v286
        %v356 = vunpack.c.h.b16 %v286
        %v357 = vunpack.c.l.b16 %v287
        %v358 = vunpack.c.h.b16 %v287
        %v359 = vunpack.c.l.b16 %v288
        %v360 = vunpack.c.h.b16 %v288
        %v361 = vunpack.c.l.b16 %v289
        %v362 = vunpack.c.h.b16 %v289
        %v363 = vunpack.c.l.b16 %v290
        %v364 = vunpack.c.h.b16 %v290
        %v365 = vunpack.c.l.b16 %v291
        %v366 = vunpack.c.h.b16 %v291
        %v367 = vpack.c.b16 %v333, %v331
        %v368 = vpack.c.b16 %v334, %v332
        %v369 = vpack.c.b16 %v337, %v335
        %v370 = vpack.c.b16 %v338, %v336
        %v371 = vpack.c.b16 %v341, %v339
        %v372 = vpack.c.b16 %v342, %v340
        %v373 = vpack.c.b16 %v345, %v343
        %v374 = vpack.c.b16 %v346, %v344
        %v375 = vpack.c.b16 %v349, %v347
        %v376 = vpack.c.b16 %v350, %v348
        %v377 = vpack.c.b16 %v353, %v351
        %v378 = vpack.c.b16 %v354, %v352
        %v379 = vpack.c.b16 %v357, %v355
        %v380 = vpack.c.b16 %v358, %v356
        %v381 = vpack.c.b16 %v361, %v359
        %v382 = vpack.c.b16 %v362, %v360
        %v383 = vpack.c.b16 %v365, %v363
        %v384 = vpack.c.b16 %v366, %v364
        %vm403 = vcmask 130048
        %v405 = vsel %vm403, %v311, 0
        %407 = vmatpush.bf16.msra.mxu0 %v381
        %408 = vmatpush.bf16.msra.mxu0 %v379
        %409 = vmatpush.bf16.msra.mxu0 %v377
        %410 = vmatpush.bf16.msra.mxu0 %v375
        %411 = vmatpush.bf16.msra.mxu0 %v373
        %412 = vmatpush.bf16.msra.mxu0 %v371
        %413 = vmatpush.bf16.msra.mxu0 %v369
        %414 = vmatpush.bf16.msra.mxu0 %v367
        %415 = vmatmul.bf16.gmra.mxu0 %v310
        %v416 = vpop.f32.mrf.mxu0
        %v417 = vadd.f32 %v297, %v416
        %v418 = vpop.f32.mrf.mxu0
        %v419 = vadd.f32 %v302, %v418
        %420 = vdwg.mxu0
        %421 = vmatpush.bf16.msra.mxu0 0
        %422 = vmatpush.bf16.msra.mxu0 0
        %423 = vmatpush.bf16.msra.mxu0 0
        %424 = vmatpush.bf16.msra.mxu0 0
        %425 = vmatpush.bf16.msra.mxu0 0
        %426 = vmatpush.bf16.msra.mxu0 0
        %427 = vmatpush.bf16.msra.mxu0 0
        %428 = vmatpush.bf16.msra.mxu0 %v383
        %429 = vmatmul.bf16.gmra.mxu0 %v405
        %v430 = vpop.f32.mrf.mxu0
        %v431 = vadd.f32 %v417, %v430
        %v432 = vpop.f32.mrf.mxu0
        %v433 = vadd.f32 %v419, %v432
        %434 = vdwg.mxu0
        %435 = vmatpush.bf16.msra.mxu0 %v382
        %436 = vmatpush.bf16.msra.mxu0 %v380
        %437 = vmatpush.bf16.msra.mxu0 %v378
        %438 = vmatpush.bf16.msra.mxu0 %v376
        %439 = vmatpush.bf16.msra.mxu0 %v374
        %440 = vmatpush.bf16.msra.mxu0 %v372
        %441 = vmatpush.bf16.msra.mxu0 %v370
        %442 = vmatpush.bf16.msra.mxu0 %v368
        %443 = vmatmul.bf16.gmra.mxu0 %v310
        %v444 = vpop.f32.mrf.mxu0
        %v445 = vadd.f32 %v297, %v444
        %v446 = vpop.f32.mrf.mxu0
        %v447 = vadd.f32 %v302, %v446
        %448 = vdwg.mxu0
        %449 = vmatpush.bf16.msra.mxu0 0
        %450 = vmatpush.bf16.msra.mxu0 0
        %451 = vmatpush.bf16.msra.mxu0 0
        %452 = vmatpush.bf16.msra.mxu0 0
        %453 = vmatpush.bf16.msra.mxu0 0
        %454 = vmatpush.bf16.msra.mxu0 0
        %455 = vmatpush.bf16.msra.mxu0 0
        %456 = vmatpush.bf16.msra.mxu0 %v384
        %457 = vmatmul.bf16.gmra.mxu0 %v405
        %v458 = vpop.f32.mrf.mxu0
        %v459 = vadd.f32 %v445, %v458
        %v460 = vpop.f32.mrf.mxu0
        %v461 = vadd.f32 %v447, %v460
        %462 = vdwg.mxu0
        %v463 = vsub.f32 0.0, %v431
        %v464 = vsub.f32 0.0, %v459
        %v465 = vsub.f32 0.0, %v433
        %v466 = vsub.f32 0.0, %v461
        %v467 = vmul.f32 %v463, 1.442695
        %v468 = vpow.pop %v467
        %v469 = vmul.f32 %v464, 1.442695
        %v470 = vpow.pop %v469
        %v471 = vmul.f32 %v465, 1.442695
        %v472 = vpow.pop %v471
        %v473 = vmul.f32 %v466, 1.442695
        %v474 = vpow.pop %v473
        %v475 = vadd.f32 %v468, 1.0
        %v476 = vadd.f32 %v470, 1.0
        %v477 = vadd.f32 %v472, 1.0
        %v478 = vadd.f32 %v474, 1.0
        %v479 = vrcp.pop %v475
        %v480 = vrcp.pop %v476
        %v481 = vrcp.pop %v477
        %v482 = vrcp.pop %v478
        %v483 = vmul.f32 %v431, %v479
        %v484 = vmul.f32 %v459, %v480
        %v485 = vmul.f32 %v433, %v481
        %v486 = vmul.f32 %v461, %v482
        %487 = vst [vmem:[%s268] sm:$0xff] %v483
        %488 = vst [vmem:[%s268 + $0x8] sm:$0xff] %v484
        %489 = vst [vmem:[%s268 + $0x10] sm:$0xff] %v485
        %490 = vst [vmem:[%s268 + $0x18] sm:$0xff] %v486
        %s491 = sand.u32 %s90, 1
        %s492 = sand.u32 %s90, 1
        %s493 = smul.addr %s492, 32
        %s494 = scalar_lea.vmem [#allocation3], %s493
        // Predicated region
        $region71: #{multitask_yolo_forward.23} parent=65 // pred_check
          %p495 = pneg %p100
        $region72: #{multitask_yolo_forward.23} parent=65 // pred_check_branch
          %497 = sbr.rel (%p495) target = $region74
        $region73: #{multitask_yolo_forward.23} parent=65 // pred_region
          %s498 = smul.u32 2, %s14
          %s499 = smul.addr %s498, 8
          %s500 = scalar_lea.vmem %s3, %s499
          // Predicated region
          $region75: #{multitask_yolo_forward.23} parent=73 // pred_check
            _
          $region76: #{multitask_yolo_forward.23} parent=73 // pred_check_branch
            %502 = sbr.rel (0) target = $region78
          $region77: #{multitask_yolo_forward.23} parent=73 // pred_region
            // Predicated region
            $region79: #{multitask_yolo_forward.23} parent=77 // pred_check
              _
            $region80: #{multitask_yolo_forward.23} parent=77 // pred_check_branch
              %504 = sbr.rel (0) target = $region82
            $region81: #{multitask_yolo_forward.23} parent=77 // pred_region
              loop: start=0, step=1, limit=1
              $region83: #{multitask_yolo_forward.23} parent=81 // loop_pre_header
                _
              $region84: #{multitask_yolo_forward.23} parent=81 // loop_header
                %s506 = sphi 0, %s510
                %p507 = scmp.ge.s32.totalorder %s506, 1
                %s511 = sphi %s494, %s494
                %s512 = sphi %s500, %s500
              $region85: #{multitask_yolo_forward.23} parent=81 // loop_header_branch
                %509 = sbr.rel (%p507) target = $region89
              $region86: #{multitask_yolo_forward.23} parent=81 // loop_body
                %v513 = vld [vmem:[%s511] sm:$0xff]
                %514 = vst [vmem:[%s512] sm:$0xff] %v513
                %v515 = vld [vmem:[%s511 + $0x8] sm:$0xff]
                %516 = vst [vmem:[%s512 + $0x8] sm:$0xff] %v515
                %v517 = vld [vmem:[%s511 + $0x10] sm:$0xff]
                %518 = vst [vmem:[%s512 + $0x20] sm:$0xff] %v517
                %v519 = vld [vmem:[%s511 + $0x18] sm:$0xff]
                %520 = vst [vmem:[%s512 + $0x28] sm:$0xff] %v519
              $region87: #{multitask_yolo_forward.23} parent=81 // loop_footer
                %s510 = sadd.s32 1, %s506
              $region88: #{multitask_yolo_forward.23} parent=81 // loop_footer_branch
                %505 = sbr.rel target = $region84
              $region89: #{multitask_yolo_forward.23} parent=81 // loop_exit
                _
            $region82: #{multitask_yolo_forward.23} parent=77 // pred_fallthru
              _
            // Predicated region
            $region90: #{multitask_yolo_forward.23} parent=77 // pred_check
              _
            $region91: #{multitask_yolo_forward.23} parent=77 // pred_check_branch
              %522 = sbr.rel target = $region93
            $region92: #{multitask_yolo_forward.23} parent=77 // pred_region
              _
            $region93: #{multitask_yolo_forward.23} parent=77 // pred_fallthru
              _
          $region78: #{multitask_yolo_forward.23} parent=73 // pred_fallthru
            _
          %523 = vnop
        $region74: #{multitask_yolo_forward.23} parent=65 // pred_fallthru
          _
      $region66: #{multitask_yolo_forward.23} parent=5 // pred_fallthru
        _
      %p524 = scmp.le.s32.totalorder 2, %s9
      // Predicated region
      $region94: #{multitask_yolo_forward.23} parent=5 // pred_check
        %p525 = pneg %p524
      $region95: #{multitask_yolo_forward.23} parent=5 // pred_check_branch
        %527 = sbr.rel (%p525) target = $region97
      $region96: #{multitask_yolo_forward.23} parent=5 // pred_region
        %s528 = ssub.s32 %s9, 2
        // Predicated region
        $region98: #{multitask_yolo_forward.23} parent=96 // pred_check
          %p529 = pneg %p106
        $region99: #{multitask_yolo_forward.23} parent=96 // pred_check_branch
          %531 = sbr.rel (%p529) target = $region101
        $region100: #{multitask_yolo_forward.23} parent=96 // pred_region
          %s532 = sand.u32 %s91, 1
          %s533 = sand.u32 %s91, 1
          %s534 = smul.addr %s533, 32
          %s535 = scalar_lea.vmem [#allocation3], %s534
        $region101: #{multitask_yolo_forward.23} parent=96 // pred_fallthru
          _
      $region97: #{multitask_yolo_forward.23} parent=5 // pred_fallthru
        _
    $region6: #{multitask_yolo_forward.23} parent=1 // loop_footer
      %s13 = sadd.s32 1, %s9
    $region7: #{multitask_yolo_forward.23} parent=1 // loop_footer_branch
      %8 = sbr.rel target = $region3
    $region8: #{multitask_yolo_forward.23} parent=1 // loop_exit
      _

// kernel: multitask_yolo_forward.24
$region0: #{multitask_yolo_forward.24}
  #allocation0 [shape = 'u32[]', space=smem, size = 0x4, offset = 0x4, fixed_abs, tag = 'smem constant byte address 0x4 - core index']
  #allocation1 [shape = 'u32[72,128]{1,0:T(1,128)}', space=vmem, size = 0x9000, scoped, tag = 'internal scratch']
  %s0 = inlined_call_operand.vmem [shape: bf16[32,144], index: 0, kind: input, shape index: {}]
  %s1 = inlined_call_operand.vmem [shape: bf16[144,128], index: 1, kind: input, shape index: {}]
  %s2 = inlined_call_operand.vmem [shape: f32[32,1], index: 2, kind: input, shape index: {}]
  %s3 = inlined_call_operand.vmem [shape: f32[32,128], index: 3, kind: output, shape index: {}]
  %s4 = sld [smem:[#allocation0]]
  $region22: #{multitask_yolo_forward.24} parent=0
    _
  %s6 = ssub.s32 1, %s4
  %s7 = scalar_select 0, %s6, %s4
  // Predicated region
  $region2: #{multitask_yolo_forward.24} parent=0 // pred_check
    _
  $region3: #{multitask_yolo_forward.24} parent=0 // pred_check_branch
    %9 = sbr.rel (0) target = $region5
  $region4: #{multitask_yolo_forward.24} parent=0 // pred_region
    _
  $region5: #{multitask_yolo_forward.24} parent=0 // pred_fallthru
    _
  // Predicated region
  $region6: #{multitask_yolo_forward.24} parent=0 // pred_check
    _
  $region7: #{multitask_yolo_forward.24} parent=0 // pred_check_branch
    %11 = sbr.rel (0) target = $region9
  $region8: #{multitask_yolo_forward.24} parent=0 // pred_region
    _
  $region9: #{multitask_yolo_forward.24} parent=0 // pred_fallthru
    _
  // Predicated region
  $region10: #{multitask_yolo_forward.24} parent=0 // pred_check
    _
  $region11: #{multitask_yolo_forward.24} parent=0 // pred_check_branch
    %13 = sbr.rel (0) target = $region13
  $region12: #{multitask_yolo_forward.24} parent=0 // pred_region
    _
  $region13: #{multitask_yolo_forward.24} parent=0 // pred_fallthru
    _
  %v15 = vld [vmem:[%s0] sm:$0xff]
  %v16 = vld [vmem:[%s0 + $0x8] sm:$0xff]
  %v17 = vld [vmem:[%s0 + $0x10] sm:$0xff]
  %v18 = vld [vmem:[%s0 + $0x18] sm:$0xff]
  %v19 = vld [vmem:[%s1] sm:$0xf]
  %v20 = vld [vmem:[%s1 + $0x4] sm:$0xf]
  %v21 = vld [vmem:[%s1 + $0x8] sm:$0xf]
  %v22 = vld [vmem:[%s1 + $0xc] sm:$0xf]
  %v23 = vld [vmem:[%s1 + $0x10] sm:$0xf]
  %v24 = vld [vmem:[%s1 + $0x14] sm:$0xf]
  %v25 = vld [vmem:[%s1 + $0x18] sm:$0xf]
  %v26 = vld [vmem:[%s1 + $0x1c] sm:$0xf]
  %v27 = vld [vmem:[%s1 + $0x20] sm:$0xf]
  %v28 = vld [vmem:[%s1 + $0x24] sm:$0xf]
  %v29 = vld [vmem:[%s1 + $0x28] sm:$0xf]
  %v30 = vld [vmem:[%s1 + $0x2c] sm:$0xf]
  %v31 = vld [vmem:[%s1 + $0x30] sm:$0xf]
  %v32 = vld [vmem:[%s1 + $0x34] sm:$0xf]
  %v33 = vld [vmem:[%s1 + $0x38] sm:$0xf]
  %v34 = vld [vmem:[%s1 + $0x3c] sm:$0xf]
  %v35 = vld [vmem:[%s1 + $0x40] sm:$0xf]
  %v36 = vld [vmem:[%s1 + $0x44] sm:$0xf]
  %v37 = vld [vmem:[%s2] sm:$0xff]
  %v38 = vld [vmem:[%s2 + $0x8] sm:$0xff]
  %v39 = vld [vmem:[%s2 + $0x10] sm:$0xff]
  %v40 = vld [vmem:[%s2 + $0x18] sm:$0xff]
  %42 = vset.pattern.permute.xlu0 0
  %43 = vperm.xlu0 %42, %v37
  %v44 = vpop.permute.xlu0 %43
  %47 = vset.pattern.permute.xlu0 0
  %48 = vperm.xlu0 %47, %v38
  %v49 = vpop.permute.xlu0 %48
  %52 = vset.pattern.permute.xlu0 0
  %53 = vperm.xlu0 %52, %v39
  %v54 = vpop.permute.xlu0 %53
  %57 = vset.pattern.permute.xlu0 0
  %58 = vperm.xlu0 %57, %v40
  %v59 = vpop.permute.xlu0 %58
  %v65 = vunpack.c.l.b16 %v15
  %v66 = vunpack.c.h.b16 %v15
  %v67 = vunpack.c.l.b16 %v16
  %v68 = vunpack.c.h.b16 %v16
  %v69 = vunpack.c.l.b16 %v17
  %v70 = vunpack.c.h.b16 %v17
  %v71 = vunpack.c.l.b16 %v18
  %v72 = vunpack.c.h.b16 %v18
  %v73 = vpack.c.b16 %v67, %v65
  %v74 = vpack.c.b16 %v68, %v66
  %v75 = vpack.c.b16 %v71, %v69
  %v76 = vpack.c.b16 %v72, %v70
  %v97 = vunpack.c.l.b16 %v19
  %v98 = vunpack.c.l.b16 %v20
  %v99 = vunpack.c.l.b16 %v21
  %v100 = vunpack.c.l.b16 %v22
  %v101 = vunpack.c.l.b16 %v23
  %v102 = vunpack.c.l.b16 %v24
  %v103 = vunpack.c.l.b16 %v25
  %v104 = vunpack.c.l.b16 %v26
  %v105 = vunpack.c.l.b16 %v27
  %v106 = vunpack.c.l.b16 %v28
  %v107 = vunpack.c.l.b16 %v29
  %v108 = vunpack.c.l.b16 %v30
  %v109 = vunpack.c.l.b16 %v31
  %v110 = vunpack.c.l.b16 %v32
  %v111 = vunpack.c.l.b16 %v33
  %v112 = vunpack.c.l.b16 %v34
  %v113 = vunpack.c.l.b16 %v35
  %v114 = vunpack.c.l.b16 %v36
  %v115 = vpack.c.b16 %v98, %v97
  %v116 = vpack.c.b16 %v100, %v99
  %v117 = vpack.c.b16 %v102, %v101
  %v118 = vpack.c.b16 %v104, %v103
  %v119 = vpack.c.b16 %v106, %v105
  %v120 = vpack.c.b16 %v108, %v107
  %v121 = vpack.c.b16 %v110, %v109
  %v122 = vpack.c.b16 %v112, %v111
  %v123 = vpack.c.b16 %v114, %v113
  %vm133 = vcmask 130048
  %v135 = vsel %vm133, %v74, 0
  %v138 = vsel %vm133, %v76, 0
  %140 = vmatpush.bf16.msra.mxu0 %v122
  %141 = vmatpush.bf16.msra.mxu0 %v121
  %142 = vmatpush.bf16.msra.mxu0 %v120
  %143 = vmatpush.bf16.msra.mxu0 %v119
  %144 = vmatpush.bf16.msra.mxu0 %v118
  %145 = vmatpush.bf16.msra.mxu0 %v117
  %146 = vmatpush.bf16.msra.mxu0 %v116
  %147 = vmatpush.bf16.msra.mxu0 %v115
  %148 = vmatmul.bf16.gmra.mxu0 %v73
  %v149 = vpop.f32.mrf.mxu0
  %v150 = vadd.f32 %v44, %v149
  %v151 = vpop.f32.mrf.mxu0
  %v152 = vadd.f32 %v49, %v151
  %153 = vmatmul.bf16.gmra.mxu0 %v75
  %v154 = vpop.f32.mrf.mxu0
  %v155 = vadd.f32 %v54, %v154
  %v156 = vpop.f32.mrf.mxu0
  %v157 = vadd.f32 %v59, %v156
  %158 = vdwg.mxu0
  %159 = vmatpush.bf16.msra.mxu0 0
  %160 = vmatpush.bf16.msra.mxu0 0
  %161 = vmatpush.bf16.msra.mxu0 0
  %162 = vmatpush.bf16.msra.mxu0 0
  %163 = vmatpush.bf16.msra.mxu0 0
  %164 = vmatpush.bf16.msra.mxu0 0
  %165 = vmatpush.bf16.msra.mxu0 0
  %166 = vmatpush.bf16.msra.mxu0 %v123
  %167 = vmatmul.bf16.gmra.mxu0 %v135
  %v168 = vpop.f32.mrf.mxu0
  %v169 = vadd.f32 %v150, %v168
  %v170 = vpop.f32.mrf.mxu0
  %v171 = vadd.f32 %v152, %v170
  %172 = vmatmul.bf16.gmra.mxu0 %v138
  %v173 = vpop.f32.mrf.mxu0
  %v174 = vadd.f32 %v155, %v173
  %v175 = vpop.f32.mrf.mxu0
  %v176 = vadd.f32 %v157, %v175
  %177 = vdwg.mxu0
  %v178 = vsub.f32 0.0, %v169
  %v179 = vsub.f32 0.0, %v171
  %v180 = vsub.f32 0.0, %v174
  %v181 = vsub.f32 0.0, %v176
  %v182 = vmul.f32 %v178, 1.442695
  %v183 = vpow.pop %v182
  %v184 = vmul.f32 %v179, 1.442695
  %v185 = vpow.pop %v184
  %v186 = vmul.f32 %v180, 1.442695
  %v187 = vpow.pop %v186
  %v188 = vmul.f32 %v181, 1.442695
  %v189 = vpow.pop %v188
  %v190 = vadd.f32 %v183, 1.0
  %v191 = vadd.f32 %v185, 1.0
  %v192 = vadd.f32 %v187, 1.0
  %v193 = vadd.f32 %v189, 1.0
  %v194 = vrcp.pop %v190
  %v195 = vrcp.pop %v191
  %v196 = vrcp.pop %v192
  %v197 = vrcp.pop %v193
  %v198 = vmul.f32 %v169, %v194
  %v199 = vmul.f32 %v171, %v195
  %v200 = vmul.f32 %v174, %v196
  %v201 = vmul.f32 %v176, %v197
  %202 = vst [vmem:[%s3] sm:$0xff] %v198
  %203 = vst [vmem:[%s3 + $0x8] sm:$0xff] %v199
  %204 = vst [vmem:[%s3 + $0x10] sm:$0xff] %v200
  %205 = vst [vmem:[%s3 + $0x18] sm:$0xff] %v201
  // Predicated region
  $region14: #{multitask_yolo_forward.24} parent=0 // pred_check
    _
  $region15: #{multitask_yolo_forward.24} parent=0 // pred_check_branch
    %207 = sbr.rel (0) target = $region17
  $region16: #{multitask_yolo_forward.24} parent=0 // pred_region
    _
  $region17: #{multitask_yolo_forward.24} parent=0 // pred_fallthru
    _
  // Predicated region
  $region18: #{multitask_yolo_forward.24} parent=0 // pred_check
    _
  $region19: #{multitask_yolo_forward.24} parent=0 // pred_check_branch
    %209 = sbr.rel (0) target = $region21
  $region20: #{multitask_yolo_forward.24} parent=0 // pred_region
    _
  $region21: #{multitask_yolo_forward.24} parent=0 // pred_fallthru
    _

// kernel: multitask_yolo_forward.25
$region0: #{multitask_yolo_forward.25}
  #allocation0 [shape = 'u32[]', space=smem, size = 0x4, offset = 0x4, fixed_abs, tag = 'smem constant byte address 0x4 - core index']
  #allocation1 [shape = 'u32[72,128]{1,0:T(1,128)}', space=vmem, size = 0x9000, scoped, tag = 'internal scratch']
  %s0 = inlined_call_operand.vmem [shape: bf16[32,288], index: 0, kind: input, shape index: {}]
  %s1 = inlined_call_operand.vmem [shape: bf16[288,128], index: 1, kind: input, shape index: {}]
  %s2 = inlined_call_operand.vmem [shape: f32[32,1], index: 2, kind: input, shape index: {}]
  %s3 = inlined_call_operand.vmem [shape: f32[32,128], index: 3, kind: output, shape index: {}]
  %s4 = sld [smem:[#allocation0]]
  $region22: #{multitask_yolo_forward.25} parent=0
    _
  %s6 = ssub.s32 1, %s4
  %s7 = scalar_select 0, %s6, %s4
  // Predicated region
  $region2: #{multitask_yolo_forward.25} parent=0 // pred_check
    _
  $region3: #{multitask_yolo_forward.25} parent=0 // pred_check_branch
    %9 = sbr.rel (0) target = $region5
  $region4: #{multitask_yolo_forward.25} parent=0 // pred_region
    _
  $region5: #{multitask_yolo_forward.25} parent=0 // pred_fallthru
    _
  // Predicated region
  $region6: #{multitask_yolo_forward.25} parent=0 // pred_check
    _
  $region7: #{multitask_yolo_forward.25} parent=0 // pred_check_branch
    %11 = sbr.rel (0) target = $region9
  $region8: #{multitask_yolo_forward.25} parent=0 // pred_region
    _
  $region9: #{multitask_yolo_forward.25} parent=0 // pred_fallthru
    _
  // Predicated region
  $region10: #{multitask_yolo_forward.25} parent=0 // pred_check
    _
  $region11: #{multitask_yolo_forward.25} parent=0 // pred_check_branch
    %13 = sbr.rel (0) target = $region13
  $region12: #{multitask_yolo_forward.25} parent=0 // pred_region
    _
  $region13: #{multitask_yolo_forward.25} parent=0 // pred_fallthru
    _
  %v15 = vld [vmem:[%s0] sm:$0xff]
  %v16 = vld [vmem:[%s0 + $0x8] sm:$0xf]
  %v17 = vld [vmem:[%s0 + $0xc] sm:$0xff]
  %v18 = vld [vmem:[%s0 + $0x14] sm:$0xf]
  %v19 = vld [vmem:[%s0 + $0x18] sm:$0xff]
  %v20 = vld [vmem:[%s0 + $0x20] sm:$0xf]
  %v21 = vld [vmem:[%s0 + $0x24] sm:$0xff]
  %v22 = vld [vmem:[%s0 + $0x2c] sm:$0xf]
  %v23 = vld [vmem:[%s1] sm:$0xf]
  %v24 = vld [vmem:[%s1 + $0x4] sm:$0xf]
  %v25 = vld [vmem:[%s1 + $0x8] sm:$0xf]
  %v26 = vld [vmem:[%s1 + $0xc] sm:$0xf]
  %v27 = vld [vmem:[%s1 + $0x10] sm:$0xf]
  %v28 = vld [vmem:[%s1 + $0x14] sm:$0xf]
  %v29 = vld [vmem:[%s1 + $0x18] sm:$0xf]
  %v30 = vld [vmem:[%s1 + $0x1c] sm:$0xf]
  %v31 = vld [vmem:[%s1 + $0x20] sm:$0xf]
  %v32 = vld [vmem:[%s1 + $0x24] sm:$0xf]
  %v33 = vld [vmem:[%s1 + $0x28] sm:$0xf]
  %v34 = vld [vmem:[%s1 + $0x2c] sm:$0xf]
  %v35 = vld [vmem:[%s1 + $0x30] sm:$0xf]
  %v36 = vld [vmem:[%s1 + $0x34] sm:$0xf]
  %v37 = vld [vmem:[%s1 + $0x38] sm:$0xf]
  %v38 = vld [vmem:[%s1 + $0x3c] sm:$0xf]
  %v39 = vld [vmem:[%s1 + $0x40] sm:$0xf]
  %v40 = vld [vmem:[%s1 + $0x44] sm:$0xf]
  %v41 = vld [vmem:[%s1 + $0x48] sm:$0xf]
  %v42 = vld [vmem:[%s1 + $0x4c] sm:$0xf]
  %v43 = vld [vmem:[%s1 + $0x50] sm:$0xf]
  %v44 = vld [vmem:[%s1 + $0x54] sm:$0xf]
  %v45 = vld [vmem:[%s1 + $0x58] sm:$0xf]
  %v46 = vld [vmem:[%s1 + $0x5c] sm:$0xf]
  %v47 = vld [vmem:[%s1 + $0x60] sm:$0xf]
  %v48 = vld [vmem:[%s1 + $0x64] sm:$0xf]
  %v49 = vld [vmem:[%s1 + $0x68] sm:$0xf]
  %v50 = vld [vmem:[%s1 + $0x6c] sm:$0xf]
  %v51 = vld [vmem:[%s1 + $0x70] sm:$0xf]
  %v52 = vld [vmem:[%s1 + $0x74] sm:$0xf]
  %v53 = vld [vmem:[%s1 + $0x78] sm:$0xf]
  %v54 = vld [vmem:[%s1 + $0x7c] sm:$0xf]
  %v55 = vld [vmem:[%s1 + $0x80] sm:$0xf]
  %v56 = vld [vmem:[%s1 + $0x84] sm:$0xf]
  %v57 = vld [vmem:[%s1 + $0x88] sm:$0xf]
  %v58 = vld [vmem:[%s1 + $0x8c] sm:$0xf]
  %v59 = vld [vmem:[%s2] sm:$0xff]
  %v60 = vld [vmem:[%s2 + $0x8] sm:$0xff]
  %v61 = vld [vmem:[%s2 + $0x10] sm:$0xff]
  %v62 = vld [vmem:[%s2 + $0x18] sm:$0xff]
  %64 = vset.pattern.permute.xlu0 0
  %65 = vperm.xlu0 %64, %v59
  %v66 = vpop.permute.xlu0 %65
  %69 = vset.pattern.permute.xlu0 0
  %70 = vperm.xlu0 %69, %v60
  %v71 = vpop.permute.xlu0 %70
  %74 = vset.pattern.permute.xlu0 0
  %75 = vperm.xlu0 %74, %v61
  %v76 = vpop.permute.xlu0 %75
  %79 = vset.pattern.permute.xlu0 0
  %80 = vperm.xlu0 %79, %v62
  %v81 = vpop.permute.xlu0 %80
  %v91 = vunpack.c.l.b16 %v15
  %v92 = vunpack.c.h.b16 %v15
  %v93 = vunpack.c.l.b16 %v16
  %v94 = vunpack.c.l.b16 %v17
  %v95 = vunpack.c.h.b16 %v17
  %v96 = vunpack.c.l.b16 %v18
  %v97 = vunpack.c.l.b16 %v19
  %v98 = vunpack.c.h.b16 %v19
  %v99 = vunpack.c.l.b16 %v20
  %v100 = vunpack.c.l.b16 %v21
  %v101 = vunpack.c.h.b16 %v21
  %v102 = vunpack.c.l.b16 %v22
  %v103 = vpack.c.b16 %v94, %v91
  %v104 = vpack.c.b16 %v95, %v92
  %v105 = vpack.c.b16 %v96, %v93
  %v106 = vpack.c.b16 %v100, %v97
  %v107 = vpack.c.b16 %v101, %v98
  %v108 = vpack.c.b16 %v102, %v99
  %v149 = vunpack.c.l.b16 %v23
  %v150 = vunpack.c.l.b16 %v24
  %v151 = vunpack.c.l.b16 %v25
  %v152 = vunpack.c.l.b16 %v26
  %v153 = vunpack.c.l.b16 %v27
  %v154 = vunpack.c.l.b16 %v28
  %v155 = vunpack.c.l.b16 %v29
  %v156 = vunpack.c.l.b16 %v30
  %v157 = vunpack.c.l.b16 %v31
  %v158 = vunpack.c.l.b16 %v32
  %v159 = vunpack.c.l.b16 %v33
  %v160 = vunpack.c.l.b16 %v34
  %v161 = vunpack.c.l.b16 %v35
  %v162 = vunpack.c.l.b16 %v36
  %v163 = vunpack.c.l.b16 %v37
  %v164 = vunpack.c.l.b16 %v38
  %v165 = vunpack.c.l.b16 %v39
  %v166 = vunpack.c.l.b16 %v40
  %v167 = vunpack.c.l.b16 %v41
  %v168 = vunpack.c.l.b16 %v42
  %v169 = vunpack.c.l.b16 %v43
  %v170 = vunpack.c.l.b16 %v44
  %v171 = vunpack.c.l.b16 %v45
  %v172 = vunpack.c.l.b16 %v46
  %v173 = vunpack.c.l.b16 %v47
  %v174 = vunpack.c.l.b16 %v48
  %v175 = vunpack.c.l.b16 %v49
  %v176 = vunpack.c.l.b16 %v50
  %v177 = vunpack.c.l.b16 %v51
  %v178 = vunpack.c.l.b16 %v52
  %v179 = vunpack.c.l.b16 %v53
  %v180 = vunpack.c.l.b16 %v54
  %v181 = vunpack.c.l.b16 %v55
  %v182 = vunpack.c.l.b16 %v56
  %v183 = vunpack.c.l.b16 %v57
  %v184 = vunpack.c.l.b16 %v58
  %v185 = vpack.c.b16 %v150, %v149
  %v186 = vpack.c.b16 %v152, %v151
  %v187 = vpack.c.b16 %v154, %v153
  %v188 = vpack.c.b16 %v156, %v155
  %v189 = vpack.c.b16 %v158, %v157
  %v190 = vpack.c.b16 %v160, %v159
  %v191 = vpack.c.b16 %v162, %v161
  %v192 = vpack.c.b16 %v164, %v163
  %v193 = vpack.c.b16 %v166, %v165
  %v194 = vpack.c.b16 %v168, %v167
  %v195 = vpack.c.b16 %v170, %v169
  %v196 = vpack.c.b16 %v172, %v171
  %v197 = vpack.c.b16 %v174, %v173
  %v198 = vpack.c.b16 %v176, %v175
  %v199 = vpack.c.b16 %v178, %v177
  %v200 = vpack.c.b16 %v180, %v179
  %v201 = vpack.c.b16 %v182, %v181
  %v202 = vpack.c.b16 %v184, %v183
  %vm221 = vcmask 261120
  %v223 = vsel %vm221, %v105, 0
  %v226 = vsel %vm221, %v108, 0
  %228 = vmatpush.bf16.msra.mxu0 %v192
  %229 = vmatpush.bf16.msra.mxu0 %v191
  %230 = vmatpush.bf16.msra.mxu0 %v190
  %231 = vmatpush.bf16.msra.mxu0 %v189
  %232 = vmatpush.bf16.msra.mxu0 %v188
  %233 = vmatpush.bf16.msra.mxu0 %v187
  %234 = vmatpush.bf16.msra.mxu0 %v186
  %235 = vmatpush.bf16.msra.mxu0 %v185
  %236 = vmatmul.bf16.gmra.mxu0 %v103
  %v237 = vpop.f32.mrf.mxu0
  %v238 = vadd.f32 %v66, %v237
  %v239 = vpop.f32.mrf.mxu0
  %v240 = vadd.f32 %v71, %v239
  %241 = vmatmul.bf16.gmra.mxu0 %v106
  %v242 = vpop.f32.mrf.mxu0
  %v243 = vadd.f32 %v76, %v242
  %v244 = vpop.f32.mrf.mxu0
  %v245 = vadd.f32 %v81, %v244
  %246 = vdwg.mxu0
  %247 = vmatpush.bf16.msra.mxu0 %v200
  %248 = vmatpush.bf16.msra.mxu0 %v199
  %249 = vmatpush.bf16.msra.mxu0 %v198
  %250 = vmatpush.bf16.msra.mxu0 %v197
  %251 = vmatpush.bf16.msra.mxu0 %v196
  %252 = vmatpush.bf16.msra.mxu0 %v195
  %253 = vmatpush.bf16.msra.mxu0 %v194
  %254 = vmatpush.bf16.msra.mxu0 %v193
  %255 = vmatmul.bf16.gmra.mxu0 %v104
  %v256 = vpop.f32.mrf.mxu0
  %v257 = vadd.f32 %v238, %v256
  %v258 = vpop.f32.mrf.mxu0
  %v259 = vadd.f32 %v240, %v258
  %260 = vmatmul.bf16.gmra.mxu0 %v107
  %v261 = vpop.f32.mrf.mxu0
  %v262 = vadd.f32 %v243, %v261
  %v263 = vpop.f32.mrf.mxu0
  %v264 = vadd.f32 %v245, %v263
  %265 = vdwg.mxu0
  %266 = vmatpush.bf16.msra.mxu0 0
  %267 = vmatpush.bf16.msra.mxu0 0
  %268 = vmatpush.bf16.msra.mxu0 0
  %269 = vmatpush.bf16.msra.mxu0 0
  %270 = vmatpush.bf16.msra.mxu0 0
  %271 = vmatpush.bf16.msra.mxu0 0
  %272 = vmatpush.bf16.msra.mxu0 %v202
  %273 = vmatpush.bf16.msra.mxu0 %v201
  %274 = vmatmul.bf16.gmra.mxu0 %v223
  %v275 = vpop.f32.mrf.mxu0
  %v276 = vadd.f32 %v257, %v275
  %v277 = vpop.f32.mrf.mxu0
  %v278 = vadd.f32 %v259, %v277
  %279 = vmatmul.bf16.gmra.mxu0 %v226
  %v280 = vpop.f32.mrf.mxu0
  %v281 = vadd.f32 %v262, %v280
  %v282 = vpop.f32.mrf.mxu0
  %v283 = vadd.f32 %v264, %v282
  %284 = vdwg.mxu0
  %v285 = vsub.f32 0.0, %v276
  %v286 = vsub.f32 0.0, %v278
  %v287 = vsub.f32 0.0, %v281
  %v288 = vsub.f32 0.0, %v283
  %v289 = vmul.f32 %v285, 1.442695
  %v290 = vpow.pop %v289
  %v291 = vmul.f32 %v286, 1.442695
  %v292 = vpow.pop %v291
  %v293 = vmul.f32 %v287, 1.442695
  %v294 = vpow.pop %v293
  %v295 = vmul.f32 %v288, 1.442695
  %v296 = vpow.pop %v295
  %v297 = vadd.f32 %v290, 1.0
  %v298 = vadd.f32 %v292, 1.0
  %v299 = vadd.f32 %v294, 1.0
  %v300 = vadd.f32 %v296, 1.0
  %v301 = vrcp.pop %v297
  %v302 = vrcp.pop %v298
  %v303 = vrcp.pop %v299
  %v304 = vrcp.pop %v300
  %v305 = vmul.f32 %v276, %v301
  %v306 = vmul.f32 %v278, %v302
  %v307 = vmul.f32 %v281, %v303
  %v308 = vmul.f32 %v283, %v304
  %309 = vst [vmem:[%s3] sm:$0xff] %v305
  %310 = vst [vmem:[%s3 + $0x8] sm:$0xff] %v306
  %311 = vst [vmem:[%s3 + $0x10] sm:$0xff] %v307
  %312 = vst [vmem:[%s3 + $0x18] sm:$0xff] %v308
  // Predicated region
  $region14: #{multitask_yolo_forward.25} parent=0 // pred_check
    _
  $region15: #{multitask_yolo_forward.25} parent=0 // pred_check_branch
    %314 = sbr.rel (0) target = $region17
  $region16: #{multitask_yolo_forward.25} parent=0 // pred_region
    _
  $region17: #{multitask_yolo_forward.25} parent=0 // pred_fallthru
    _
  // Predicated region
  $region18: #{multitask_yolo_forward.25} parent=0 // pred_check
    _
  $region19: #{multitask_yolo_forward.25} parent=0 // pred_check_branch
    %316 = sbr.rel (0) target = $region21
  $region20: #{multitask_yolo_forward.25} parent=0 // pred_region
    _
  $region21: #{multitask_yolo_forward.25} parent=0 // pred_fallthru
    _

// kernel: multitask_yolo_forward.26
$region0: #{multitask_yolo_forward.26}
  #allocation0 [shape = 'u32[]', space=smem, size = 0x4, offset = 0x4, fixed_abs, tag = 'smem constant byte address 0x4 - core index']
  #allocation1 [shape = 'u32[72,128]{1,0:T(1,128)}', space=vmem, size = 0x9000, scoped, tag = 'internal scratch']
  %s0 = inlined_call_operand.vmem [shape: bf16[32,288], index: 0, kind: input, shape index: {}]
  %s1 = inlined_call_operand.vmem [shape: bf16[288,32], index: 1, kind: input, shape index: {}]
  %s2 = inlined_call_operand.vmem [shape: f32[32,1], index: 2, kind: input, shape index: {}]
  %s3 = inlined_call_operand.vmem [shape: f32[32,32], index: 3, kind: output, shape index: {}]
  %s4 = sld [smem:[#allocation0]]
  $region22: #{multitask_yolo_forward.26} parent=0
    _
  %s6 = ssub.s32 1, %s4
  %s7 = scalar_select 0, %s6, %s4
  // Predicated region
  $region2: #{multitask_yolo_forward.26} parent=0 // pred_check
    _
  $region3: #{multitask_yolo_forward.26} parent=0 // pred_check_branch
    %9 = sbr.rel (0) target = $region5
  $region4: #{multitask_yolo_forward.26} parent=0 // pred_region
    _
  $region5: #{multitask_yolo_forward.26} parent=0 // pred_fallthru
    _
  // Predicated region
  $region6: #{multitask_yolo_forward.26} parent=0 // pred_check
    _
  $region7: #{multitask_yolo_forward.26} parent=0 // pred_check_branch
    %11 = sbr.rel (0) target = $region9
  $region8: #{multitask_yolo_forward.26} parent=0 // pred_region
    _
  $region9: #{multitask_yolo_forward.26} parent=0 // pred_fallthru
    _
  // Predicated region
  $region10: #{multitask_yolo_forward.26} parent=0 // pred_check
    _
  $region11: #{multitask_yolo_forward.26} parent=0 // pred_check_branch
    %13 = sbr.rel (0) target = $region13
  $region12: #{multitask_yolo_forward.26} parent=0 // pred_region
    _
  $region13: #{multitask_yolo_forward.26} parent=0 // pred_fallthru
    _
  %v15 = vld [vmem:[%s0] sm:$0xff]
  %v16 = vld [vmem:[%s0 + $0x8] sm:$0xf]
  %v17 = vld [vmem:[%s0 + $0xc] sm:$0xff]
  %v18 = vld [vmem:[%s0 + $0x14] sm:$0xf]
  %v19 = vld [vmem:[%s0 + $0x18] sm:$0xff]
  %v20 = vld [vmem:[%s0 + $0x20] sm:$0xf]
  %v21 = vld [vmem:[%s0 + $0x24] sm:$0xff]
  %v22 = vld [vmem:[%s0 + $0x2c] sm:$0xf]
  %v23 = vld [vmem:[%s1] sm:$0xf]
  %v24 = vld [vmem:[%s1 + $0x4] sm:$0xf]
  %v25 = vld [vmem:[%s1 + $0x8] sm:$0xf]
  %v26 = vld [vmem:[%s1 + $0xc] sm:$0xf]
  %v27 = vld [vmem:[%s1 + $0x10] sm:$0xf]
  %v28 = vld [vmem:[%s1 + $0x14] sm:$0xf]
  %v29 = vld [vmem:[%s1 + $0x18] sm:$0xf]
  %v30 = vld [vmem:[%s1 + $0x1c] sm:$0xf]
  %v31 = vld [vmem:[%s1 + $0x20] sm:$0xf]
  %v32 = vld [vmem:[%s1 + $0x24] sm:$0xf]
  %v33 = vld [vmem:[%s1 + $0x28] sm:$0xf]
  %v34 = vld [vmem:[%s1 + $0x2c] sm:$0xf]
  %v35 = vld [vmem:[%s1 + $0x30] sm:$0xf]
  %v36 = vld [vmem:[%s1 + $0x34] sm:$0xf]
  %v37 = vld [vmem:[%s1 + $0x38] sm:$0xf]
  %v38 = vld [vmem:[%s1 + $0x3c] sm:$0xf]
  %v39 = vld [vmem:[%s1 + $0x40] sm:$0xf]
  %v40 = vld [vmem:[%s1 + $0x44] sm:$0xf]
  %v41 = vld [vmem:[%s1 + $0x48] sm:$0xf]
  %v42 = vld [vmem:[%s1 + $0x4c] sm:$0xf]
  %v43 = vld [vmem:[%s1 + $0x50] sm:$0xf]
  %v44 = vld [vmem:[%s1 + $0x54] sm:$0xf]
  %v45 = vld [vmem:[%s1 + $0x58] sm:$0xf]
  %v46 = vld [vmem:[%s1 + $0x5c] sm:$0xf]
  %v47 = vld [vmem:[%s1 + $0x60] sm:$0xf]
  %v48 = vld [vmem:[%s1 + $0x64] sm:$0xf]
  %v49 = vld [vmem:[%s1 + $0x68] sm:$0xf]
  %v50 = vld [vmem:[%s1 + $0x6c] sm:$0xf]
  %v51 = vld [vmem:[%s1 + $0x70] sm:$0xf]
  %v52 = vld [vmem:[%s1 + $0x74] sm:$0xf]
  %v53 = vld [vmem:[%s1 + $0x78] sm:$0xf]
  %v54 = vld [vmem:[%s1 + $0x7c] sm:$0xf]
  %v55 = vld [vmem:[%s1 + $0x80] sm:$0xf]
  %v56 = vld [vmem:[%s1 + $0x84] sm:$0xf]
  %v57 = vld [vmem:[%s1 + $0x88] sm:$0xf]
  %v58 = vld [vmem:[%s1 + $0x8c] sm:$0xf]
  %v59 = vld [vmem:[%s2] sm:$0xff]
  %v60 = vld [vmem:[%s2 + $0x8] sm:$0xff]
  %v61 = vld [vmem:[%s2 + $0x10] sm:$0xff]
  %v62 = vld [vmem:[%s2 + $0x18] sm:$0xff]
  %64 = vset.pattern.permute.xlu0 0
  %65 = vperm.xlu0 %64, %v59
  %v66 = vpop.permute.xlu0 %65
  %69 = vset.pattern.permute.xlu0 0
  %70 = vperm.xlu0 %69, %v60
  %v71 = vpop.permute.xlu0 %70
  %74 = vset.pattern.permute.xlu0 0
  %75 = vperm.xlu0 %74, %v61
  %v76 = vpop.permute.xlu0 %75
  %79 = vset.pattern.permute.xlu0 0
  %80 = vperm.xlu0 %79, %v62
  %v81 = vpop.permute.xlu0 %80
  %v91 = vunpack.c.l.b16 %v15
  %v92 = vunpack.c.h.b16 %v15
  %v93 = vunpack.c.l.b16 %v16
  %v94 = vunpack.c.l.b16 %v17
  %v95 = vunpack.c.h.b16 %v17
  %v96 = vunpack.c.l.b16 %v18
  %v97 = vunpack.c.l.b16 %v19
  %v98 = vunpack.c.h.b16 %v19
  %v99 = vunpack.c.l.b16 %v20
  %v100 = vunpack.c.l.b16 %v21
  %v101 = vunpack.c.h.b16 %v21
  %v102 = vunpack.c.l.b16 %v22
  %v103 = vpack.c.b16 %v94, %v91
  %v104 = vpack.c.b16 %v95, %v92
  %v105 = vpack.c.b16 %v96, %v93
  %v106 = vpack.c.b16 %v100, %v97
  %v107 = vpack.c.b16 %v101, %v98
  %v108 = vpack.c.b16 %v102, %v99
  %v149 = vunpack.c.l.b16 %v23
  %v150 = vunpack.c.l.b16 %v24
  %v151 = vunpack.c.l.b16 %v25
  %v152 = vunpack.c.l.b16 %v26
  %v153 = vunpack.c.l.b16 %v27
  %v154 = vunpack.c.l.b16 %v28
  %v155 = vunpack.c.l.b16 %v29
  %v156 = vunpack.c.l.b16 %v30
  %v157 = vunpack.c.l.b16 %v31
  %v158 = vunpack.c.l.b16 %v32
  %v159 = vunpack.c.l.b16 %v33
  %v160 = vunpack.c.l.b16 %v34
  %v161 = vunpack.c.l.b16 %v35
  %v162 = vunpack.c.l.b16 %v36
  %v163 = vunpack.c.l.b16 %v37
  %v164 = vunpack.c.l.b16 %v38
  %v165 = vunpack.c.l.b16 %v39
  %v166 = vunpack.c.l.b16 %v40
  %v167 = vunpack.c.l.b16 %v41
  %v168 = vunpack.c.l.b16 %v42
  %v169 = vunpack.c.l.b16 %v43
  %v170 = vunpack.c.l.b16 %v44
  %v171 = vunpack.c.l.b16 %v45
  %v172 = vunpack.c.l.b16 %v46
  %v173 = vunpack.c.l.b16 %v47
  %v174 = vunpack.c.l.b16 %v48
  %v175 = vunpack.c.l.b16 %v49
  %v176 = vunpack.c.l.b16 %v50
  %v177 = vunpack.c.l.b16 %v51
  %v178 = vunpack.c.l.b16 %v52
  %v179 = vunpack.c.l.b16 %v53
  %v180 = vunpack.c.l.b16 %v54
  %v181 = vunpack.c.l.b16 %v55
  %v182 = vunpack.c.l.b16 %v56
  %v183 = vunpack.c.l.b16 %v57
  %v184 = vunpack.c.l.b16 %v58
  %v185 = vpack.c.b16 %v150, %v149
  %v186 = vpack.c.b16 %v152, %v151
  %v187 = vpack.c.b16 %v154, %v153
  %v188 = vpack.c.b16 %v156, %v155
  %v189 = vpack.c.b16 %v158, %v157
  %v190 = vpack.c.b16 %v160, %v159
  %v191 = vpack.c.b16 %v162, %v161
  %v192 = vpack.c.b16 %v164, %v163
  %v193 = vpack.c.b16 %v166, %v165
  %v194 = vpack.c.b16 %v168, %v167
  %v195 = vpack.c.b16 %v170, %v169
  %v196 = vpack.c.b16 %v172, %v171
  %v197 = vpack.c.b16 %v174, %v173
  %v198 = vpack.c.b16 %v176, %v175
  %v199 = vpack.c.b16 %v178, %v177
  %v200 = vpack.c.b16 %v180, %v179
  %v201 = vpack.c.b16 %v182, %v181
  %v202 = vpack.c.b16 %v184, %v183
  %vm221 = vcmask 261120
  %v223 = vsel %vm221, %v105, 0
  %v226 = vsel %vm221, %v108, 0
  %228 = vmatpush.bf16.msra.mxu0 %v192
  %229 = vmatpush.bf16.msra.mxu0 %v191
  %230 = vmatpush.bf16.msra.mxu0 %v190
  %231 = vmatpush.bf16.msra.mxu0 %v189
  %232 = vmatpush.bf16.msra.mxu0 %v188
  %233 = vmatpush.bf16.msra.mxu0 %v187
  %234 = vmatpush.bf16.msra.mxu0 %v186
  %235 = vmatpush.bf16.msra.mxu0 %v185
  %236 = vmatmul.bf16.gmra.mxu0 %v103
  %v237 = vpop.f32.mrf.mxu0
  %v238 = vadd.f32 %v66, %v237
  %v239 = vpop.f32.mrf.mxu0
  %v240 = vadd.f32 %v71, %v239
  %241 = vmatmul.bf16.gmra.mxu0 %v106
  %v242 = vpop.f32.mrf.mxu0
  %v243 = vadd.f32 %v76, %v242
  %v244 = vpop.f32.mrf.mxu0
  %v245 = vadd.f32 %v81, %v244
  %246 = vdwg.mxu0
  %247 = vmatpush.bf16.msra.mxu0 %v200
  %248 = vmatpush.bf16.msra.mxu0 %v199
  %249 = vmatpush.bf16.msra.mxu0 %v198
  %250 = vmatpush.bf16.msra.mxu0 %v197
  %251 = vmatpush.bf16.msra.mxu0 %v196
  %252 = vmatpush.bf16.msra.mxu0 %v195
  %253 = vmatpush.bf16.msra.mxu0 %v194
  %254 = vmatpush.bf16.msra.mxu0 %v193
  %255 = vmatmul.bf16.gmra.mxu0 %v104
  %v256 = vpop.f32.mrf.mxu0
  %v257 = vadd.f32 %v238, %v256
  %v258 = vpop.f32.mrf.mxu0
  %v259 = vadd.f32 %v240, %v258
  %260 = vmatmul.bf16.gmra.mxu0 %v107
  %v261 = vpop.f32.mrf.mxu0
  %v262 = vadd.f32 %v243, %v261
  %v263 = vpop.f32.mrf.mxu0
  %v264 = vadd.f32 %v245, %v263
  %265 = vdwg.mxu0
  %266 = vmatpush.bf16.msra.mxu0 0
  %267 = vmatpush.bf16.msra.mxu0 0
  %268 = vmatpush.bf16.msra.mxu0 0
  %269 = vmatpush.bf16.msra.mxu0 0
  %270 = vmatpush.bf16.msra.mxu0 0
  %271 = vmatpush.bf16.msra.mxu0 0
  %272 = vmatpush.bf16.msra.mxu0 %v202
  %273 = vmatpush.bf16.msra.mxu0 %v201
  %274 = vmatmul.bf16.gmra.mxu0 %v223
  %v275 = vpop.f32.mrf.mxu0
  %v276 = vadd.f32 %v257, %v275
  %v277 = vpop.f32.mrf.mxu0
  %v278 = vadd.f32 %v259, %v277
  %279 = vmatmul.bf16.gmra.mxu0 %v226
  %v280 = vpop.f32.mrf.mxu0
  %v281 = vadd.f32 %v262, %v280
  %v282 = vpop.f32.mrf.mxu0
  %v283 = vadd.f32 %v264, %v282
  %284 = vdwg.mxu0
  %v285 = vsub.f32 0.0, %v276
  %v286 = vsub.f32 0.0, %v278
  %v287 = vsub.f32 0.0, %v281
  %v288 = vsub.f32 0.0, %v283
  %v289 = vmul.f32 %v285, 1.442695
  %v290 = vpow.pop %v289
  %v291 = vmul.f32 %v286, 1.442695
  %v292 = vpow.pop %v291
  %v293 = vmul.f32 %v287, 1.442695
  %v294 = vpow.pop %v293
  %v295 = vmul.f32 %v288, 1.442695
  %v296 = vpow.pop %v295
  %v297 = vadd.f32 %v290, 1.0
  %v298 = vadd.f32 %v292, 1.0
  %v299 = vadd.f32 %v294, 1.0
  %v300 = vadd.f32 %v296, 1.0
  %v301 = vrcp.pop %v297
  %v302 = vrcp.pop %v298
  %v303 = vrcp.pop %v299
  %v304 = vrcp.pop %v300
  %v305 = vmul.f32 %v276, %v301
  %v306 = vmul.f32 %v278, %v302
  %v307 = vmul.f32 %v281, %v303
  %v308 = vmul.f32 %v283, %v304
  %309 = vst.msk [vmem:[%s3] sm:$0xff] %vm221, %v305
  %310 = vst.msk [vmem:[%s3 + $0x8] sm:$0xff] %vm221, %v306
  %311 = vst.msk [vmem:[%s3 + $0x10] sm:$0xff] %vm221, %v307
  %312 = vst.msk [vmem:[%s3 + $0x18] sm:$0xff] %vm221, %v308
  // Predicated region
  $region14: #{multitask_yolo_forward.26} parent=0 // pred_check
    _
  $region15: #{multitask_yolo_forward.26} parent=0 // pred_check_branch
    %314 = sbr.rel (0) target = $region17
  $region16: #{multitask_yolo_forward.26} parent=0 // pred_region
    _
  $region17: #{multitask_yolo_forward.26} parent=0 // pred_fallthru
    _
  // Predicated region
  $region18: #{multitask_yolo_forward.26} parent=0 // pred_check
    _
  $region19: #{multitask_yolo_forward.26} parent=0 // pred_check_branch
    %316 = sbr.rel (0) target = $region21
  $region20: #{multitask_yolo_forward.26} parent=0 // pred_region
    _
  $region21: #{multitask_yolo_forward.26} parent=0 // pred_fallthru
    _

// kernel: multitask_yolo_forward.28
$region0: #{multitask_yolo_forward.28}
  #allocation0 [shape = 'u32[]', space=smem, size = 0x4, offset = 0x4, fixed_abs, tag = 'smem constant byte address 0x4 - core index']
  #allocation1 [shape = 'u32[72,128]{1,0:T(1,128)}', space=vmem, size = 0x9000, scoped, tag = 'internal scratch']
  %s0 = inlined_call_operand.vmem [shape: bf16[64,288], index: 0, kind: input, shape index: {}]
  %s1 = inlined_call_operand.vmem [shape: bf16[288,8], index: 1, kind: input, shape index: {}]
  %s2 = inlined_call_operand.vmem [shape: f32[64,1], index: 2, kind: input, shape index: {}]
  %s3 = inlined_call_operand.vmem [shape: f32[64,8], index: 3, kind: output, shape index: {}]
  %s4 = sld [smem:[#allocation0]]
  $region22: #{multitask_yolo_forward.28} parent=0
    _
  %s6 = ssub.s32 1, %s4
  %s7 = scalar_select 0, %s6, %s4
  // Predicated region
  $region2: #{multitask_yolo_forward.28} parent=0 // pred_check
    _
  $region3: #{multitask_yolo_forward.28} parent=0 // pred_check_branch
    %9 = sbr.rel (0) target = $region5
  $region4: #{multitask_yolo_forward.28} parent=0 // pred_region
    _
  $region5: #{multitask_yolo_forward.28} parent=0 // pred_fallthru
    _
  // Predicated region
  $region6: #{multitask_yolo_forward.28} parent=0 // pred_check
    _
  $region7: #{multitask_yolo_forward.28} parent=0 // pred_check_branch
    %11 = sbr.rel (0) target = $region9
  $region8: #{multitask_yolo_forward.28} parent=0 // pred_region
    _
  $region9: #{multitask_yolo_forward.28} parent=0 // pred_fallthru
    _
  // Predicated region
  $region10: #{multitask_yolo_forward.28} parent=0 // pred_check
    _
  $region11: #{multitask_yolo_forward.28} parent=0 // pred_check_branch
    %13 = sbr.rel (0) target = $region13
  $region12: #{multitask_yolo_forward.28} parent=0 // pred_region
    _
  $region13: #{multitask_yolo_forward.28} parent=0 // pred_fallthru
    _
  %v15 = vld [vmem:[%s0] sm:$0xff]
  %v16 = vld [vmem:[%s0 + $0x8] sm:$0xf]
  %v17 = vld [vmem:[%s0 + $0xc] sm:$0xff]
  %v18 = vld [vmem:[%s0 + $0x14] sm:$0xf]
  %v19 = vld [vmem:[%s0 + $0x18] sm:$0xff]
  %v20 = vld [vmem:[%s0 + $0x20] sm:$0xf]
  %v21 = vld [vmem:[%s0 + $0x24] sm:$0xff]
  %v22 = vld [vmem:[%s0 + $0x2c] sm:$0xf]
  %v23 = vld [vmem:[%s0 + $0x30] sm:$0xff]
  %v24 = vld [vmem:[%s0 + $0x38] sm:$0xf]
  %v25 = vld [vmem:[%s0 + $0x3c] sm:$0xff]
  %v26 = vld [vmem:[%s0 + $0x44] sm:$0xf]
  %v27 = vld [vmem:[%s0 + $0x48] sm:$0xff]
  %v28 = vld [vmem:[%s0 + $0x50] sm:$0xf]
  %v29 = vld [vmem:[%s0 + $0x54] sm:$0xff]
  %v30 = vld [vmem:[%s0 + $0x5c] sm:$0xf]
  %v31 = vld [vmem:[%s1] sm:$0xf]
  %v32 = vld [vmem:[%s1 + $0x4] sm:$0xf]
  %v33 = vld [vmem:[%s1 + $0x8] sm:$0xf]
  %v34 = vld [vmem:[%s1 + $0xc] sm:$0xf]
  %v35 = vld [vmem:[%s1 + $0x10] sm:$0xf]
  %v36 = vld [vmem:[%s1 + $0x14] sm:$0xf]
  %v37 = vld [vmem:[%s1 + $0x18] sm:$0xf]
  %v38 = vld [vmem:[%s1 + $0x1c] sm:$0xf]
  %v39 = vld [vmem:[%s1 + $0x20] sm:$0xf]
  %v40 = vld [vmem:[%s1 + $0x24] sm:$0xf]
  %v41 = vld [vmem:[%s1 + $0x28] sm:$0xf]
  %v42 = vld [vmem:[%s1 + $0x2c] sm:$0xf]
  %v43 = vld [vmem:[%s1 + $0x30] sm:$0xf]
  %v44 = vld [vmem:[%s1 + $0x34] sm:$0xf]
  %v45 = vld [vmem:[%s1 + $0x38] sm:$0xf]
  %v46 = vld [vmem:[%s1 + $0x3c] sm:$0xf]
  %v47 = vld [vmem:[%s1 + $0x40] sm:$0xf]
  %v48 = vld [vmem:[%s1 + $0x44] sm:$0xf]
  %v49 = vld [vmem:[%s1 + $0x48] sm:$0xf]
  %v50 = vld [vmem:[%s1 + $0x4c] sm:$0xf]
  %v51 = vld [vmem:[%s1 + $0x50] sm:$0xf]
  %v52 = vld [vmem:[%s1 + $0x54] sm:$0xf]
  %v53 = vld [vmem:[%s1 + $0x58] sm:$0xf]
  %v54 = vld [vmem:[%s1 + $0x5c] sm:$0xf]
  %v55 = vld [vmem:[%s1 + $0x60] sm:$0xf]
  %v56 = vld [vmem:[%s1 + $0x64] sm:$0xf]
  %v57 = vld [vmem:[%s1 + $0x68] sm:$0xf]
  %v58 = vld [vmem:[%s1 + $0x6c] sm:$0xf]
  %v59 = vld [vmem:[%s1 + $0x70] sm:$0xf]
  %v60 = vld [vmem:[%s1 + $0x74] sm:$0xf]
  %v61 = vld [vmem:[%s1 + $0x78] sm:$0xf]
  %v62 = vld [vmem:[%s1 + $0x7c] sm:$0xf]
  %v63 = vld [vmem:[%s1 + $0x80] sm:$0xf]
  %v64 = vld [vmem:[%s1 + $0x84] sm:$0xf]
  %v65 = vld [vmem:[%s1 + $0x88] sm:$0xf]
  %v66 = vld [vmem:[%s1 + $0x8c] sm:$0xf]
  %v67 = vld [vmem:[%s2] sm:$0xff]
  %v68 = vld [vmem:[%s2 + $0x8] sm:$0xff]
  %v69 = vld [vmem:[%s2 + $0x10] sm:$0xff]
  %v70 = vld [vmem:[%s2 + $0x18] sm:$0xff]
  %v71 = vld [vmem:[%s2 + $0x20] sm:$0xff]
  %v72 = vld [vmem:[%s2 + $0x28] sm:$0xff]
  %v73 = vld [vmem:[%s2 + $0x30] sm:$0xff]
  %v74 = vld [vmem:[%s2 + $0x38] sm:$0xff]
  %76 = vset.pattern.permute.xlu0 0
  %77 = vperm.xlu0 %76, %v67
  %v78 = vpop.permute.xlu0 %77
  %81 = vset.pattern.permute.xlu0 0
  %82 = vperm.xlu0 %81, %v68
  %v83 = vpop.permute.xlu0 %82
  %86 = vset.pattern.permute.xlu0 0
  %87 = vperm.xlu0 %86, %v69
  %v88 = vpop.permute.xlu0 %87
  %91 = vset.pattern.permute.xlu0 0
  %92 = vperm.xlu0 %91, %v70
  %v93 = vpop.permute.xlu0 %92
  %96 = vset.pattern.permute.xlu0 0
  %97 = vperm.xlu0 %96, %v71
  %v98 = vpop.permute.xlu0 %97
  %101 = vset.pattern.permute.xlu0 0
  %102 = vperm.xlu0 %101, %v72
  %v103 = vpop.permute.xlu0 %102
  %106 = vset.pattern.permute.xlu0 0
  %107 = vperm.xlu0 %106, %v73
  %v108 = vpop.permute.xlu0 %107
  %111 = vset.pattern.permute.xlu0 0
  %112 = vperm.xlu0 %111, %v74
  %v113 = vpop.permute.xlu0 %112
  %v131 = vunpack.c.l.b16 %v15
  %v132 = vunpack.c.h.b16 %v15
  %v133 = vunpack.c.l.b16 %v16
  %v134 = vunpack.c.l.b16 %v17
  %v135 = vunpack.c.h.b16 %v17
  %v136 = vunpack.c.l.b16 %v18
  %v137 = vunpack.c.l.b16 %v19
  %v138 = vunpack.c.h.b16 %v19
  %v139 = vunpack.c.l.b16 %v20
  %v140 = vunpack.c.l.b16 %v21
  %v141 = vunpack.c.h.b16 %v21
  %v142 = vunpack.c.l.b16 %v22
  %v143 = vunpack.c.l.b16 %v23
  %v144 = vunpack.c.h.b16 %v23
  %v145 = vunpack.c.l.b16 %v24
  %v146 = vunpack.c.l.b16 %v25
  %v147 = vunpack.c.h.b16 %v25
  %v148 = vunpack.c.l.b16 %v26
  %v149 = vunpack.c.l.b16 %v27
  %v150 = vunpack.c.h.b16 %v27
  %v151 = vunpack.c.l.b16 %v28
  %v152 = vunpack.c.l.b16 %v29
  %v153 = vunpack.c.h.b16 %v29
  %v154 = vunpack.c.l.b16 %v30
  %v155 = vpack.c.b16 %v134, %v131
  %v156 = vpack.c.b16 %v135, %v132
  %v157 = vpack.c.b16 %v136, %v133
  %v158 = vpack.c.b16 %v140, %v137
  %v159 = vpack.c.b16 %v141, %v138
  %v160 = vpack.c.b16 %v142, %v139
  %v161 = vpack.c.b16 %v146, %v143
  %v162 = vpack.c.b16 %v147, %v144
  %v163 = vpack.c.b16 %v148, %v145
  %v164 = vpack.c.b16 %v152, %v149
  %v165 = vpack.c.b16 %v153, %v150
  %v166 = vpack.c.b16 %v154, %v151
  %v211 = vunpack.c.l.b16 %v31
  %v212 = vunpack.c.l.b16 %v32
  %v213 = vunpack.c.l.b16 %v33
  %v214 = vunpack.c.l.b16 %v34
  %v215 = vunpack.c.l.b16 %v35
  %v216 = vunpack.c.l.b16 %v36
  %v217 = vunpack.c.l.b16 %v37
  %v218 = vunpack.c.l.b16 %v38
  %v219 = vunpack.c.l.b16 %v39
  %v220 = vunpack.c.l.b16 %v40
  %v221 = vunpack.c.l.b16 %v41
  %v222 = vunpack.c.l.b16 %v42
  %v223 = vunpack.c.l.b16 %v43
  %v224 = vunpack.c.l.b16 %v44
  %v225 = vunpack.c.l.b16 %v45
  %v226 = vunpack.c.l.b16 %v46
  %v227 = vunpack.c.l.b16 %v47
  %v228 = vunpack.c.l.b16 %v48
  %v229 = vunpack.c.l.b16 %v49
  %v230 = vunpack.c.l.b16 %v50
  %v231 = vunpack.c.l.b16 %v51
  %v232 = vunpack.c.l.b16 %v52
  %v233 = vunpack.c.l.b16 %v53
  %v234 = vunpack.c.l.b16 %v54
  %v235 = vunpack.c.l.b16 %v55
  %v236 = vunpack.c.l.b16 %v56
  %v237 = vunpack.c.l.b16 %v57
  %v238 = vunpack.c.l.b16 %v58
  %v239 = vunpack.c.l.b16 %v59
  %v240 = vunpack.c.l.b16 %v60
  %v241 = vunpack.c.l.b16 %v61
  %v242 = vunpack.c.l.b16 %v62
  %v243 = vunpack.c.l.b16 %v63
  %v244 = vunpack.c.l.b16 %v64
  %v245 = vunpack.c.l.b16 %v65
  %v246 = vunpack.c.l.b16 %v66
  %v247 = vpack.c.b16 %v212, %v211
  %v248 = vpack.c.b16 %v214, %v213
  %v249 = vpack.c.b16 %v216, %v215
  %v250 = vpack.c.b16 %v218, %v217
  %v251 = vpack.c.b16 %v220, %v219
  %v252 = vpack.c.b16 %v222, %v221
  %v253 = vpack.c.b16 %v224, %v223
  %v254 = vpack.c.b16 %v226, %v225
  %v255 = vpack.c.b16 %v228, %v227
  %v256 = vpack.c.b16 %v230, %v229
  %v257 = vpack.c.b16 %v232, %v231
  %v258 = vpack.c.b16 %v234, %v233
  %v259 = vpack.c.b16 %v236, %v235
  %v260 = vpack.c.b16 %v238, %v237
  %v261 = vpack.c.b16 %v240, %v239
  %v262 = vpack.c.b16 %v242, %v241
  %v263 = vpack.c.b16 %v244, %v243
  %v264 = vpack.c.b16 %v246, %v245
  %vm283 = vcmask 261120
  %v285 = vsel %vm283, %v157, 0
  %v288 = vsel %vm283, %v160, 0
  %v291 = vsel %vm283, %v163, 0
  %v294 = vsel %vm283, %v166, 0
  %296 = vmatpush.bf16.msra.mxu0 %v254
  %297 = vmatpush.bf16.msra.mxu0 %v253
  %298 = vmatpush.bf16.msra.mxu0 %v252
  %299 = vmatpush.bf16.msra.mxu0 %v251
  %300 = vmatpush.bf16.msra.mxu0 %v250
  %301 = vmatpush.bf16.msra.mxu0 %v249
  %302 = vmatpush.bf16.msra.mxu0 %v248
  %303 = vmatpush.bf16.msra.mxu0 %v247
  %304 = vmatmul.bf16.gmra.mxu0 %v155
  %v305 = vpop.f32.mrf.mxu0
  %v306 = vadd.f32 %v78, %v305
  %v307 = vpop.f32.mrf.mxu0
  %v308 = vadd.f32 %v83, %v307
  %309 = vmatmul.bf16.gmra.mxu0 %v158
  %v310 = vpop.f32.mrf.mxu0
  %v311 = vadd.f32 %v88, %v310
  %v312 = vpop.f32.mrf.mxu0
  %v313 = vadd.f32 %v93, %v312
  %314 = vmatmul.bf16.gmra.mxu0 %v161
  %v315 = vpop.f32.mrf.mxu0
  %v316 = vadd.f32 %v98, %v315
  %v317 = vpop.f32.mrf.mxu0
  %v318 = vadd.f32 %v103, %v317
  %319 = vmatmul.bf16.gmra.mxu0 %v164
  %v320 = vpop.f32.mrf.mxu0
  %v321 = vadd.f32 %v108, %v320
  %v322 = vpop.f32.mrf.mxu0
  %v323 = vadd.f32 %v113, %v322
  %324 = vdwg.mxu0
  %325 = vmatpush.bf16.msra.mxu0 %v262
  %326 = vmatpush.bf16.msra.mxu0 %v261
  %327 = vmatpush.bf16.msra.mxu0 %v260
  %328 = vmatpush.bf16.msra.mxu0 %v259
  %329 = vmatpush.bf16.msra.mxu0 %v258
  %330 = vmatpush.bf16.msra.mxu0 %v257
  %331 = vmatpush.bf16.msra.mxu0 %v256
  %332 = vmatpush.bf16.msra.mxu0 %v255
  %333 = vmatmul.bf16.gmra.mxu0 %v156
  %v334 = vpop.f32.mrf.mxu0
  %v335 = vadd.f32 %v306, %v334
  %v336 = vpop.f32.mrf.mxu0
  %v337 = vadd.f32 %v308, %v336
  %338 = vmatmul.bf16.gmra.mxu0 %v159
  %v339 = vpop.f32.mrf.mxu0
  %v340 = vadd.f32 %v311, %v339
  %v341 = vpop.f32.mrf.mxu0
  %v342 = vadd.f32 %v313, %v341
  %343 = vmatmul.bf16.gmra.mxu0 %v162
  %v344 = vpop.f32.mrf.mxu0
  %v345 = vadd.f32 %v316, %v344
  %v346 = vpop.f32.mrf.mxu0
  %v347 = vadd.f32 %v318, %v346
  %348 = vmatmul.bf16.gmra.mxu0 %v165
  %v349 = vpop.f32.mrf.mxu0
  %v350 = vadd.f32 %v321, %v349
  %v351 = vpop.f32.mrf.mxu0
  %v352 = vadd.f32 %v323, %v351
  %353 = vdwg.mxu0
  %354 = vmatpush.bf16.msra.mxu0 0
  %355 = vmatpush.bf16.msra.mxu0 0
  %356 = vmatpush.bf16.msra.mxu0 0
  %357 = vmatpush.bf16.msra.mxu0 0
  %358 = vmatpush.bf16.msra.mxu0 0
  %359 = vmatpush.bf16.msra.mxu0 0
  %360 = vmatpush.bf16.msra.mxu0 %v264
  %361 = vmatpush.bf16.msra.mxu0 %v263
  %362 = vmatmul.bf16.gmra.mxu0 %v285
  %v363 = vpop.f32.mrf.mxu0
  %v364 = vadd.f32 %v335, %v363
  %v365 = vpop.f32.mrf.mxu0
  %v366 = vadd.f32 %v337, %v365
  %367 = vmatmul.bf16.gmra.mxu0 %v288
  %v368 = vpop.f32.mrf.mxu0
  %v369 = vadd.f32 %v340, %v368
  %v370 = vpop.f32.mrf.mxu0
  %v371 = vadd.f32 %v342, %v370
  %372 = vmatmul.bf16.gmra.mxu0 %v291
  %v373 = vpop.f32.mrf.mxu0
  %v374 = vadd.f32 %v345, %v373
  %v375 = vpop.f32.mrf.mxu0
  %v376 = vadd.f32 %v347, %v375
  %377 = vmatmul.bf16.gmra.mxu0 %v294
  %v378 = vpop.f32.mrf.mxu0
  %v379 = vadd.f32 %v350, %v378
  %v380 = vpop.f32.mrf.mxu0
  %v381 = vadd.f32 %v352, %v380
  %382 = vdwg.mxu0
  %v383 = vsub.f32 0.0, %v364
  %v384 = vsub.f32 0.0, %v366
  %v385 = vsub.f32 0.0, %v369
  %v386 = vsub.f32 0.0, %v371
  %v387 = vsub.f32 0.0, %v374
  %v388 = vsub.f32 0.0, %v376
  %v389 = vsub.f32 0.0, %v379
  %v390 = vsub.f32 0.0, %v381
  %v391 = vmul.f32 %v383, 1.442695
  %v392 = vpow.pop %v391
  %v393 = vmul.f32 %v384, 1.442695
  %v394 = vpow.pop %v393
  %v395 = vmul.f32 %v385, 1.442695
  %v396 = vpow.pop %v395
  %v397 = vmul.f32 %v386, 1.442695
  %v398 = vpow.pop %v397
  %v399 = vmul.f32 %v387, 1.442695
  %v400 = vpow.pop %v399
  %v401 = vmul.f32 %v388, 1.442695
  %v402 = vpow.pop %v401
  %v403 = vmul.f32 %v389, 1.442695
  %v404 = vpow.pop %v403
  %v405 = vmul.f32 %v390, 1.442695
  %v406 = vpow.pop %v405
  %v407 = vadd.f32 %v392, 1.0
  %v408 = vadd.f32 %v394, 1.0
  %v409 = vadd.f32 %v396, 1.0
  %v410 = vadd.f32 %v398, 1.0
  %v411 = vadd.f32 %v400, 1.0
  %v412 = vadd.f32 %v402, 1.0
  %v413 = vadd.f32 %v404, 1.0
  %v414 = vadd.f32 %v406, 1.0
  %v415 = vrcp.pop %v407
  %v416 = vrcp.pop %v408
  %v417 = vrcp.pop %v409
  %v418 = vrcp.pop %v410
  %v419 = vrcp.pop %v411
  %v420 = vrcp.pop %v412
  %v421 = vrcp.pop %v413
  %v422 = vrcp.pop %v414
  %v423 = vmul.f32 %v364, %v415
  %v424 = vmul.f32 %v366, %v416
  %v425 = vmul.f32 %v369, %v417
  %v426 = vmul.f32 %v371, %v418
  %v427 = vmul.f32 %v374, %v419
  %v428 = vmul.f32 %v376, %v420
  %v429 = vmul.f32 %v379, %v421
  %v430 = vmul.f32 %v381, %v422
  %vm431 = vcmask 64512
  %432 = vst.msk [vmem:[%s3] sm:$0xff] %vm431, %v423
  %433 = vst.msk [vmem:[%s3 + $0x8] sm:$0xff] %vm431, %v424
  %434 = vst.msk [vmem:[%s3 + $0x10] sm:$0xff] %vm431, %v425
  %435 = vst.msk [vmem:[%s3 + $0x18] sm:$0xff] %vm431, %v426
  %436 = vst.msk [vmem:[%s3 + $0x20] sm:$0xff] %vm431, %v427
  %437 = vst.msk [vmem:[%s3 + $0x28] sm:$0xff] %vm431, %v428
  %438 = vst.msk [vmem:[%s3 + $0x30] sm:$0xff] %vm431, %v429
  %439 = vst.msk [vmem:[%s3 + $0x38] sm:$0xff] %vm431, %v430
  // Predicated region
  $region14: #{multitask_yolo_forward.28} parent=0 // pred_check
    _
  $region15: #{multitask_yolo_forward.28} parent=0 // pred_check_branch
    %441 = sbr.rel (0) target = $region17
  $region16: #{multitask_yolo_forward.28} parent=0 // pred_region
    _
  $region17: #{multitask_yolo_forward.28} parent=0 // pred_fallthru
    _
  // Predicated region
  $region18: #{multitask_yolo_forward.28} parent=0 // pred_check
    _
  $region19: #{multitask_yolo_forward.28} parent=0 // pred_check_branch
    %443 = sbr.rel (0) target = $region21
  $region20: #{multitask_yolo_forward.28} parent=0 // pred_region
    _
  $region21: #{multitask_yolo_forward.28} parent=0 // pred_fallthru
    _

// kernel: multitask_yolo_forward.29
$region0: #{multitask_yolo_forward.29}
  #allocation0 [shape = 'u32[]', space=smem, size = 0x4, offset = 0x4, fixed_abs, tag = 'smem constant byte address 0x4 - core index']
  #allocation1 [shape = 'u32[72,128]{1,0:T(1,128)}', space=vmem, size = 0x9000, scoped, tag = 'internal scratch']
  %s0 = inlined_call_operand.vmem [shape: bf16[64,576], index: 0, kind: input, shape index: {}]
  %s1 = inlined_call_operand.vmem [shape: bf16[576,8], index: 1, kind: input, shape index: {}]
  %s2 = inlined_call_operand.vmem [shape: f32[64,1], index: 2, kind: input, shape index: {}]
  %s3 = inlined_call_operand.vmem [shape: f32[64,8], index: 3, kind: output, shape index: {}]
  %s4 = sld [smem:[#allocation0]]
  $region22: #{multitask_yolo_forward.29} parent=0
    _
  %s6 = ssub.s32 1, %s4
  %s7 = scalar_select 0, %s6, %s4
  // Predicated region
  $region2: #{multitask_yolo_forward.29} parent=0 // pred_check
    _
  $region3: #{multitask_yolo_forward.29} parent=0 // pred_check_branch
    %9 = sbr.rel (0) target = $region5
  $region4: #{multitask_yolo_forward.29} parent=0 // pred_region
    _
  $region5: #{multitask_yolo_forward.29} parent=0 // pred_fallthru
    _
  // Predicated region
  $region6: #{multitask_yolo_forward.29} parent=0 // pred_check
    _
  $region7: #{multitask_yolo_forward.29} parent=0 // pred_check_branch
    %11 = sbr.rel (0) target = $region9
  $region8: #{multitask_yolo_forward.29} parent=0 // pred_region
    _
  $region9: #{multitask_yolo_forward.29} parent=0 // pred_fallthru
    _
  // Predicated region
  $region10: #{multitask_yolo_forward.29} parent=0 // pred_check
    _
  $region11: #{multitask_yolo_forward.29} parent=0 // pred_check_branch
    %13 = sbr.rel (0) target = $region13
  $region12: #{multitask_yolo_forward.29} parent=0 // pred_region
    _
  $region13: #{multitask_yolo_forward.29} parent=0 // pred_fallthru
    _
  %v15 = vld [vmem:[%s0] sm:$0xff]
  %v16 = vld [vmem:[%s0 + $0x8] sm:$0xff]
  %v17 = vld [vmem:[%s0 + $0x10] sm:$0xf]
  %v18 = vld [vmem:[%s0 + $0x14] sm:$0xff]
  %v19 = vld [vmem:[%s0 + $0x1c] sm:$0xff]
  %v20 = vld [vmem:[%s0 + $0x24] sm:$0xf]
  %v21 = vld [vmem:[%s0 + $0x28] sm:$0xff]
  %v22 = vld [vmem:[%s0 + $0x30] sm:$0xff]
  %v23 = vld [vmem:[%s0 + $0x38] sm:$0xf]
  %v24 = vld [vmem:[%s0 + $0x3c] sm:$0xff]
  %v25 = vld [vmem:[%s0 + $0x44] sm:$0xff]
  %v26 = vld [vmem:[%s0 + $0x4c] sm:$0xf]
  %v27 = vld [vmem:[%s0 + $0x50] sm:$0xff]
  %v28 = vld [vmem:[%s0 + $0x58] sm:$0xff]
  %v29 = vld [vmem:[%s0 + $0x60] sm:$0xf]
  %v30 = vld [vmem:[%s0 + $0x64] sm:$0xff]
  %v31 = vld [vmem:[%s0 + $0x6c] sm:$0xff]
  %v32 = vld [vmem:[%s0 + $0x74] sm:$0xf]
  %v33 = vld [vmem:[%s0 + $0x78] sm:$0xff]
  %v34 = vld [vmem:[%s0 + $0x80] sm:$0xff]
  %v35 = vld [vmem:[%s0 + $0x88] sm:$0xf]
  %v36 = vld [vmem:[%s0 + $0x8c] sm:$0xff]
  %v37 = vld [vmem:[%s0 + $0x94] sm:$0xff]
  %v38 = vld [vmem:[%s0 + $0x9c] sm:$0xf]
  %v39 = vld [vmem:[%s1] sm:$0xf]
  %v40 = vld [vmem:[%s1 + $0x4] sm:$0xf]
  %v41 = vld [vmem:[%s1 + $0x8] sm:$0xf]
  %v42 = vld [vmem:[%s1 + $0xc] sm:$0xf]
  %v43 = vld [vmem:[%s1 + $0x10] sm:$0xf]
  %v44 = vld [vmem:[%s1 + $0x14] sm:$0xf]
  %v45 = vld [vmem:[%s1 + $0x18] sm:$0xf]
  %v46 = vld [vmem:[%s1 + $0x1c] sm:$0xf]
  %v47 = vld [vmem:[%s1 + $0x20] sm:$0xf]
  %v48 = vld [vmem:[%s1 + $0x24] sm:$0xf]
  %v49 = vld [vmem:[%s1 + $0x28] sm:$0xf]
  %v50 = vld [vmem:[%s1 + $0x2c] sm:$0xf]
  %v51 = vld [vmem:[%s1 + $0x30] sm:$0xf]
  %v52 = vld [vmem:[%s1 + $0x34] sm:$0xf]
  %v53 = vld [vmem:[%s1 + $0x38] sm:$0xf]
  %v54 = vld [vmem:[%s1 + $0x3c] sm:$0xf]
  %v55 = vld [vmem:[%s1 + $0x40] sm:$0xf]
  %v56 = vld [vmem:[%s1 + $0x44] sm:$0xf]
  %v57 = vld [vmem:[%s1 + $0x48] sm:$0xf]
  %v58 = vld [vmem:[%s1 + $0x4c] sm:$0xf]
  %v59 = vld [vmem:[%s1 + $0x50] sm:$0xf]
  %v60 = vld [vmem:[%s1 + $0x54] sm:$0xf]
  %v61 = vld [vmem:[%s1 + $0x58] sm:$0xf]
  %v62 = vld [vmem:[%s1 + $0x5c] sm:$0xf]
  %v63 = vld [vmem:[%s1 + $0x60] sm:$0xf]
  %v64 = vld [vmem:[%s1 + $0x64] sm:$0xf]
  %v65 = vld [vmem:[%s1 + $0x68] sm:$0xf]
  %v66 = vld [vmem:[%s1 + $0x6c] sm:$0xf]
  %v67 = vld [vmem:[%s1 + $0x70] sm:$0xf]
  %v68 = vld [vmem:[%s1 + $0x74] sm:$0xf]
  %v69 = vld [vmem:[%s1 + $0x78] sm:$0xf]
  %v70 = vld [vmem:[%s1 + $0x7c] sm:$0xf]
  %v71 = vld [vmem:[%s1 + $0x80] sm:$0xf]
  %v72 = vld [vmem:[%s1 + $0x84] sm:$0xf]
  %v73 = vld [vmem:[%s1 + $0x88] sm:$0xf]
  %v74 = vld [vmem:[%s1 + $0x8c] sm:$0xf]
  %v75 = vld [vmem:[%s1 + $0x90] sm:$0xf]
  %v76 = vld [vmem:[%s1 + $0x94] sm:$0xf]
  %v77 = vld [vmem:[%s1 + $0x98] sm:$0xf]
  %v78 = vld [vmem:[%s1 + $0x9c] sm:$0xf]
  %v79 = vld [vmem:[%s1 + $0xa0] sm:$0xf]
  %v80 = vld [vmem:[%s1 + $0xa4] sm:$0xf]
  %v81 = vld [vmem:[%s1 + $0xa8] sm:$0xf]
  %v82 = vld [vmem:[%s1 + $0xac] sm:$0xf]
  %v83 = vld [vmem:[%s1 + $0xb0] sm:$0xf]
  %v84 = vld [vmem:[%s1 + $0xb4] sm:$0xf]
  %v85 = vld [vmem:[%s1 + $0xb8] sm:$0xf]
  %v86 = vld [vmem:[%s1 + $0xbc] sm:$0xf]
  %v87 = vld [vmem:[%s1 + $0xc0] sm:$0xf]
  %v88 = vld [vmem:[%s1 + $0xc4] sm:$0xf]
  %v89 = vld [vmem:[%s1 + $0xc8] sm:$0xf]
  %v90 = vld [vmem:[%s1 + $0xcc] sm:$0xf]
  %v91 = vld [vmem:[%s1 + $0xd0] sm:$0xf]
  %v92 = vld [vmem:[%s1 + $0xd4] sm:$0xf]
  %v93 = vld [vmem:[%s1 + $0xd8] sm:$0xf]
  %v94 = vld [vmem:[%s1 + $0xdc] sm:$0xf]
  %v95 = vld [vmem:[%s1 + $0xe0] sm:$0xf]
  %v96 = vld [vmem:[%s1 + $0xe4] sm:$0xf]
  %v97 = vld [vmem:[%s1 + $0xe8] sm:$0xf]
  %v98 = vld [vmem:[%s1 + $0xec] sm:$0xf]
  %v99 = vld [vmem:[%s1 + $0xf0] sm:$0xf]
  %v100 = vld [vmem:[%s1 + $0xf4] sm:$0xf]
  %v101 = vld [vmem:[%s1 + $0xf8] sm:$0xf]
  %v102 = vld [vmem:[%s1 + $0xfc] sm:$0xf]
  %v103 = vld [vmem:[%s1 + $0x100] sm:$0xf]
  %v104 = vld [vmem:[%s1 + $0x104] sm:$0xf]
  %v105 = vld [vmem:[%s1 + $0x108] sm:$0xf]
  %v106 = vld [vmem:[%s1 + $0x10c] sm:$0xf]
  %v107 = vld [vmem:[%s1 + $0x110] sm:$0xf]
  %v108 = vld [vmem:[%s1 + $0x114] sm:$0xf]
  %v109 = vld [vmem:[%s1 + $0x118] sm:$0xf]
  %v110 = vld [vmem:[%s1 + $0x11c] sm:$0xf]
  %v111 = vld [vmem:[%s2] sm:$0xff]
  %v112 = vld [vmem:[%s2 + $0x8] sm:$0xff]
  %v113 = vld [vmem:[%s2 + $0x10] sm:$0xff]
  %v114 = vld [vmem:[%s2 + $0x18] sm:$0xff]
  %v115 = vld [vmem:[%s2 + $0x20] sm:$0xff]
  %v116 = vld [vmem:[%s2 + $0x28] sm:$0xff]
  %v117 = vld [vmem:[%s2 + $0x30] sm:$0xff]
  %v118 = vld [vmem:[%s2 + $0x38] sm:$0xff]
  %120 = vset.pattern.permute.xlu0 0
  %121 = vperm.xlu0 %120, %v111
  %v122 = vpop.permute.xlu0 %121
  %125 = vset.pattern.permute.xlu0 0
  %126 = vperm.xlu0 %125, %v112
  %v127 = vpop.permute.xlu0 %126
  %130 = vset.pattern.permute.xlu0 0
  %131 = vperm.xlu0 %130, %v113
  %v132 = vpop.permute.xlu0 %131
  %135 = vset.pattern.permute.xlu0 0
  %136 = vperm.xlu0 %135, %v114
  %v137 = vpop.permute.xlu0 %136
  %140 = vset.pattern.permute.xlu0 0
  %141 = vperm.xlu0 %140, %v115
  %v142 = vpop.permute.xlu0 %141
  %145 = vset.pattern.permute.xlu0 0
  %146 = vperm.xlu0 %145, %v116
  %v147 = vpop.permute.xlu0 %146
  %150 = vset.pattern.permute.xlu0 0
  %151 = vperm.xlu0 %150, %v117
  %v152 = vpop.permute.xlu0 %151
  %155 = vset.pattern.permute.xlu0 0
  %156 = vperm.xlu0 %155, %v118
  %v157 = vpop.permute.xlu0 %156
  %v183 = vunpack.c.l.b16 %v15
  %v184 = vunpack.c.h.b16 %v15
  %v185 = vunpack.c.l.b16 %v16
  %v186 = vunpack.c.h.b16 %v16
  %v187 = vunpack.c.l.b16 %v17
  %v188 = vunpack.c.l.b16 %v18
  %v189 = vunpack.c.h.b16 %v18
  %v190 = vunpack.c.l.b16 %v19
  %v191 = vunpack.c.h.b16 %v19
  %v192 = vunpack.c.l.b16 %v20
  %v193 = vunpack.c.l.b16 %v21
  %v194 = vunpack.c.h.b16 %v21
  %v195 = vunpack.c.l.b16 %v22
  %v196 = vunpack.c.h.b16 %v22
  %v197 = vunpack.c.l.b16 %v23
  %v198 = vunpack.c.l.b16 %v24
  %v199 = vunpack.c.h.b16 %v24
  %v200 = vunpack.c.l.b16 %v25
  %v201 = vunpack.c.h.b16 %v25
  %v202 = vunpack.c.l.b16 %v26
  %v203 = vunpack.c.l.b16 %v27
  %v204 = vunpack.c.h.b16 %v27
  %v205 = vunpack.c.l.b16 %v28
  %v206 = vunpack.c.h.b16 %v28
  %v207 = vunpack.c.l.b16 %v29
  %v208 = vunpack.c.l.b16 %v30
  %v209 = vunpack.c.h.b16 %v30
  %v210 = vunpack.c.l.b16 %v31
  %v211 = vunpack.c.h.b16 %v31
  %v212 = vunpack.c.l.b16 %v32
  %v213 = vunpack.c.l.b16 %v33
  %v214 = vunpack.c.h.b16 %v33
  %v215 = vunpack.c.l.b16 %v34
  %v216 = vunpack.c.h.b16 %v34
  %v217 = vunpack.c.l.b16 %v35
  %v218 = vunpack.c.l.b16 %v36
  %v219 = vunpack.c.h.b16 %v36
  %v220 = vunpack.c.l.b16 %v37
  %v221 = vunpack.c.h.b16 %v37
  %v222 = vunpack.c.l.b16 %v38
  %v223 = vpack.c.b16 %v188, %v183
  %v224 = vpack.c.b16 %v189, %v184
  %v225 = vpack.c.b16 %v190, %v185
  %v226 = vpack.c.b16 %v191, %v186
  %v227 = vpack.c.b16 %v192, %v187
  %v228 = vpack.c.b16 %v198, %v193
  %v229 = vpack.c.b16 %v199, %v194
  %v230 = vpack.c.b16 %v200, %v195
  %v231 = vpack.c.b16 %v201, %v196
  %v232 = vpack.c.b16 %v202, %v197
  %v233 = vpack.c.b16 %v208, %v203
  %v234 = vpack.c.b16 %v209, %v204
  %v235 = vpack.c.b16 %v210, %v205
  %v236 = vpack.c.b16 %v211, %v206
  %v237 = vpack.c.b16 %v212, %v207
  %v238 = vpack.c.b16 %v218, %v213
  %v239 = vpack.c.b16 %v219, %v214
  %v240 = vpack.c.b16 %v220, %v215
  %v241 = vpack.c.b16 %v221, %v216
  %v242 = vpack.c.b16 %v222, %v217
  %v331 = vunpack.c.l.b16 %v39
  %v332 = vunpack.c.l.b16 %v40
  %v333 = vunpack.c.l.b16 %v41
  %v334 = vunpack.c.l.b16 %v42
  %v335 = vunpack.c.l.b16 %v43
  %v336 = vunpack.c.l.b16 %v44
  %v337 = vunpack.c.l.b16 %v45
  %v338 = vunpack.c.l.b16 %v46
  %v339 = vunpack.c.l.b16 %v47
  %v340 = vunpack.c.l.b16 %v48
  %v341 = vunpack.c.l.b16 %v49
  %v342 = vunpack.c.l.b16 %v50
  %v343 = vunpack.c.l.b16 %v51
  %v344 = vunpack.c.l.b16 %v52
  %v345 = vunpack.c.l.b16 %v53
  %v346 = vunpack.c.l.b16 %v54
  %v347 = vunpack.c.l.b16 %v55
  %v348 = vunpack.c.l.b16 %v56
  %v349 = vunpack.c.l.b16 %v57
  %v350 = vunpack.c.l.b16 %v58
  %v351 = vunpack.c.l.b16 %v59
  %v352 = vunpack.c.l.b16 %v60
  %v353 = vunpack.c.l.b16 %v61
  %v354 = vunpack.c.l.b16 %v62
  %v355 = vunpack.c.l.b16 %v63
  %v356 = vunpack.c.l.b16 %v64
  %v357 = vunpack.c.l.b16 %v65
  %v358 = vunpack.c.l.b16 %v66
  %v359 = vunpack.c.l.b16 %v67
  %v360 = vunpack.c.l.b16 %v68
  %v361 = vunpack.c.l.b16 %v69
  %v362 = vunpack.c.l.b16 %v70
  %v363 = vunpack.c.l.b16 %v71
  %v364 = vunpack.c.l.b16 %v72
  %v365 = vunpack.c.l.b16 %v73
  %v366 = vunpack.c.l.b16 %v74
  %v367 = vunpack.c.l.b16 %v75
  %v368 = vunpack.c.l.b16 %v76
  %v369 = vunpack.c.l.b16 %v77
  %v370 = vunpack.c.l.b16 %v78
  %v371 = vunpack.c.l.b16 %v79
  %v372 = vunpack.c.l.b16 %v80
  %v373 = vunpack.c.l.b16 %v81
  %v374 = vunpack.c.l.b16 %v82
  %v375 = vunpack.c.l.b16 %v83
  %v376 = vunpack.c.l.b16 %v84
  %v377 = vunpack.c.l.b16 %v85
  %v378 = vunpack.c.l.b16 %v86
  %v379 = vunpack.c.l.b16 %v87
  %v380 = vunpack.c.l.b16 %v88
  %v381 = vunpack.c.l.b16 %v89
  %v382 = vunpack.c.l.b16 %v90
  %v383 = vunpack.c.l.b16 %v91
  %v384 = vunpack.c.l.b16 %v92
  %v385 = vunpack.c.l.b16 %v93
  %v386 = vunpack.c.l.b16 %v94
  %v387 = vunpack.c.l.b16 %v95
  %v388 = vunpack.c.l.b16 %v96
  %v389 = vunpack.c.l.b16 %v97
  %v390 = vunpack.c.l.b16 %v98
  %v391 = vunpack.c.l.b16 %v99
  %v392 = vunpack.c.l.b16 %v100
  %v393 = vunpack.c.l.b16 %v101
  %v394 = vunpack.c.l.b16 %v102
  %v395 = vunpack.c.l.b16 %v103
  %v396 = vunpack.c.l.b16 %v104
  %v397 = vunpack.c.l.b16 %v105
  %v398 = vunpack.c.l.b16 %v106
  %v399 = vunpack.c.l.b16 %v107
  %v400 = vunpack.c.l.b16 %v108
  %v401 = vunpack.c.l.b16 %v109
  %v402 = vunpack.c.l.b16 %v110
  %v403 = vpack.c.b16 %v332, %v331
  %v404 = vpack.c.b16 %v334, %v333
  %v405 = vpack.c.b16 %v336, %v335
  %v406 = vpack.c.b16 %v338, %v337
  %v407 = vpack.c.b16 %v340, %v339
  %v408 = vpack.c.b16 %v342, %v341
  %v409 = vpack.c.b16 %v344, %v343
  %v410 = vpack.c.b16 %v346, %v345
  %v411 = vpack.c.b16 %v348, %v347
  %v412 = vpack.c.b16 %v350, %v349
  %v413 = vpack.c.b16 %v352, %v351
  %v414 = vpack.c.b16 %v354, %v353
  %v415 = vpack.c.b16 %v356, %v355
  %v416 = vpack.c.b16 %v358, %v357
  %v417 = vpack.c.b16 %v360, %v359
  %v418 = vpack.c.b16 %v362, %v361
  %v419 = vpack.c.b16 %v364, %v363
  %v420 = vpack.c.b16 %v366, %v365
  %v421 = vpack.c.b16 %v368, %v367
  %v422 = vpack.c.b16 %v370, %v369
  %v423 = vpack.c.b16 %v372, %v371
  %v424 = vpack.c.b16 %v374, %v373
  %v425 = vpack.c.b16 %v376, %v375
  %v426 = vpack.c.b16 %v378, %v377
  %v427 = vpack.c.b16 %v380, %v379
  %v428 = vpack.c.b16 %v382, %v381
  %v429 = vpack.c.b16 %v384, %v383
  %v430 = vpack.c.b16 %v386, %v385
  %v431 = vpack.c.b16 %v388, %v387
  %v432 = vpack.c.b16 %v390, %v389
  %v433 = vpack.c.b16 %v392, %v391
  %v434 = vpack.c.b16 %v394, %v393
  %v435 = vpack.c.b16 %v396, %v395
  %v436 = vpack.c.b16 %v398, %v397
  %v437 = vpack.c.b16 %v400, %v399
  %v438 = vpack.c.b16 %v402, %v401
  %vm475 = vcmask 523264
  %v477 = vsel %vm475, %v227, 0
  %v480 = vsel %vm475, %v232, 0
  %v483 = vsel %vm475, %v237, 0
  %v486 = vsel %vm475, %v242, 0
  %488 = vmatpush.bf16.msra.mxu0 %v410
  %489 = vmatpush.bf16.msra.mxu0 %v409
  %490 = vmatpush.bf16.msra.mxu0 %v408
  %491 = vmatpush.bf16.msra.mxu0 %v407
  %492 = vmatpush.bf16.msra.mxu0 %v406
  %493 = vmatpush.bf16.msra.mxu0 %v405
  %494 = vmatpush.bf16.msra.mxu0 %v404
  %495 = vmatpush.bf16.msra.mxu0 %v403
  %496 = vmatmul.bf16.gmra.mxu0 %v223
  %v497 = vpop.f32.mrf.mxu0
  %v498 = vadd.f32 %v122, %v497
  %v499 = vpop.f32.mrf.mxu0
  %v500 = vadd.f32 %v127, %v499
  %501 = vmatmul.bf16.gmra.mxu0 %v228
  %v502 = vpop.f32.mrf.mxu0
  %v503 = vadd.f32 %v132, %v502
  %v504 = vpop.f32.mrf.mxu0
  %v505 = vadd.f32 %v137, %v504
  %506 = vmatmul.bf16.gmra.mxu0 %v233
  %v507 = vpop.f32.mrf.mxu0
  %v508 = vadd.f32 %v142, %v507
  %v509 = vpop.f32.mrf.mxu0
  %v510 = vadd.f32 %v147, %v509
  %511 = vmatmul.bf16.gmra.mxu0 %v238
  %v512 = vpop.f32.mrf.mxu0
  %v513 = vadd.f32 %v152, %v512
  %v514 = vpop.f32.mrf.mxu0
  %v515 = vadd.f32 %v157, %v514
  %516 = vdwg.mxu0
  %517 = vmatpush.bf16.msra.mxu0 %v418
  %518 = vmatpush.bf16.msra.mxu0 %v417
  %519 = vmatpush.bf16.msra.mxu0 %v416
  %520 = vmatpush.bf16.msra.mxu0 %v415
  %521 = vmatpush.bf16.msra.mxu0 %v414
  %522 = vmatpush.bf16.msra.mxu0 %v413
  %523 = vmatpush.bf16.msra.mxu0 %v412
  %524 = vmatpush.bf16.msra.mxu0 %v411
  %525 = vmatmul.bf16.gmra.mxu0 %v224
  %v526 = vpop.f32.mrf.mxu0
  %v527 = vadd.f32 %v498, %v526
  %v528 = vpop.f32.mrf.mxu0
  %v529 = vadd.f32 %v500, %v528
  %530 = vmatmul.bf16.gmra.mxu0 %v229
  %v531 = vpop.f32.mrf.mxu0
  %v532 = vadd.f32 %v503, %v531
  %v533 = vpop.f32.mrf.mxu0
  %v534 = vadd.f32 %v505, %v533
  %535 = vmatmul.bf16.gmra.mxu0 %v234
  %v536 = vpop.f32.mrf.mxu0
  %v537 = vadd.f32 %v508, %v536
  %v538 = vpop.f32.mrf.mxu0
  %v539 = vadd.f32 %v510, %v538
  %540 = vmatmul.bf16.gmra.mxu0 %v239
  %v541 = vpop.f32.mrf.mxu0
  %v542 = vadd.f32 %v513, %v541
  %v543 = vpop.f32.mrf.mxu0
  %v544 = vadd.f32 %v515, %v543
  %545 = vdwg.mxu0
  %546 = vmatpush.bf16.msra.mxu0 %v426
  %547 = vmatpush.bf16.msra.mxu0 %v425
  %548 = vmatpush.bf16.msra.mxu0 %v424
  %549 = vmatpush.bf16.msra.mxu0 %v423
  %550 = vmatpush.bf16.msra.mxu0 %v422
  %551 = vmatpush.bf16.msra.mxu0 %v421
  %552 = vmatpush.bf16.msra.mxu0 %v420
  %553 = vmatpush.bf16.msra.mxu0 %v419
  %554 = vmatmul.bf16.gmra.mxu0 %v225
  %v555 = vpop.f32.mrf.mxu0
  %v556 = vadd.f32 %v527, %v555
  %v557 = vpop.f32.mrf.mxu0
  %v558 = vadd.f32 %v529, %v557
  %559 = vmatmul.bf16.gmra.mxu0 %v230
  %v560 = vpop.f32.mrf.mxu0
  %v561 = vadd.f32 %v532, %v560
  %v562 = vpop.f32.mrf.mxu0
  %v563 = vadd.f32 %v534, %v562
  %564 = vmatmul.bf16.gmra.mxu0 %v235
  %v565 = vpop.f32.mrf.mxu0
  %v566 = vadd.f32 %v537, %v565
  %v567 = vpop.f32.mrf.mxu0
  %v568 = vadd.f32 %v539, %v567
  %569 = vmatmul.bf16.gmra.mxu0 %v240
  %v570 = vpop.f32.mrf.mxu0
  %v571 = vadd.f32 %v542, %v570
  %v572 = vpop.f32.mrf.mxu0
  %v573 = vadd.f32 %v544, %v572
  %574 = vdwg.mxu0
  %575 = vmatpush.bf16.msra.mxu0 %v434
  %576 = vmatpush.bf16.msra.mxu0 %v433
  %577 = vmatpush.bf16.msra.mxu0 %v432
  %578 = vmatpush.bf16.msra.mxu0 %v431
  %579 = vmatpush.bf16.msra.mxu0 %v430
  %580 = vmatpush.bf16.msra.mxu0 %v429
  %581 = vmatpush.bf16.msra.mxu0 %v428
  %582 = vmatpush.bf16.msra.mxu0 %v427
  %583 = vmatmul.bf16.gmra.mxu0 %v226
  %v584 = vpop.f32.mrf.mxu0
  %v585 = vadd.f32 %v556, %v584
  %v586 = vpop.f32.mrf.mxu0
  %v587 = vadd.f32 %v558, %v586
  %588 = vmatmul.bf16.gmra.mxu0 %v231
  %v589 = vpop.f32.mrf.mxu0
  %v590 = vadd.f32 %v561, %v589
  %v591 = vpop.f32.mrf.mxu0
  %v592 = vadd.f32 %v563, %v591
  %593 = vmatmul.bf16.gmra.mxu0 %v236
  %v594 = vpop.f32.mrf.mxu0
  %v595 = vadd.f32 %v566, %v594
  %v596 = vpop.f32.mrf.mxu0
  %v597 = vadd.f32 %v568, %v596
  %598 = vmatmul.bf16.gmra.mxu0 %v241
  %v599 = vpop.f32.mrf.mxu0
  %v600 = vadd.f32 %v571, %v599
  %v601 = vpop.f32.mrf.mxu0
  %v602 = vadd.f32 %v573, %v601
  %603 = vdwg.mxu0
  %604 = vmatpush.bf16.msra.mxu0 0
  %605 = vmatpush.bf16.msra.mxu0 0
  %606 = vmatpush.bf16.msra.mxu0 0
  %607 = vmatpush.bf16.msra.mxu0 0
  %608 = vmatpush.bf16.msra.mxu0 %v438
  %609 = vmatpush.bf16.msra.mxu0 %v437
  %610 = vmatpush.bf16.msra.mxu0 %v436
  %611 = vmatpush.bf16.msra.mxu0 %v435
  %612 = vmatmul.bf16.gmra.mxu0 %v477
  %v613 = vpop.f32.mrf.mxu0
  %v614 = vadd.f32 %v585, %v613
  %v615 = vpop.f32.mrf.mxu0
  %v616 = vadd.f32 %v587, %v615
  %617 = vmatmul.bf16.gmra.mxu0 %v480
  %v618 = vpop.f32.mrf.mxu0
  %v619 = vadd.f32 %v590, %v618
  %v620 = vpop.f32.mrf.mxu0
  %v621 = vadd.f32 %v592, %v620
  %622 = vmatmul.bf16.gmra.mxu0 %v483
  %v623 = vpop.f32.mrf.mxu0
  %v624 = vadd.f32 %v595, %v623
  %v625 = vpop.f32.mrf.mxu0
  %v626 = vadd.f32 %v597, %v625
  %627 = vmatmul.bf16.gmra.mxu0 %v486
  %v628 = vpop.f32.mrf.mxu0
  %v629 = vadd.f32 %v600, %v628
  %v630 = vpop.f32.mrf.mxu0
  %v631 = vadd.f32 %v602, %v630
  %632 = vdwg.mxu0
  %v633 = vsub.f32 0.0, %v614
  %v634 = vsub.f32 0.0, %v616
  %v635 = vsub.f32 0.0, %v619
  %v636 = vsub.f32 0.0, %v621
  %v637 = vsub.f32 0.0, %v624
  %v638 = vsub.f32 0.0, %v626
  %v639 = vsub.f32 0.0, %v629
  %v640 = vsub.f32 0.0, %v631
  %v641 = vmul.f32 %v633, 1.442695
  %v642 = vpow.pop %v641
  %v643 = vmul.f32 %v634, 1.442695
  %v644 = vpow.pop %v643
  %v645 = vmul.f32 %v635, 1.442695
  %v646 = vpow.pop %v645
  %v647 = vmul.f32 %v636, 1.442695
  %v648 = vpow.pop %v647
  %v649 = vmul.f32 %v637, 1.442695
  %v650 = vpow.pop %v649
  %v651 = vmul.f32 %v638, 1.442695
  %v652 = vpow.pop %v651
  %v653 = vmul.f32 %v639, 1.442695
  %v654 = vpow.pop %v653
  %v655 = vmul.f32 %v640, 1.442695
  %v656 = vpow.pop %v655
  %v657 = vadd.f32 %v642, 1.0
  %v658 = vadd.f32 %v644, 1.0
  %v659 = vadd.f32 %v646, 1.0
  %v660 = vadd.f32 %v648, 1.0
  %v661 = vadd.f32 %v650, 1.0
  %v662 = vadd.f32 %v652, 1.0
  %v663 = vadd.f32 %v654, 1.0
  %v664 = vadd.f32 %v656, 1.0
  %v665 = vrcp.pop %v657
  %v666 = vrcp.pop %v658
  %v667 = vrcp.pop %v659
  %v668 = vrcp.pop %v660
  %v669 = vrcp.pop %v661
  %v670 = vrcp.pop %v662
  %v671 = vrcp.pop %v663
  %v672 = vrcp.pop %v664
  %v673 = vmul.f32 %v614, %v665
  %v674 = vmul.f32 %v616, %v666
  %v675 = vmul.f32 %v619, %v667
  %v676 = vmul.f32 %v621, %v668
  %v677 = vmul.f32 %v624, %v669
  %v678 = vmul.f32 %v626, %v670
  %v679 = vmul.f32 %v629, %v671
  %v680 = vmul.f32 %v631, %v672
  %vm681 = vcmask 64512
  %682 = vst.msk [vmem:[%s3] sm:$0xff] %vm681, %v673
  %683 = vst.msk [vmem:[%s3 + $0x8] sm:$0xff] %vm681, %v674
  %684 = vst.msk [vmem:[%s3 + $0x10] sm:$0xff] %vm681, %v675
  %685 = vst.msk [vmem:[%s3 + $0x18] sm:$0xff] %vm681, %v676
  %686 = vst.msk [vmem:[%s3 + $0x20] sm:$0xff] %vm681, %v677
  %687 = vst.msk [vmem:[%s3 + $0x28] sm:$0xff] %vm681, %v678
  %688 = vst.msk [vmem:[%s3 + $0x30] sm:$0xff] %vm681, %v679
  %689 = vst.msk [vmem:[%s3 + $0x38] sm:$0xff] %vm681, %v680
  // Predicated region
  $region14: #{multitask_yolo_forward.29} parent=0 // pred_check
    _
  $region15: #{multitask_yolo_forward.29} parent=0 // pred_check_branch
    %691 = sbr.rel (0) target = $region17
  $region16: #{multitask_yolo_forward.29} parent=0 // pred_region
    _
  $region17: #{multitask_yolo_forward.29} parent=0 // pred_fallthru
    _
  // Predicated region
  $region18: #{multitask_yolo_forward.29} parent=0 // pred_check
    _
  $region19: #{multitask_yolo_forward.29} parent=0 // pred_check_branch
    %693 = sbr.rel (0) target = $region21
  $region20: #{multitask_yolo_forward.29} parent=0 // pred_region
    _
  $region21: #{multitask_yolo_forward.29} parent=0 // pred_fallthru
    _

// kernel: multitask_yolo_forward.30
$region0: #{multitask_yolo_forward.30}
  #allocation0 [shape = 'u32[]', space=smem, size = 0x4, offset = 0x4, fixed_abs, tag = 'smem constant byte address 0x4 - core index']
  #allocation1 [shape = 'u32[72,128]{1,0:T(1,128)}', space=vmem, size = 0x9000, scoped, tag = 'internal scratch']
  %s0 = inlined_call_operand.vmem [shape: bf16[32,864], index: 0, kind: input, shape index: {}]
  %s1 = inlined_call_operand.vmem [shape: bf16[864,32], index: 1, kind: input, shape index: {}]
  %s2 = inlined_call_operand.vmem [shape: f32[32,1], index: 2, kind: input, shape index: {}]
  %s3 = inlined_call_operand.vmem [shape: f32[32,32], index: 3, kind: output, shape index: {}]
  %s4 = sld [smem:[#allocation0]]
  $region22: #{multitask_yolo_forward.30} parent=0
    _
  %s6 = ssub.s32 1, %s4
  %s7 = scalar_select 0, %s6, %s4
  // Predicated region
  $region2: #{multitask_yolo_forward.30} parent=0 // pred_check
    _
  $region3: #{multitask_yolo_forward.30} parent=0 // pred_check_branch
    %9 = sbr.rel (0) target = $region5
  $region4: #{multitask_yolo_forward.30} parent=0 // pred_region
    _
  $region5: #{multitask_yolo_forward.30} parent=0 // pred_fallthru
    _
  // Predicated region
  $region6: #{multitask_yolo_forward.30} parent=0 // pred_check
    _
  $region7: #{multitask_yolo_forward.30} parent=0 // pred_check_branch
    %11 = sbr.rel (0) target = $region9
  $region8: #{multitask_yolo_forward.30} parent=0 // pred_region
    _
  $region9: #{multitask_yolo_forward.30} parent=0 // pred_fallthru
    _
  // Predicated region
  $region10: #{multitask_yolo_forward.30} parent=0 // pred_check
    _
  $region11: #{multitask_yolo_forward.30} parent=0 // pred_check_branch
    %13 = sbr.rel (0) target = $region13
  $region12: #{multitask_yolo_forward.30} parent=0 // pred_region
    _
  $region13: #{multitask_yolo_forward.30} parent=0 // pred_fallthru
    _
  %v15 = vld [vmem:[%s0] sm:$0xff]
  %v16 = vld [vmem:[%s0 + $0x8] sm:$0xff]
  %v17 = vld [vmem:[%s0 + $0x10] sm:$0xff]
  %v18 = vld [vmem:[%s0 + $0x18] sm:$0xf]
  %v19 = vld [vmem:[%s0 + $0x1c] sm:$0xff]
  %v20 = vld [vmem:[%s0 + $0x24] sm:$0xff]
  %v21 = vld [vmem:[%s0 + $0x2c] sm:$0xff]
  %v22 = vld [vmem:[%s0 + $0x34] sm:$0xf]
  %v23 = vld [vmem:[%s0 + $0x38] sm:$0xff]
  %v24 = vld [vmem:[%s0 + $0x40] sm:$0xff]
  %v25 = vld [vmem:[%s0 + $0x48] sm:$0xff]
  %v26 = vld [vmem:[%s0 + $0x50] sm:$0xf]
  %v27 = vld [vmem:[%s0 + $0x54] sm:$0xff]
  %v28 = vld [vmem:[%s0 + $0x5c] sm:$0xff]
  %v29 = vld [vmem:[%s0 + $0x64] sm:$0xff]
  %v30 = vld [vmem:[%s0 + $0x6c] sm:$0xf]
  %v31 = vld [vmem:[%s1] sm:$0xf]
  %v32 = vld [vmem:[%s1 + $0x4] sm:$0xf]
  %v33 = vld [vmem:[%s1 + $0x8] sm:$0xf]
  %v34 = vld [vmem:[%s1 + $0xc] sm:$0xf]
  %v35 = vld [vmem:[%s1 + $0x10] sm:$0xf]
  %v36 = vld [vmem:[%s1 + $0x14] sm:$0xf]
  %v37 = vld [vmem:[%s1 + $0x18] sm:$0xf]
  %v38 = vld [vmem:[%s1 + $0x1c] sm:$0xf]
  %v39 = vld [vmem:[%s1 + $0x20] sm:$0xf]
  %v40 = vld [vmem:[%s1 + $0x24] sm:$0xf]
  %v41 = vld [vmem:[%s1 + $0x28] sm:$0xf]
  %v42 = vld [vmem:[%s1 + $0x2c] sm:$0xf]
  %v43 = vld [vmem:[%s1 + $0x30] sm:$0xf]
  %v44 = vld [vmem:[%s1 + $0x34] sm:$0xf]
  %v45 = vld [vmem:[%s1 + $0x38] sm:$0xf]
  %v46 = vld [vmem:[%s1 + $0x3c] sm:$0xf]
  %v47 = vld [vmem:[%s1 + $0x40] sm:$0xf]
  %v48 = vld [vmem:[%s1 + $0x44] sm:$0xf]
  %v49 = vld [vmem:[%s1 + $0x48] sm:$0xf]
  %v50 = vld [vmem:[%s1 + $0x4c] sm:$0xf]
  %v51 = vld [vmem:[%s1 + $0x50] sm:$0xf]
  %v52 = vld [vmem:[%s1 + $0x54] sm:$0xf]
  %v53 = vld [vmem:[%s1 + $0x58] sm:$0xf]
  %v54 = vld [vmem:[%s1 + $0x5c] sm:$0xf]
  %v55 = vld [vmem:[%s1 + $0x60] sm:$0xf]
  %v56 = vld [vmem:[%s1 + $0x64] sm:$0xf]
  %v57 = vld [vmem:[%s1 + $0x68] sm:$0xf]
  %v58 = vld [vmem:[%s1 + $0x6c] sm:$0xf]
  %v59 = vld [vmem:[%s1 + $0x70] sm:$0xf]
  %v60 = vld [vmem:[%s1 + $0x74] sm:$0xf]
  %v61 = vld [vmem:[%s1 + $0x78] sm:$0xf]
  %v62 = vld [vmem:[%s1 + $0x7c] sm:$0xf]
  %v63 = vld [vmem:[%s1 + $0x80] sm:$0xf]
  %v64 = vld [vmem:[%s1 + $0x84] sm:$0xf]
  %v65 = vld [vmem:[%s1 + $0x88] sm:$0xf]
  %v66 = vld [vmem:[%s1 + $0x8c] sm:$0xf]
  %v67 = vld [vmem:[%s1 + $0x90] sm:$0xf]
  %v68 = vld [vmem:[%s1 + $0x94] sm:$0xf]
  %v69 = vld [vmem:[%s1 + $0x98] sm:$0xf]
  %v70 = vld [vmem:[%s1 + $0x9c] sm:$0xf]
  %v71 = vld [vmem:[%s1 + $0xa0] sm:$0xf]
  %v72 = vld [vmem:[%s1 + $0xa4] sm:$0xf]
  %v73 = vld [vmem:[%s1 + $0xa8] sm:$0xf]
  %v74 = vld [vmem:[%s1 + $0xac] sm:$0xf]
  %v75 = vld [vmem:[%s1 + $0xb0] sm:$0xf]
  %v76 = vld [vmem:[%s1 + $0xb4] sm:$0xf]
  %v77 = vld [vmem:[%s1 + $0xb8] sm:$0xf]
  %v78 = vld [vmem:[%s1 + $0xbc] sm:$0xf]
  %v79 = vld [vmem:[%s1 + $0xc0] sm:$0xf]
  %v80 = vld [vmem:[%s1 + $0xc4] sm:$0xf]
  %v81 = vld [vmem:[%s1 + $0xc8] sm:$0xf]
  %v82 = vld [vmem:[%s1 + $0xcc] sm:$0xf]
  %v83 = vld [vmem:[%s1 + $0xd0] sm:$0xf]
  %v84 = vld [vmem:[%s1 + $0xd4] sm:$0xf]
  %v85 = vld [vmem:[%s1 + $0xd8] sm:$0xf]
  %v86 = vld [vmem:[%s1 + $0xdc] sm:$0xf]
  %v87 = vld [vmem:[%s1 + $0xe0] sm:$0xf]
  %v88 = vld [vmem:[%s1 + $0xe4] sm:$0xf]
  %v89 = vld [vmem:[%s1 + $0xe8] sm:$0xf]
  %v90 = vld [vmem:[%s1 + $0xec] sm:$0xf]
  %v91 = vld [vmem:[%s1 + $0xf0] sm:$0xf]
  %v92 = vld [vmem:[%s1 + $0xf4] sm:$0xf]
  %v93 = vld [vmem:[%s1 + $0xf8] sm:$0xf]
  %v94 = vld [vmem:[%s1 + $0xfc] sm:$0xf]
  %v95 = vld [vmem:[%s1 + $0x100] sm:$0xf]
  %v96 = vld [vmem:[%s1 + $0x104] sm:$0xf]
  %v97 = vld [vmem:[%s1 + $0x108] sm:$0xf]
  %v98 = vld [vmem:[%s1 + $0x10c] sm:$0xf]
  %v99 = vld [vmem:[%s1 + $0x110] sm:$0xf]
  %v100 = vld [vmem:[%s1 + $0x114] sm:$0xf]
  %v101 = vld [vmem:[%s1 + $0x118] sm:$0xf]
  %v102 = vld [vmem:[%s1 + $0x11c] sm:$0xf]
  %v103 = vld [vmem:[%s1 + $0x120] sm:$0xf]
  %v104 = vld [vmem:[%s1 + $0x124] sm:$0xf]
  %v105 = vld [vmem:[%s1 + $0x128] sm:$0xf]
  %v106 = vld [vmem:[%s1 + $0x12c] sm:$0xf]
  %v107 = vld [vmem:[%s1 + $0x130] sm:$0xf]
  %v108 = vld [vmem:[%s1 + $0x134] sm:$0xf]
  %v109 = vld [vmem:[%s1 + $0x138] sm:$0xf]
  %v110 = vld [vmem:[%s1 + $0x13c] sm:$0xf]
  %v111 = vld [vmem:[%s1 + $0x140] sm:$0xf]
  %v112 = vld [vmem:[%s1 + $0x144] sm:$0xf]
  %v113 = vld [vmem:[%s1 + $0x148] sm:$0xf]
  %v114 = vld [vmem:[%s1 + $0x14c] sm:$0xf]
  %v115 = vld [vmem:[%s1 + $0x150] sm:$0xf]
  %v116 = vld [vmem:[%s1 + $0x154] sm:$0xf]
  %v117 = vld [vmem:[%s1 + $0x158] sm:$0xf]
  %v118 = vld [vmem:[%s1 + $0x15c] sm:$0xf]
  %v119 = vld [vmem:[%s1 + $0x160] sm:$0xf]
  %v120 = vld [vmem:[%s1 + $0x164] sm:$0xf]
  %v121 = vld [vmem:[%s1 + $0x168] sm:$0xf]
  %v122 = vld [vmem:[%s1 + $0x16c] sm:$0xf]
  %v123 = vld [vmem:[%s1 + $0x170] sm:$0xf]
  %v124 = vld [vmem:[%s1 + $0x174] sm:$0xf]
  %v125 = vld [vmem:[%s1 + $0x178] sm:$0xf]
  %v126 = vld [vmem:[%s1 + $0x17c] sm:$0xf]
  %v127 = vld [vmem:[%s1 + $0x180] sm:$0xf]
  %v128 = vld [vmem:[%s1 + $0x184] sm:$0xf]
  %v129 = vld [vmem:[%s1 + $0x188] sm:$0xf]
  %v130 = vld [vmem:[%s1 + $0x18c] sm:$0xf]
  %v131 = vld [vmem:[%s1 + $0x190] sm:$0xf]
  %v132 = vld [vmem:[%s1 + $0x194] sm:$0xf]
  %v133 = vld [vmem:[%s1 + $0x198] sm:$0xf]
  %v134 = vld [vmem:[%s1 + $0x19c] sm:$0xf]
  %v135 = vld [vmem:[%s1 + $0x1a0] sm:$0xf]
  %v136 = vld [vmem:[%s1 + $0x1a4] sm:$0xf]
  %v137 = vld [vmem:[%s1 + $0x1a8] sm:$0xf]
  %v138 = vld [vmem:[%s1 + $0x1ac] sm:$0xf]
  %v139 = vld [vmem:[%s2] sm:$0xff]
  %v140 = vld [vmem:[%s2 + $0x8] sm:$0xff]
  %v141 = vld [vmem:[%s2 + $0x10] sm:$0xff]
  %v142 = vld [vmem:[%s2 + $0x18] sm:$0xff]
  %144 = vset.pattern.permute.xlu0 0
  %145 = vperm.xlu0 %144, %v139
  %v146 = vpop.permute.xlu0 %145
  %149 = vset.pattern.permute.xlu0 0
  %150 = vperm.xlu0 %149, %v140
  %v151 = vpop.permute.xlu0 %150
  %154 = vset.pattern.permute.xlu0 0
  %155 = vperm.xlu0 %154, %v141
  %v156 = vpop.permute.xlu0 %155
  %159 = vset.pattern.permute.xlu0 0
  %160 = vperm.xlu0 %159, %v142
  %v161 = vpop.permute.xlu0 %160
  %v179 = vunpack.c.l.b16 %v15
  %v180 = vunpack.c.h.b16 %v15
  %v181 = vunpack.c.l.b16 %v16
  %v182 = vunpack.c.h.b16 %v16
  %v183 = vunpack.c.l.b16 %v17
  %v184 = vunpack.c.h.b16 %v17
  %v185 = vunpack.c.l.b16 %v18
  %v186 = vunpack.c.l.b16 %v19
  %v187 = vunpack.c.h.b16 %v19
  %v188 = vunpack.c.l.b16 %v20
  %v189 = vunpack.c.h.b16 %v20
  %v190 = vunpack.c.l.b16 %v21
  %v191 = vunpack.c.h.b16 %v21
  %v192 = vunpack.c.l.b16 %v22
  %v193 = vunpack.c.l.b16 %v23
  %v194 = vunpack.c.h.b16 %v23
  %v195 = vunpack.c.l.b16 %v24
  %v196 = vunpack.c.h.b16 %v24
  %v197 = vunpack.c.l.b16 %v25
  %v198 = vunpack.c.h.b16 %v25
  %v199 = vunpack.c.l.b16 %v26
  %v200 = vunpack.c.l.b16 %v27
  %v201 = vunpack.c.h.b16 %v27
  %v202 = vunpack.c.l.b16 %v28
  %v203 = vunpack.c.h.b16 %v28
  %v204 = vunpack.c.l.b16 %v29
  %v205 = vunpack.c.h.b16 %v29
  %v206 = vunpack.c.l.b16 %v30
  %v207 = vpack.c.b16 %v186, %v179
  %v208 = vpack.c.b16 %v187, %v180
  %v209 = vpack.c.b16 %v188, %v181
  %v210 = vpack.c.b16 %v189, %v182
  %v211 = vpack.c.b16 %v190, %v183
  %v212 = vpack.c.b16 %v191, %v184
  %v213 = vpack.c.b16 %v192, %v185
  %v214 = vpack.c.b16 %v200, %v193
  %v215 = vpack.c.b16 %v201, %v194
  %v216 = vpack.c.b16 %v202, %v195
  %v217 = vpack.c.b16 %v203, %v196
  %v218 = vpack.c.b16 %v204, %v197
  %v219 = vpack.c.b16 %v205, %v198
  %v220 = vpack.c.b16 %v206, %v199
  %v341 = vunpack.c.l.b16 %v31
  %v342 = vunpack.c.l.b16 %v32
  %v343 = vunpack.c.l.b16 %v33
  %v344 = vunpack.c.l.b16 %v34
  %v345 = vunpack.c.l.b16 %v35
  %v346 = vunpack.c.l.b16 %v36
  %v347 = vunpack.c.l.b16 %v37
  %v348 = vunpack.c.l.b16 %v38
  %v349 = vunpack.c.l.b16 %v39
  %v350 = vunpack.c.l.b16 %v40
  %v351 = vunpack.c.l.b16 %v41
  %v352 = vunpack.c.l.b16 %v42
  %v353 = vunpack.c.l.b16 %v43
  %v354 = vunpack.c.l.b16 %v44
  %v355 = vunpack.c.l.b16 %v45
  %v356 = vunpack.c.l.b16 %v46
  %v357 = vunpack.c.l.b16 %v47
  %v358 = vunpack.c.l.b16 %v48
  %v359 = vunpack.c.l.b16 %v49
  %v360 = vunpack.c.l.b16 %v50
  %v361 = vunpack.c.l.b16 %v51
  %v362 = vunpack.c.l.b16 %v52
  %v363 = vunpack.c.l.b16 %v53
  %v364 = vunpack.c.l.b16 %v54
  %v365 = vunpack.c.l.b16 %v55
  %v366 = vunpack.c.l.b16 %v56
  %v367 = vunpack.c.l.b16 %v57
  %v368 = vunpack.c.l.b16 %v58
  %v369 = vunpack.c.l.b16 %v59
  %v370 = vunpack.c.l.b16 %v60
  %v371 = vunpack.c.l.b16 %v61
  %v372 = vunpack.c.l.b16 %v62
  %v373 = vunpack.c.l.b16 %v63
  %v374 = vunpack.c.l.b16 %v64
  %v375 = vunpack.c.l.b16 %v65
  %v376 = vunpack.c.l.b16 %v66
  %v377 = vunpack.c.l.b16 %v67
  %v378 = vunpack.c.l.b16 %v68
  %v379 = vunpack.c.l.b16 %v69
  %v380 = vunpack.c.l.b16 %v70
  %v381 = vunpack.c.l.b16 %v71
  %v382 = vunpack.c.l.b16 %v72
  %v383 = vunpack.c.l.b16 %v73
  %v384 = vunpack.c.l.b16 %v74
  %v385 = vunpack.c.l.b16 %v75
  %v386 = vunpack.c.l.b16 %v76
  %v387 = vunpack.c.l.b16 %v77
  %v388 = vunpack.c.l.b16 %v78
  %v389 = vunpack.c.l.b16 %v79
  %v390 = vunpack.c.l.b16 %v80
  %v391 = vunpack.c.l.b16 %v81
  %v392 = vunpack.c.l.b16 %v82
  %v393 = vunpack.c.l.b16 %v83
  %v394 = vunpack.c.l.b16 %v84
  %v395 = vunpack.c.l.b16 %v85
  %v396 = vunpack.c.l.b16 %v86
  %v397 = vunpack.c.l.b16 %v87
  %v398 = vunpack.c.l.b16 %v88
  %v399 = vunpack.c.l.b16 %v89
  %v400 = vunpack.c.l.b16 %v90
  %v401 = vunpack.c.l.b16 %v91
  %v402 = vunpack.c.l.b16 %v92
  %v403 = vunpack.c.l.b16 %v93
  %v404 = vunpack.c.l.b16 %v94
  %v405 = vunpack.c.l.b16 %v95
  %v406 = vunpack.c.l.b16 %v96
  %v407 = vunpack.c.l.b16 %v97
  %v408 = vunpack.c.l.b16 %v98
  %v409 = vunpack.c.l.b16 %v99
  %v410 = vunpack.c.l.b16 %v100
  %v411 = vunpack.c.l.b16 %v101
  %v412 = vunpack.c.l.b16 %v102
  %v413 = vunpack.c.l.b16 %v103
  %v414 = vunpack.c.l.b16 %v104
  %v415 = vunpack.c.l.b16 %v105
  %v416 = vunpack.c.l.b16 %v106
  %v417 = vunpack.c.l.b16 %v107
  %v418 = vunpack.c.l.b16 %v108
  %v419 = vunpack.c.l.b16 %v109
  %v420 = vunpack.c.l.b16 %v110
  %v421 = vunpack.c.l.b16 %v111
  %v422 = vunpack.c.l.b16 %v112
  %v423 = vunpack.c.l.b16 %v113
  %v424 = vunpack.c.l.b16 %v114
  %v425 = vunpack.c.l.b16 %v115
  %v426 = vunpack.c.l.b16 %v116
  %v427 = vunpack.c.l.b16 %v117
  %v428 = vunpack.c.l.b16 %v118
  %v429 = vunpack.c.l.b16 %v119
  %v430 = vunpack.c.l.b16 %v120
  %v431 = vunpack.c.l.b16 %v121
  %v432 = vunpack.c.l.b16 %v122
  %v433 = vunpack.c.l.b16 %v123
  %v434 = vunpack.c.l.b16 %v124
  %v435 = vunpack.c.l.b16 %v125
  %v436 = vunpack.c.l.b16 %v126
  %v437 = vunpack.c.l.b16 %v127
  %v438 = vunpack.c.l.b16 %v128
  %v439 = vunpack.c.l.b16 %v129
  %v440 = vunpack.c.l.b16 %v130
  %v441 = vunpack.c.l.b16 %v131
  %v442 = vunpack.c.l.b16 %v132
  %v443 = vunpack.c.l.b16 %v133
  %v444 = vunpack.c.l.b16 %v134
  %v445 = vunpack.c.l.b16 %v135
  %v446 = vunpack.c.l.b16 %v136
  %v447 = vunpack.c.l.b16 %v137
  %v448 = vunpack.c.l.b16 %v138
  %v449 = vpack.c.b16 %v342, %v341
  %v450 = vpack.c.b16 %v344, %v343
  %v451 = vpack.c.b16 %v346, %v345
  %v452 = vpack.c.b16 %v348, %v347
  %v453 = vpack.c.b16 %v350, %v349
  %v454 = vpack.c.b16 %v352, %v351
  %v455 = vpack.c.b16 %v354, %v353
  %v456 = vpack.c.b16 %v356, %v355
  %v457 = vpack.c.b16 %v358, %v357
  %v458 = vpack.c.b16 %v360, %v359
  %v459 = vpack.c.b16 %v362, %v361
  %v460 = vpack.c.b16 %v364, %v363
  %v461 = vpack.c.b16 %v366, %v365
  %v462 = vpack.c.b16 %v368, %v367
  %v463 = vpack.c.b16 %v370, %v369
  %v464 = vpack.c.b16 %v372, %v371
  %v465 = vpack.c.b16 %v374, %v373
  %v466 = vpack.c.b16 %v376, %v375
  %v467 = vpack.c.b16 %v378, %v377
  %v468 = vpack.c.b16 %v380, %v379
  %v469 = vpack.c.b16 %v382, %v381
  %v470 = vpack.c.b16 %v384, %v383
  %v471 = vpack.c.b16 %v386, %v385
  %v472 = vpack.c.b16 %v388, %v387
  %v473 = vpack.c.b16 %v390, %v389
  %v474 = vpack.c.b16 %v392, %v391
  %v475 = vpack.c.b16 %v394, %v393
  %v476 = vpack.c.b16 %v396, %v395
  %v477 = vpack.c.b16 %v398, %v397
  %v478 = vpack.c.b16 %v400, %v399
  %v479 = vpack.c.b16 %v402, %v401
  %v480 = vpack.c.b16 %v404, %v403
  %v481 = vpack.c.b16 %v406, %v405
  %v482 = vpack.c.b16 %v408, %v407
  %v483 = vpack.c.b16 %v410, %v409
  %v484 = vpack.c.b16 %v412, %v411
  %v485 = vpack.c.b16 %v414, %v413
  %v486 = vpack.c.b16 %v416, %v415
  %v487 = vpack.c.b16 %v418, %v417
  %v488 = vpack.c.b16 %v420, %v419
  %v489 = vpack.c.b16 %v422, %v421
  %v490 = vpack.c.b16 %v424, %v423
  %v491 = vpack.c.b16 %v426, %v425
  %v492 = vpack.c.b16 %v428, %v427
  %v493 = vpack.c.b16 %v430, %v429
  %v494 = vpack.c.b16 %v432, %v431
  %v495 = vpack.c.b16 %v434, %v433
  %v496 = vpack.c.b16 %v436, %v435
  %v497 = vpack.c.b16 %v438, %v437
  %v498 = vpack.c.b16 %v440, %v439
  %v499 = vpack.c.b16 %v442, %v441
  %v500 = vpack.c.b16 %v444, %v443
  %v501 = vpack.c.b16 %v446, %v445
  %v502 = vpack.c.b16 %v448, %v447
  %vm557 = vcmask 785408
  %v559 = vsel %vm557, %v213, 0
  %v562 = vsel %vm557, %v220, 0
  %564 = vmatpush.bf16.msra.mxu0 %v456
  %565 = vmatpush.bf16.msra.mxu0 %v455
  %566 = vmatpush.bf16.msra.mxu0 %v454
  %567 = vmatpush.bf16.msra.mxu0 %v453
  %568 = vmatpush.bf16.msra.mxu0 %v452
  %569 = vmatpush.bf16.msra.mxu0 %v451
  %570 = vmatpush.bf16.msra.mxu0 %v450
  %571 = vmatpush.bf16.msra.mxu0 %v449
  %572 = vmatmul.bf16.gmra.mxu0 %v207
  %v573 = vpop.f32.mrf.mxu0
  %v574 = vadd.f32 %v146, %v573
  %v575 = vpop.f32.mrf.mxu0
  %v576 = vadd.f32 %v151, %v575
  %577 = vmatmul.bf16.gmra.mxu0 %v214
  %v578 = vpop.f32.mrf.mxu0
  %v579 = vadd.f32 %v156, %v578
  %v580 = vpop.f32.mrf.mxu0
  %v581 = vadd.f32 %v161, %v580
  %582 = vdwg.mxu0
  %583 = vmatpush.bf16.msra.mxu0 %v464
  %584 = vmatpush.bf16.msra.mxu0 %v463
  %585 = vmatpush.bf16.msra.mxu0 %v462
  %586 = vmatpush.bf16.msra.mxu0 %v461
  %587 = vmatpush.bf16.msra.mxu0 %v460
  %588 = vmatpush.bf16.msra.mxu0 %v459
  %589 = vmatpush.bf16.msra.mxu0 %v458
  %590 = vmatpush.bf16.msra.mxu0 %v457
  %591 = vmatmul.bf16.gmra.mxu0 %v208
  %v592 = vpop.f32.mrf.mxu0
  %v593 = vadd.f32 %v574, %v592
  %v594 = vpop.f32.mrf.mxu0
  %v595 = vadd.f32 %v576, %v594
  %596 = vmatmul.bf16.gmra.mxu0 %v215
  %v597 = vpop.f32.mrf.mxu0
  %v598 = vadd.f32 %v579, %v597
  %v599 = vpop.f32.mrf.mxu0
  %v600 = vadd.f32 %v581, %v599
  %601 = vdwg.mxu0
  %602 = vmatpush.bf16.msra.mxu0 %v472
  %603 = vmatpush.bf16.msra.mxu0 %v471
  %604 = vmatpush.bf16.msra.mxu0 %v470
  %605 = vmatpush.bf16.msra.mxu0 %v469
  %606 = vmatpush.bf16.msra.mxu0 %v468
  %607 = vmatpush.bf16.msra.mxu0 %v467
  %608 = vmatpush.bf16.msra.mxu0 %v466
  %609 = vmatpush.bf16.msra.mxu0 %v465
  %610 = vmatmul.bf16.gmra.mxu0 %v209
  %v611 = vpop.f32.mrf.mxu0
  %v612 = vadd.f32 %v593, %v611
  %v613 = vpop.f32.mrf.mxu0
  %v614 = vadd.f32 %v595, %v613
  %615 = vmatmul.bf16.gmra.mxu0 %v216
  %v616 = vpop.f32.mrf.mxu0
  %v617 = vadd.f32 %v598, %v616
  %v618 = vpop.f32.mrf.mxu0
  %v619 = vadd.f32 %v600, %v618
  %620 = vdwg.mxu0
  %621 = vmatpush.bf16.msra.mxu0 %v480
  %622 = vmatpush.bf16.msra.mxu0 %v479
  %623 = vmatpush.bf16.msra.mxu0 %v478
  %624 = vmatpush.bf16.msra.mxu0 %v477
  %625 = vmatpush.bf16.msra.mxu0 %v476
  %626 = vmatpush.bf16.msra.mxu0 %v475
  %627 = vmatpush.bf16.msra.mxu0 %v474
  %628 = vmatpush.bf16.msra.mxu0 %v473
  %629 = vmatmul.bf16.gmra.mxu0 %v210
  %v630 = vpop.f32.mrf.mxu0
  %v631 = vadd.f32 %v612, %v630
  %v632 = vpop.f32.mrf.mxu0
  %v633 = vadd.f32 %v614, %v632
  %634 = vmatmul.bf16.gmra.mxu0 %v217
  %v635 = vpop.f32.mrf.mxu0
  %v636 = vadd.f32 %v617, %v635
  %v637 = vpop.f32.mrf.mxu0
  %v638 = vadd.f32 %v619, %v637
  %639 = vdwg.mxu0
  %640 = vmatpush.bf16.msra.mxu0 %v488
  %641 = vmatpush.bf16.msra.mxu0 %v487
  %642 = vmatpush.bf16.msra.mxu0 %v486
  %643 = vmatpush.bf16.msra.mxu0 %v485
  %644 = vmatpush.bf16.msra.mxu0 %v484
  %645 = vmatpush.bf16.msra.mxu0 %v483
  %646 = vmatpush.bf16.msra.mxu0 %v482
  %647 = vmatpush.bf16.msra.mxu0 %v481
  %648 = vmatmul.bf16.gmra.mxu0 %v211
  %v649 = vpop.f32.mrf.mxu0
  %v650 = vadd.f32 %v631, %v649
  %v651 = vpop.f32.mrf.mxu0
  %v652 = vadd.f32 %v633, %v651
  %653 = vmatmul.bf16.gmra.mxu0 %v218
  %v654 = vpop.f32.mrf.mxu0
  %v655 = vadd.f32 %v636, %v654
  %v656 = vpop.f32.mrf.mxu0
  %v657 = vadd.f32 %v638, %v656
  %658 = vdwg.mxu0
  %659 = vmatpush.bf16.msra.mxu0 %v496
  %660 = vmatpush.bf16.msra.mxu0 %v495
  %661 = vmatpush.bf16.msra.mxu0 %v494
  %662 = vmatpush.bf16.msra.mxu0 %v493
  %663 = vmatpush.bf16.msra.mxu0 %v492
  %664 = vmatpush.bf16.msra.mxu0 %v491
  %665 = vmatpush.bf16.msra.mxu0 %v490
  %666 = vmatpush.bf16.msra.mxu0 %v489
  %667 = vmatmul.bf16.gmra.mxu0 %v212
  %v668 = vpop.f32.mrf.mxu0
  %v669 = vadd.f32 %v650, %v668
  %v670 = vpop.f32.mrf.mxu0
  %v671 = vadd.f32 %v652, %v670
  %672 = vmatmul.bf16.gmra.mxu0 %v219
  %v673 = vpop.f32.mrf.mxu0
  %v674 = vadd.f32 %v655, %v673
  %v675 = vpop.f32.mrf.mxu0
  %v676 = vadd.f32 %v657, %v675
  %677 = vdwg.mxu0
  %678 = vmatpush.bf16.msra.mxu0 0
  %679 = vmatpush.bf16.msra.mxu0 0
  %680 = vmatpush.bf16.msra.mxu0 %v502
  %681 = vmatpush.bf16.msra.mxu0 %v501
  %682 = vmatpush.bf16.msra.mxu0 %v500
  %683 = vmatpush.bf16.msra.mxu0 %v499
  %684 = vmatpush.bf16.msra.mxu0 %v498
  %685 = vmatpush.bf16.msra.mxu0 %v497
  %686 = vmatmul.bf16.gmra.mxu0 %v559
  %v687 = vpop.f32.mrf.mxu0
  %v688 = vadd.f32 %v669, %v687
  %v689 = vpop.f32.mrf.mxu0
  %v690 = vadd.f32 %v671, %v689
  %691 = vmatmul.bf16.gmra.mxu0 %v562
  %v692 = vpop.f32.mrf.mxu0
  %v693 = vadd.f32 %v674, %v692
  %v694 = vpop.f32.mrf.mxu0
  %v695 = vadd.f32 %v676, %v694
  %696 = vdwg.mxu0
  %v697 = vsub.f32 0.0, %v688
  %v698 = vsub.f32 0.0, %v690
  %v699 = vsub.f32 0.0, %v693
  %v700 = vsub.f32 0.0, %v695
  %v701 = vmul.f32 %v697, 1.442695
  %v702 = vpow.pop %v701
  %v703 = vmul.f32 %v698, 1.442695
  %v704 = vpow.pop %v703
  %v705 = vmul.f32 %v699, 1.442695
  %v706 = vpow.pop %v705
  %v707 = vmul.f32 %v700, 1.442695
  %v708 = vpow.pop %v707
  %v709 = vadd.f32 %v702, 1.0
  %v710 = vadd.f32 %v704, 1.0
  %v711 = vadd.f32 %v706, 1.0
  %v712 = vadd.f32 %v708, 1.0
  %v713 = vrcp.pop %v709
  %v714 = vrcp.pop %v710
  %v715 = vrcp.pop %v711
  %v716 = vrcp.pop %v712
  %v717 = vmul.f32 %v688, %v713
  %v718 = vmul.f32 %v690, %v714
  %v719 = vmul.f32 %v693, %v715
  %v720 = vmul.f32 %v695, %v716
  %vm721 = vcmask 261120
  %722 = vst.msk [vmem:[%s3] sm:$0xff] %vm721, %v717
  %723 = vst.msk [vmem:[%s3 + $0x8] sm:$0xff] %vm721, %v718
  %724 = vst.msk [vmem:[%s3 + $0x10] sm:$0xff] %vm721, %v719
  %725 = vst.msk [vmem:[%s3 + $0x18] sm:$0xff] %vm721, %v720
  // Predicated region
  $region14: #{multitask_yolo_forward.30} parent=0 // pred_check
    _
  $region15: #{multitask_yolo_forward.30} parent=0 // pred_check_branch
    %727 = sbr.rel (0) target = $region17
  $region16: #{multitask_yolo_forward.30} parent=0 // pred_region
    _
  $region17: #{multitask_yolo_forward.30} parent=0 // pred_fallthru
    _
  // Predicated region
  $region18: #{multitask_yolo_forward.30} parent=0 // pred_check
    _
  $region19: #{multitask_yolo_forward.30} parent=0 // pred_check_branch
    %729 = sbr.rel (0) target = $region21
  $region20: #{multitask_yolo_forward.30} parent=0 // pred_region
    _
  $region21: #{multitask_yolo_forward.30} parent=0 // pred_fallthru
    _

// kernel: multitask_yolo_forward.39
$region0: #{multitask_yolo_forward.39}
  #allocation0 [shape = 'u32[]', space=smem, size = 0x4, offset = 0x4, fixed_abs, tag = 'smem constant byte address 0x4 - core index']
  #allocation1 [shape = 'u32[72,128]{1,0:T(1,128)}', space=vmem, size = 0x9000, scoped, tag = 'internal scratch']
  %s0 = inlined_call_operand.vmem [shape: bf16[16,144], index: 0, kind: input, shape index: {}]
  %s1 = inlined_call_operand.vmem [shape: bf16[144,128], index: 1, kind: input, shape index: {}]
  %s2 = inlined_call_operand.vmem [shape: f32[16,1], index: 2, kind: input, shape index: {}]
  %s3 = inlined_call_operand.vmem [shape: f32[16,128], index: 3, kind: output, shape index: {}]
  %s4 = sld [smem:[#allocation0]]
  $region22: #{multitask_yolo_forward.39} parent=0
    _
  %s6 = ssub.s32 1, %s4
  %s7 = scalar_select 0, %s6, %s4
  // Predicated region
  $region2: #{multitask_yolo_forward.39} parent=0 // pred_check
    _
  $region3: #{multitask_yolo_forward.39} parent=0 // pred_check_branch
    %9 = sbr.rel (0) target = $region5
  $region4: #{multitask_yolo_forward.39} parent=0 // pred_region
    _
  $region5: #{multitask_yolo_forward.39} parent=0 // pred_fallthru
    _
  // Predicated region
  $region6: #{multitask_yolo_forward.39} parent=0 // pred_check
    _
  $region7: #{multitask_yolo_forward.39} parent=0 // pred_check_branch
    %11 = sbr.rel (0) target = $region9
  $region8: #{multitask_yolo_forward.39} parent=0 // pred_region
    _
  $region9: #{multitask_yolo_forward.39} parent=0 // pred_fallthru
    _
  // Predicated region
  $region10: #{multitask_yolo_forward.39} parent=0 // pred_check
    _
  $region11: #{multitask_yolo_forward.39} parent=0 // pred_check_branch
    %13 = sbr.rel (0) target = $region13
  $region12: #{multitask_yolo_forward.39} parent=0 // pred_region
    _
  $region13: #{multitask_yolo_forward.39} parent=0 // pred_fallthru
    _
  %v15 = vld [vmem:[%s0] sm:$0xff]
  %v16 = vld [vmem:[%s0 + $0x8] sm:$0xff]
  %v17 = vld [vmem:[%s1] sm:$0xf]
  %v18 = vld [vmem:[%s1 + $0x4] sm:$0xf]
  %v19 = vld [vmem:[%s1 + $0x8] sm:$0xf]
  %v20 = vld [vmem:[%s1 + $0xc] sm:$0xf]
  %v21 = vld [vmem:[%s1 + $0x10] sm:$0xf]
  %v22 = vld [vmem:[%s1 + $0x14] sm:$0xf]
  %v23 = vld [vmem:[%s1 + $0x18] sm:$0xf]
  %v24 = vld [vmem:[%s1 + $0x1c] sm:$0xf]
  %v25 = vld [vmem:[%s1 + $0x20] sm:$0xf]
  %v26 = vld [vmem:[%s1 + $0x24] sm:$0xf]
  %v27 = vld [vmem:[%s1 + $0x28] sm:$0xf]
  %v28 = vld [vmem:[%s1 + $0x2c] sm:$0xf]
  %v29 = vld [vmem:[%s1 + $0x30] sm:$0xf]
  %v30 = vld [vmem:[%s1 + $0x34] sm:$0xf]
  %v31 = vld [vmem:[%s1 + $0x38] sm:$0xf]
  %v32 = vld [vmem:[%s1 + $0x3c] sm:$0xf]
  %v33 = vld [vmem:[%s1 + $0x40] sm:$0xf]
  %v34 = vld [vmem:[%s1 + $0x44] sm:$0xf]
  %v35 = vld [vmem:[%s2] sm:$0xff]
  %v36 = vld [vmem:[%s2 + $0x8] sm:$0xff]
  %38 = vset.pattern.permute.xlu0 0
  %39 = vperm.xlu0 %38, %v35
  %v40 = vpop.permute.xlu0 %39
  %43 = vset.pattern.permute.xlu0 0
  %44 = vperm.xlu0 %43, %v36
  %v45 = vpop.permute.xlu0 %44
  %v49 = vunpack.c.l.b16 %v15
  %v50 = vunpack.c.h.b16 %v15
  %v51 = vunpack.c.l.b16 %v16
  %v52 = vunpack.c.h.b16 %v16
  %v53 = vpack.c.b16 %v51, %v49
  %v54 = vpack.c.b16 %v52, %v50
  %v74 = vunpack.c.l.b16 %v17
  %v75 = vunpack.c.l.b16 %v18
  %v76 = vunpack.c.l.b16 %v19
  %v77 = vunpack.c.l.b16 %v20
  %v78 = vunpack.c.l.b16 %v21
  %v79 = vunpack.c.l.b16 %v22
  %v80 = vunpack.c.l.b16 %v23
  %v81 = vunpack.c.l.b16 %v24
  %v82 = vunpack.c.l.b16 %v25
  %v83 = vunpack.c.l.b16 %v26
  %v84 = vunpack.c.l.b16 %v27
  %v85 = vunpack.c.l.b16 %v28
  %v86 = vunpack.c.l.b16 %v29
  %v87 = vunpack.c.l.b16 %v30
  %v88 = vunpack.c.l.b16 %v31
  %v89 = vunpack.c.l.b16 %v32
  %v90 = vunpack.c.l.b16 %v33
  %v91 = vunpack.c.l.b16 %v34
  %v92 = vpack.c.b16 %v75, %v74
  %v93 = vpack.c.b16 %v77, %v76
  %v94 = vpack.c.b16 %v79, %v78
  %v95 = vpack.c.b16 %v81, %v80
  %v96 = vpack.c.b16 %v83, %v82
  %v97 = vpack.c.b16 %v85, %v84
  %v98 = vpack.c.b16 %v87, %v86
  %v99 = vpack.c.b16 %v89, %v88
  %v100 = vpack.c.b16 %v91, %v90
  %vm110 = vcmask 130048
  %v112 = vsel %vm110, %v54, 0
  %114 = vmatpush.bf16.msra.mxu0 %v99
  %115 = vmatpush.bf16.msra.mxu0 %v98
  %116 = vmatpush.bf16.msra.mxu0 %v97
  %117 = vmatpush.bf16.msra.mxu0 %v96
  %118 = vmatpush.bf16.msra.mxu0 %v95
  %119 = vmatpush.bf16.msra.mxu0 %v94
  %120 = vmatpush.bf16.msra.mxu0 %v93
  %121 = vmatpush.bf16.msra.mxu0 %v92
  %122 = vmatmul.bf16.gmra.mxu0 %v53
  %v123 = vpop.f32.mrf.mxu0
  %v124 = vadd.f32 %v40, %v123
  %v125 = vpop.f32.mrf.mxu0
  %v126 = vadd.f32 %v45, %v125
  %127 = vdwg.mxu0
  %128 = vmatpush.bf16.msra.mxu0 0
  %129 = vmatpush.bf16.msra.mxu0 0
  %130 = vmatpush.bf16.msra.mxu0 0
  %131 = vmatpush.bf16.msra.mxu0 0
  %132 = vmatpush.bf16.msra.mxu0 0
  %133 = vmatpush.bf16.msra.mxu0 0
  %134 = vmatpush.bf16.msra.mxu0 0
  %135 = vmatpush.bf16.msra.mxu0 %v100
  %136 = vmatmul.bf16.gmra.mxu0 %v112
  %v137 = vpop.f32.mrf.mxu0
  %v138 = vadd.f32 %v124, %v137
  %v139 = vpop.f32.mrf.mxu0
  %v140 = vadd.f32 %v126, %v139
  %141 = vdwg.mxu0
  %v142 = vsub.f32 0.0, %v138
  %v143 = vsub.f32 0.0, %v140
  %v144 = vmul.f32 %v142, 1.442695
  %v145 = vpow.pop %v144
  %v146 = vmul.f32 %v143, 1.442695
  %v147 = vpow.pop %v146
  %v148 = vadd.f32 %v145, 1.0
  %v149 = vadd.f32 %v147, 1.0
  %v150 = vrcp.pop %v148
  %v151 = vrcp.pop %v149
  %v152 = vmul.f32 %v138, %v150
  %v153 = vmul.f32 %v140, %v151
  %154 = vst [vmem:[%s3] sm:$0xff] %v152
  %155 = vst [vmem:[%s3 + $0x8] sm:$0xff] %v153
  // Predicated region
  $region14: #{multitask_yolo_forward.39} parent=0 // pred_check
    _
  $region15: #{multitask_yolo_forward.39} parent=0 // pred_check_branch
    %157 = sbr.rel (0) target = $region17
  $region16: #{multitask_yolo_forward.39} parent=0 // pred_region
    _
  $region17: #{multitask_yolo_forward.39} parent=0 // pred_fallthru
    _
  // Predicated region
  $region18: #{multitask_yolo_forward.39} parent=0 // pred_check
    _
  $region19: #{multitask_yolo_forward.39} parent=0 // pred_check_branch
    %159 = sbr.rel (0) target = $region21
  $region20: #{multitask_yolo_forward.39} parent=0 // pred_region
    _
  $region21: #{multitask_yolo_forward.39} parent=0 // pred_fallthru
    _

// kernel: multitask_yolo_forward.31
$region0: #{multitask_yolo_forward.31}
  #allocation0 [shape = 'u32[]', space=smem, size = 0x4, offset = 0x4, fixed_abs, tag = 'smem constant byte address 0x4 - core index']
  #allocation1 [shape = 'u32[72,128]{1,0:T(1,128)}', space=vmem, size = 0x9000, scoped, tag = 'internal scratch']
  %s0 = inlined_call_operand.vmem [shape: bf16[16,576], index: 0, kind: input, shape index: {}]
  %s1 = inlined_call_operand.vmem [shape: bf16[576,128], index: 1, kind: input, shape index: {}]
  %s2 = inlined_call_operand.vmem [shape: f32[16,1], index: 2, kind: input, shape index: {}]
  %s3 = inlined_call_operand.vmem [shape: f32[16,128], index: 3, kind: output, shape index: {}]
  %s4 = sld [smem:[#allocation0]]
  $region22: #{multitask_yolo_forward.31} parent=0
    _
  %s6 = ssub.s32 1, %s4
  %s7 = scalar_select 0, %s6, %s4
  // Predicated region
  $region2: #{multitask_yolo_forward.31} parent=0 // pred_check
    _
  $region3: #{multitask_yolo_forward.31} parent=0 // pred_check_branch
    %9 = sbr.rel (0) target = $region5
  $region4: #{multitask_yolo_forward.31} parent=0 // pred_region
    _
  $region5: #{multitask_yolo_forward.31} parent=0 // pred_fallthru
    _
  // Predicated region
  $region6: #{multitask_yolo_forward.31} parent=0 // pred_check
    _
  $region7: #{multitask_yolo_forward.31} parent=0 // pred_check_branch
    %11 = sbr.rel (0) target = $region9
  $region8: #{multitask_yolo_forward.31} parent=0 // pred_region
    _
  $region9: #{multitask_yolo_forward.31} parent=0 // pred_fallthru
    _
  // Predicated region
  $region10: #{multitask_yolo_forward.31} parent=0 // pred_check
    _
  $region11: #{multitask_yolo_forward.31} parent=0 // pred_check_branch
    %13 = sbr.rel (0) target = $region13
  $region12: #{multitask_yolo_forward.31} parent=0 // pred_region
    _
  $region13: #{multitask_yolo_forward.31} parent=0 // pred_fallthru
    _
  %v15 = vld [vmem:[%s0] sm:$0xff]
  %v16 = vld [vmem:[%s0 + $0x8] sm:$0xff]
  %v17 = vld [vmem:[%s0 + $0x10] sm:$0xf]
  %v18 = vld [vmem:[%s0 + $0x14] sm:$0xff]
  %v19 = vld [vmem:[%s0 + $0x1c] sm:$0xff]
  %v20 = vld [vmem:[%s0 + $0x24] sm:$0xf]
  %v21 = vld [vmem:[%s1] sm:$0xf]
  %v22 = vld [vmem:[%s1 + $0x4] sm:$0xf]
  %v23 = vld [vmem:[%s1 + $0x8] sm:$0xf]
  %v24 = vld [vmem:[%s1 + $0xc] sm:$0xf]
  %v25 = vld [vmem:[%s1 + $0x10] sm:$0xf]
  %v26 = vld [vmem:[%s1 + $0x14] sm:$0xf]
  %v27 = vld [vmem:[%s1 + $0x18] sm:$0xf]
  %v28 = vld [vmem:[%s1 + $0x1c] sm:$0xf]
  %v29 = vld [vmem:[%s1 + $0x20] sm:$0xf]
  %v30 = vld [vmem:[%s1 + $0x24] sm:$0xf]
  %v31 = vld [vmem:[%s1 + $0x28] sm:$0xf]
  %v32 = vld [vmem:[%s1 + $0x2c] sm:$0xf]
  %v33 = vld [vmem:[%s1 + $0x30] sm:$0xf]
  %v34 = vld [vmem:[%s1 + $0x34] sm:$0xf]
  %v35 = vld [vmem:[%s1 + $0x38] sm:$0xf]
  %v36 = vld [vmem:[%s1 + $0x3c] sm:$0xf]
  %v37 = vld [vmem:[%s1 + $0x40] sm:$0xf]
  %v38 = vld [vmem:[%s1 + $0x44] sm:$0xf]
  %v39 = vld [vmem:[%s1 + $0x48] sm:$0xf]
  %v40 = vld [vmem:[%s1 + $0x4c] sm:$0xf]
  %v41 = vld [vmem:[%s1 + $0x50] sm:$0xf]
  %v42 = vld [vmem:[%s1 + $0x54] sm:$0xf]
  %v43 = vld [vmem:[%s1 + $0x58] sm:$0xf]
  %v44 = vld [vmem:[%s1 + $0x5c] sm:$0xf]
  %v45 = vld [vmem:[%s1 + $0x60] sm:$0xf]
  %v46 = vld [vmem:[%s1 + $0x64] sm:$0xf]
  %v47 = vld [vmem:[%s1 + $0x68] sm:$0xf]
  %v48 = vld [vmem:[%s1 + $0x6c] sm:$0xf]
  %v49 = vld [vmem:[%s1 + $0x70] sm:$0xf]
  %v50 = vld [vmem:[%s1 + $0x74] sm:$0xf]
  %v51 = vld [vmem:[%s1 + $0x78] sm:$0xf]
  %v52 = vld [vmem:[%s1 + $0x7c] sm:$0xf]
  %v53 = vld [vmem:[%s1 + $0x80] sm:$0xf]
  %v54 = vld [vmem:[%s1 + $0x84] sm:$0xf]
  %v55 = vld [vmem:[%s1 + $0x88] sm:$0xf]
  %v56 = vld [vmem:[%s1 + $0x8c] sm:$0xf]
  %v57 = vld [vmem:[%s1 + $0x90] sm:$0xf]
  %v58 = vld [vmem:[%s1 + $0x94] sm:$0xf]
  %v59 = vld [vmem:[%s1 + $0x98] sm:$0xf]
  %v60 = vld [vmem:[%s1 + $0x9c] sm:$0xf]
  %v61 = vld [vmem:[%s1 + $0xa0] sm:$0xf]
  %v62 = vld [vmem:[%s1 + $0xa4] sm:$0xf]
  %v63 = vld [vmem:[%s1 + $0xa8] sm:$0xf]
  %v64 = vld [vmem:[%s1 + $0xac] sm:$0xf]
  %v65 = vld [vmem:[%s1 + $0xb0] sm:$0xf]
  %v66 = vld [vmem:[%s1 + $0xb4] sm:$0xf]
  %v67 = vld [vmem:[%s1 + $0xb8] sm:$0xf]
  %v68 = vld [vmem:[%s1 + $0xbc] sm:$0xf]
  %v69 = vld [vmem:[%s1 + $0xc0] sm:$0xf]
  %v70 = vld [vmem:[%s1 + $0xc4] sm:$0xf]
  %v71 = vld [vmem:[%s1 + $0xc8] sm:$0xf]
  %v72 = vld [vmem:[%s1 + $0xcc] sm:$0xf]
  %v73 = vld [vmem:[%s1 + $0xd0] sm:$0xf]
  %v74 = vld [vmem:[%s1 + $0xd4] sm:$0xf]
  %v75 = vld [vmem:[%s1 + $0xd8] sm:$0xf]
  %v76 = vld [vmem:[%s1 + $0xdc] sm:$0xf]
  %v77 = vld [vmem:[%s1 + $0xe0] sm:$0xf]
  %v78 = vld [vmem:[%s1 + $0xe4] sm:$0xf]
  %v79 = vld [vmem:[%s1 + $0xe8] sm:$0xf]
  %v80 = vld [vmem:[%s1 + $0xec] sm:$0xf]
  %v81 = vld [vmem:[%s1 + $0xf0] sm:$0xf]
  %v82 = vld [vmem:[%s1 + $0xf4] sm:$0xf]
  %v83 = vld [vmem:[%s1 + $0xf8] sm:$0xf]
  %v84 = vld [vmem:[%s1 + $0xfc] sm:$0xf]
  %v85 = vld [vmem:[%s1 + $0x100] sm:$0xf]
  %v86 = vld [vmem:[%s1 + $0x104] sm:$0xf]
  %v87 = vld [vmem:[%s1 + $0x108] sm:$0xf]
  %v88 = vld [vmem:[%s1 + $0x10c] sm:$0xf]
  %v89 = vld [vmem:[%s1 + $0x110] sm:$0xf]
  %v90 = vld [vmem:[%s1 + $0x114] sm:$0xf]
  %v91 = vld [vmem:[%s1 + $0x118] sm:$0xf]
  %v92 = vld [vmem:[%s1 + $0x11c] sm:$0xf]
  %v93 = vld [vmem:[%s2] sm:$0xff]
  %v94 = vld [vmem:[%s2 + $0x8] sm:$0xff]
  %96 = vset.pattern.permute.xlu0 0
  %97 = vperm.xlu0 %96, %v93
  %v98 = vpop.permute.xlu0 %97
  %101 = vset.pattern.permute.xlu0 0
  %102 = vperm.xlu0 %101, %v94
  %v103 = vpop.permute.xlu0 %102
  %v111 = vunpack.c.l.b16 %v15
  %v112 = vunpack.c.h.b16 %v15
  %v113 = vunpack.c.l.b16 %v16
  %v114 = vunpack.c.h.b16 %v16
  %v115 = vunpack.c.l.b16 %v17
  %v116 = vunpack.c.l.b16 %v18
  %v117 = vunpack.c.h.b16 %v18
  %v118 = vunpack.c.l.b16 %v19
  %v119 = vunpack.c.h.b16 %v19
  %v120 = vunpack.c.l.b16 %v20
  %v121 = vpack.c.b16 %v116, %v111
  %v122 = vpack.c.b16 %v117, %v112
  %v123 = vpack.c.b16 %v118, %v113
  %v124 = vpack.c.b16 %v119, %v114
  %v125 = vpack.c.b16 %v120, %v115
  %v202 = vunpack.c.l.b16 %v21
  %v203 = vunpack.c.l.b16 %v22
  %v204 = vunpack.c.l.b16 %v23
  %v205 = vunpack.c.l.b16 %v24
  %v206 = vunpack.c.l.b16 %v25
  %v207 = vunpack.c.l.b16 %v26
  %v208 = vunpack.c.l.b16 %v27
  %v209 = vunpack.c.l.b16 %v28
  %v210 = vunpack.c.l.b16 %v29
  %v211 = vunpack.c.l.b16 %v30
  %v212 = vunpack.c.l.b16 %v31
  %v213 = vunpack.c.l.b16 %v32
  %v214 = vunpack.c.l.b16 %v33
  %v215 = vunpack.c.l.b16 %v34
  %v216 = vunpack.c.l.b16 %v35
  %v217 = vunpack.c.l.b16 %v36
  %v218 = vunpack.c.l.b16 %v37
  %v219 = vunpack.c.l.b16 %v38
  %v220 = vunpack.c.l.b16 %v39
  %v221 = vunpack.c.l.b16 %v40
  %v222 = vunpack.c.l.b16 %v41
  %v223 = vunpack.c.l.b16 %v42
  %v224 = vunpack.c.l.b16 %v43
  %v225 = vunpack.c.l.b16 %v44
  %v226 = vunpack.c.l.b16 %v45
  %v227 = vunpack.c.l.b16 %v46
  %v228 = vunpack.c.l.b16 %v47
  %v229 = vunpack.c.l.b16 %v48
  %v230 = vunpack.c.l.b16 %v49
  %v231 = vunpack.c.l.b16 %v50
  %v232 = vunpack.c.l.b16 %v51
  %v233 = vunpack.c.l.b16 %v52
  %v234 = vunpack.c.l.b16 %v53
  %v235 = vunpack.c.l.b16 %v54
  %v236 = vunpack.c.l.b16 %v55
  %v237 = vunpack.c.l.b16 %v56
  %v238 = vunpack.c.l.b16 %v57
  %v239 = vunpack.c.l.b16 %v58
  %v240 = vunpack.c.l.b16 %v59
  %v241 = vunpack.c.l.b16 %v60
  %v242 = vunpack.c.l.b16 %v61
  %v243 = vunpack.c.l.b16 %v62
  %v244 = vunpack.c.l.b16 %v63
  %v245 = vunpack.c.l.b16 %v64
  %v246 = vunpack.c.l.b16 %v65
  %v247 = vunpack.c.l.b16 %v66
  %v248 = vunpack.c.l.b16 %v67
  %v249 = vunpack.c.l.b16 %v68
  %v250 = vunpack.c.l.b16 %v69
  %v251 = vunpack.c.l.b16 %v70
  %v252 = vunpack.c.l.b16 %v71
  %v253 = vunpack.c.l.b16 %v72
  %v254 = vunpack.c.l.b16 %v73
  %v255 = vunpack.c.l.b16 %v74
  %v256 = vunpack.c.l.b16 %v75
  %v257 = vunpack.c.l.b16 %v76
  %v258 = vunpack.c.l.b16 %v77
  %v259 = vunpack.c.l.b16 %v78
  %v260 = vunpack.c.l.b16 %v79
  %v261 = vunpack.c.l.b16 %v80
  %v262 = vunpack.c.l.b16 %v81
  %v263 = vunpack.c.l.b16 %v82
  %v264 = vunpack.c.l.b16 %v83
  %v265 = vunpack.c.l.b16 %v84
  %v266 = vunpack.c.l.b16 %v85
  %v267 = vunpack.c.l.b16 %v86
  %v268 = vunpack.c.l.b16 %v87
  %v269 = vunpack.c.l.b16 %v88
  %v270 = vunpack.c.l.b16 %v89
  %v271 = vunpack.c.l.b16 %v90
  %v272 = vunpack.c.l.b16 %v91
  %v273 = vunpack.c.l.b16 %v92
  %v274 = vpack.c.b16 %v203, %v202
  %v275 = vpack.c.b16 %v205, %v204
  %v276 = vpack.c.b16 %v207, %v206
  %v277 = vpack.c.b16 %v209, %v208
  %v278 = vpack.c.b16 %v211, %v210
  %v279 = vpack.c.b16 %v213, %v212
  %v280 = vpack.c.b16 %v215, %v214
  %v281 = vpack.c.b16 %v217, %v216
  %v282 = vpack.c.b16 %v219, %v218
  %v283 = vpack.c.b16 %v221, %v220
  %v284 = vpack.c.b16 %v223, %v222
  %v285 = vpack.c.b16 %v225, %v224
  %v286 = vpack.c.b16 %v227, %v226
  %v287 = vpack.c.b16 %v229, %v228
  %v288 = vpack.c.b16 %v231, %v230
  %v289 = vpack.c.b16 %v233, %v232
  %v290 = vpack.c.b16 %v235, %v234
  %v291 = vpack.c.b16 %v237, %v236
  %v292 = vpack.c.b16 %v239, %v238
  %v293 = vpack.c.b16 %v241, %v240
  %v294 = vpack.c.b16 %v243, %v242
  %v295 = vpack.c.b16 %v245, %v244
  %v296 = vpack.c.b16 %v247, %v246
  %v297 = vpack.c.b16 %v249, %v248
  %v298 = vpack.c.b16 %v251, %v250
  %v299 = vpack.c.b16 %v253, %v252
  %v300 = vpack.c.b16 %v255, %v254
  %v301 = vpack.c.b16 %v257, %v256
  %v302 = vpack.c.b16 %v259, %v258
  %v303 = vpack.c.b16 %v261, %v260
  %v304 = vpack.c.b16 %v263, %v262
  %v305 = vpack.c.b16 %v265, %v264
  %v306 = vpack.c.b16 %v267, %v266
  %v307 = vpack.c.b16 %v269, %v268
  %v308 = vpack.c.b16 %v271, %v270
  %v309 = vpack.c.b16 %v273, %v272
  %vm346 = vcmask 523264
  %v348 = vsel %vm346, %v125, 0
  %350 = vmatpush.bf16.msra.mxu0 %v281
  %351 = vmatpush.bf16.msra.mxu0 %v280
  %352 = vmatpush.bf16.msra.mxu0 %v279
  %353 = vmatpush.bf16.msra.mxu0 %v278
  %354 = vmatpush.bf16.msra.mxu0 %v277
  %355 = vmatpush.bf16.msra.mxu0 %v276
  %356 = vmatpush.bf16.msra.mxu0 %v275
  %357 = vmatpush.bf16.msra.mxu0 %v274
  %358 = vmatmul.bf16.gmra.mxu0 %v121
  %v359 = vpop.f32.mrf.mxu0
  %v360 = vadd.f32 %v98, %v359
  %v361 = vpop.f32.mrf.mxu0
  %v362 = vadd.f32 %v103, %v361
  %363 = vdwg.mxu0
  %364 = vmatpush.bf16.msra.mxu0 %v289
  %365 = vmatpush.bf16.msra.mxu0 %v288
  %366 = vmatpush.bf16.msra.mxu0 %v287
  %367 = vmatpush.bf16.msra.mxu0 %v286
  %368 = vmatpush.bf16.msra.mxu0 %v285
  %369 = vmatpush.bf16.msra.mxu0 %v284
  %370 = vmatpush.bf16.msra.mxu0 %v283
  %371 = vmatpush.bf16.msra.mxu0 %v282
  %372 = vmatmul.bf16.gmra.mxu0 %v122
  %v373 = vpop.f32.mrf.mxu0
  %v374 = vadd.f32 %v360, %v373
  %v375 = vpop.f32.mrf.mxu0
  %v376 = vadd.f32 %v362, %v375
  %377 = vdwg.mxu0
  %378 = vmatpush.bf16.msra.mxu0 %v297
  %379 = vmatpush.bf16.msra.mxu0 %v296
  %380 = vmatpush.bf16.msra.mxu0 %v295
  %381 = vmatpush.bf16.msra.mxu0 %v294
  %382 = vmatpush.bf16.msra.mxu0 %v293
  %383 = vmatpush.bf16.msra.mxu0 %v292
  %384 = vmatpush.bf16.msra.mxu0 %v291
  %385 = vmatpush.bf16.msra.mxu0 %v290
  %386 = vmatmul.bf16.gmra.mxu0 %v123
  %v387 = vpop.f32.mrf.mxu0
  %v388 = vadd.f32 %v374, %v387
  %v389 = vpop.f32.mrf.mxu0
  %v390 = vadd.f32 %v376, %v389
  %391 = vdwg.mxu0
  %392 = vmatpush.bf16.msra.mxu0 %v305
  %393 = vmatpush.bf16.msra.mxu0 %v304
  %394 = vmatpush.bf16.msra.mxu0 %v303
  %395 = vmatpush.bf16.msra.mxu0 %v302
  %396 = vmatpush.bf16.msra.mxu0 %v301
  %397 = vmatpush.bf16.msra.mxu0 %v300
  %398 = vmatpush.bf16.msra.mxu0 %v299
  %399 = vmatpush.bf16.msra.mxu0 %v298
  %400 = vmatmul.bf16.gmra.mxu0 %v124
  %v401 = vpop.f32.mrf.mxu0
  %v402 = vadd.f32 %v388, %v401
  %v403 = vpop.f32.mrf.mxu0
  %v404 = vadd.f32 %v390, %v403
  %405 = vdwg.mxu0
  %406 = vmatpush.bf16.msra.mxu0 0
  %407 = vmatpush.bf16.msra.mxu0 0
  %408 = vmatpush.bf16.msra.mxu0 0
  %409 = vmatpush.bf16.msra.mxu0 0
  %410 = vmatpush.bf16.msra.mxu0 %v309
  %411 = vmatpush.bf16.msra.mxu0 %v308
  %412 = vmatpush.bf16.msra.mxu0 %v307
  %413 = vmatpush.bf16.msra.mxu0 %v306
  %414 = vmatmul.bf16.gmra.mxu0 %v348
  %v415 = vpop.f32.mrf.mxu0
  %v416 = vadd.f32 %v402, %v415
  %v417 = vpop.f32.mrf.mxu0
  %v418 = vadd.f32 %v404, %v417
  %419 = vdwg.mxu0
  %v420 = vsub.f32 0.0, %v416
  %v421 = vsub.f32 0.0, %v418
  %v422 = vmul.f32 %v420, 1.442695
  %v423 = vpow.pop %v422
  %v424 = vmul.f32 %v421, 1.442695
  %v425 = vpow.pop %v424
  %v426 = vadd.f32 %v423, 1.0
  %v427 = vadd.f32 %v425, 1.0
  %v428 = vrcp.pop %v426
  %v429 = vrcp.pop %v427
  %v430 = vmul.f32 %v416, %v428
  %v431 = vmul.f32 %v418, %v429
  %432 = vst [vmem:[%s3] sm:$0xff] %v430
  %433 = vst [vmem:[%s3 + $0x8] sm:$0xff] %v431
  // Predicated region
  $region14: #{multitask_yolo_forward.31} parent=0 // pred_check
    _
  $region15: #{multitask_yolo_forward.31} parent=0 // pred_check_branch
    %435 = sbr.rel (0) target = $region17
  $region16: #{multitask_yolo_forward.31} parent=0 // pred_region
    _
  $region17: #{multitask_yolo_forward.31} parent=0 // pred_fallthru
    _
  // Predicated region
  $region18: #{multitask_yolo_forward.31} parent=0 // pred_check
    _
  $region19: #{multitask_yolo_forward.31} parent=0 // pred_check_branch
    %437 = sbr.rel (0) target = $region21
  $region20: #{multitask_yolo_forward.31} parent=0 // pred_region
    _
  $region21: #{multitask_yolo_forward.31} parent=0 // pred_fallthru
    _

// kernel: multitask_yolo_forward.41
$region0: #{multitask_yolo_forward.41}
  #allocation0 [shape = 'u32[]', space=smem, size = 0x4, offset = 0x4, fixed_abs, tag = 'smem constant byte address 0x4 - core index']
  #allocation1 [shape = 'u32[72,128]{1,0:T(1,128)}', space=vmem, size = 0x9000, scoped, tag = 'internal scratch']
  %s0 = inlined_call_operand.vmem [shape: bf16[8,16], index: 0, kind: input, shape index: {}]
  %s1 = inlined_call_operand.vmem [shape: bf16[16,512], index: 1, kind: input, shape index: {}]
  %s2 = inlined_call_operand.vmem [shape: f32[8,1], index: 2, kind: input, shape index: {}]
  %s3 = inlined_call_operand.vmem [shape: f32[8,512], index: 3, kind: output, shape index: {}]
  %s4 = sld [smem:[#allocation0]]
  $region83: #{multitask_yolo_forward.41} parent=0
    _
  %s6 = ssub.s32 1, %s4
  %s7 = scalar_select 0, %s6, %s4
  $region1: #{multitask_yolo_forward.41} parent=0
    #allocation2 [shape = 'u8[16384]{0}', space=vmem, size = 0x4000, scoped, tag = 'input window, operand 1']
    loop: start=0, step=1, limit=4
    $region2: #{multitask_yolo_forward.41} parent=1 // loop_pre_header
      _
    $region3: #{multitask_yolo_forward.41} parent=1 // loop_header
      %s9 = sphi 0, %s13
      %p10 = scmp.ge.s32.totalorder %s9, 4
      %s17 = sphi 0, %s17
      %s19 = sphi 0, %s17
      %s20 = sphi 0, %s19
      %s34 = sphi 0, %s20
      %s40 = sphi 0, %s42
      %s43 = sphi 0, %s40
      %s44 = sphi 0, %s43
      %s60 = sphi 0, %s44
      %s64 = sphi 0, %s64
      %s66 = sphi 0, %s64
      %s67 = sphi 0, %s66
      %s81 = sphi 0, %s67
      %s87 = sphi 0, %s89
      %s90 = sphi 0, %s87
      %s91 = sphi 0, %s90
      %s107 = sphi 0, %s91
    $region4: #{multitask_yolo_forward.41} parent=1 // loop_header_branch
      %12 = sbr.rel (%p10) target = $region8
    $region5: #{multitask_yolo_forward.41} parent=1 // loop_body
      %s14 = ssub.s32 %s9, 1
      %s15 = ssub.s32 %s9, 2
      %s16 = sadd.s32 %s9, 1
      %s18 = sadd.s32 %s17, 1
      %p21 = scmp.eq.s32.totalorder %s9, 1
      %p22 = scmp.ne.s32.totalorder %s17, %s19
      %p23 = scmp.eq.s32.totalorder %s9, 0
      %p24 = por %p22, %p23
      %p25 = scmp.ne.s32.totalorder %s17, %s19
      %p26 = scmp.eq.s32.totalorder %s14, 1
      %p27 = por %p25, %p26
      %p28 = scmp.ne.s32.totalorder %s19, %s20
      %p29 = scmp.eq.s32.totalorder %s14, 0
      %p30 = por %p28, %p29
      %p31 = scmp.ne.s32.totalorder %s19, %s20
      %p32 = scmp.eq.s32.totalorder %s15, 1
      %p33 = por %p31, %p32
      %p35 = scmp.ne.s32.totalorder %s20, %s34
      %p36 = scmp.eq.s32.totalorder %s15, 0
      %p37 = por %p35, %p36
      %s38 = ssub.s32 %s9, %s16
      %p39 = scmp.eq.s32.totalorder %s38, 0
      %s41 = sadd.s32 %s40, 1
      %s42 = scalar_select %p39, %s40, %s41
      %p45 = pneg %p39
      %p46 = scmp.eq.s32.totalorder %s9, 1
      %p47 = por %p45, %p46
      %p48 = scmp.ne.s32.totalorder %s40, %s43
      %p49 = scmp.eq.s32.totalorder %s9, 0
      %p50 = por %p48, %p49
      %p51 = scmp.ne.s32.totalorder %s40, %s43
      %p52 = scmp.eq.s32.totalorder %s14, 1
      %p53 = por %p51, %p52
      %p54 = scmp.ne.s32.totalorder %s43, %s44
      %p55 = scmp.eq.s32.totalorder %s14, 0
      %p56 = por %p54, %p55
      %p57 = scmp.ne.s32.totalorder %s43, %s44
      %p58 = scmp.eq.s32.totalorder %s15, 1
      %p59 = por %p57, %p58
      %p61 = scmp.ne.s32.totalorder %s44, %s60
      %p62 = scmp.eq.s32.totalorder %s15, 0
      %p63 = por %p61, %p62
      %s65 = sadd.s32 %s64, 1
      %p68 = scmp.eq.s32.totalorder %s9, 1
      %p69 = scmp.ne.s32.totalorder %s64, %s66
      %p70 = scmp.eq.s32.totalorder %s9, 0
      %p71 = por %p69, %p70
      %p72 = scmp.ne.s32.totalorder %s64, %s66
      %p73 = scmp.eq.s32.totalorder %s14, 1
      %p74 = por %p72, %p73
      %p75 = scmp.ne.s32.totalorder %s66, %s67
      %p76 = scmp.eq.s32.totalorder %s14, 0
      %p77 = por %p75, %p76
      %p78 = scmp.ne.s32.totalorder %s66, %s67
      %p79 = scmp.eq.s32.totalorder %s15, 1
      %p80 = por %p78, %p79
      %p82 = scmp.ne.s32.totalorder %s67, %s81
      %p83 = scmp.eq.s32.totalorder %s15, 0
      %p84 = por %p82, %p83
      %s85 = ssub.s32 %s9, %s16
      %p86 = scmp.eq.s32.totalorder %s85, 0
      %s88 = sadd.s32 %s87, 1
      %s89 = scalar_select %p86, %s87, %s88
      %p92 = pneg %p86
      %p93 = scmp.eq.s32.totalorder %s9, 1
      %p94 = por %p92, %p93
      %p95 = scmp.ne.s32.totalorder %s87, %s90
      %p96 = scmp.eq.s32.totalorder %s9, 0
      %p97 = por %p95, %p96
      %p98 = scmp.ne.s32.totalorder %s87, %s90
      %p99 = scmp.eq.s32.totalorder %s14, 1
      %p100 = por %p98, %p99
      %p101 = scmp.ne.s32.totalorder %s90, %s91
      %p102 = scmp.eq.s32.totalorder %s14, 0
      %p103 = por %p101, %p102
      %p104 = scmp.ne.s32.totalorder %s90, %s91
      %p105 = scmp.eq.s32.totalorder %s15, 1
      %p106 = por %p104, %p105
      %p108 = scmp.ne.s32.totalorder %s91, %s107
      %p109 = scmp.eq.s32.totalorder %s15, 0
      %p110 = por %p108, %p109
      %p111 = scmp.le.s32.totalorder 1, %s9
      %p112 = scmp.lt.s32.totalorder %s9, 3
      %p113 = pnand %p111, %p112
      %p114 = pneg %p113
      // Predicated region
      $region9: #{multitask_yolo_forward.41} parent=5 // pred_check
        _
      $region10: #{multitask_yolo_forward.41} parent=5 // pred_check_branch
        %116 = sbr.rel (%p113) target = $region12
      $region11: #{multitask_yolo_forward.41} parent=5 // pred_region
        %s117 = ssub.s32 %s9, 1
        // Predicated region
        $region13: #{multitask_yolo_forward.41} parent=11 // pred_check
          %p118 = pneg %p30
        $region14: #{multitask_yolo_forward.41} parent=11 // pred_check_branch
          %120 = sbr.rel (%p118) target = $region16
        $region15: #{multitask_yolo_forward.41} parent=11 // pred_region
          _
        $region16: #{multitask_yolo_forward.41} parent=11 // pred_fallthru
          _
        // Predicated region
        $region17: #{multitask_yolo_forward.41} parent=11 // pred_check
          %p121 = pneg %p77
        $region18: #{multitask_yolo_forward.41} parent=11 // pred_check_branch
          %123 = sbr.rel (%p121) target = $region20
        $region19: #{multitask_yolo_forward.41} parent=11 // pred_region
          _
        $region20: #{multitask_yolo_forward.41} parent=11 // pred_fallthru
          _
      $region12: #{multitask_yolo_forward.41} parent=5 // pred_fallthru
        _
      %p124 = scmp.lt.s32.totalorder %s9, 2
      // Predicated region
      $region21: #{multitask_yolo_forward.41} parent=5 // pred_check
        %p125 = pneg %p124
      $region22: #{multitask_yolo_forward.41} parent=5 // pred_check_branch
        %127 = sbr.rel (%p125) target = $region24
      $region23: #{multitask_yolo_forward.41} parent=5 // pred_region
        // Predicated region
        $region25: #{multitask_yolo_forward.41} parent=23 // pred_check
          %p128 = pneg %p50
        $region26: #{multitask_yolo_forward.41} parent=23 // pred_check_branch
          %130 = sbr.rel (%p128) target = $region28
        $region27: #{multitask_yolo_forward.41} parent=23 // pred_region
          %s131 = sand.u32 %s40, 1
          %s132 = sand.u32 %s40, 1
          %s133 = smul.addr %s132, 16
          %s134 = scalar_lea.vmem [#allocation2], %s133
          %s135 = smul.u32 2, %s9
          %s136 = smul.addr %s135, 4
          %s137 = scalar_lea.vmem %s1, %s136
          // Predicated region
          $region29: #{multitask_yolo_forward.41} parent=27 // pred_check
            _
          $region30: #{multitask_yolo_forward.41} parent=27 // pred_check_branch
            %139 = sbr.rel (0) target = $region32
          $region31: #{multitask_yolo_forward.41} parent=27 // pred_region
            // Predicated region
            $region33: #{multitask_yolo_forward.41} parent=31 // pred_check
              _
            $region34: #{multitask_yolo_forward.41} parent=31 // pred_check_branch
              %141 = sbr.rel (0) target = $region36
            $region35: #{multitask_yolo_forward.41} parent=31 // pred_region
              // Predicated region
              $region48: #{multitask_yolo_forward.41} parent=35 // pred_check
                _
              $region49: #{multitask_yolo_forward.41} parent=35 // pred_check_branch
                %159 = sbr.rel (0) target = $region51
              $region50: #{multitask_yolo_forward.41} parent=35 // pred_region
                loop: start=0, step=1, limit=1
                $region52: #{multitask_yolo_forward.41} parent=50 // loop_pre_header
                  _
                $region53: #{multitask_yolo_forward.41} parent=50 // loop_header
                  %s161 = sphi 0, %s165
                  %p162 = scmp.ge.s32.totalorder %s161, 1
                  %s166 = sphi %s137, %s137
                  %s167 = sphi %s134, %s134
                $region54: #{multitask_yolo_forward.41} parent=50 // loop_header_branch
                  %164 = sbr.rel (%p162) target = $region58
                $region55: #{multitask_yolo_forward.41} parent=50 // loop_body
                  %v168 = vld [vmem:[%s166] sm:$0xff]
                  %169 = vst [vmem:[%s167] sm:$0xff] %v168
                  %v170 = vld [vmem:[%s166 + $0x10] sm:$0xff]
                  %171 = vst [vmem:[%s167 + $0x8] sm:$0xff] %v170
                $region56: #{multitask_yolo_forward.41} parent=50 // loop_footer
                  %s165 = sadd.s32 1, %s161
                $region57: #{multitask_yolo_forward.41} parent=50 // loop_footer_branch
                  %160 = sbr.rel target = $region53
                $region58: #{multitask_yolo_forward.41} parent=50 // loop_exit
                  _
              $region51: #{multitask_yolo_forward.41} parent=35 // pred_fallthru
                _
              // Predicated region
              $region59: #{multitask_yolo_forward.41} parent=35 // pred_check
                _
              $region60: #{multitask_yolo_forward.41} parent=35 // pred_check_branch
                %173 = sbr.rel target = $region62
              $region61: #{multitask_yolo_forward.41} parent=35 // pred_region
                _
              $region62: #{multitask_yolo_forward.41} parent=35 // pred_fallthru
                _
            $region36: #{multitask_yolo_forward.41} parent=31 // pred_fallthru
              _
            // Predicated region
            $region37: #{multitask_yolo_forward.41} parent=31 // pred_check
              _
            $region38: #{multitask_yolo_forward.41} parent=31 // pred_check_branch
              %143 = sbr.rel target = $region40
            $region39: #{multitask_yolo_forward.41} parent=31 // pred_region
              %s145 = ssub.s32 256, 1
              loop: start=0, step=1, limit=1
              $region41: #{multitask_yolo_forward.41} parent=39 // loop_pre_header
                _
              $region42: #{multitask_yolo_forward.41} parent=39 // loop_header
                %s147 = sphi 0, %s151
                %p148 = scmp.ge.s32.totalorder %s147, 1
                %s152 = sphi %s137, %s137
                %s153 = sphi %s134, %s134
              $region43: #{multitask_yolo_forward.41} parent=39 // loop_header_branch
                %150 = sbr.rel (%p148) target = $region47
              $region44: #{multitask_yolo_forward.41} parent=39 // loop_body
                %v154 = vld [vmem:[%s152] sm:%s145]
                %155 = vst [vmem:[%s153] sm:%s145] %v154
                %v156 = vld [vmem:[%s152 + $0x10] sm:%s145]
                %157 = vst [vmem:[%s153 + $0x8] sm:%s145] %v156
              $region45: #{multitask_yolo_forward.41} parent=39 // loop_footer
                %s151 = sadd.s32 1, %s147
              $region46: #{multitask_yolo_forward.41} parent=39 // loop_footer_branch
                %146 = sbr.rel target = $region42
              $region47: #{multitask_yolo_forward.41} parent=39 // loop_exit
                _
            $region40: #{multitask_yolo_forward.41} parent=31 // pred_fallthru
              _
          $region32: #{multitask_yolo_forward.41} parent=27 // pred_fallthru
            _
          %174 = vnop
        $region28: #{multitask_yolo_forward.41} parent=23 // pred_fallthru
          _
      $region24: #{multitask_yolo_forward.41} parent=5 // pred_fallthru
        _
      %p175 = scmp.le.s32.totalorder 1, %s9
      %p176 = scmp.lt.s32.totalorder %s9, 3
      %p177 = pnand %p175, %p176
      %p178 = pneg %p177
      // Predicated region
      $region63: #{multitask_yolo_forward.41} parent=5 // pred_check
        _
      $region64: #{multitask_yolo_forward.41} parent=5 // pred_check_branch
        %180 = sbr.rel (%p177) target = $region66
      $region65: #{multitask_yolo_forward.41} parent=5 // pred_region
        %s181 = ssub.s32 %s9, 1
        %s182 = sand.u32 %s43, 1
        %s183 = sand.u32 %s43, 1
        %s184 = smul.addr %s183, 16
        %s185 = scalar_lea.vmem [#allocation2], %s184
        // Predicated region
        $region67: #{multitask_yolo_forward.41} parent=65 // pred_check
          %p186 = pneg %p56
        $region68: #{multitask_yolo_forward.41} parent=65 // pred_check_branch
          %188 = sbr.rel (%p186) target = $region70
        $region69: #{multitask_yolo_forward.41} parent=65 // pred_region
          _
        $region70: #{multitask_yolo_forward.41} parent=65 // pred_fallthru
          _
        %p189 = pneg %p30
        %p190 = pneg %p27
        %s191 = sand.u32 %s43, 1
        %s192 = sand.u32 %s43, 1
        %s193 = smul.addr %s192, 16
        %s194 = scalar_lea.vmem [#allocation2], %s193
        %p195 = pneg %p56
        %p196 = pneg %p53
        %p197 = pneg %p77
        %p198 = pneg %p74
        %p199 = pneg %p103
        %p200 = pneg %p100
        %s201 = smul.u32 2, %s14
        %p202 = scmp.lt.s32.totalorder %s201, 3
        %s203 = scalar_select %p202, %s201, 3
        %s204 = smul.addr %s203, 8
        %s205 = scalar_lea.vmem %s3, %s204
        %s206 = smul.u32 2, %s14
        %s207 = smul.u32 2, %s14
        %p208 = scmp.lt.s32.totalorder %s207, 3
        %s209 = scalar_select %p208, %s207, 3
        %s210 = smul.addr %s209, 8
        %s211 = scalar_lea.vmem %s3, %s210
        %s212 = smul.u32 2, %s14
        %v214 = vld [vmem:[%s0] sm:$0xf]
        %v215 = vld [vmem:[%s185] sm:$0xff]
        %v216 = vld [vmem:[%s185 + $0x8] sm:$0xff]
        %v217 = vld [vmem:[%s2] sm:$0xff]
        %219 = vset.pattern.permute.xlu0 0
        %220 = vperm.xlu0 %219, %v217
        %v221 = vpop.permute.xlu0 %220
        %v225 = vunpack.c.l.b16 %v215
        %v226 = vunpack.c.h.b16 %v215
        %v227 = vunpack.c.l.b16 %v216
        %v228 = vunpack.c.h.b16 %v216
        %v229 = vpack.c.b16 %v227, %v225
        %v230 = vpack.c.b16 %v228, %v226
        %vm233 = vcmask 130048
        %v235 = vsel %vm233, %v214, 0
        %237 = vmatpush.bf16.msra.mxu0 0
        %238 = vmatpush.bf16.msra.mxu0 0
        %239 = vmatpush.bf16.msra.mxu0 0
        %240 = vmatpush.bf16.msra.mxu0 0
        %241 = vmatpush.bf16.msra.mxu0 0
        %242 = vmatpush.bf16.msra.mxu0 0
        %243 = vmatpush.bf16.msra.mxu0 0
        %244 = vmatpush.bf16.msra.mxu0 %v229
        %245 = vmatmul.bf16.gmra.mxu0 %v235
        %v246 = vpop.f32.mrf.mxu0
        %v247 = vadd.f32 %v221, %v246
        %v248 = vpop.f32.mrf.mxu0
        %249 = vdwg.mxu0
        %250 = vmatpush.bf16.msra.mxu0 0
        %251 = vmatpush.bf16.msra.mxu0 0
        %252 = vmatpush.bf16.msra.mxu0 0
        %253 = vmatpush.bf16.msra.mxu0 0
        %254 = vmatpush.bf16.msra.mxu0 0
        %255 = vmatpush.bf16.msra.mxu0 0
        %256 = vmatpush.bf16.msra.mxu0 0
        %257 = vmatpush.bf16.msra.mxu0 %v230
        %258 = vmatmul.bf16.gmra.mxu0 %v235
        %v259 = vpop.f32.mrf.mxu0
        %v260 = vadd.f32 %v221, %v259
        %v261 = vpop.f32.mrf.mxu0
        %262 = vdwg.mxu0
        %263 = vst [vmem:[%s211] sm:$0xff] %v247
        %264 = vst [vmem:[%s211 + $0x8] sm:$0xff] %v260
        %s265 = smul.u32 2, %s14
        %p266 = scmp.lt.s32.totalorder %s265, 3
        %s267 = scalar_select %p266, %s265, 3
        %s268 = smul.addr %s267, 8
        %s269 = scalar_lea.vmem %s3, %s268
        // Predicated region
        $region71: #{multitask_yolo_forward.41} parent=65 // pred_check
          %p270 = pneg %p100
        $region72: #{multitask_yolo_forward.41} parent=65 // pred_check_branch
          %272 = sbr.rel (%p270) target = $region74
        $region73: #{multitask_yolo_forward.41} parent=65 // pred_region
          %s273 = smul.u32 2, %s14
        $region74: #{multitask_yolo_forward.41} parent=65 // pred_fallthru
          _
      $region66: #{multitask_yolo_forward.41} parent=5 // pred_fallthru
        _
      %p274 = scmp.le.s32.totalorder 2, %s9
      // Predicated region
      $region75: #{multitask_yolo_forward.41} parent=5 // pred_check
        %p275 = pneg %p274
      $region76: #{multitask_yolo_forward.41} parent=5 // pred_check_branch
        %277 = sbr.rel (%p275) target = $region78
      $region77: #{multitask_yolo_forward.41} parent=5 // pred_region
        %s278 = ssub.s32 %s9, 2
        // Predicated region
        $region79: #{multitask_yolo_forward.41} parent=77 // pred_check
          %p279 = pneg %p106
        $region80: #{multitask_yolo_forward.41} parent=77 // pred_check_branch
          %281 = sbr.rel (%p279) target = $region82
        $region81: #{multitask_yolo_forward.41} parent=77 // pred_region
          %s282 = smul.u32 2, %s15
          %p283 = scmp.lt.s32.totalorder %s282, 3
          %s284 = scalar_select %p283, %s282, 3
          %s285 = smul.addr %s284, 8
          %s286 = scalar_lea.vmem %s3, %s285
        $region82: #{multitask_yolo_forward.41} parent=77 // pred_fallthru
          _
      $region78: #{multitask_yolo_forward.41} parent=5 // pred_fallthru
        _
    $region6: #{multitask_yolo_forward.41} parent=1 // loop_footer
      %s13 = sadd.s32 1, %s9
    $region7: #{multitask_yolo_forward.41} parent=1 // loop_footer_branch
      %8 = sbr.rel target = $region3
    $region8: #{multitask_yolo_forward.41} parent=1 // loop_exit
      _

// kernel: multitask_yolo_forward.32
$region0: #{multitask_yolo_forward.32}
  #allocation0 [shape = 'u32[]', space=smem, size = 0x4, offset = 0x4, fixed_abs, tag = 'smem constant byte address 0x4 - core index']
  #allocation1 [shape = 'u32[72,128]{1,0:T(1,128)}', space=vmem, size = 0x9000, scoped, tag = 'internal scratch']
  %s0 = inlined_call_operand.vmem [shape: bf16[16,144], index: 0, kind: input, shape index: {}]
  %s1 = inlined_call_operand.vmem [shape: bf16[144,32], index: 1, kind: input, shape index: {}]
  %s2 = inlined_call_operand.vmem [shape: f32[16,1], index: 2, kind: input, shape index: {}]
  %s3 = inlined_call_operand.vmem [shape: f32[16,32], index: 3, kind: output, shape index: {}]
  %s4 = sld [smem:[#allocation0]]
  $region22: #{multitask_yolo_forward.32} parent=0
    _
  %s6 = ssub.s32 1, %s4
  %s7 = scalar_select 0, %s6, %s4
  // Predicated region
  $region2: #{multitask_yolo_forward.32} parent=0 // pred_check
    _
  $region3: #{multitask_yolo_forward.32} parent=0 // pred_check_branch
    %9 = sbr.rel (0) target = $region5
  $region4: #{multitask_yolo_forward.32} parent=0 // pred_region
    _
  $region5: #{multitask_yolo_forward.32} parent=0 // pred_fallthru
    _
  // Predicated region
  $region6: #{multitask_yolo_forward.32} parent=0 // pred_check
    _
  $region7: #{multitask_yolo_forward.32} parent=0 // pred_check_branch
    %11 = sbr.rel (0) target = $region9
  $region8: #{multitask_yolo_forward.32} parent=0 // pred_region
    _
  $region9: #{multitask_yolo_forward.32} parent=0 // pred_fallthru
    _
  // Predicated region
  $region10: #{multitask_yolo_forward.32} parent=0 // pred_check
    _
  $region11: #{multitask_yolo_forward.32} parent=0 // pred_check_branch
    %13 = sbr.rel (0) target = $region13
  $region12: #{multitask_yolo_forward.32} parent=0 // pred_region
    _
  $region13: #{multitask_yolo_forward.32} parent=0 // pred_fallthru
    _
  %v15 = vld [vmem:[%s0] sm:$0xff]
  %v16 = vld [vmem:[%s0 + $0x8] sm:$0xff]
  %v17 = vld [vmem:[%s1] sm:$0xf]
  %v18 = vld [vmem:[%s1 + $0x4] sm:$0xf]
  %v19 = vld [vmem:[%s1 + $0x8] sm:$0xf]
  %v20 = vld [vmem:[%s1 + $0xc] sm:$0xf]
  %v21 = vld [vmem:[%s1 + $0x10] sm:$0xf]
  %v22 = vld [vmem:[%s1 + $0x14] sm:$0xf]
  %v23 = vld [vmem:[%s1 + $0x18] sm:$0xf]
  %v24 = vld [vmem:[%s1 + $0x1c] sm:$0xf]
  %v25 = vld [vmem:[%s1 + $0x20] sm:$0xf]
  %v26 = vld [vmem:[%s1 + $0x24] sm:$0xf]
  %v27 = vld [vmem:[%s1 + $0x28] sm:$0xf]
  %v28 = vld [vmem:[%s1 + $0x2c] sm:$0xf]
  %v29 = vld [vmem:[%s1 + $0x30] sm:$0xf]
  %v30 = vld [vmem:[%s1 + $0x34] sm:$0xf]
  %v31 = vld [vmem:[%s1 + $0x38] sm:$0xf]
  %v32 = vld [vmem:[%s1 + $0x3c] sm:$0xf]
  %v33 = vld [vmem:[%s1 + $0x40] sm:$0xf]
  %v34 = vld [vmem:[%s1 + $0x44] sm:$0xf]
  %v35 = vld [vmem:[%s2] sm:$0xff]
  %v36 = vld [vmem:[%s2 + $0x8] sm:$0xff]
  %38 = vset.pattern.permute.xlu0 0
  %39 = vperm.xlu0 %38, %v35
  %v40 = vpop.permute.xlu0 %39
  %43 = vset.pattern.permute.xlu0 0
  %44 = vperm.xlu0 %43, %v36
  %v45 = vpop.permute.xlu0 %44
  %v49 = vunpack.c.l.b16 %v15
  %v50 = vunpack.c.h.b16 %v15
  %v51 = vunpack.c.l.b16 %v16
  %v52 = vunpack.c.h.b16 %v16
  %v53 = vpack.c.b16 %v51, %v49
  %v54 = vpack.c.b16 %v52, %v50
  %v74 = vunpack.c.l.b16 %v17
  %v75 = vunpack.c.l.b16 %v18
  %v76 = vunpack.c.l.b16 %v19
  %v77 = vunpack.c.l.b16 %v20
  %v78 = vunpack.c.l.b16 %v21
  %v79 = vunpack.c.l.b16 %v22
  %v80 = vunpack.c.l.b16 %v23
  %v81 = vunpack.c.l.b16 %v24
  %v82 = vunpack.c.l.b16 %v25
  %v83 = vunpack.c.l.b16 %v26
  %v84 = vunpack.c.l.b16 %v27
  %v85 = vunpack.c.l.b16 %v28
  %v86 = vunpack.c.l.b16 %v29
  %v87 = vunpack.c.l.b16 %v30
  %v88 = vunpack.c.l.b16 %v31
  %v89 = vunpack.c.l.b16 %v32
  %v90 = vunpack.c.l.b16 %v33
  %v91 = vunpack.c.l.b16 %v34
  %v92 = vpack.c.b16 %v75, %v74
  %v93 = vpack.c.b16 %v77, %v76
  %v94 = vpack.c.b16 %v79, %v78
  %v95 = vpack.c.b16 %v81, %v80
  %v96 = vpack.c.b16 %v83, %v82
  %v97 = vpack.c.b16 %v85, %v84
  %v98 = vpack.c.b16 %v87, %v86
  %v99 = vpack.c.b16 %v89, %v88
  %v100 = vpack.c.b16 %v91, %v90
  %vm110 = vcmask 130048
  %v112 = vsel %vm110, %v54, 0
  %114 = vmatpush.bf16.msra.mxu0 %v99
  %115 = vmatpush.bf16.msra.mxu0 %v98
  %116 = vmatpush.bf16.msra.mxu0 %v97
  %117 = vmatpush.bf16.msra.mxu0 %v96
  %118 = vmatpush.bf16.msra.mxu0 %v95
  %119 = vmatpush.bf16.msra.mxu0 %v94
  %120 = vmatpush.bf16.msra.mxu0 %v93
  %121 = vmatpush.bf16.msra.mxu0 %v92
  %122 = vmatmul.bf16.gmra.mxu0 %v53
  %v123 = vpop.f32.mrf.mxu0
  %v124 = vadd.f32 %v40, %v123
  %v125 = vpop.f32.mrf.mxu0
  %v126 = vadd.f32 %v45, %v125
  %127 = vdwg.mxu0
  %128 = vmatpush.bf16.msra.mxu0 0
  %129 = vmatpush.bf16.msra.mxu0 0
  %130 = vmatpush.bf16.msra.mxu0 0
  %131 = vmatpush.bf16.msra.mxu0 0
  %132 = vmatpush.bf16.msra.mxu0 0
  %133 = vmatpush.bf16.msra.mxu0 0
  %134 = vmatpush.bf16.msra.mxu0 0
  %135 = vmatpush.bf16.msra.mxu0 %v100
  %136 = vmatmul.bf16.gmra.mxu0 %v112
  %v137 = vpop.f32.mrf.mxu0
  %v138 = vadd.f32 %v124, %v137
  %v139 = vpop.f32.mrf.mxu0
  %v140 = vadd.f32 %v126, %v139
  %141 = vdwg.mxu0
  %v142 = vsub.f32 0.0, %v138
  %v143 = vsub.f32 0.0, %v140
  %v144 = vmul.f32 %v142, 1.442695
  %v145 = vpow.pop %v144
  %v146 = vmul.f32 %v143, 1.442695
  %v147 = vpow.pop %v146
  %v148 = vadd.f32 %v145, 1.0
  %v149 = vadd.f32 %v147, 1.0
  %v150 = vrcp.pop %v148
  %v151 = vrcp.pop %v149
  %v152 = vmul.f32 %v138, %v150
  %v153 = vmul.f32 %v140, %v151
  %vm154 = vcmask 261120
  %155 = vst.msk [vmem:[%s3] sm:$0xff] %vm154, %v152
  %156 = vst.msk [vmem:[%s3 + $0x8] sm:$0xff] %vm154, %v153
  // Predicated region
  $region14: #{multitask_yolo_forward.32} parent=0 // pred_check
    _
  $region15: #{multitask_yolo_forward.32} parent=0 // pred_check_branch
    %158 = sbr.rel (0) target = $region17
  $region16: #{multitask_yolo_forward.32} parent=0 // pred_region
    _
  $region17: #{multitask_yolo_forward.32} parent=0 // pred_fallthru
    _
  // Predicated region
  $region18: #{multitask_yolo_forward.32} parent=0 // pred_check
    _
  $region19: #{multitask_yolo_forward.32} parent=0 // pred_check_branch
    %160 = sbr.rel (0) target = $region21
  $region20: #{multitask_yolo_forward.32} parent=0 // pred_region
    _
  $region21: #{multitask_yolo_forward.32} parent=0 // pred_fallthru
    _

// kernel: multitask_yolo_forward.34
$region0: #{multitask_yolo_forward.34}
  #allocation0 [shape = 'u32[]', space=smem, size = 0x4, offset = 0x4, fixed_abs, tag = 'smem constant byte address 0x4 - core index']
  #allocation1 [shape = 'u32[72,128]{1,0:T(1,128)}', space=vmem, size = 0x9000, scoped, tag = 'internal scratch']
  %s0 = inlined_call_operand.vmem [shape: bf16[32,288], index: 0, kind: input, shape index: {}]
  %s1 = inlined_call_operand.vmem [shape: bf16[288,8], index: 1, kind: input, shape index: {}]
  %s2 = inlined_call_operand.vmem [shape: f32[32,1], index: 2, kind: input, shape index: {}]
  %s3 = inlined_call_operand.vmem [shape: f32[32,8], index: 3, kind: output, shape index: {}]
  %s4 = sld [smem:[#allocation0]]
  $region22: #{multitask_yolo_forward.34} parent=0
    _
  %s6 = ssub.s32 1, %s4
  %s7 = scalar_select 0, %s6, %s4
  // Predicated region
  $region2: #{multitask_yolo_forward.34} parent=0 // pred_check
    _
  $region3: #{multitask_yolo_forward.34} parent=0 // pred_check_branch
    %9 = sbr.rel (0) target = $region5
  $region4: #{multitask_yolo_forward.34} parent=0 // pred_region
    _
  $region5: #{multitask_yolo_forward.34} parent=0 // pred_fallthru
    _
  // Predicated region
  $region6: #{multitask_yolo_forward.34} parent=0 // pred_check
    _
  $region7: #{multitask_yolo_forward.34} parent=0 // pred_check_branch
    %11 = sbr.rel (0) target = $region9
  $region8: #{multitask_yolo_forward.34} parent=0 // pred_region
    _
  $region9: #{multitask_yolo_forward.34} parent=0 // pred_fallthru
    _
  // Predicated region
  $region10: #{multitask_yolo_forward.34} parent=0 // pred_check
    _
  $region11: #{multitask_yolo_forward.34} parent=0 // pred_check_branch
    %13 = sbr.rel (0) target = $region13
  $region12: #{multitask_yolo_forward.34} parent=0 // pred_region
    _
  $region13: #{multitask_yolo_forward.34} parent=0 // pred_fallthru
    _
  %v15 = vld [vmem:[%s0] sm:$0xff]
  %v16 = vld [vmem:[%s0 + $0x8] sm:$0xf]
  %v17 = vld [vmem:[%s0 + $0xc] sm:$0xff]
  %v18 = vld [vmem:[%s0 + $0x14] sm:$0xf]
  %v19 = vld [vmem:[%s0 + $0x18] sm:$0xff]
  %v20 = vld [vmem:[%s0 + $0x20] sm:$0xf]
  %v21 = vld [vmem:[%s0 + $0x24] sm:$0xff]
  %v22 = vld [vmem:[%s0 + $0x2c] sm:$0xf]
  %v23 = vld [vmem:[%s1] sm:$0xf]
  %v24 = vld [vmem:[%s1 + $0x4] sm:$0xf]
  %v25 = vld [vmem:[%s1 + $0x8] sm:$0xf]
  %v26 = vld [vmem:[%s1 + $0xc] sm:$0xf]
  %v27 = vld [vmem:[%s1 + $0x10] sm:$0xf]
  %v28 = vld [vmem:[%s1 + $0x14] sm:$0xf]
  %v29 = vld [vmem:[%s1 + $0x18] sm:$0xf]
  %v30 = vld [vmem:[%s1 + $0x1c] sm:$0xf]
  %v31 = vld [vmem:[%s1 + $0x20] sm:$0xf]
  %v32 = vld [vmem:[%s1 + $0x24] sm:$0xf]
  %v33 = vld [vmem:[%s1 + $0x28] sm:$0xf]
  %v34 = vld [vmem:[%s1 + $0x2c] sm:$0xf]
  %v35 = vld [vmem:[%s1 + $0x30] sm:$0xf]
  %v36 = vld [vmem:[%s1 + $0x34] sm:$0xf]
  %v37 = vld [vmem:[%s1 + $0x38] sm:$0xf]
  %v38 = vld [vmem:[%s1 + $0x3c] sm:$0xf]
  %v39 = vld [vmem:[%s1 + $0x40] sm:$0xf]
  %v40 = vld [vmem:[%s1 + $0x44] sm:$0xf]
  %v41 = vld [vmem:[%s1 + $0x48] sm:$0xf]
  %v42 = vld [vmem:[%s1 + $0x4c] sm:$0xf]
  %v43 = vld [vmem:[%s1 + $0x50] sm:$0xf]
  %v44 = vld [vmem:[%s1 + $0x54] sm:$0xf]
  %v45 = vld [vmem:[%s1 + $0x58] sm:$0xf]
  %v46 = vld [vmem:[%s1 + $0x5c] sm:$0xf]
  %v47 = vld [vmem:[%s1 + $0x60] sm:$0xf]
  %v48 = vld [vmem:[%s1 + $0x64] sm:$0xf]
  %v49 = vld [vmem:[%s1 + $0x68] sm:$0xf]
  %v50 = vld [vmem:[%s1 + $0x6c] sm:$0xf]
  %v51 = vld [vmem:[%s1 + $0x70] sm:$0xf]
  %v52 = vld [vmem:[%s1 + $0x74] sm:$0xf]
  %v53 = vld [vmem:[%s1 + $0x78] sm:$0xf]
  %v54 = vld [vmem:[%s1 + $0x7c] sm:$0xf]
  %v55 = vld [vmem:[%s1 + $0x80] sm:$0xf]
  %v56 = vld [vmem:[%s1 + $0x84] sm:$0xf]
  %v57 = vld [vmem:[%s1 + $0x88] sm:$0xf]
  %v58 = vld [vmem:[%s1 + $0x8c] sm:$0xf]
  %v59 = vld [vmem:[%s2] sm:$0xff]
  %v60 = vld [vmem:[%s2 + $0x8] sm:$0xff]
  %v61 = vld [vmem:[%s2 + $0x10] sm:$0xff]
  %v62 = vld [vmem:[%s2 + $0x18] sm:$0xff]
  %64 = vset.pattern.permute.xlu0 0
  %65 = vperm.xlu0 %64, %v59
  %v66 = vpop.permute.xlu0 %65
  %69 = vset.pattern.permute.xlu0 0
  %70 = vperm.xlu0 %69, %v60
  %v71 = vpop.permute.xlu0 %70
  %74 = vset.pattern.permute.xlu0 0
  %75 = vperm.xlu0 %74, %v61
  %v76 = vpop.permute.xlu0 %75
  %79 = vset.pattern.permute.xlu0 0
  %80 = vperm.xlu0 %79, %v62
  %v81 = vpop.permute.xlu0 %80
  %v91 = vunpack.c.l.b16 %v15
  %v92 = vunpack.c.h.b16 %v15
  %v93 = vunpack.c.l.b16 %v16
  %v94 = vunpack.c.l.b16 %v17
  %v95 = vunpack.c.h.b16 %v17
  %v96 = vunpack.c.l.b16 %v18
  %v97 = vunpack.c.l.b16 %v19
  %v98 = vunpack.c.h.b16 %v19
  %v99 = vunpack.c.l.b16 %v20
  %v100 = vunpack.c.l.b16 %v21
  %v101 = vunpack.c.h.b16 %v21
  %v102 = vunpack.c.l.b16 %v22
  %v103 = vpack.c.b16 %v94, %v91
  %v104 = vpack.c.b16 %v95, %v92
  %v105 = vpack.c.b16 %v96, %v93
  %v106 = vpack.c.b16 %v100, %v97
  %v107 = vpack.c.b16 %v101, %v98
  %v108 = vpack.c.b16 %v102, %v99
  %v149 = vunpack.c.l.b16 %v23
  %v150 = vunpack.c.l.b16 %v24
  %v151 = vunpack.c.l.b16 %v25
  %v152 = vunpack.c.l.b16 %v26
  %v153 = vunpack.c.l.b16 %v27
  %v154 = vunpack.c.l.b16 %v28
  %v155 = vunpack.c.l.b16 %v29
  %v156 = vunpack.c.l.b16 %v30
  %v157 = vunpack.c.l.b16 %v31
  %v158 = vunpack.c.l.b16 %v32
  %v159 = vunpack.c.l.b16 %v33
  %v160 = vunpack.c.l.b16 %v34
  %v161 = vunpack.c.l.b16 %v35
  %v162 = vunpack.c.l.b16 %v36
  %v163 = vunpack.c.l.b16 %v37
  %v164 = vunpack.c.l.b16 %v38
  %v165 = vunpack.c.l.b16 %v39
  %v166 = vunpack.c.l.b16 %v40
  %v167 = vunpack.c.l.b16 %v41
  %v168 = vunpack.c.l.b16 %v42
  %v169 = vunpack.c.l.b16 %v43
  %v170 = vunpack.c.l.b16 %v44
  %v171 = vunpack.c.l.b16 %v45
  %v172 = vunpack.c.l.b16 %v46
  %v173 = vunpack.c.l.b16 %v47
  %v174 = vunpack.c.l.b16 %v48
  %v175 = vunpack.c.l.b16 %v49
  %v176 = vunpack.c.l.b16 %v50
  %v177 = vunpack.c.l.b16 %v51
  %v178 = vunpack.c.l.b16 %v52
  %v179 = vunpack.c.l.b16 %v53
  %v180 = vunpack.c.l.b16 %v54
  %v181 = vunpack.c.l.b16 %v55
  %v182 = vunpack.c.l.b16 %v56
  %v183 = vunpack.c.l.b16 %v57
  %v184 = vunpack.c.l.b16 %v58
  %v185 = vpack.c.b16 %v150, %v149
  %v186 = vpack.c.b16 %v152, %v151
  %v187 = vpack.c.b16 %v154, %v153
  %v188 = vpack.c.b16 %v156, %v155
  %v189 = vpack.c.b16 %v158, %v157
  %v190 = vpack.c.b16 %v160, %v159
  %v191 = vpack.c.b16 %v162, %v161
  %v192 = vpack.c.b16 %v164, %v163
  %v193 = vpack.c.b16 %v166, %v165
  %v194 = vpack.c.b16 %v168, %v167
  %v195 = vpack.c.b16 %v170, %v169
  %v196 = vpack.c.b16 %v172, %v171
  %v197 = vpack.c.b16 %v174, %v173
  %v198 = vpack.c.b16 %v176, %v175
  %v199 = vpack.c.b16 %v178, %v177
  %v200 = vpack.c.b16 %v180, %v179
  %v201 = vpack.c.b16 %v182, %v181
  %v202 = vpack.c.b16 %v184, %v183
  %vm221 = vcmask 261120
  %v223 = vsel %vm221, %v105, 0
  %v226 = vsel %vm221, %v108, 0
  %228 = vmatpush.bf16.msra.mxu0 %v192
  %229 = vmatpush.bf16.msra.mxu0 %v191
  %230 = vmatpush.bf16.msra.mxu0 %v190
  %231 = vmatpush.bf16.msra.mxu0 %v189
  %232 = vmatpush.bf16.msra.mxu0 %v188
  %233 = vmatpush.bf16.msra.mxu0 %v187
  %234 = vmatpush.bf16.msra.mxu0 %v186
  %235 = vmatpush.bf16.msra.mxu0 %v185
  %236 = vmatmul.bf16.gmra.mxu0 %v103
  %v237 = vpop.f32.mrf.mxu0
  %v238 = vadd.f32 %v66, %v237
  %v239 = vpop.f32.mrf.mxu0
  %v240 = vadd.f32 %v71, %v239
  %241 = vmatmul.bf16.gmra.mxu0 %v106
  %v242 = vpop.f32.mrf.mxu0
  %v243 = vadd.f32 %v76, %v242
  %v244 = vpop.f32.mrf.mxu0
  %v245 = vadd.f32 %v81, %v244
  %246 = vdwg.mxu0
  %247 = vmatpush.bf16.msra.mxu0 %v200
  %248 = vmatpush.bf16.msra.mxu0 %v199
  %249 = vmatpush.bf16.msra.mxu0 %v198
  %250 = vmatpush.bf16.msra.mxu0 %v197
  %251 = vmatpush.bf16.msra.mxu0 %v196
  %252 = vmatpush.bf16.msra.mxu0 %v195
  %253 = vmatpush.bf16.msra.mxu0 %v194
  %254 = vmatpush.bf16.msra.mxu0 %v193
  %255 = vmatmul.bf16.gmra.mxu0 %v104
  %v256 = vpop.f32.mrf.mxu0
  %v257 = vadd.f32 %v238, %v256
  %v258 = vpop.f32.mrf.mxu0
  %v259 = vadd.f32 %v240, %v258
  %260 = vmatmul.bf16.gmra.mxu0 %v107
  %v261 = vpop.f32.mrf.mxu0
  %v262 = vadd.f32 %v243, %v261
  %v263 = vpop.f32.mrf.mxu0
  %v264 = vadd.f32 %v245, %v263
  %265 = vdwg.mxu0
  %266 = vmatpush.bf16.msra.mxu0 0
  %267 = vmatpush.bf16.msra.mxu0 0
  %268 = vmatpush.bf16.msra.mxu0 0
  %269 = vmatpush.bf16.msra.mxu0 0
  %270 = vmatpush.bf16.msra.mxu0 0
  %271 = vmatpush.bf16.msra.mxu0 0
  %272 = vmatpush.bf16.msra.mxu0 %v202
  %273 = vmatpush.bf16.msra.mxu0 %v201
  %274 = vmatmul.bf16.gmra.mxu0 %v223
  %v275 = vpop.f32.mrf.mxu0
  %v276 = vadd.f32 %v257, %v275
  %v277 = vpop.f32.mrf.mxu0
  %v278 = vadd.f32 %v259, %v277
  %279 = vmatmul.bf16.gmra.mxu0 %v226
  %v280 = vpop.f32.mrf.mxu0
  %v281 = vadd.f32 %v262, %v280
  %v282 = vpop.f32.mrf.mxu0
  %v283 = vadd.f32 %v264, %v282
  %284 = vdwg.mxu0
  %v285 = vsub.f32 0.0, %v276
  %v286 = vsub.f32 0.0, %v278
  %v287 = vsub.f32 0.0, %v281
  %v288 = vsub.f32 0.0, %v283
  %v289 = vmul.f32 %v285, 1.442695
  %v290 = vpow.pop %v289
  %v291 = vmul.f32 %v286, 1.442695
  %v292 = vpow.pop %v291
  %v293 = vmul.f32 %v287, 1.442695
  %v294 = vpow.pop %v293
  %v295 = vmul.f32 %v288, 1.442695
  %v296 = vpow.pop %v295
  %v297 = vadd.f32 %v290, 1.0
  %v298 = vadd.f32 %v292, 1.0
  %v299 = vadd.f32 %v294, 1.0
  %v300 = vadd.f32 %v296, 1.0
  %v301 = vrcp.pop %v297
  %v302 = vrcp.pop %v298
  %v303 = vrcp.pop %v299
  %v304 = vrcp.pop %v300
  %v305 = vmul.f32 %v276, %v301
  %v306 = vmul.f32 %v278, %v302
  %v307 = vmul.f32 %v281, %v303
  %v308 = vmul.f32 %v283, %v304
  %vm309 = vcmask 64512
  %310 = vst.msk [vmem:[%s3] sm:$0xff] %vm309, %v305
  %311 = vst.msk [vmem:[%s3 + $0x8] sm:$0xff] %vm309, %v306
  %312 = vst.msk [vmem:[%s3 + $0x10] sm:$0xff] %vm309, %v307
  %313 = vst.msk [vmem:[%s3 + $0x18] sm:$0xff] %vm309, %v308
  // Predicated region
  $region14: #{multitask_yolo_forward.34} parent=0 // pred_check
    _
  $region15: #{multitask_yolo_forward.34} parent=0 // pred_check_branch
    %315 = sbr.rel (0) target = $region17
  $region16: #{multitask_yolo_forward.34} parent=0 // pred_region
    _
  $region17: #{multitask_yolo_forward.34} parent=0 // pred_fallthru
    _
  // Predicated region
  $region18: #{multitask_yolo_forward.34} parent=0 // pred_check
    _
  $region19: #{multitask_yolo_forward.34} parent=0 // pred_check_branch
    %317 = sbr.rel (0) target = $region21
  $region20: #{multitask_yolo_forward.34} parent=0 // pred_region
    _
  $region21: #{multitask_yolo_forward.34} parent=0 // pred_fallthru
    _

// kernel: multitask_yolo_forward.33
$region0: #{multitask_yolo_forward.33}
  #allocation0 [shape = 'u32[]', space=smem, size = 0x4, offset = 0x4, fixed_abs, tag = 'smem constant byte address 0x4 - core index']
  #allocation1 [shape = 'u32[72,128]{1,0:T(1,128)}', space=vmem, size = 0x9000, scoped, tag = 'internal scratch']
  %s0 = inlined_call_operand.vmem [shape: bf16[32,432], index: 0, kind: input, shape index: {}]
  %s1 = inlined_call_operand.vmem [shape: bf16[432,32], index: 1, kind: input, shape index: {}]
  %s2 = inlined_call_operand.vmem [shape: f32[32,1], index: 2, kind: input, shape index: {}]
  %s3 = inlined_call_operand.vmem [shape: f32[32,32], index: 3, kind: output, shape index: {}]
  %s4 = sld [smem:[#allocation0]]
  $region22: #{multitask_yolo_forward.33} parent=0
    _
  %s6 = ssub.s32 1, %s4
  %s7 = scalar_select 0, %s6, %s4
  // Predicated region
  $region2: #{multitask_yolo_forward.33} parent=0 // pred_check
    _
  $region3: #{multitask_yolo_forward.33} parent=0 // pred_check_branch
    %9 = sbr.rel (0) target = $region5
  $region4: #{multitask_yolo_forward.33} parent=0 // pred_region
    _
  $region5: #{multitask_yolo_forward.33} parent=0 // pred_fallthru
    _
  // Predicated region
  $region6: #{multitask_yolo_forward.33} parent=0 // pred_check
    _
  $region7: #{multitask_yolo_forward.33} parent=0 // pred_check_branch
    %11 = sbr.rel (0) target = $region9
  $region8: #{multitask_yolo_forward.33} parent=0 // pred_region
    _
  $region9: #{multitask_yolo_forward.33} parent=0 // pred_fallthru
    _
  // Predicated region
  $region10: #{multitask_yolo_forward.33} parent=0 // pred_check
    _
  $region11: #{multitask_yolo_forward.33} parent=0 // pred_check_branch
    %13 = sbr.rel (0) target = $region13
  $region12: #{multitask_yolo_forward.33} parent=0 // pred_region
    _
  $region13: #{multitask_yolo_forward.33} parent=0 // pred_fallthru
    _
  %v15 = vld [vmem:[%s0] sm:$0xff]
  %v16 = vld [vmem:[%s0 + $0x8] sm:$0xff]
  %v17 = vld [vmem:[%s0 + $0x10] sm:$0xff]
  %v18 = vld [vmem:[%s0 + $0x18] sm:$0xff]
  %v19 = vld [vmem:[%s0 + $0x20] sm:$0xff]
  %v20 = vld [vmem:[%s0 + $0x28] sm:$0xff]
  %v21 = vld [vmem:[%s0 + $0x30] sm:$0xff]
  %v22 = vld [vmem:[%s0 + $0x38] sm:$0xff]
  %v23 = vld [vmem:[%s1] sm:$0xf]
  %v24 = vld [vmem:[%s1 + $0x4] sm:$0xf]
  %v25 = vld [vmem:[%s1 + $0x8] sm:$0xf]
  %v26 = vld [vmem:[%s1 + $0xc] sm:$0xf]
  %v27 = vld [vmem:[%s1 + $0x10] sm:$0xf]
  %v28 = vld [vmem:[%s1 + $0x14] sm:$0xf]
  %v29 = vld [vmem:[%s1 + $0x18] sm:$0xf]
  %v30 = vld [vmem:[%s1 + $0x1c] sm:$0xf]
  %v31 = vld [vmem:[%s1 + $0x20] sm:$0xf]
  %v32 = vld [vmem:[%s1 + $0x24] sm:$0xf]
  %v33 = vld [vmem:[%s1 + $0x28] sm:$0xf]
  %v34 = vld [vmem:[%s1 + $0x2c] sm:$0xf]
  %v35 = vld [vmem:[%s1 + $0x30] sm:$0xf]
  %v36 = vld [vmem:[%s1 + $0x34] sm:$0xf]
  %v37 = vld [vmem:[%s1 + $0x38] sm:$0xf]
  %v38 = vld [vmem:[%s1 + $0x3c] sm:$0xf]
  %v39 = vld [vmem:[%s1 + $0x40] sm:$0xf]
  %v40 = vld [vmem:[%s1 + $0x44] sm:$0xf]
  %v41 = vld [vmem:[%s1 + $0x48] sm:$0xf]
  %v42 = vld [vmem:[%s1 + $0x4c] sm:$0xf]
  %v43 = vld [vmem:[%s1 + $0x50] sm:$0xf]
  %v44 = vld [vmem:[%s1 + $0x54] sm:$0xf]
  %v45 = vld [vmem:[%s1 + $0x58] sm:$0xf]
  %v46 = vld [vmem:[%s1 + $0x5c] sm:$0xf]
  %v47 = vld [vmem:[%s1 + $0x60] sm:$0xf]
  %v48 = vld [vmem:[%s1 + $0x64] sm:$0xf]
  %v49 = vld [vmem:[%s1 + $0x68] sm:$0xf]
  %v50 = vld [vmem:[%s1 + $0x6c] sm:$0xf]
  %v51 = vld [vmem:[%s1 + $0x70] sm:$0xf]
  %v52 = vld [vmem:[%s1 + $0x74] sm:$0xf]
  %v53 = vld [vmem:[%s1 + $0x78] sm:$0xf]
  %v54 = vld [vmem:[%s1 + $0x7c] sm:$0xf]
  %v55 = vld [vmem:[%s1 + $0x80] sm:$0xf]
  %v56 = vld [vmem:[%s1 + $0x84] sm:$0xf]
  %v57 = vld [vmem:[%s1 + $0x88] sm:$0xf]
  %v58 = vld [vmem:[%s1 + $0x8c] sm:$0xf]
  %v59 = vld [vmem:[%s1 + $0x90] sm:$0xf]
  %v60 = vld [vmem:[%s1 + $0x94] sm:$0xf]
  %v61 = vld [vmem:[%s1 + $0x98] sm:$0xf]
  %v62 = vld [vmem:[%s1 + $0x9c] sm:$0xf]
  %v63 = vld [vmem:[%s1 + $0xa0] sm:$0xf]
  %v64 = vld [vmem:[%s1 + $0xa4] sm:$0xf]
  %v65 = vld [vmem:[%s1 + $0xa8] sm:$0xf]
  %v66 = vld [vmem:[%s1 + $0xac] sm:$0xf]
  %v67 = vld [vmem:[%s1 + $0xb0] sm:$0xf]
  %v68 = vld [vmem:[%s1 + $0xb4] sm:$0xf]
  %v69 = vld [vmem:[%s1 + $0xb8] sm:$0xf]
  %v70 = vld [vmem:[%s1 + $0xbc] sm:$0xf]
  %v71 = vld [vmem:[%s1 + $0xc0] sm:$0xf]
  %v72 = vld [vmem:[%s1 + $0xc4] sm:$0xf]
  %v73 = vld [vmem:[%s1 + $0xc8] sm:$0xf]
  %v74 = vld [vmem:[%s1 + $0xcc] sm:$0xf]
  %v75 = vld [vmem:[%s1 + $0xd0] sm:$0xf]
  %v76 = vld [vmem:[%s1 + $0xd4] sm:$0xf]
  %v77 = vld [vmem:[%s2] sm:$0xff]
  %v78 = vld [vmem:[%s2 + $0x8] sm:$0xff]
  %v79 = vld [vmem:[%s2 + $0x10] sm:$0xff]
  %v80 = vld [vmem:[%s2 + $0x18] sm:$0xff]
  %82 = vset.pattern.permute.xlu0 0
  %83 = vperm.xlu0 %82, %v77
  %v84 = vpop.permute.xlu0 %83
  %87 = vset.pattern.permute.xlu0 0
  %88 = vperm.xlu0 %87, %v78
  %v89 = vpop.permute.xlu0 %88
  %92 = vset.pattern.permute.xlu0 0
  %93 = vperm.xlu0 %92, %v79
  %v94 = vpop.permute.xlu0 %93
  %97 = vset.pattern.permute.xlu0 0
  %98 = vperm.xlu0 %97, %v80
  %v99 = vpop.permute.xlu0 %98
  %v109 = vunpack.c.l.b16 %v15
  %v110 = vunpack.c.h.b16 %v15
  %v111 = vunpack.c.l.b16 %v16
  %v112 = vunpack.c.h.b16 %v16
  %v113 = vunpack.c.l.b16 %v17
  %v114 = vunpack.c.h.b16 %v17
  %v115 = vunpack.c.l.b16 %v18
  %v116 = vunpack.c.h.b16 %v18
  %v117 = vunpack.c.l.b16 %v19
  %v118 = vunpack.c.h.b16 %v19
  %v119 = vunpack.c.l.b16 %v20
  %v120 = vunpack.c.h.b16 %v20
  %v121 = vunpack.c.l.b16 %v21
  %v122 = vunpack.c.h.b16 %v21
  %v123 = vunpack.c.l.b16 %v22
  %v124 = vunpack.c.h.b16 %v22
  %v125 = vpack.c.b16 %v113, %v109
  %v126 = vpack.c.b16 %v114, %v110
  %v127 = vpack.c.b16 %v115, %v111
  %v128 = vpack.c.b16 %v116, %v112
  %v129 = vpack.c.b16 %v121, %v117
  %v130 = vpack.c.b16 %v122, %v118
  %v131 = vpack.c.b16 %v123, %v119
  %v132 = vpack.c.b16 %v124, %v120
  %v193 = vunpack.c.l.b16 %v23
  %v194 = vunpack.c.l.b16 %v24
  %v195 = vunpack.c.l.b16 %v25
  %v196 = vunpack.c.l.b16 %v26
  %v197 = vunpack.c.l.b16 %v27
  %v198 = vunpack.c.l.b16 %v28
  %v199 = vunpack.c.l.b16 %v29
  %v200 = vunpack.c.l.b16 %v30
  %v201 = vunpack.c.l.b16 %v31
  %v202 = vunpack.c.l.b16 %v32
  %v203 = vunpack.c.l.b16 %v33
  %v204 = vunpack.c.l.b16 %v34
  %v205 = vunpack.c.l.b16 %v35
  %v206 = vunpack.c.l.b16 %v36
  %v207 = vunpack.c.l.b16 %v37
  %v208 = vunpack.c.l.b16 %v38
  %v209 = vunpack.c.l.b16 %v39
  %v210 = vunpack.c.l.b16 %v40
  %v211 = vunpack.c.l.b16 %v41
  %v212 = vunpack.c.l.b16 %v42
  %v213 = vunpack.c.l.b16 %v43
  %v214 = vunpack.c.l.b16 %v44
  %v215 = vunpack.c.l.b16 %v45
  %v216 = vunpack.c.l.b16 %v46
  %v217 = vunpack.c.l.b16 %v47
  %v218 = vunpack.c.l.b16 %v48
  %v219 = vunpack.c.l.b16 %v49
  %v220 = vunpack.c.l.b16 %v50
  %v221 = vunpack.c.l.b16 %v51
  %v222 = vunpack.c.l.b16 %v52
  %v223 = vunpack.c.l.b16 %v53
  %v224 = vunpack.c.l.b16 %v54
  %v225 = vunpack.c.l.b16 %v55
  %v226 = vunpack.c.l.b16 %v56
  %v227 = vunpack.c.l.b16 %v57
  %v228 = vunpack.c.l.b16 %v58
  %v229 = vunpack.c.l.b16 %v59
  %v230 = vunpack.c.l.b16 %v60
  %v231 = vunpack.c.l.b16 %v61
  %v232 = vunpack.c.l.b16 %v62
  %v233 = vunpack.c.l.b16 %v63
  %v234 = vunpack.c.l.b16 %v64
  %v235 = vunpack.c.l.b16 %v65
  %v236 = vunpack.c.l.b16 %v66
  %v237 = vunpack.c.l.b16 %v67
  %v238 = vunpack.c.l.b16 %v68
  %v239 = vunpack.c.l.b16 %v69
  %v240 = vunpack.c.l.b16 %v70
  %v241 = vunpack.c.l.b16 %v71
  %v242 = vunpack.c.l.b16 %v72
  %v243 = vunpack.c.l.b16 %v73
  %v244 = vunpack.c.l.b16 %v74
  %v245 = vunpack.c.l.b16 %v75
  %v246 = vunpack.c.l.b16 %v76
  %v247 = vpack.c.b16 %v194, %v193
  %v248 = vpack.c.b16 %v196, %v195
  %v249 = vpack.c.b16 %v198, %v197
  %v250 = vpack.c.b16 %v200, %v199
  %v251 = vpack.c.b16 %v202, %v201
  %v252 = vpack.c.b16 %v204, %v203
  %v253 = vpack.c.b16 %v206, %v205
  %v254 = vpack.c.b16 %v208, %v207
  %v255 = vpack.c.b16 %v210, %v209
  %v256 = vpack.c.b16 %v212, %v211
  %v257 = vpack.c.b16 %v214, %v213
  %v258 = vpack.c.b16 %v216, %v215
  %v259 = vpack.c.b16 %v218, %v217
  %v260 = vpack.c.b16 %v220, %v219
  %v261 = vpack.c.b16 %v222, %v221
  %v262 = vpack.c.b16 %v224, %v223
  %v263 = vpack.c.b16 %v226, %v225
  %v264 = vpack.c.b16 %v228, %v227
  %v265 = vpack.c.b16 %v230, %v229
  %v266 = vpack.c.b16 %v232, %v231
  %v267 = vpack.c.b16 %v234, %v233
  %v268 = vpack.c.b16 %v236, %v235
  %v269 = vpack.c.b16 %v238, %v237
  %v270 = vpack.c.b16 %v240, %v239
  %v271 = vpack.c.b16 %v242, %v241
  %v272 = vpack.c.b16 %v244, %v243
  %v273 = vpack.c.b16 %v246, %v245
  %vm301 = vcmask 392192
  %v303 = vsel %vm301, %v128, 0
  %v306 = vsel %vm301, %v132, 0
  %308 = vmatpush.bf16.msra.mxu0 %v254
  %309 = vmatpush.bf16.msra.mxu0 %v253
  %310 = vmatpush.bf16.msra.mxu0 %v252
  %311 = vmatpush.bf16.msra.mxu0 %v251
  %312 = vmatpush.bf16.msra.mxu0 %v250
  %313 = vmatpush.bf16.msra.mxu0 %v249
  %314 = vmatpush.bf16.msra.mxu0 %v248
  %315 = vmatpush.bf16.msra.mxu0 %v247
  %316 = vmatmul.bf16.gmra.mxu0 %v125
  %v317 = vpop.f32.mrf.mxu0
  %v318 = vadd.f32 %v84, %v317
  %v319 = vpop.f32.mrf.mxu0
  %v320 = vadd.f32 %v89, %v319
  %321 = vmatmul.bf16.gmra.mxu0 %v129
  %v322 = vpop.f32.mrf.mxu0
  %v323 = vadd.f32 %v94, %v322
  %v324 = vpop.f32.mrf.mxu0
  %v325 = vadd.f32 %v99, %v324
  %326 = vdwg.mxu0
  %327 = vmatpush.bf16.msra.mxu0 %v262
  %328 = vmatpush.bf16.msra.mxu0 %v261
  %329 = vmatpush.bf16.msra.mxu0 %v260
  %330 = vmatpush.bf16.msra.mxu0 %v259
  %331 = vmatpush.bf16.msra.mxu0 %v258
  %332 = vmatpush.bf16.msra.mxu0 %v257
  %333 = vmatpush.bf16.msra.mxu0 %v256
  %334 = vmatpush.bf16.msra.mxu0 %v255
  %335 = vmatmul.bf16.gmra.mxu0 %v126
  %v336 = vpop.f32.mrf.mxu0
  %v337 = vadd.f32 %v318, %v336
  %v338 = vpop.f32.mrf.mxu0
  %v339 = vadd.f32 %v320, %v338
  %340 = vmatmul.bf16.gmra.mxu0 %v130
  %v341 = vpop.f32.mrf.mxu0
  %v342 = vadd.f32 %v323, %v341
  %v343 = vpop.f32.mrf.mxu0
  %v344 = vadd.f32 %v325, %v343
  %345 = vdwg.mxu0
  %346 = vmatpush.bf16.msra.mxu0 %v270
  %347 = vmatpush.bf16.msra.mxu0 %v269
  %348 = vmatpush.bf16.msra.mxu0 %v268
  %349 = vmatpush.bf16.msra.mxu0 %v267
  %350 = vmatpush.bf16.msra.mxu0 %v266
  %351 = vmatpush.bf16.msra.mxu0 %v265
  %352 = vmatpush.bf16.msra.mxu0 %v264
  %353 = vmatpush.bf16.msra.mxu0 %v263
  %354 = vmatmul.bf16.gmra.mxu0 %v127
  %v355 = vpop.f32.mrf.mxu0
  %v356 = vadd.f32 %v337, %v355
  %v357 = vpop.f32.mrf.mxu0
  %v358 = vadd.f32 %v339, %v357
  %359 = vmatmul.bf16.gmra.mxu0 %v131
  %v360 = vpop.f32.mrf.mxu0
  %v361 = vadd.f32 %v342, %v360
  %v362 = vpop.f32.mrf.mxu0
  %v363 = vadd.f32 %v344, %v362
  %364 = vdwg.mxu0
  %365 = vmatpush.bf16.msra.mxu0 0
  %366 = vmatpush.bf16.msra.mxu0 0
  %367 = vmatpush.bf16.msra.mxu0 0
  %368 = vmatpush.bf16.msra.mxu0 0
  %369 = vmatpush.bf16.msra.mxu0 0
  %370 = vmatpush.bf16.msra.mxu0 %v273
  %371 = vmatpush.bf16.msra.mxu0 %v272
  %372 = vmatpush.bf16.msra.mxu0 %v271
  %373 = vmatmul.bf16.gmra.mxu0 %v303
  %v374 = vpop.f32.mrf.mxu0
  %v375 = vadd.f32 %v356, %v374
  %v376 = vpop.f32.mrf.mxu0
  %v377 = vadd.f32 %v358, %v376
  %378 = vmatmul.bf16.gmra.mxu0 %v306
  %v379 = vpop.f32.mrf.mxu0
  %v380 = vadd.f32 %v361, %v379
  %v381 = vpop.f32.mrf.mxu0
  %v382 = vadd.f32 %v363, %v381
  %383 = vdwg.mxu0
  %v384 = vsub.f32 0.0, %v375
  %v385 = vsub.f32 0.0, %v377
  %v386 = vsub.f32 0.0, %v380
  %v387 = vsub.f32 0.0, %v382
  %v388 = vmul.f32 %v384, 1.442695
  %v389 = vpow.pop %v388
  %v390 = vmul.f32 %v385, 1.442695
  %v391 = vpow.pop %v390
  %v392 = vmul.f32 %v386, 1.442695
  %v393 = vpow.pop %v392
  %v394 = vmul.f32 %v387, 1.442695
  %v395 = vpow.pop %v394
  %v396 = vadd.f32 %v389, 1.0
  %v397 = vadd.f32 %v391, 1.0
  %v398 = vadd.f32 %v393, 1.0
  %v399 = vadd.f32 %v395, 1.0
  %v400 = vrcp.pop %v396
  %v401 = vrcp.pop %v397
  %v402 = vrcp.pop %v398
  %v403 = vrcp.pop %v399
  %v404 = vmul.f32 %v375, %v400
  %v405 = vmul.f32 %v377, %v401
  %v406 = vmul.f32 %v380, %v402
  %v407 = vmul.f32 %v382, %v403
  %vm408 = vcmask 261120
  %409 = vst.msk [vmem:[%s3] sm:$0xff] %vm408, %v404
  %410 = vst.msk [vmem:[%s3 + $0x8] sm:$0xff] %vm408, %v405
  %411 = vst.msk [vmem:[%s3 + $0x10] sm:$0xff] %vm408, %v406
  %412 = vst.msk [vmem:[%s3 + $0x18] sm:$0xff] %vm408, %v407
  // Predicated region
  $region14: #{multitask_yolo_forward.33} parent=0 // pred_check
    _
  $region15: #{multitask_yolo_forward.33} parent=0 // pred_check_branch
    %414 = sbr.rel (0) target = $region17
  $region16: #{multitask_yolo_forward.33} parent=0 // pred_region
    _
  $region17: #{multitask_yolo_forward.33} parent=0 // pred_fallthru
    _
  // Predicated region
  $region18: #{multitask_yolo_forward.33} parent=0 // pred_check
    _
  $region19: #{multitask_yolo_forward.33} parent=0 // pred_check_branch
    %416 = sbr.rel (0) target = $region21
  $region20: #{multitask_yolo_forward.33} parent=0 // pred_region
    _
  $region21: #{multitask_yolo_forward.33} parent=0 // pred_fallthru
    _

// kernel: multitask_yolo_forward.35
$region0: #{multitask_yolo_forward.35}
  #allocation0 [shape = 'u32[]', space=smem, size = 0x4, offset = 0x4, fixed_abs, tag = 'smem constant byte address 0x4 - core index']
  #allocation1 [shape = 'u32[72,128]{1,0:T(1,128)}', space=vmem, size = 0x9000, scoped, tag = 'internal scratch']
  %s0 = inlined_call_operand.vmem [shape: bf16[64,864], index: 0, kind: input, shape index: {}]
  %s1 = inlined_call_operand.vmem [shape: bf16[864,8], index: 1, kind: input, shape index: {}]
  %s2 = inlined_call_operand.vmem [shape: f32[64,1], index: 2, kind: input, shape index: {}]
  %s3 = inlined_call_operand.vmem [shape: f32[64,8], index: 3, kind: output, shape index: {}]
  %s4 = sld [smem:[#allocation0]]
  $region22: #{multitask_yolo_forward.35} parent=0
    _
  %s6 = ssub.s32 1, %s4
  %s7 = scalar_select 0, %s6, %s4
  // Predicated region
  $region2: #{multitask_yolo_forward.35} parent=0 // pred_check
    _
  $region3: #{multitask_yolo_forward.35} parent=0 // pred_check_branch
    %9 = sbr.rel (0) target = $region5
  $region4: #{multitask_yolo_forward.35} parent=0 // pred_region
    _
  $region5: #{multitask_yolo_forward.35} parent=0 // pred_fallthru
    _
  // Predicated region
  $region6: #{multitask_yolo_forward.35} parent=0 // pred_check
    _
  $region7: #{multitask_yolo_forward.35} parent=0 // pred_check_branch
    %11 = sbr.rel (0) target = $region9
  $region8: #{multitask_yolo_forward.35} parent=0 // pred_region
    _
  $region9: #{multitask_yolo_forward.35} parent=0 // pred_fallthru
    _
  // Predicated region
  $region10: #{multitask_yolo_forward.35} parent=0 // pred_check
    _
  $region11: #{multitask_yolo_forward.35} parent=0 // pred_check_branch
    %13 = sbr.rel (0) target = $region13
  $region12: #{multitask_yolo_forward.35} parent=0 // pred_region
    _
  $region13: #{multitask_yolo_forward.35} parent=0 // pred_fallthru
    _
  %v15 = vld [vmem:[%s0] sm:$0xff]
  %v16 = vld [vmem:[%s0 + $0x8] sm:$0xff]
  %v17 = vld [vmem:[%s0 + $0x10] sm:$0xff]
  %v18 = vld [vmem:[%s0 + $0x18] sm:$0xf]
  %v19 = vld [vmem:[%s0 + $0x1c] sm:$0xff]
  %v20 = vld [vmem:[%s0 + $0x24] sm:$0xff]
  %v21 = vld [vmem:[%s0 + $0x2c] sm:$0xff]
  %v22 = vld [vmem:[%s0 + $0x34] sm:$0xf]
  %v23 = vld [vmem:[%s0 + $0x38] sm:$0xff]
  %v24 = vld [vmem:[%s0 + $0x40] sm:$0xff]
  %v25 = vld [vmem:[%s0 + $0x48] sm:$0xff]
  %v26 = vld [vmem:[%s0 + $0x50] sm:$0xf]
  %v27 = vld [vmem:[%s0 + $0x54] sm:$0xff]
  %v28 = vld [vmem:[%s0 + $0x5c] sm:$0xff]
  %v29 = vld [vmem:[%s0 + $0x64] sm:$0xff]
  %v30 = vld [vmem:[%s0 + $0x6c] sm:$0xf]
  %v31 = vld [vmem:[%s0 + $0x70] sm:$0xff]
  %v32 = vld [vmem:[%s0 + $0x78] sm:$0xff]
  %v33 = vld [vmem:[%s0 + $0x80] sm:$0xff]
  %v34 = vld [vmem:[%s0 + $0x88] sm:$0xf]
  %v35 = vld [vmem:[%s0 + $0x8c] sm:$0xff]
  %v36 = vld [vmem:[%s0 + $0x94] sm:$0xff]
  %v37 = vld [vmem:[%s0 + $0x9c] sm:$0xff]
  %v38 = vld [vmem:[%s0 + $0xa4] sm:$0xf]
  %v39 = vld [vmem:[%s0 + $0xa8] sm:$0xff]
  %v40 = vld [vmem:[%s0 + $0xb0] sm:$0xff]
  %v41 = vld [vmem:[%s0 + $0xb8] sm:$0xff]
  %v42 = vld [vmem:[%s0 + $0xc0] sm:$0xf]
  %v43 = vld [vmem:[%s0 + $0xc4] sm:$0xff]
  %v44 = vld [vmem:[%s0 + $0xcc] sm:$0xff]
  %v45 = vld [vmem:[%s0 + $0xd4] sm:$0xff]
  %v46 = vld [vmem:[%s0 + $0xdc] sm:$0xf]
  %v47 = vld [vmem:[%s1] sm:$0xf]
  %v48 = vld [vmem:[%s1 + $0x4] sm:$0xf]
  %v49 = vld [vmem:[%s1 + $0x8] sm:$0xf]
  %v50 = vld [vmem:[%s1 + $0xc] sm:$0xf]
  %v51 = vld [vmem:[%s1 + $0x10] sm:$0xf]
  %v52 = vld [vmem:[%s1 + $0x14] sm:$0xf]
  %v53 = vld [vmem:[%s1 + $0x18] sm:$0xf]
  %v54 = vld [vmem:[%s1 + $0x1c] sm:$0xf]
  %v55 = vld [vmem:[%s1 + $0x20] sm:$0xf]
  %v56 = vld [vmem:[%s1 + $0x24] sm:$0xf]
  %v57 = vld [vmem:[%s1 + $0x28] sm:$0xf]
  %v58 = vld [vmem:[%s1 + $0x2c] sm:$0xf]
  %v59 = vld [vmem:[%s1 + $0x30] sm:$0xf]
  %v60 = vld [vmem:[%s1 + $0x34] sm:$0xf]
  %v61 = vld [vmem:[%s1 + $0x38] sm:$0xf]
  %v62 = vld [vmem:[%s1 + $0x3c] sm:$0xf]
  %v63 = vld [vmem:[%s1 + $0x40] sm:$0xf]
  %v64 = vld [vmem:[%s1 + $0x44] sm:$0xf]
  %v65 = vld [vmem:[%s1 + $0x48] sm:$0xf]
  %v66 = vld [vmem:[%s1 + $0x4c] sm:$0xf]
  %v67 = vld [vmem:[%s1 + $0x50] sm:$0xf]
  %v68 = vld [vmem:[%s1 + $0x54] sm:$0xf]
  %v69 = vld [vmem:[%s1 + $0x58] sm:$0xf]
  %v70 = vld [vmem:[%s1 + $0x5c] sm:$0xf]
  %v71 = vld [vmem:[%s1 + $0x60] sm:$0xf]
  %v72 = vld [vmem:[%s1 + $0x64] sm:$0xf]
  %v73 = vld [vmem:[%s1 + $0x68] sm:$0xf]
  %v74 = vld [vmem:[%s1 + $0x6c] sm:$0xf]
  %v75 = vld [vmem:[%s1 + $0x70] sm:$0xf]
  %v76 = vld [vmem:[%s1 + $0x74] sm:$0xf]
  %v77 = vld [vmem:[%s1 + $0x78] sm:$0xf]
  %v78 = vld [vmem:[%s1 + $0x7c] sm:$0xf]
  %v79 = vld [vmem:[%s1 + $0x80] sm:$0xf]
  %v80 = vld [vmem:[%s1 + $0x84] sm:$0xf]
  %v81 = vld [vmem:[%s1 + $0x88] sm:$0xf]
  %v82 = vld [vmem:[%s1 + $0x8c] sm:$0xf]
  %v83 = vld [vmem:[%s1 + $0x90] sm:$0xf]
  %v84 = vld [vmem:[%s1 + $0x94] sm:$0xf]
  %v85 = vld [vmem:[%s1 + $0x98] sm:$0xf]
  %v86 = vld [vmem:[%s1 + $0x9c] sm:$0xf]
  %v87 = vld [vmem:[%s1 + $0xa0] sm:$0xf]
  %v88 = vld [vmem:[%s1 + $0xa4] sm:$0xf]
  %v89 = vld [vmem:[%s1 + $0xa8] sm:$0xf]
  %v90 = vld [vmem:[%s1 + $0xac] sm:$0xf]
  %v91 = vld [vmem:[%s1 + $0xb0] sm:$0xf]
  %v92 = vld [vmem:[%s1 + $0xb4] sm:$0xf]
  %v93 = vld [vmem:[%s1 + $0xb8] sm:$0xf]
  %v94 = vld [vmem:[%s1 + $0xbc] sm:$0xf]
  %v95 = vld [vmem:[%s1 + $0xc0] sm:$0xf]
  %v96 = vld [vmem:[%s1 + $0xc4] sm:$0xf]
  %v97 = vld [vmem:[%s1 + $0xc8] sm:$0xf]
  %v98 = vld [vmem:[%s1 + $0xcc] sm:$0xf]
  %v99 = vld [vmem:[%s1 + $0xd0] sm:$0xf]
  %v100 = vld [vmem:[%s1 + $0xd4] sm:$0xf]
  %v101 = vld [vmem:[%s1 + $0xd8] sm:$0xf]
  %v102 = vld [vmem:[%s1 + $0xdc] sm:$0xf]
  %v103 = vld [vmem:[%s1 + $0xe0] sm:$0xf]
  %v104 = vld [vmem:[%s1 + $0xe4] sm:$0xf]
  %v105 = vld [vmem:[%s1 + $0xe8] sm:$0xf]
  %v106 = vld [vmem:[%s1 + $0xec] sm:$0xf]
  %v107 = vld [vmem:[%s1 + $0xf0] sm:$0xf]
  %v108 = vld [vmem:[%s1 + $0xf4] sm:$0xf]
  %v109 = vld [vmem:[%s1 + $0xf8] sm:$0xf]
  %v110 = vld [vmem:[%s1 + $0xfc] sm:$0xf]
  %v111 = vld [vmem:[%s1 + $0x100] sm:$0xf]
  %v112 = vld [vmem:[%s1 + $0x104] sm:$0xf]
  %v113 = vld [vmem:[%s1 + $0x108] sm:$0xf]
  %v114 = vld [vmem:[%s1 + $0x10c] sm:$0xf]
  %v115 = vld [vmem:[%s1 + $0x110] sm:$0xf]
  %v116 = vld [vmem:[%s1 + $0x114] sm:$0xf]
  %v117 = vld [vmem:[%s1 + $0x118] sm:$0xf]
  %v118 = vld [vmem:[%s1 + $0x11c] sm:$0xf]
  %v119 = vld [vmem:[%s1 + $0x120] sm:$0xf]
  %v120 = vld [vmem:[%s1 + $0x124] sm:$0xf]
  %v121 = vld [vmem:[%s1 + $0x128] sm:$0xf]
  %v122 = vld [vmem:[%s1 + $0x12c] sm:$0xf]
  %v123 = vld [vmem:[%s1 + $0x130] sm:$0xf]
  %v124 = vld [vmem:[%s1 + $0x134] sm:$0xf]
  %v125 = vld [vmem:[%s1 + $0x138] sm:$0xf]
  %v126 = vld [vmem:[%s1 + $0x13c] sm:$0xf]
  %v127 = vld [vmem:[%s1 + $0x140] sm:$0xf]
  %v128 = vld [vmem:[%s1 + $0x144] sm:$0xf]
  %v129 = vld [vmem:[%s1 + $0x148] sm:$0xf]
  %v130 = vld [vmem:[%s1 + $0x14c] sm:$0xf]
  %v131 = vld [vmem:[%s1 + $0x150] sm:$0xf]
  %v132 = vld [vmem:[%s1 + $0x154] sm:$0xf]
  %v133 = vld [vmem:[%s1 + $0x158] sm:$0xf]
  %v134 = vld [vmem:[%s1 + $0x15c] sm:$0xf]
  %v135 = vld [vmem:[%s1 + $0x160] sm:$0xf]
  %v136 = vld [vmem:[%s1 + $0x164] sm:$0xf]
  %v137 = vld [vmem:[%s1 + $0x168] sm:$0xf]
  %v138 = vld [vmem:[%s1 + $0x16c] sm:$0xf]
  %v139 = vld [vmem:[%s1 + $0x170] sm:$0xf]
  %v140 = vld [vmem:[%s1 + $0x174] sm:$0xf]
  %v141 = vld [vmem:[%s1 + $0x178] sm:$0xf]
  %v142 = vld [vmem:[%s1 + $0x17c] sm:$0xf]
  %v143 = vld [vmem:[%s1 + $0x180] sm:$0xf]
  %v144 = vld [vmem:[%s1 + $0x184] sm:$0xf]
  %v145 = vld [vmem:[%s1 + $0x188] sm:$0xf]
  %v146 = vld [vmem:[%s1 + $0x18c] sm:$0xf]
  %v147 = vld [vmem:[%s1 + $0x190] sm:$0xf]
  %v148 = vld [vmem:[%s1 + $0x194] sm:$0xf]
  %v149 = vld [vmem:[%s1 + $0x198] sm:$0xf]
  %v150 = vld [vmem:[%s1 + $0x19c] sm:$0xf]
  %v151 = vld [vmem:[%s1 + $0x1a0] sm:$0xf]
  %v152 = vld [vmem:[%s1 + $0x1a4] sm:$0xf]
  %v153 = vld [vmem:[%s1 + $0x1a8] sm:$0xf]
  %v154 = vld [vmem:[%s1 + $0x1ac] sm:$0xf]
  %v155 = vld [vmem:[%s2] sm:$0xff]
  %v156 = vld [vmem:[%s2 + $0x8] sm:$0xff]
  %v157 = vld [vmem:[%s2 + $0x10] sm:$0xff]
  %v158 = vld [vmem:[%s2 + $0x18] sm:$0xff]
  %v159 = vld [vmem:[%s2 + $0x20] sm:$0xff]
  %v160 = vld [vmem:[%s2 + $0x28] sm:$0xff]
  %v161 = vld [vmem:[%s2 + $0x30] sm:$0xff]
  %v162 = vld [vmem:[%s2 + $0x38] sm:$0xff]
  %164 = vset.pattern.permute.xlu0 0
  %165 = vperm.xlu0 %164, %v155
  %v166 = vpop.permute.xlu0 %165
  %169 = vset.pattern.permute.xlu0 0
  %170 = vperm.xlu0 %169, %v156
  %v171 = vpop.permute.xlu0 %170
  %174 = vset.pattern.permute.xlu0 0
  %175 = vperm.xlu0 %174, %v157
  %v176 = vpop.permute.xlu0 %175
  %179 = vset.pattern.permute.xlu0 0
  %180 = vperm.xlu0 %179, %v158
  %v181 = vpop.permute.xlu0 %180
  %184 = vset.pattern.permute.xlu0 0
  %185 = vperm.xlu0 %184, %v159
  %v186 = vpop.permute.xlu0 %185
  %189 = vset.pattern.permute.xlu0 0
  %190 = vperm.xlu0 %189, %v160
  %v191 = vpop.permute.xlu0 %190
  %194 = vset.pattern.permute.xlu0 0
  %195 = vperm.xlu0 %194, %v161
  %v196 = vpop.permute.xlu0 %195
  %199 = vset.pattern.permute.xlu0 0
  %200 = vperm.xlu0 %199, %v162
  %v201 = vpop.permute.xlu0 %200
  %v235 = vunpack.c.l.b16 %v15
  %v236 = vunpack.c.h.b16 %v15
  %v237 = vunpack.c.l.b16 %v16
  %v238 = vunpack.c.h.b16 %v16
  %v239 = vunpack.c.l.b16 %v17
  %v240 = vunpack.c.h.b16 %v17
  %v241 = vunpack.c.l.b16 %v18
  %v242 = vunpack.c.l.b16 %v19
  %v243 = vunpack.c.h.b16 %v19
  %v244 = vunpack.c.l.b16 %v20
  %v245 = vunpack.c.h.b16 %v20
  %v246 = vunpack.c.l.b16 %v21
  %v247 = vunpack.c.h.b16 %v21
  %v248 = vunpack.c.l.b16 %v22
  %v249 = vunpack.c.l.b16 %v23
  %v250 = vunpack.c.h.b16 %v23
  %v251 = vunpack.c.l.b16 %v24
  %v252 = vunpack.c.h.b16 %v24
  %v253 = vunpack.c.l.b16 %v25
  %v254 = vunpack.c.h.b16 %v25
  %v255 = vunpack.c.l.b16 %v26
  %v256 = vunpack.c.l.b16 %v27
  %v257 = vunpack.c.h.b16 %v27
  %v258 = vunpack.c.l.b16 %v28
  %v259 = vunpack.c.h.b16 %v28
  %v260 = vunpack.c.l.b16 %v29
  %v261 = vunpack.c.h.b16 %v29
  %v262 = vunpack.c.l.b16 %v30
  %v263 = vunpack.c.l.b16 %v31
  %v264 = vunpack.c.h.b16 %v31
  %v265 = vunpack.c.l.b16 %v32
  %v266 = vunpack.c.h.b16 %v32
  %v267 = vunpack.c.l.b16 %v33
  %v268 = vunpack.c.h.b16 %v33
  %v269 = vunpack.c.l.b16 %v34
  %v270 = vunpack.c.l.b16 %v35
  %v271 = vunpack.c.h.b16 %v35
  %v272 = vunpack.c.l.b16 %v36
  %v273 = vunpack.c.h.b16 %v36
  %v274 = vunpack.c.l.b16 %v37
  %v275 = vunpack.c.h.b16 %v37
  %v276 = vunpack.c.l.b16 %v38
  %v277 = vunpack.c.l.b16 %v39
  %v278 = vunpack.c.h.b16 %v39
  %v279 = vunpack.c.l.b16 %v40
  %v280 = vunpack.c.h.b16 %v40
  %v281 = vunpack.c.l.b16 %v41
  %v282 = vunpack.c.h.b16 %v41
  %v283 = vunpack.c.l.b16 %v42
  %v284 = vunpack.c.l.b16 %v43
  %v285 = vunpack.c.h.b16 %v43
  %v286 = vunpack.c.l.b16 %v44
  %v287 = vunpack.c.h.b16 %v44
  %v288 = vunpack.c.l.b16 %v45
  %v289 = vunpack.c.h.b16 %v45
  %v290 = vunpack.c.l.b16 %v46
  %v291 = vpack.c.b16 %v242, %v235
  %v292 = vpack.c.b16 %v243, %v236
  %v293 = vpack.c.b16 %v244, %v237
  %v294 = vpack.c.b16 %v245, %v238
  %v295 = vpack.c.b16 %v246, %v239
  %v296 = vpack.c.b16 %v247, %v240
  %v297 = vpack.c.b16 %v248, %v241
  %v298 = vpack.c.b16 %v256, %v249
  %v299 = vpack.c.b16 %v257, %v250
  %v300 = vpack.c.b16 %v258, %v251
  %v301 = vpack.c.b16 %v259, %v252
  %v302 = vpack.c.b16 %v260, %v253
  %v303 = vpack.c.b16 %v261, %v254
  %v304 = vpack.c.b16 %v262, %v255
  %v305 = vpack.c.b16 %v270, %v263
  %v306 = vpack.c.b16 %v271, %v264
  %v307 = vpack.c.b16 %v272, %v265
  %v308 = vpack.c.b16 %v273, %v266
  %v309 = vpack.c.b16 %v274, %v267
  %v310 = vpack.c.b16 %v275, %v268
  %v311 = vpack.c.b16 %v276, %v269
  %v312 = vpack.c.b16 %v284, %v277
  %v313 = vpack.c.b16 %v285, %v278
  %v314 = vpack.c.b16 %v286, %v279
  %v315 = vpack.c.b16 %v287, %v280
  %v316 = vpack.c.b16 %v288, %v281
  %v317 = vpack.c.b16 %v289, %v282
  %v318 = vpack.c.b16 %v290, %v283
  %v451 = vunpack.c.l.b16 %v47
  %v452 = vunpack.c.l.b16 %v48
  %v453 = vunpack.c.l.b16 %v49
  %v454 = vunpack.c.l.b16 %v50
  %v455 = vunpack.c.l.b16 %v51
  %v456 = vunpack.c.l.b16 %v52
  %v457 = vunpack.c.l.b16 %v53
  %v458 = vunpack.c.l.b16 %v54
  %v459 = vunpack.c.l.b16 %v55
  %v460 = vunpack.c.l.b16 %v56
  %v461 = vunpack.c.l.b16 %v57
  %v462 = vunpack.c.l.b16 %v58
  %v463 = vunpack.c.l.b16 %v59
  %v464 = vunpack.c.l.b16 %v60
  %v465 = vunpack.c.l.b16 %v61
  %v466 = vunpack.c.l.b16 %v62
  %v467 = vunpack.c.l.b16 %v63
  %v468 = vunpack.c.l.b16 %v64
  %v469 = vunpack.c.l.b16 %v65
  %v470 = vunpack.c.l.b16 %v66
  %v471 = vunpack.c.l.b16 %v67
  %v472 = vunpack.c.l.b16 %v68
  %v473 = vunpack.c.l.b16 %v69
  %v474 = vunpack.c.l.b16 %v70
  %v475 = vunpack.c.l.b16 %v71
  %v476 = vunpack.c.l.b16 %v72
  %v477 = vunpack.c.l.b16 %v73
  %v478 = vunpack.c.l.b16 %v74
  %v479 = vunpack.c.l.b16 %v75
  %v480 = vunpack.c.l.b16 %v76
  %v481 = vunpack.c.l.b16 %v77
  %v482 = vunpack.c.l.b16 %v78
  %v483 = vunpack.c.l.b16 %v79
  %v484 = vunpack.c.l.b16 %v80
  %v485 = vunpack.c.l.b16 %v81
  %v486 = vunpack.c.l.b16 %v82
  %v487 = vunpack.c.l.b16 %v83
  %v488 = vunpack.c.l.b16 %v84
  %v489 = vunpack.c.l.b16 %v85
  %v490 = vunpack.c.l.b16 %v86
  %v491 = vunpack.c.l.b16 %v87
  %v492 = vunpack.c.l.b16 %v88
  %v493 = vunpack.c.l.b16 %v89
  %v494 = vunpack.c.l.b16 %v90
  %v495 = vunpack.c.l.b16 %v91
  %v496 = vunpack.c.l.b16 %v92
  %v497 = vunpack.c.l.b16 %v93
  %v498 = vunpack.c.l.b16 %v94
  %v499 = vunpack.c.l.b16 %v95
  %v500 = vunpack.c.l.b16 %v96
  %v501 = vunpack.c.l.b16 %v97
  %v502 = vunpack.c.l.b16 %v98
  %v503 = vunpack.c.l.b16 %v99
  %v504 = vunpack.c.l.b16 %v100
  %v505 = vunpack.c.l.b16 %v101
  %v506 = vunpack.c.l.b16 %v102
  %v507 = vunpack.c.l.b16 %v103
  %v508 = vunpack.c.l.b16 %v104
  %v509 = vunpack.c.l.b16 %v105
  %v510 = vunpack.c.l.b16 %v106
  %v511 = vunpack.c.l.b16 %v107
  %v512 = vunpack.c.l.b16 %v108
  %v513 = vunpack.c.l.b16 %v109
  %v514 = vunpack.c.l.b16 %v110
  %v515 = vunpack.c.l.b16 %v111
  %v516 = vunpack.c.l.b16 %v112
  %v517 = vunpack.c.l.b16 %v113
  %v518 = vunpack.c.l.b16 %v114
  %v519 = vunpack.c.l.b16 %v115
  %v520 = vunpack.c.l.b16 %v116
  %v521 = vunpack.c.l.b16 %v117
  %v522 = vunpack.c.l.b16 %v118
  %v523 = vunpack.c.l.b16 %v119
  %v524 = vunpack.c.l.b16 %v120
  %v525 = vunpack.c.l.b16 %v121
  %v526 = vunpack.c.l.b16 %v122
  %v527 = vunpack.c.l.b16 %v123
  %v528 = vunpack.c.l.b16 %v124
  %v529 = vunpack.c.l.b16 %v125
  %v530 = vunpack.c.l.b16 %v126
  %v531 = vunpack.c.l.b16 %v127
  %v532 = vunpack.c.l.b16 %v128
  %v533 = vunpack.c.l.b16 %v129
  %v534 = vunpack.c.l.b16 %v130
  %v535 = vunpack.c.l.b16 %v131
  %v536 = vunpack.c.l.b16 %v132
  %v537 = vunpack.c.l.b16 %v133
  %v538 = vunpack.c.l.b16 %v134
  %v539 = vunpack.c.l.b16 %v135
  %v540 = vunpack.c.l.b16 %v136
  %v541 = vunpack.c.l.b16 %v137
  %v542 = vunpack.c.l.b16 %v138
  %v543 = vunpack.c.l.b16 %v139
  %v544 = vunpack.c.l.b16 %v140
  %v545 = vunpack.c.l.b16 %v141
  %v546 = vunpack.c.l.b16 %v142
  %v547 = vunpack.c.l.b16 %v143
  %v548 = vunpack.c.l.b16 %v144
  %v549 = vunpack.c.l.b16 %v145
  %v550 = vunpack.c.l.b16 %v146
  %v551 = vunpack.c.l.b16 %v147
  %v552 = vunpack.c.l.b16 %v148
  %v553 = vunpack.c.l.b16 %v149
  %v554 = vunpack.c.l.b16 %v150
  %v555 = vunpack.c.l.b16 %v151
  %v556 = vunpack.c.l.b16 %v152
  %v557 = vunpack.c.l.b16 %v153
  %v558 = vunpack.c.l.b16 %v154
  %v559 = vpack.c.b16 %v452, %v451
  %v560 = vpack.c.b16 %v454, %v453
  %v561 = vpack.c.b16 %v456, %v455
  %v562 = vpack.c.b16 %v458, %v457
  %v563 = vpack.c.b16 %v460, %v459
  %v564 = vpack.c.b16 %v462, %v461
  %v565 = vpack.c.b16 %v464, %v463
  %v566 = vpack.c.b16 %v466, %v465
  %v567 = vpack.c.b16 %v468, %v467
  %v568 = vpack.c.b16 %v470, %v469
  %v569 = vpack.c.b16 %v472, %v471
  %v570 = vpack.c.b16 %v474, %v473
  %v571 = vpack.c.b16 %v476, %v475
  %v572 = vpack.c.b16 %v478, %v477
  %v573 = vpack.c.b16 %v480, %v479
  %v574 = vpack.c.b16 %v482, %v481
  %v575 = vpack.c.b16 %v484, %v483
  %v576 = vpack.c.b16 %v486, %v485
  %v577 = vpack.c.b16 %v488, %v487
  %v578 = vpack.c.b16 %v490, %v489
  %v579 = vpack.c.b16 %v492, %v491
  %v580 = vpack.c.b16 %v494, %v493
  %v581 = vpack.c.b16 %v496, %v495
  %v582 = vpack.c.b16 %v498, %v497
  %v583 = vpack.c.b16 %v500, %v499
  %v584 = vpack.c.b16 %v502, %v501
  %v585 = vpack.c.b16 %v504, %v503
  %v586 = vpack.c.b16 %v506, %v505
  %v587 = vpack.c.b16 %v508, %v507
  %v588 = vpack.c.b16 %v510, %v509
  %v589 = vpack.c.b16 %v512, %v511
  %v590 = vpack.c.b16 %v514, %v513
  %v591 = vpack.c.b16 %v516, %v515
  %v592 = vpack.c.b16 %v518, %v517
  %v593 = vpack.c.b16 %v520, %v519
  %v594 = vpack.c.b16 %v522, %v521
  %v595 = vpack.c.b16 %v524, %v523
  %v596 = vpack.c.b16 %v526, %v525
  %v597 = vpack.c.b16 %v528, %v527
  %v598 = vpack.c.b16 %v530, %v529
  %v599 = vpack.c.b16 %v532, %v531
  %v600 = vpack.c.b16 %v534, %v533
  %v601 = vpack.c.b16 %v536, %v535
  %v602 = vpack.c.b16 %v538, %v537
  %v603 = vpack.c.b16 %v540, %v539
  %v604 = vpack.c.b16 %v542, %v541
  %v605 = vpack.c.b16 %v544, %v543
  %v606 = vpack.c.b16 %v546, %v545
  %v607 = vpack.c.b16 %v548, %v547
  %v608 = vpack.c.b16 %v550, %v549
  %v609 = vpack.c.b16 %v552, %v551
  %v610 = vpack.c.b16 %v554, %v553
  %v611 = vpack.c.b16 %v556, %v555
  %v612 = vpack.c.b16 %v558, %v557
  %vm667 = vcmask 785408
  %v669 = vsel %vm667, %v297, 0
  %v672 = vsel %vm667, %v304, 0
  %v675 = vsel %vm667, %v311, 0
  %v678 = vsel %vm667, %v318, 0
  %680 = vmatpush.bf16.msra.mxu0 %v566
  %681 = vmatpush.bf16.msra.mxu0 %v565
  %682 = vmatpush.bf16.msra.mxu0 %v564
  %683 = vmatpush.bf16.msra.mxu0 %v563
  %684 = vmatpush.bf16.msra.mxu0 %v562
  %685 = vmatpush.bf16.msra.mxu0 %v561
  %686 = vmatpush.bf16.msra.mxu0 %v560
  %687 = vmatpush.bf16.msra.mxu0 %v559
  %688 = vmatmul.bf16.gmra.mxu0 %v291
  %v689 = vpop.f32.mrf.mxu0
  %v690 = vadd.f32 %v166, %v689
  %v691 = vpop.f32.mrf.mxu0
  %v692 = vadd.f32 %v171, %v691
  %693 = vmatmul.bf16.gmra.mxu0 %v298
  %v694 = vpop.f32.mrf.mxu0
  %v695 = vadd.f32 %v176, %v694
  %v696 = vpop.f32.mrf.mxu0
  %v697 = vadd.f32 %v181, %v696
  %698 = vmatmul.bf16.gmra.mxu0 %v305
  %v699 = vpop.f32.mrf.mxu0
  %v700 = vadd.f32 %v186, %v699
  %v701 = vpop.f32.mrf.mxu0
  %v702 = vadd.f32 %v191, %v701
  %703 = vmatmul.bf16.gmra.mxu0 %v312
  %v704 = vpop.f32.mrf.mxu0
  %v705 = vadd.f32 %v196, %v704
  %v706 = vpop.f32.mrf.mxu0
  %v707 = vadd.f32 %v201, %v706
  %708 = vdwg.mxu0
  %709 = vmatpush.bf16.msra.mxu0 %v574
  %710 = vmatpush.bf16.msra.mxu0 %v573
  %711 = vmatpush.bf16.msra.mxu0 %v572
  %712 = vmatpush.bf16.msra.mxu0 %v571
  %713 = vmatpush.bf16.msra.mxu0 %v570
  %714 = vmatpush.bf16.msra.mxu0 %v569
  %715 = vmatpush.bf16.msra.mxu0 %v568
  %716 = vmatpush.bf16.msra.mxu0 %v567
  %717 = vmatmul.bf16.gmra.mxu0 %v292
  %v718 = vpop.f32.mrf.mxu0
  %v719 = vadd.f32 %v690, %v718
  %v720 = vpop.f32.mrf.mxu0
  %v721 = vadd.f32 %v692, %v720
  %722 = vmatmul.bf16.gmra.mxu0 %v299
  %v723 = vpop.f32.mrf.mxu0
  %v724 = vadd.f32 %v695, %v723
  %v725 = vpop.f32.mrf.mxu0
  %v726 = vadd.f32 %v697, %v725
  %727 = vmatmul.bf16.gmra.mxu0 %v306
  %v728 = vpop.f32.mrf.mxu0
  %v729 = vadd.f32 %v700, %v728
  %v730 = vpop.f32.mrf.mxu0
  %v731 = vadd.f32 %v702, %v730
  %732 = vmatmul.bf16.gmra.mxu0 %v313
  %v733 = vpop.f32.mrf.mxu0
  %v734 = vadd.f32 %v705, %v733
  %v735 = vpop.f32.mrf.mxu0
  %v736 = vadd.f32 %v707, %v735
  %737 = vdwg.mxu0
  %738 = vmatpush.bf16.msra.mxu0 %v582
  %739 = vmatpush.bf16.msra.mxu0 %v581
  %740 = vmatpush.bf16.msra.mxu0 %v580
  %741 = vmatpush.bf16.msra.mxu0 %v579
  %742 = vmatpush.bf16.msra.mxu0 %v578
  %743 = vmatpush.bf16.msra.mxu0 %v577
  %744 = vmatpush.bf16.msra.mxu0 %v576
  %745 = vmatpush.bf16.msra.mxu0 %v575
  %746 = vmatmul.bf16.gmra.mxu0 %v293
  %v747 = vpop.f32.mrf.mxu0
  %v748 = vadd.f32 %v719, %v747
  %v749 = vpop.f32.mrf.mxu0
  %v750 = vadd.f32 %v721, %v749
  %751 = vmatmul.bf16.gmra.mxu0 %v300
  %v752 = vpop.f32.mrf.mxu0
  %v753 = vadd.f32 %v724, %v752
  %v754 = vpop.f32.mrf.mxu0
  %v755 = vadd.f32 %v726, %v754
  %756 = vmatmul.bf16.gmra.mxu0 %v307
  %v757 = vpop.f32.mrf.mxu0
  %v758 = vadd.f32 %v729, %v757
  %v759 = vpop.f32.mrf.mxu0
  %v760 = vadd.f32 %v731, %v759
  %761 = vmatmul.bf16.gmra.mxu0 %v314
  %v762 = vpop.f32.mrf.mxu0
  %v763 = vadd.f32 %v734, %v762
  %v764 = vpop.f32.mrf.mxu0
  %v765 = vadd.f32 %v736, %v764
  %766 = vdwg.mxu0
  %767 = vmatpush.bf16.msra.mxu0 %v590
  %768 = vmatpush.bf16.msra.mxu0 %v589
  %769 = vmatpush.bf16.msra.mxu0 %v588
  %770 = vmatpush.bf16.msra.mxu0 %v587
  %771 = vmatpush.bf16.msra.mxu0 %v586
  %772 = vmatpush.bf16.msra.mxu0 %v585
  %773 = vmatpush.bf16.msra.mxu0 %v584
  %774 = vmatpush.bf16.msra.mxu0 %v583
  %775 = vmatmul.bf16.gmra.mxu0 %v294
  %v776 = vpop.f32.mrf.mxu0
  %v777 = vadd.f32 %v748, %v776
  %v778 = vpop.f32.mrf.mxu0
  %v779 = vadd.f32 %v750, %v778
  %780 = vmatmul.bf16.gmra.mxu0 %v301
  %v781 = vpop.f32.mrf.mxu0
  %v782 = vadd.f32 %v753, %v781
  %v783 = vpop.f32.mrf.mxu0
  %v784 = vadd.f32 %v755, %v783
  %785 = vmatmul.bf16.gmra.mxu0 %v308
  %v786 = vpop.f32.mrf.mxu0
  %v787 = vadd.f32 %v758, %v786
  %v788 = vpop.f32.mrf.mxu0
  %v789 = vadd.f32 %v760, %v788
  %790 = vmatmul.bf16.gmra.mxu0 %v315
  %v791 = vpop.f32.mrf.mxu0
  %v792 = vadd.f32 %v763, %v791
  %v793 = vpop.f32.mrf.mxu0
  %v794 = vadd.f32 %v765, %v793
  %795 = vdwg.mxu0
  %796 = vmatpush.bf16.msra.mxu0 %v598
  %797 = vmatpush.bf16.msra.mxu0 %v597
  %798 = vmatpush.bf16.msra.mxu0 %v596
  %799 = vmatpush.bf16.msra.mxu0 %v595
  %800 = vmatpush.bf16.msra.mxu0 %v594
  %801 = vmatpush.bf16.msra.mxu0 %v593
  %802 = vmatpush.bf16.msra.mxu0 %v592
  %803 = vmatpush.bf16.msra.mxu0 %v591
  %804 = vmatmul.bf16.gmra.mxu0 %v295
  %v805 = vpop.f32.mrf.mxu0
  %v806 = vadd.f32 %v777, %v805
  %v807 = vpop.f32.mrf.mxu0
  %v808 = vadd.f32 %v779, %v807
  %809 = vmatmul.bf16.gmra.mxu0 %v302
  %v810 = vpop.f32.mrf.mxu0
  %v811 = vadd.f32 %v782, %v810
  %v812 = vpop.f32.mrf.mxu0
  %v813 = vadd.f32 %v784, %v812
  %814 = vmatmul.bf16.gmra.mxu0 %v309
  %v815 = vpop.f32.mrf.mxu0
  %v816 = vadd.f32 %v787, %v815
  %v817 = vpop.f32.mrf.mxu0
  %v818 = vadd.f32 %v789, %v817
  %819 = vmatmul.bf16.gmra.mxu0 %v316
  %v820 = vpop.f32.mrf.mxu0
  %v821 = vadd.f32 %v792, %v820
  %v822 = vpop.f32.mrf.mxu0
  %v823 = vadd.f32 %v794, %v822
  %824 = vdwg.mxu0
  %825 = vmatpush.bf16.msra.mxu0 %v606
  %826 = vmatpush.bf16.msra.mxu0 %v605
  %827 = vmatpush.bf16.msra.mxu0 %v604
  %828 = vmatpush.bf16.msra.mxu0 %v603
  %829 = vmatpush.bf16.msra.mxu0 %v602
  %830 = vmatpush.bf16.msra.mxu0 %v601
  %831 = vmatpush.bf16.msra.mxu0 %v600
  %832 = vmatpush.bf16.msra.mxu0 %v599
  %833 = vmatmul.bf16.gmra.mxu0 %v296
  %v834 = vpop.f32.mrf.mxu0
  %v835 = vadd.f32 %v806, %v834
  %v836 = vpop.f32.mrf.mxu0
  %v837 = vadd.f32 %v808, %v836
  %838 = vmatmul.bf16.gmra.mxu0 %v303
  %v839 = vpop.f32.mrf.mxu0
  %v840 = vadd.f32 %v811, %v839
  %v841 = vpop.f32.mrf.mxu0
  %v842 = vadd.f32 %v813, %v841
  %843 = vmatmul.bf16.gmra.mxu0 %v310
  %v844 = vpop.f32.mrf.mxu0
  %v845 = vadd.f32 %v816, %v844
  %v846 = vpop.f32.mrf.mxu0
  %v847 = vadd.f32 %v818, %v846
  %848 = vmatmul.bf16.gmra.mxu0 %v317
  %v849 = vpop.f32.mrf.mxu0
  %v850 = vadd.f32 %v821, %v849
  %v851 = vpop.f32.mrf.mxu0
  %v852 = vadd.f32 %v823, %v851
  %853 = vdwg.mxu0
  %854 = vmatpush.bf16.msra.mxu0 0
  %855 = vmatpush.bf16.msra.mxu0 0
  %856 = vmatpush.bf16.msra.mxu0 %v612
  %857 = vmatpush.bf16.msra.mxu0 %v611
  %858 = vmatpush.bf16.msra.mxu0 %v610
  %859 = vmatpush.bf16.msra.mxu0 %v609
  %860 = vmatpush.bf16.msra.mxu0 %v608
  %861 = vmatpush.bf16.msra.mxu0 %v607
  %862 = vmatmul.bf16.gmra.mxu0 %v669
  %v863 = vpop.f32.mrf.mxu0
  %v864 = vadd.f32 %v835, %v863
  %v865 = vpop.f32.mrf.mxu0
  %v866 = vadd.f32 %v837, %v865
  %867 = vmatmul.bf16.gmra.mxu0 %v672
  %v868 = vpop.f32.mrf.mxu0
  %v869 = vadd.f32 %v840, %v868
  %v870 = vpop.f32.mrf.mxu0
  %v871 = vadd.f32 %v842, %v870
  %872 = vmatmul.bf16.gmra.mxu0 %v675
  %v873 = vpop.f32.mrf.mxu0
  %v874 = vadd.f32 %v845, %v873
  %v875 = vpop.f32.mrf.mxu0
  %v876 = vadd.f32 %v847, %v875
  %877 = vmatmul.bf16.gmra.mxu0 %v678
  %v878 = vpop.f32.mrf.mxu0
  %v879 = vadd.f32 %v850, %v878
  %v880 = vpop.f32.mrf.mxu0
  %v881 = vadd.f32 %v852, %v880
  %882 = vdwg.mxu0
  %v883 = vsub.f32 0.0, %v864
  %v884 = vsub.f32 0.0, %v866
  %v885 = vsub.f32 0.0, %v869
  %v886 = vsub.f32 0.0, %v871
  %v887 = vsub.f32 0.0, %v874
  %v888 = vsub.f32 0.0, %v876
  %v889 = vsub.f32 0.0, %v879
  %v890 = vsub.f32 0.0, %v881
  %v891 = vmul.f32 %v883, 1.442695
  %v892 = vpow.pop %v891
  %v893 = vmul.f32 %v884, 1.442695
  %v894 = vpow.pop %v893
  %v895 = vmul.f32 %v885, 1.442695
  %v896 = vpow.pop %v895
  %v897 = vmul.f32 %v886, 1.442695
  %v898 = vpow.pop %v897
  %v899 = vmul.f32 %v887, 1.442695
  %v900 = vpow.pop %v899
  %v901 = vmul.f32 %v888, 1.442695
  %v902 = vpow.pop %v901
  %v903 = vmul.f32 %v889, 1.442695
  %v904 = vpow.pop %v903
  %v905 = vmul.f32 %v890, 1.442695
  %v906 = vpow.pop %v905
  %v907 = vadd.f32 %v892, 1.0
  %v908 = vadd.f32 %v894, 1.0
  %v909 = vadd.f32 %v896, 1.0
  %v910 = vadd.f32 %v898, 1.0
  %v911 = vadd.f32 %v900, 1.0
  %v912 = vadd.f32 %v902, 1.0
  %v913 = vadd.f32 %v904, 1.0
  %v914 = vadd.f32 %v906, 1.0
  %v915 = vrcp.pop %v907
  %v916 = vrcp.pop %v908
  %v917 = vrcp.pop %v909
  %v918 = vrcp.pop %v910
  %v919 = vrcp.pop %v911
  %v920 = vrcp.pop %v912
  %v921 = vrcp.pop %v913
  %v922 = vrcp.pop %v914
  %v923 = vmul.f32 %v864, %v915
  %v924 = vmul.f32 %v866, %v916
  %v925 = vmul.f32 %v869, %v917
  %v926 = vmul.f32 %v871, %v918
  %v927 = vmul.f32 %v874, %v919
  %v928 = vmul.f32 %v876, %v920
  %v929 = vmul.f32 %v879, %v921
  %v930 = vmul.f32 %v881, %v922
  %vm931 = vcmask 64512
  %932 = vst.msk [vmem:[%s3] sm:$0xff] %vm931, %v923
  %933 = vst.msk [vmem:[%s3 + $0x8] sm:$0xff] %vm931, %v924
  %934 = vst.msk [vmem:[%s3 + $0x10] sm:$0xff] %vm931, %v925
  %935 = vst.msk [vmem:[%s3 + $0x18] sm:$0xff] %vm931, %v926
  %936 = vst.msk [vmem:[%s3 + $0x20] sm:$0xff] %vm931, %v927
  %937 = vst.msk [vmem:[%s3 + $0x28] sm:$0xff] %vm931, %v928
  %938 = vst.msk [vmem:[%s3 + $0x30] sm:$0xff] %vm931, %v929
  %939 = vst.msk [vmem:[%s3 + $0x38] sm:$0xff] %vm931, %v930
  // Predicated region
  $region14: #{multitask_yolo_forward.35} parent=0 // pred_check
    _
  $region15: #{multitask_yolo_forward.35} parent=0 // pred_check_branch
    %941 = sbr.rel (0) target = $region17
  $region16: #{multitask_yolo_forward.35} parent=0 // pred_region
    _
  $region17: #{multitask_yolo_forward.35} parent=0 // pred_fallthru
    _
  // Predicated region
  $region18: #{multitask_yolo_forward.35} parent=0 // pred_check
    _
  $region19: #{multitask_yolo_forward.35} parent=0 // pred_check_branch
    %943 = sbr.rel (0) target = $region21
  $region20: #{multitask_yolo_forward.35} parent=0 // pred_region
    _
  $region21: #{multitask_yolo_forward.35} parent=0 // pred_fallthru
    _

// kernel: multitask_yolo_forward.38
$region0: #{multitask_yolo_forward.38}
  #allocation0 [shape = 'u32[]', space=smem, size = 0x4, offset = 0x4, fixed_abs, tag = 'smem constant byte address 0x4 - core index']
  #allocation1 [shape = 'u32[72,128]{1,0:T(1,128)}', space=vmem, size = 0x9000, scoped, tag = 'internal scratch']
  %s0 = inlined_call_operand.vmem [shape: bf16[28,64], index: 0, kind: input, shape index: {}]
  %s1 = inlined_call_operand.vmem [shape: bf16[64,8], index: 1, kind: input, shape index: {}]
  %s2 = inlined_call_operand.vmem [shape: f32[28,1], index: 2, kind: input, shape index: {}]
  %s3 = inlined_call_operand.vmem [shape: f32[28,8], index: 3, kind: output, shape index: {}]
  %s4 = sld [smem:[#allocation0]]
  $region22: #{multitask_yolo_forward.38} parent=0
    _
  %s6 = ssub.s32 1, %s4
  %s7 = scalar_select 0, %s6, %s4
  // Predicated region
  $region2: #{multitask_yolo_forward.38} parent=0 // pred_check
    _
  $region3: #{multitask_yolo_forward.38} parent=0 // pred_check_branch
    %9 = sbr.rel (0) target = $region5
  $region4: #{multitask_yolo_forward.38} parent=0 // pred_region
    _
  $region5: #{multitask_yolo_forward.38} parent=0 // pred_fallthru
    _
  // Predicated region
  $region6: #{multitask_yolo_forward.38} parent=0 // pred_check
    _
  $region7: #{multitask_yolo_forward.38} parent=0 // pred_check_branch
    %11 = sbr.rel (0) target = $region9
  $region8: #{multitask_yolo_forward.38} parent=0 // pred_region
    _
  $region9: #{multitask_yolo_forward.38} parent=0 // pred_fallthru
    _
  // Predicated region
  $region10: #{multitask_yolo_forward.38} parent=0 // pred_check
    _
  $region11: #{multitask_yolo_forward.38} parent=0 // pred_check_branch
    %13 = sbr.rel (0) target = $region13
  $region12: #{multitask_yolo_forward.38} parent=0 // pred_region
    _
  $region13: #{multitask_yolo_forward.38} parent=0 // pred_fallthru
    _
  %v15 = vld [vmem:[%s0] sm:$0xf]
  %v16 = vld [vmem:[%s0 + $0x4] sm:$0xf]
  %v17 = vld [vmem:[%s0 + $0x8] sm:$0xf]
  %v18 = vld [vmem:[%s0 + $0xc] sm:$0x3]
  %v19 = vld [vmem:[%s1] sm:$0xf]
  %v20 = vld [vmem:[%s1 + $0x4] sm:$0xf]
  %v21 = vld [vmem:[%s1 + $0x8] sm:$0xf]
  %v22 = vld [vmem:[%s1 + $0xc] sm:$0xf]
  %v23 = vld [vmem:[%s1 + $0x10] sm:$0xf]
  %v24 = vld [vmem:[%s1 + $0x14] sm:$0xf]
  %v25 = vld [vmem:[%s1 + $0x18] sm:$0xf]
  %v26 = vld [vmem:[%s1 + $0x1c] sm:$0xf]
  %v27 = vld [vmem:[%s2] sm:$0xff]
  %v28 = vld [vmem:[%s2 + $0x8] sm:$0xff]
  %v29 = vld [vmem:[%s2 + $0x10] sm:$0xff]
  %v30 = vld [vmem:[%s2 + $0x18] sm:$0xf]
  %32 = vset.pattern.permute.xlu0 0
  %33 = vperm.xlu0 %32, %v27
  %v34 = vpop.permute.xlu0 %33
  %37 = vset.pattern.permute.xlu0 0
  %38 = vperm.xlu0 %37, %v28
  %v39 = vpop.permute.xlu0 %38
  %42 = vset.pattern.permute.xlu0 0
  %43 = vperm.xlu0 %42, %v29
  %v44 = vpop.permute.xlu0 %43
  %47 = vset.pattern.permute.xlu0 0
  %48 = vperm.xlu0 %47, %v30
  %v49 = vpop.permute.xlu0 %48
  %v55 = vunpack.c.l.b16 %v15
  %v56 = vunpack.c.l.b16 %v16
  %v57 = vunpack.c.l.b16 %v17
  %v58 = vunpack.c.l.b16 %v18
  %v59 = vpack.c.b16 %v56, %v55
  %v60 = vpack.c.b16 %v58, %v57
  %v69 = vunpack.c.l.b16 %v19
  %v70 = vunpack.c.l.b16 %v20
  %v71 = vunpack.c.l.b16 %v21
  %v72 = vunpack.c.l.b16 %v22
  %v73 = vunpack.c.l.b16 %v23
  %v74 = vunpack.c.l.b16 %v24
  %v75 = vunpack.c.l.b16 %v25
  %v76 = vunpack.c.l.b16 %v26
  %v77 = vpack.c.b16 %v70, %v69
  %v78 = vpack.c.b16 %v72, %v71
  %v79 = vpack.c.b16 %v74, %v73
  %v80 = vpack.c.b16 %v76, %v75
  %vm85 = vcmask 523264
  %v87 = vsel %vm85, %v59, 0
  %v90 = vsel %vm85, %v60, 0
  %92 = vmatpush.bf16.msra.mxu0 0
  %93 = vmatpush.bf16.msra.mxu0 0
  %94 = vmatpush.bf16.msra.mxu0 0
  %95 = vmatpush.bf16.msra.mxu0 0
  %96 = vmatpush.bf16.msra.mxu0 %v80
  %97 = vmatpush.bf16.msra.mxu0 %v79
  %98 = vmatpush.bf16.msra.mxu0 %v78
  %99 = vmatpush.bf16.msra.mxu0 %v77
  %100 = vmatmul.bf16.gmra.mxu0 %v87
  %v101 = vpop.f32.mrf.mxu0
  %v102 = vadd.f32 %v34, %v101
  %v103 = vpop.f32.mrf.mxu0
  %v104 = vadd.f32 %v39, %v103
  %105 = vmatmul.bf16.gmra.mxu0 %v90
  %v106 = vpop.f32.mrf.mxu0
  %v107 = vadd.f32 %v44, %v106
  %v108 = vpop.f32.mrf.mxu0
  %v109 = vadd.f32 %v49, %v108
  %110 = vdwg.mxu0
  %vm111 = vcmask 64512
  %112 = vst.msk [vmem:[%s3] sm:$0xff] %vm111, %v102
  %113 = vst.msk [vmem:[%s3 + $0x8] sm:$0xff] %vm111, %v104
  %114 = vst.msk [vmem:[%s3 + $0x10] sm:$0xff] %vm111, %v107
  %vm115 = vcmask 60416
  %116 = vst.msk [vmem:[%s3 + $0x18] sm:$0xf] %vm115, %v109
  // Predicated region
  $region14: #{multitask_yolo_forward.38} parent=0 // pred_check
    _
  $region15: #{multitask_yolo_forward.38} parent=0 // pred_check_branch
    %118 = sbr.rel (0) target = $region17
  $region16: #{multitask_yolo_forward.38} parent=0 // pred_region
    _
  $region17: #{multitask_yolo_forward.38} parent=0 // pred_fallthru
    _
  // Predicated region
  $region18: #{multitask_yolo_forward.38} parent=0 // pred_check
    _
  $region19: #{multitask_yolo_forward.38} parent=0 // pred_check_branch
    %120 = sbr.rel (0) target = $region21
  $region20: #{multitask_yolo_forward.38} parent=0 // pred_region
    _
  $region21: #{multitask_yolo_forward.38} parent=0 // pred_fallthru
    _

// kernel: multitask_yolo_forward.37
$region0: #{multitask_yolo_forward.37}
  #allocation0 [shape = 'u32[]', space=smem, size = 0x4, offset = 0x4, fixed_abs, tag = 'smem constant byte address 0x4 - core index']
  #allocation1 [shape = 'u32[72,128]{1,0:T(1,128)}', space=vmem, size = 0x9000, scoped, tag = 'internal scratch']
  %s0 = inlined_call_operand.vmem [shape: bf16[28,32], index: 0, kind: input, shape index: {}]
  %s1 = inlined_call_operand.vmem [shape: bf16[32,32], index: 1, kind: input, shape index: {}]
  %s2 = inlined_call_operand.vmem [shape: f32[28,1], index: 2, kind: input, shape index: {}]
  %s3 = inlined_call_operand.vmem [shape: f32[28,32], index: 3, kind: output, shape index: {}]
  %s4 = sld [smem:[#allocation0]]
  $region22: #{multitask_yolo_forward.37} parent=0
    _
  %s6 = ssub.s32 1, %s4
  %s7 = scalar_select 0, %s6, %s4
  // Predicated region
  $region2: #{multitask_yolo_forward.37} parent=0 // pred_check
    _
  $region3: #{multitask_yolo_forward.37} parent=0 // pred_check_branch
    %9 = sbr.rel (0) target = $region5
  $region4: #{multitask_yolo_forward.37} parent=0 // pred_region
    _
  $region5: #{multitask_yolo_forward.37} parent=0 // pred_fallthru
    _
  // Predicated region
  $region6: #{multitask_yolo_forward.37} parent=0 // pred_check
    _
  $region7: #{multitask_yolo_forward.37} parent=0 // pred_check_branch
    %11 = sbr.rel (0) target = $region9
  $region8: #{multitask_yolo_forward.37} parent=0 // pred_region
    _
  $region9: #{multitask_yolo_forward.37} parent=0 // pred_fallthru
    _
  // Predicated region
  $region10: #{multitask_yolo_forward.37} parent=0 // pred_check
    _
  $region11: #{multitask_yolo_forward.37} parent=0 // pred_check_branch
    %13 = sbr.rel (0) target = $region13
  $region12: #{multitask_yolo_forward.37} parent=0 // pred_region
    _
  $region13: #{multitask_yolo_forward.37} parent=0 // pred_fallthru
    _
  %v15 = vld [vmem:[%s0] sm:$0xf]
  %v16 = vld [vmem:[%s0 + $0x4] sm:$0xf]
  %v17 = vld [vmem:[%s0 + $0x8] sm:$0xf]
  %v18 = vld [vmem:[%s0 + $0xc] sm:$0x3]
  %v19 = vld [vmem:[%s1] sm:$0xf]
  %v20 = vld [vmem:[%s1 + $0x4] sm:$0xf]
  %v21 = vld [vmem:[%s1 + $0x8] sm:$0xf]
  %v22 = vld [vmem:[%s1 + $0xc] sm:$0xf]
  %v23 = vld [vmem:[%s2] sm:$0xff]
  %v24 = vld [vmem:[%s2 + $0x8] sm:$0xff]
  %v25 = vld [vmem:[%s2 + $0x10] sm:$0xff]
  %v26 = vld [vmem:[%s2 + $0x18] sm:$0xf]
  %28 = vset.pattern.permute.xlu0 0
  %29 = vperm.xlu0 %28, %v23
  %v30 = vpop.permute.xlu0 %29
  %33 = vset.pattern.permute.xlu0 0
  %34 = vperm.xlu0 %33, %v24
  %v35 = vpop.permute.xlu0 %34
  %38 = vset.pattern.permute.xlu0 0
  %39 = vperm.xlu0 %38, %v25
  %v40 = vpop.permute.xlu0 %39
  %43 = vset.pattern.permute.xlu0 0
  %44 = vperm.xlu0 %43, %v26
  %v45 = vpop.permute.xlu0 %44
  %v51 = vunpack.c.l.b16 %v15
  %v52 = vunpack.c.l.b16 %v16
  %v53 = vunpack.c.l.b16 %v17
  %v54 = vunpack.c.l.b16 %v18
  %v55 = vpack.c.b16 %v52, %v51
  %v56 = vpack.c.b16 %v54, %v53
  %v61 = vunpack.c.l.b16 %v19
  %v62 = vunpack.c.l.b16 %v20
  %v63 = vunpack.c.l.b16 %v21
  %v64 = vunpack.c.l.b16 %v22
  %v65 = vpack.c.b16 %v62, %v61
  %v66 = vpack.c.b16 %v64, %v63
  %vm69 = vcmask 261120
  %v71 = vsel %vm69, %v55, 0
  %v74 = vsel %vm69, %v56, 0
  %76 = vmatpush.bf16.msra.mxu0 0
  %77 = vmatpush.bf16.msra.mxu0 0
  %78 = vmatpush.bf16.msra.mxu0 0
  %79 = vmatpush.bf16.msra.mxu0 0
  %80 = vmatpush.bf16.msra.mxu0 0
  %81 = vmatpush.bf16.msra.mxu0 0
  %82 = vmatpush.bf16.msra.mxu0 %v66
  %83 = vmatpush.bf16.msra.mxu0 %v65
  %84 = vmatmul.bf16.gmra.mxu0 %v71
  %v85 = vpop.f32.mrf.mxu0
  %v86 = vadd.f32 %v30, %v85
  %v87 = vpop.f32.mrf.mxu0
  %v88 = vadd.f32 %v35, %v87
  %89 = vmatmul.bf16.gmra.mxu0 %v74
  %v90 = vpop.f32.mrf.mxu0
  %v91 = vadd.f32 %v40, %v90
  %v92 = vpop.f32.mrf.mxu0
  %v93 = vadd.f32 %v45, %v92
  %94 = vdwg.mxu0
  %95 = vst.msk [vmem:[%s3] sm:$0xff] %vm69, %v86
  %96 = vst.msk [vmem:[%s3 + $0x8] sm:$0xff] %vm69, %v88
  %97 = vst.msk [vmem:[%s3 + $0x10] sm:$0xff] %vm69, %v91
  %vm98 = vcmask 257024
  %99 = vst.msk [vmem:[%s3 + $0x18] sm:$0xf] %vm98, %v93
  // Predicated region
  $region14: #{multitask_yolo_forward.37} parent=0 // pred_check
    _
  $region15: #{multitask_yolo_forward.37} parent=0 // pred_check_branch
    %101 = sbr.rel (0) target = $region17
  $region16: #{multitask_yolo_forward.37} parent=0 // pred_region
    _
  $region17: #{multitask_yolo_forward.37} parent=0 // pred_fallthru
    _
  // Predicated region
  $region18: #{multitask_yolo_forward.37} parent=0 // pred_check
    _
  $region19: #{multitask_yolo_forward.37} parent=0 // pred_check_branch
    %103 = sbr.rel (0) target = $region21
  $region20: #{multitask_yolo_forward.37} parent=0 // pred_region
    _
  $region21: #{multitask_yolo_forward.37} parent=0 // pred_fallthru
    _

// kernel: multitask_yolo_forward.36
$region0: #{multitask_yolo_forward.36}
  #allocation0 [shape = 'u32[]', space=smem, size = 0x4, offset = 0x4, fixed_abs, tag = 'smem constant byte address 0x4 - core index']
  #allocation1 [shape = 'u32[72,128]{1,0:T(1,128)}', space=vmem, size = 0x9000, scoped, tag = 'internal scratch']
  %s0 = inlined_call_operand.vmem [shape: bf16[28,16], index: 0, kind: input, shape index: {}]
  %s1 = inlined_call_operand.vmem [shape: bf16[16,128], index: 1, kind: input, shape index: {}]
  %s2 = inlined_call_operand.vmem [shape: f32[28,1], index: 2, kind: input, shape index: {}]
  %s3 = inlined_call_operand.vmem [shape: f32[28,128], index: 3, kind: output, shape index: {}]
  %s4 = sld [smem:[#allocation0]]
  $region22: #{multitask_yolo_forward.36} parent=0
    _
  %s6 = ssub.s32 1, %s4
  %s7 = scalar_select 0, %s6, %s4
  // Predicated region
  $region2: #{multitask_yolo_forward.36} parent=0 // pred_check
    _
  $region3: #{multitask_yolo_forward.36} parent=0 // pred_check_branch
    %9 = sbr.rel (0) target = $region5
  $region4: #{multitask_yolo_forward.36} parent=0 // pred_region
    _
  $region5: #{multitask_yolo_forward.36} parent=0 // pred_fallthru
    _
  // Predicated region
  $region6: #{multitask_yolo_forward.36} parent=0 // pred_check
    _
  $region7: #{multitask_yolo_forward.36} parent=0 // pred_check_branch
    %11 = sbr.rel (0) target = $region9
  $region8: #{multitask_yolo_forward.36} parent=0 // pred_region
    _
  $region9: #{multitask_yolo_forward.36} parent=0 // pred_fallthru
    _
  // Predicated region
  $region10: #{multitask_yolo_forward.36} parent=0 // pred_check
    _
  $region11: #{multitask_yolo_forward.36} parent=0 // pred_check_branch
    %13 = sbr.rel (0) target = $region13
  $region12: #{multitask_yolo_forward.36} parent=0 // pred_region
    _
  $region13: #{multitask_yolo_forward.36} parent=0 // pred_fallthru
    _
  %v15 = vld [vmem:[%s0] sm:$0xf]
  %v16 = vld [vmem:[%s0 + $0x4] sm:$0xf]
  %v17 = vld [vmem:[%s0 + $0x8] sm:$0xf]
  %v18 = vld [vmem:[%s0 + $0xc] sm:$0x3]
  %v19 = vld [vmem:[%s1] sm:$0xf]
  %v20 = vld [vmem:[%s1 + $0x4] sm:$0xf]
  %v21 = vld [vmem:[%s2] sm:$0xff]
  %v22 = vld [vmem:[%s2 + $0x8] sm:$0xff]
  %v23 = vld [vmem:[%s2 + $0x10] sm:$0xff]
  %v24 = vld [vmem:[%s2 + $0x18] sm:$0xf]
  %26 = vset.pattern.permute.xlu0 0
  %27 = vperm.xlu0 %26, %v21
  %v28 = vpop.permute.xlu0 %27
  %31 = vset.pattern.permute.xlu0 0
  %32 = vperm.xlu0 %31, %v22
  %v33 = vpop.permute.xlu0 %32
  %36 = vset.pattern.permute.xlu0 0
  %37 = vperm.xlu0 %36, %v23
  %v38 = vpop.permute.xlu0 %37
  %41 = vset.pattern.permute.xlu0 0
  %42 = vperm.xlu0 %41, %v24
  %v43 = vpop.permute.xlu0 %42
  %v49 = vunpack.c.l.b16 %v15
  %v50 = vunpack.c.l.b16 %v16
  %v51 = vunpack.c.l.b16 %v17
  %v52 = vunpack.c.l.b16 %v18
  %v53 = vpack.c.b16 %v50, %v49
  %v54 = vpack.c.b16 %v52, %v51
  %v57 = vunpack.c.l.b16 %v19
  %v58 = vunpack.c.l.b16 %v20
  %v59 = vpack.c.b16 %v58, %v57
  %vm61 = vcmask 130048
  %v63 = vsel %vm61, %v53, 0
  %v66 = vsel %vm61, %v54, 0
  %68 = vmatpush.bf16.msra.mxu0 0
  %69 = vmatpush.bf16.msra.mxu0 0
  %70 = vmatpush.bf16.msra.mxu0 0
  %71 = vmatpush.bf16.msra.mxu0 0
  %72 = vmatpush.bf16.msra.mxu0 0
  %73 = vmatpush.bf16.msra.mxu0 0
  %74 = vmatpush.bf16.msra.mxu0 0
  %75 = vmatpush.bf16.msra.mxu0 %v59
  %76 = vmatmul.bf16.gmra.mxu0 %v63
  %v77 = vpop.f32.mrf.mxu0
  %v78 = vadd.f32 %v28, %v77
  %v79 = vpop.f32.mrf.mxu0
  %v80 = vadd.f32 %v33, %v79
  %81 = vmatmul.bf16.gmra.mxu0 %v66
  %v82 = vpop.f32.mrf.mxu0
  %v83 = vadd.f32 %v38, %v82
  %v84 = vpop.f32.mrf.mxu0
  %v85 = vadd.f32 %v43, %v84
  %86 = vdwg.mxu0
  %87 = vst [vmem:[%s3] sm:$0xff] %v78
  %88 = vst [vmem:[%s3 + $0x8] sm:$0xff] %v80
  %89 = vst [vmem:[%s3 + $0x10] sm:$0xff] %v83
  %90 = vst [vmem:[%s3 + $0x18] sm:$0xf] %v85
  // Predicated region
  $region14: #{multitask_yolo_forward.36} parent=0 // pred_check
    _
  $region15: #{multitask_yolo_forward.36} parent=0 // pred_check_branch
    %92 = sbr.rel (0) target = $region17
  $region16: #{multitask_yolo_forward.36} parent=0 // pred_region
    _
  $region17: #{multitask_yolo_forward.36} parent=0 // pred_fallthru
    _
  // Predicated region
  $region18: #{multitask_yolo_forward.36} parent=0 // pred_check
    _
  $region19: #{multitask_yolo_forward.36} parent=0 // pred_check_branch
    %94 = sbr.rel (0) target = $region21
  $region20: #{multitask_yolo_forward.36} parent=0 // pred_region
    _
  $region21: #{multitask_yolo_forward.36} parent=0 // pred_fallthru
    _

</llo_original>
